<compile_context>
chip_gen: v6e
topology: v6e:2x2x1
jax: 0.10.0
libtpu: 0.0.40
codegen_flags: <defaults>
</compile_context>

<pallas_src>
import functools

import jax
import jax.numpy as jnp
from jax import lax
from jax.experimental import pallas as pl
from jax.experimental.pallas import tpu as pltpu

EPS = 1e-5
# Explicit scoped-VMEM limit (perf-review item: v5e default is only 16 MiB).
# The small example needs far less; raise toward 64-100 MiB (v5e/v6e) for the
# real 16384-channel module, keep <= ~48 MiB on v7x (64 MiB physical per TC).
VMEM_LIMIT = 32 * 1024 * 1024


# ---------------------------------------------------------------------------
# Pass 1: tiled matmul + per-channel BatchNorm statistics (sum, sum of squares)
# ---------------------------------------------------------------------------
def _matmul_stats_kernel(x_ref, w_ref, y_ref, s_ref, ss_ref, acc_ref):
    """Grid = (N tiles, M tiles, K tiles); K innermost (reduction), N outermost.

    x_ref  : (tm, tk) bf16  activation tile (channels-last)
    w_ref  : (tk, tn) bf16  pre-transposed weight tile (C_in, C_out) — no .T here
    y_ref  : (tm, tn) f32   conv output tile (written on last K step)
    s_ref  : (1, tn)  f32   per-out-channel sum       (resident across M and K)
    ss_ref : (1, tn)  f32   per-out-channel sum(y^2)  (resident across M and K)
    acc_ref: (tm, tn) f32   VMEM accumulator scratch
    """
    m = pl.program_id(1)
    k = pl.program_id(2)
    last_k = k == pl.num_programs(2) - 1

    @pl.when(k == 0)
    def _():
        acc_ref[...] = jnp.zeros_like(acc_ref)

    # bf16 x bf16 -> f32 accumulation on the MXU.  Conv bias intentionally
    # omitted: training-mode BN mean-subtraction cancels it exactly.
    acc_ref[...] += jnp.dot(x_ref[...], w_ref[...],
                            preferred_element_type=jnp.float32)

    @pl.when(jnp.logical_and(last_k, m == 0))
    def _():
        s_ref[...] = jnp.zeros_like(s_ref)
        ss_ref[...] = jnp.zeros_like(ss_ref)

    @pl.when(last_k)
    def _():
        y = acc_ref[...]
        y_ref[...] = y
        s_ref[...] += jnp.sum(y, axis=0, keepdims=True)
        ss_ref[...] += jnp.sum(y * y, axis=0, keepdims=True)


def _matmul_bn_stats(x_bf16, w_t_bf16, *, tm, tn, tk):
    M, K = x_bf16.shape
    _, N = w_t_bf16.shape
    grid = (N // tn, M // tm, K // tk)
    return pl.pallas_call(
        _matmul_stats_kernel,
        out_shape=(jax.ShapeDtypeStruct((M, N), jnp.float32),
                   jax.ShapeDtypeStruct((1, N), jnp.float32),
                   jax.ShapeDtypeStruct((1, N), jnp.float32)),
        grid_spec=pltpu.PrefetchScalarGridSpec(
            num_scalar_prefetch=0,
            grid=grid,
            in_specs=[
                pl.BlockSpec((tm, tk), lambda n, m, k: (m, k)),
                pl.BlockSpec((tk, tn), lambda n, m, k: (k, n)),
            ],
            out_specs=[
                pl.BlockSpec((tm, tn), lambda n, m, k: (m, n)),
                pl.BlockSpec((1, tn), lambda n, m, k: (0, n)),
                pl.BlockSpec((1, tn), lambda n, m, k: (0, n)),
            ],
            scratch_shapes=[pltpu.VMEM((tm, tn), jnp.float32)],
        ),
        compiler_params=pltpu.CompilerParams(
            dimension_semantics=("parallel", "arbitrary", "arbitrary"),
            vmem_limit_bytes=VMEM_LIMIT,
        ),
    )(x_bf16, w_t_bf16)


# ---------------------------------------------------------------------------
# Pass 2: streamed normalize + activation (fused BN epilogue: y*scale + shift)
# ---------------------------------------------------------------------------
def _norm_act_kernel(y_ref, scale_ref, shift_ref, o_ref, *, act):
    yn = y_ref[...] * scale_ref[...] + shift_ref[...]     # single FMA pass
    if act == "relu":
        o_ref[...] = jnp.maximum(yn, 0.0).astype(o_ref.dtype)
    else:  # sigmoid (EUP)
        o_ref[...] = jax.nn.sigmoid(yn).astype(o_ref.dtype)


def _normalize_act(y, scale, shift, *, act, out_dtype, tm, tn):
    M, N = y.shape
    kernel = functools.partial(_norm_act_kernel, act=act)
    return pl.pallas_call(
        kernel,
        out_shape=jax.ShapeDtypeStruct((M, N), out_dtype),
        grid_spec=pltpu.PrefetchScalarGridSpec(
            num_scalar_prefetch=0,
            grid=(M // tm, N // tn),
            in_specs=[
                pl.BlockSpec((tm, tn), lambda m, n: (m, n)),
                pl.BlockSpec((1, tn), lambda m, n: (0, n)),
                pl.BlockSpec((1, tn), lambda m, n: (0, n)),
            ],
            out_specs=pl.BlockSpec((tm, tn), lambda m, n: (m, n)),
        ),
        compiler_params=pltpu.CompilerParams(
            dimension_semantics=("parallel", "parallel"),
            vmem_limit_bytes=VMEM_LIMIT,
        ),
    )(y, scale, shift)


# ---------------------------------------------------------------------------
# Layer wrapper + full forward
# ---------------------------------------------------------------------------
def _pick_tile(dim, pref):
    if dim <= pref:          # full dimension as a single block
        return dim
    assert dim % pref == 0, (dim, pref)
    return pref


def conv_bn_act(x_bf16, w_oc_ic, gamma, beta, *, act, out_dtype,
                tm=256, tn=256, tk=256):
    """One layer: act(BatchNorm2d_train(conv1x1(x))) on a channels-last view.

    x_bf16  : (M, C_in) bf16 activations
    w_oc_ic : (C_out, C_in) f32 conv weight, PyTorch layout
    gamma, beta : (C_out,) f32 BN affine parameters
    """
    M, K = x_bf16.shape
    N = w_oc_ic.shape[0]
    tm = _pick_tile(M, tm)
    tn = _pick_tile(N, tn)
    tk = _pick_tile(K, tk)

    # Pre-transpose to (C_in, C_out) and cast to bf16 in the wrapper: pure
    # layout plumbing — keeps per-step XLU transposes out of the kernel.
    w_t = w_oc_ic.T.astype(jnp.bfloat16)

    y, s, ss = _matmul_bn_stats(x_bf16, w_t, tm=tm, tn=tn, tk=tk)

    # Training-mode BatchNorm2d: batch mean, biased variance, eps=1e-5.
    # O(C_out) scalar math — plain f32 JAX.
    # TODO(synk): single-pass E[y^2]-mean^2 can cancel for huge activations;
    # switch to a shifted two-pass accumulation if that regime matters.
    mean = s[0] / M
    var = jnp.maximum(ss[0] / M - mean * mean, 0.0)
    scale = gamma * lax.rsqrt(var + EPS)                  # (C_out,)
    shift = beta - mean * scale                           # conv bias cancels here
    return _normalize_act(y, scale.reshape(1, N), shift.reshape(1, N),
                          act=act, out_dtype=out_dtype, tm=tm, tn=tn)


def move_analyser_forward(x_nchw, params):
    """Forward of MoveAnalyser. x_nchw: (B, C_in, H, W) f32.
    Returns (B, C3*H*W), matching `torch.reshape(out, [len(x), -1])`."""
    B, C, H, W = x_nchw.shape
    # NCHW -> channels-last (M, C_in).
    # TODO(synk): at production scale (C_in = 8192*2) fold this layout change
    # into layer 1 (e.g. compute W @ X per batch) to avoid an extra mem-bound
    # HBM round trip outside the Pallas pipeline (perf-review item).
    x2d = jnp.transpose(x_nchw, (0, 2, 3, 1)).reshape(B * H * W, C)
    h = x2d.astype(jnp.bfloat16)      # bf16 MXU inputs; accumulation/BN in f32

    # Conv biases (params["b*"]) are deliberately NOT consumed by the kernels —
    # training-mode BN cancels them (verified against the f32 reference below).
    h = conv_bn_act(h, params["w1"], params["g1"], params["be1"],
                    act="relu", out_dtype=jnp.bfloat16)
    h = conv_bn_act(h, params["w2"], params["g2"], params["be2"],
                    act="relu", out_dtype=jnp.bfloat16)
    out = conv_bn_act(h, params["w3"], params["g3"], params["be3"],
                      act="sigmoid", out_dtype=jnp.float32)       # (M, C3)

    C3 = out.shape[1]
    # (M, C3) -> (B, C3, H, W) -> (B, C3*H*W).  Tiny (C3=4), negligible cost.
    return out.reshape(B, H, W, C3).transpose(0, 3, 1, 2).reshape(B, -1)


# ---------------------------------------------------------------------------
# References and parameters
# ---------------------------------------------------------------------------
def _reference_f32(x_nchw, params):
    """Exact PyTorch semantics: f32, conv bias included, training-mode BN."""
    B, C, H, W = x_nchw.shape
    h = jnp.transpose(x_nchw, (0, 2, 3, 1)).reshape(B * H * W, C)

    def layer(h, w, b, g, be, act):
        y = h @ w.T + b
        mean = jnp.mean(y, axis=0)
        var = jnp.mean((y - mean) ** 2, axis=0)
        yn = (y - mean) / jnp.sqrt(var + EPS) * g + be
        return jnp.maximum(yn, 0.0) if act == "relu" else jax.nn.sigmoid(yn)

    h = layer(h, params["w1"], params["b1"], params["g1"], params["be1"], "relu")
    h = layer(h, params["w2"], params["b2"], params["g2"], params["be2"], "relu")
    h = layer(h, params["w3"], params["b3"], params["g3"], params["be3"], "sigmoid")
    C3 = h.shape[1]
    return h.reshape(B, H, W, C3).transpose(0, 3, 1, 2).reshape(B, -1)


def _reference_matched(x_nchw, params):
    """Same mixed-precision policy as the Pallas path (bf16 matmul inputs,
    f32 accumulation/BN, bias omitted since BN cancels it)."""
    B, C, H, W = x_nchw.shape
    h = jnp.transpose(x_nchw, (0, 2, 3, 1)).reshape(B * H * W, C)
    h = h.astype(jnp.bfloat16)

    def layer(h, w, g, be, act, out_dtype):
        y = jnp.dot(h, w.T.astype(jnp.bfloat16),
                    preferred_element_type=jnp.float32)
        mean = jnp.mean(y, axis=0)
        var = jnp.maximum(jnp.mean(y * y, axis=0) - mean * mean, 0.0)
        scale = g * lax.rsqrt(var + EPS)
        yn = y * scale + (be - mean * scale)
        a = jnp.maximum(yn, 0.0) if act == "relu" else jax.nn.sigmoid(yn)
        return a.astype(out_dtype)

    h = layer(h, params["w1"], params["g1"], params["be1"], "relu", jnp.bfloat16)
    h = layer(h, params["w2"], params["g2"], params["be2"], "relu", jnp.bfloat16)
    h = layer(h, params["w3"], params["g3"], params["be3"], "sigmoid", jnp.float32)
    C3 = h.shape[1]
    return h.reshape(B, H, W, C3).transpose(0, 3, 1, 2).reshape(B, -1)


def make_params(key, c_in, widths):
    """Deterministic synthetic parameters in PyTorch layout (w: (C_out, C_in))."""
    chans = (c_in,) + tuple(widths)
    ks = jax.random.split(key, 3)
    p = {}
    for i in range(3):
        cin, cout = chans[i], chans[i + 1]
        kw, kb = jax.random.split(ks[i])
        name = str(i + 1)
        p["w" + name] = jax.random.normal(kw, (cout, cin), jnp.float32) / jnp.sqrt(cin)
        p["b" + name] = jax.random.normal(kb, (cout,), jnp.float32) * 0.01
        p["g" + name] = 1.0 + 0.01 * jnp.cos(jnp.arange(cout, dtype=jnp.float32) * (0.1 + i))
        p["be" + name] = 0.01 * jnp.sin(jnp.arange(cout, dtype=jnp.float32) * (0.2 + i))
    return p


if __name__ == "__main__":
    # Small shapes consistent with the module: channel stack 8192*2->1024->128->4
    # scaled down to 512->256->128->4; batch 2, 16x16 spatial (M = 512 rows).
    B, C_IN, H, W = 2, 512, 16, 16
    C1, C2, C3 = 256, 128, 4

    key = jax.random.PRNGKey(0)
    kx, kp = jax.random.split(key)
    x = jax.random.normal(kx, (B, C_IN, H, W), jnp.float32)
    params = make_params(kp, C_IN, (C1, C2, C3))

    out = jax.jit(move_analyser_forward)(x, params)
    out = jax.block_until_ready(out)
    assert out.shape == (B, C3 * H * W)

    # Tight check vs a reference using the same mixed-precision policy.
    ref_m = _reference_matched(x, params)
    assert jnp.allclose(out, ref_m, atol=1e-2, rtol=1e-2), \
        "mismatch vs matched-precision reference"

    # Looser check vs exact f32 PyTorch semantics (with conv bias): differences
    # are only bf16 matmul-input quantization; also demonstrates bias cancellation.
    ref_f = _reference_f32(x, params)
    assert jnp.allclose(out, ref_f, atol=5e-2), "mismatch vs f32 reference"

    print("KERNEL_OK")
</pallas_src>

<mosaic_0001>
module attributes {stable_mosaic.version = 11 : i64} {
  func.func @_matmul_stats_kernel(%arg0: i32, %arg1: i32, %arg2: i32, %arg3: memref<256x256xbf16, #tpu.memory_space<vmem>>, %arg4: memref<256x256xbf16, #tpu.memory_space<vmem>>, %arg5: memref<256x256xf32, #tpu.memory_space<vmem>>, %arg6: memref<1x256xf32, #tpu.memory_space<vmem>>, %arg7: memref<1x256xf32, #tpu.memory_space<vmem>>, %arg8: memref<256x256xf32, #tpu.memory_space<vmem>>) attributes {dimension_semantics = [#tpu.dimension_semantics<parallel>, #tpu.dimension_semantics<arbitrary>, #tpu.dimension_semantics<arbitrary>], iteration_bounds = array<i64: 1, 2, 2>, scalar_prefetch = 0 : i64, scratch_operands = 1 : i64, tpu.core_type = #tpu.core_type<tc>, window_params = [{transform_indices = @transform_0, window_bounds = array<i64: 256, 256>}, {transform_indices = @transform_1, window_bounds = array<i64: 256, 256>}, {transform_indices = @transform_2, window_bounds = array<i64: 256, 256>}, {transform_indices = @transform_3, window_bounds = array<i64: 1, 256>}, {transform_indices = @transform_4, window_bounds = array<i64: 1, 256>}]} {
    %c1_i32 = arith.constant 1 : i32
    %0 = arith.cmpi eq, %arg2, %c1_i32 : i32
    %c0_i32 = arith.constant 0 : i32
    %1 = arith.cmpi eq, %arg2, %c0_i32 : i32
    %2 = arith.extui %1 : i1 to i32
    %c0_i32_0 = arith.constant 0 : i32
    %3 = arith.cmpi ne, %2, %c0_i32_0 : i32
    scf.if %3 {
      %cst_11 = arith.constant 0.000000e+00 : f32
      %16 = vector.broadcast %cst_11 : f32 to vector<256x256xf32>
      %c0_12 = arith.constant 0 : index
      %c0_13 = arith.constant 0 : index
      %17 = vector.load %arg8[%c0_12, %c0_13] : memref<256x256xf32, #tpu.memory_space<vmem>>, vector<256x256xf32>
      tpu.vector_store %arg8[%c0_12, %c0_13], %16 {strides = array<i32>} : memref<256x256xf32, #tpu.memory_space<vmem>>, vector<256x256xf32>,
    } else {
    }
    %c0 = arith.constant 0 : index
    %c0_1 = arith.constant 0 : index
    %4 = vector.load %arg8[%c0, %c0_1] : memref<256x256xf32, #tpu.memory_space<vmem>>, vector<256x256xf32>
    %c0_2 = arith.constant 0 : index
    %c0_3 = arith.constant 0 : index
    %5 = vector.load %arg3[%c0_2, %c0_3] : memref<256x256xbf16, #tpu.memory_space<vmem>>, vector<256x256xbf16>
    %c0_4 = arith.constant 0 : index
    %c0_5 = arith.constant 0 : index
    %6 = vector.load %arg4[%c0_4, %c0_5] : memref<256x256xbf16, #tpu.memory_space<vmem>>, vector<256x256xbf16>
    %cst = arith.constant dense<0.000000e+00> : vector<256x256xf32>
    %7 = tpu.matmul %5, %6, %cst {dimension_numbers = #tpu.dot_dimension_numbers<[1], [0], [0], [1], [0, 0, 1, 1], [], []>} : vector<256x256xbf16>, vector<256x256xbf16>, vector<256x256xf32> -> vector<256x256xf32>
    %8 = arith.addf %4, %7 : vector<256x256xf32>
    %c0_6 = arith.constant 0 : index
    %c0_7 = arith.constant 0 : index
    %9 = vector.load %arg8[%c0_6, %c0_7] : memref<256x256xf32, #tpu.memory_space<vmem>>, vector<256x256xf32>
    tpu.vector_store %arg8[%c0_6, %c0_7], %8 {strides = array<i32>} : memref<256x256xf32, #tpu.memory_space<vmem>>, vector<256x256xf32>,
    %c0_i32_8 = arith.constant 0 : i32
    %10 = arith.cmpi eq, %arg1, %c0_i32_8 : i32
    %11 = arith.andi %0, %10 : i1
    %12 = arith.extui %11 : i1 to i32
    %c0_i32_9 = arith.constant 0 : i32
    %13 = arith.cmpi ne, %12, %c0_i32_9 : i32
    scf.if %13 {
      %cst_11 = arith.constant 0.000000e+00 : f32
      %16 = vector.broadcast %cst_11 : f32 to vector<1x256xf32>
      %c0_12 = arith.constant 0 : index
      %c0_13 = arith.constant 0 : index
      %17 = vector.load %arg6[%c0_12, %c0_13] : memref<1x256xf32, #tpu.memory_space<vmem>>, vector<1x256xf32>
      tpu.vector_store %arg6[%c0_12, %c0_13], %16 {strides = array<i32>} : memref<1x256xf32, #tpu.memory_space<vmem>>, vector<1x256xf32>,
      %cst_14 = arith.constant 0.000000e+00 : f32
      %18 = vector.broadcast %cst_14 : f32 to vector<1x256xf32>
      %c0_15 = arith.constant 0 : index
      %c0_16 = arith.constant 0 : index
      %19 = vector.load %arg7[%c0_15, %c0_16] : memref<1x256xf32, #tpu.memory_space<vmem>>, vector<1x256xf32>
      tpu.vector_store %arg7[%c0_15, %c0_16], %18 {strides = array<i32>} : memref<1x256xf32, #tpu.memory_space<vmem>>, vector<1x256xf32>,
    } else {
    }
    %14 = arith.extui %0 : i1 to i32
    %c0_i32_10 = arith.constant 0 : i32
    %15 = arith.cmpi ne, %14, %c0_i32_10 : i32
    scf.if %15 {
      %c0_11 = arith.constant 0 : index
      %c0_12 = arith.constant 0 : index
      %16 = vector.load %arg8[%c0_11, %c0_12] : memref<256x256xf32, #tpu.memory_space<vmem>>, vector<256x256xf32>
      %c0_13 = arith.constant 0 : index
      %c0_14 = arith.constant 0 : index
      %17 = vector.load %arg5[%c0_13, %c0_14] : memref<256x256xf32, #tpu.memory_space<vmem>>, vector<256x256xf32>
      tpu.vector_store %arg5[%c0_13, %c0_14], %16 {strides = array<i32>} : memref<256x256xf32, #tpu.memory_space<vmem>>, vector<256x256xf32>,
      %c0_15 = arith.constant 0 : index
      %c0_16 = arith.constant 0 : index
      %18 = vector.load %arg6[%c0_15, %c0_16] : memref<1x256xf32, #tpu.memory_space<vmem>>, vector<1x256xf32>
      %cst_17 = arith.constant dense<0.000000e+00> : vector<256xf32>
      %19 = vector.multi_reduction <add>, %16, %cst_17 [0] : vector<256x256xf32> to vector<256xf32>
      %20 = vector.shape_cast %19 : vector<256xf32> to vector<1x256xf32>
      %21 = arith.addf %18, %20 : vector<1x256xf32>
      %c0_18 = arith.constant 0 : index
      %c0_19 = arith.constant 0 : index
      %22 = vector.load %arg6[%c0_18, %c0_19] : memref<1x256xf32, #tpu.memory_space<vmem>>, vector<1x256xf32>
      tpu.vector_store %arg6[%c0_18, %c0_19], %21 {strides = array<i32>} : memref<1x256xf32, #tpu.memory_space<vmem>>, vector<1x256xf32>,
      %c0_20 = arith.constant 0 : index
      %c0_21 = arith.constant 0 : index
      %23 = vector.load %arg7[%c0_20, %c0_21] : memref<1x256xf32, #tpu.memory_space<vmem>>, vector<1x256xf32>
      %24 = arith.mulf %16, %16 : vector<256x256xf32>
      %cst_22 = arith.constant dense<0.000000e+00> : vector<256xf32>
      %25 = vector.multi_reduction <add>, %24, %cst_22 [0] : vector<256x256xf32> to vector<256xf32>
      %26 = vector.shape_cast %25 : vector<256xf32> to vector<1x256xf32>
      %27 = arith.addf %23, %26 : vector<1x256xf32>
      %c0_23 = arith.constant 0 : index
      %c0_24 = arith.constant 0 : index
      %28 = vector.load %arg7[%c0_23, %c0_24] : memref<1x256xf32, #tpu.memory_space<vmem>>, vector<1x256xf32>
      tpu.vector_store %arg7[%c0_23, %c0_24], %27 {strides = array<i32>} : memref<1x256xf32, #tpu.memory_space<vmem>>, vector<1x256xf32>,
    } else {
    }
    return
  }
  func.func @transform_0(%arg0: i32, %arg1: i32, %arg2: i32) -> (i32, i32) {
    %c0_i32 = arith.constant 0 : i32
    return %arg1, %arg2 : i32, i32
  }
  func.func @transform_1(%arg0: i32, %arg1: i32, %arg2: i32) -> (i32, i32) {
    %c0_i32 = arith.constant 0 : i32
    return %arg2, %arg0 : i32, i32
  }
  func.func @transform_2(%arg0: i32, %arg1: i32, %arg2: i32) -> (i32, i32) {
    %c0_i32 = arith.constant 0 : i32
    return %arg1, %arg0 : i32, i32
  }
  func.func @transform_3(%arg0: i32, %arg1: i32, %arg2: i32) -> (i32, i32) {
    %c0_i32 = arith.constant 0 : i32
    %c0_i32_0 = arith.constant 0 : i32
    return %c0_i32, %arg0 : i32, i32
  }
  func.func @transform_4(%arg0: i32, %arg1: i32, %arg2: i32) -> (i32, i32) {
    %c0_i32 = arith.constant 0 : i32
    %c0_i32_0 = arith.constant 0 : i32
    return %c0_i32, %arg0 : i32, i32
  }
}

module attributes {stable_mosaic.version = 11 : i64} {
  func.func @_norm_act_kernel(%arg0: i32, %arg1: i32, %arg2: memref<256x256xf32, #tpu.memory_space<vmem>>, %arg3: memref<1x256xf32, #tpu.memory_space<vmem>>, %arg4: memref<1x256xf32, #tpu.memory_space<vmem>>, %arg5: memref<256x256xbf16, #tpu.memory_space<vmem>>) attributes {dimension_semantics = [#tpu.dimension_semantics<parallel>, #tpu.dimension_semantics<parallel>], iteration_bounds = array<i64: 2, 1>, scalar_prefetch = 0 : i64, scratch_operands = 0 : i64, tpu.core_type = #tpu.core_type<tc>, window_params = [{transform_indices = @transform_0, window_bounds = array<i64: 256, 256>}, {transform_indices = @transform_1, window_bounds = array<i64: 1, 256>}, {transform_indices = @transform_2, window_bounds = array<i64: 1, 256>}, {transform_indices = @transform_3, window_bounds = array<i64: 256, 256>}]} {
    %c0 = arith.constant 0 : index
    %c0_0 = arith.constant 0 : index
    %0 = vector.load %arg2[%c0, %c0_0] : memref<256x256xf32, #tpu.memory_space<vmem>>, vector<256x256xf32>
    %c0_1 = arith.constant 0 : index
    %c0_2 = arith.constant 0 : index
    %1 = vector.load %arg3[%c0_1, %c0_2] : memref<1x256xf32, #tpu.memory_space<vmem>>, vector<1x256xf32>
    %2 = vector.broadcast %1 : vector<1x256xf32> to vector<256x256xf32>
    %3 = arith.mulf %0, %2 : vector<256x256xf32>
    %c0_3 = arith.constant 0 : index
    %c0_4 = arith.constant 0 : index
    %4 = vector.load %arg4[%c0_3, %c0_4] : memref<1x256xf32, #tpu.memory_space<vmem>>, vector<1x256xf32>
    %5 = vector.broadcast %4 : vector<1x256xf32> to vector<256x256xf32>
    %6 = arith.addf %3, %5 : vector<256x256xf32>
    %cst = arith.constant 0.000000e+00 : f32
    %7 = vector.broadcast %cst : f32 to vector<256x256xf32>
    %8 = arith.maximumf %6, %7 : vector<256x256xf32>
    %9 = arith.truncf %8 : vector<256x256xf32> to vector<256x256xbf16>
    %c0_5 = arith.constant 0 : index
    %c0_6 = arith.constant 0 : index
    %10 = vector.load %arg5[%c0_5, %c0_6] : memref<256x256xbf16, #tpu.memory_space<vmem>>, vector<256x256xbf16>
    tpu.vector_store %arg5[%c0_5, %c0_6], %9 {strides = array<i32>} : memref<256x256xbf16, #tpu.memory_space<vmem>>, vector<256x256xbf16>,
    return
  }
  func.func @transform_0(%arg0: i32, %arg1: i32) -> (i32, i32) {
    %c0_i32 = arith.constant 0 : i32
    return %arg0, %arg1 : i32, i32
  }
  func.func @transform_1(%arg0: i32, %arg1: i32) -> (i32, i32) {
    %c0_i32 = arith.constant 0 : i32
    %c0_i32_0 = arith.constant 0 : i32
    return %c0_i32, %arg1 : i32, i32
  }
  func.func @transform_2(%arg0: i32, %arg1: i32) -> (i32, i32) {
    %c0_i32 = arith.constant 0 : i32
    %c0_i32_0 = arith.constant 0 : i32
    return %c0_i32, %arg1 : i32, i32
  }
  func.func @transform_3(%arg0: i32, %arg1: i32) -> (i32, i32) {
    %c0_i32 = arith.constant 0 : i32
    return %arg0, %arg1 : i32, i32
  }
}

module attributes {stable_mosaic.version = 11 : i64} {
  func.func @_matmul_stats_kernel(%arg0: i32, %arg1: i32, %arg2: i32, %arg3: memref<256x256xbf16, #tpu.memory_space<vmem>>, %arg4: memref<256x128xbf16, #tpu.memory_space<vmem>>, %arg5: memref<256x128xf32, #tpu.memory_space<vmem>>, %arg6: memref<1x128xf32, #tpu.memory_space<vmem>>, %arg7: memref<1x128xf32, #tpu.memory_space<vmem>>, %arg8: memref<256x128xf32, #tpu.memory_space<vmem>>) attributes {dimension_semantics = [#tpu.dimension_semantics<parallel>, #tpu.dimension_semantics<arbitrary>, #tpu.dimension_semantics<arbitrary>], iteration_bounds = array<i64: 1, 2, 1>, scalar_prefetch = 0 : i64, scratch_operands = 1 : i64, tpu.core_type = #tpu.core_type<tc>, window_params = [{transform_indices = @transform_0, window_bounds = array<i64: 256, 256>}, {transform_indices = @transform_1, window_bounds = array<i64: 256, 128>}, {transform_indices = @transform_2, window_bounds = array<i64: 256, 128>}, {transform_indices = @transform_3, window_bounds = array<i64: 1, 128>}, {transform_indices = @transform_4, window_bounds = array<i64: 1, 128>}]} {
    %c0_i32 = arith.constant 0 : i32
    %0 = arith.cmpi eq, %arg2, %c0_i32 : i32
    %c0_i32_0 = arith.constant 0 : i32
    %1 = arith.cmpi eq, %arg2, %c0_i32_0 : i32
    %2 = arith.extui %1 : i1 to i32
    %c0_i32_1 = arith.constant 0 : i32
    %3 = arith.cmpi ne, %2, %c0_i32_1 : i32
    scf.if %3 {
      %cst_12 = arith.constant 0.000000e+00 : f32
      %16 = vector.broadcast %cst_12 : f32 to vector<256x128xf32>
      %c0_13 = arith.constant 0 : index
      %c0_14 = arith.constant 0 : index
      %17 = vector.load %arg8[%c0_13, %c0_14] : memref<256x128xf32, #tpu.memory_space<vmem>>, vector<256x128xf32>
      tpu.vector_store %arg8[%c0_13, %c0_14], %16 {strides = array<i32>} : memref<256x128xf32, #tpu.memory_space<vmem>>, vector<256x128xf32>,
    } else {
    }
    %c0 = arith.constant 0 : index
    %c0_2 = arith.constant 0 : index
    %4 = vector.load %arg8[%c0, %c0_2] : memref<256x128xf32, #tpu.memory_space<vmem>>, vector<256x128xf32>
    %c0_3 = arith.constant 0 : index
    %c0_4 = arith.constant 0 : index
    %5 = vector.load %arg3[%c0_3, %c0_4] : memref<256x256xbf16, #tpu.memory_space<vmem>>, vector<256x256xbf16>
    %c0_5 = arith.constant 0 : index
    %c0_6 = arith.constant 0 : index
    %6 = vector.load %arg4[%c0_5, %c0_6] : memref<256x128xbf16, #tpu.memory_space<vmem>>, vector<256x128xbf16>
    %cst = arith.constant dense<0.000000e+00> : vector<256x128xf32>
    %7 = tpu.matmul %5, %6, %cst {dimension_numbers = #tpu.dot_dimension_numbers<[1], [0], [0], [1], [0, 0, 1, 1], [], []>} : vector<256x256xbf16>, vector<256x128xbf16>, vector<256x128xf32> -> vector<256x128xf32>
    %8 = arith.addf %4, %7 : vector<256x128xf32>
    %c0_7 = arith.constant 0 : index
    %c0_8 = arith.constant 0 : index
    %9 = vector.load %arg8[%c0_7, %c0_8] : memref<256x128xf32, #tpu.memory_space<vmem>>, vector<256x128xf32>
    tpu.vector_store %arg8[%c0_7, %c0_8], %8 {strides = array<i32>} : memref<256x128xf32, #tpu.memory_space<vmem>>, vector<256x128xf32>,
    %c0_i32_9 = arith.constant 0 : i32
    %10 = arith.cmpi eq, %arg1, %c0_i32_9 : i32
    %11 = arith.andi %0, %10 : i1
    %12 = arith.extui %11 : i1 to i32
    %c0_i32_10 = arith.constant 0 : i32
    %13 = arith.cmpi ne, %12, %c0_i32_10 : i32
    scf.if %13 {
      %cst_12 = arith.constant 0.000000e+00 : f32
      %16 = vector.broadcast %cst_12 : f32 to vector<1x128xf32>
      %c0_13 = arith.constant 0 : index
      %c0_14 = arith.constant 0 : index
      %17 = vector.load %arg6[%c0_13, %c0_14] : memref<1x128xf32, #tpu.memory_space<vmem>>, vector<1x128xf32>
      tpu.vector_store %arg6[%c0_13, %c0_14], %16 {strides = array<i32>} : memref<1x128xf32, #tpu.memory_space<vmem>>, vector<1x128xf32>,
      %cst_15 = arith.constant 0.000000e+00 : f32
      %18 = vector.broadcast %cst_15 : f32 to vector<1x128xf32>
      %c0_16 = arith.constant 0 : index
      %c0_17 = arith.constant 0 : index
      %19 = vector.load %arg7[%c0_16, %c0_17] : memref<1x128xf32, #tpu.memory_space<vmem>>, vector<1x128xf32>
      tpu.vector_store %arg7[%c0_16, %c0_17], %18 {strides = array<i32>} : memref<1x128xf32, #tpu.memory_space<vmem>>, vector<1x128xf32>,
    } else {
    }
    %14 = arith.extui %0 : i1 to i32
    %c0_i32_11 = arith.constant 0 : i32
    %15 = arith.cmpi ne, %14, %c0_i32_11 : i32
    scf.if %15 {
      %c0_12 = arith.constant 0 : index
      %c0_13 = arith.constant 0 : index
      %16 = vector.load %arg8[%c0_12, %c0_13] : memref<256x128xf32, #tpu.memory_space<vmem>>, vector<256x128xf32>
      %c0_14 = arith.constant 0 : index
      %c0_15 = arith.constant 0 : index
      %17 = vector.load %arg5[%c0_14, %c0_15] : memref<256x128xf32, #tpu.memory_space<vmem>>, vector<256x128xf32>
      tpu.vector_store %arg5[%c0_14, %c0_15], %16 {strides = array<i32>} : memref<256x128xf32, #tpu.memory_space<vmem>>, vector<256x128xf32>,
      %c0_16 = arith.constant 0 : index
      %c0_17 = arith.constant 0 : index
      %18 = vector.load %arg6[%c0_16, %c0_17] : memref<1x128xf32, #tpu.memory_space<vmem>>, vector<1x128xf32>
      %cst_18 = arith.constant dense<0.000000e+00> : vector<128xf32>
      %19 = vector.multi_reduction <add>, %16, %cst_18 [0] : vector<256x128xf32> to vector<128xf32>
      %20 = vector.shape_cast %19 : vector<128xf32> to vector<1x128xf32>
      %21 = arith.addf %18, %20 : vector<1x128xf32>
      %c0_19 = arith.constant 0 : index
      %c0_20 = arith.constant 0 : index
      %22 = vector.load %arg6[%c0_19, %c0_20] : memref<1x128xf32, #tpu.memory_space<vmem>>, vector<1x128xf32>
      tpu.vector_store %arg6[%c0_19, %c0_20], %21 {strides = array<i32>} : memref<1x128xf32, #tpu.memory_space<vmem>>, vector<1x128xf32>,
      %c0_21 = arith.constant 0 : index
      %c0_22 = arith.constant 0 : index
      %23 = vector.load %arg7[%c0_21, %c0_22] : memref<1x128xf32, #tpu.memory_space<vmem>>, vector<1x128xf32>
      %24 = arith.mulf %16, %16 : vector<256x128xf32>
      %cst_23 = arith.constant dense<0.000000e+00> : vector<128xf32>
      %25 = vector.multi_reduction <add>, %24, %cst_23 [0] : vector<256x128xf32> to vector<128xf32>
      %26 = vector.shape_cast %25 : vector<128xf32> to vector<1x128xf32>
      %27 = arith.addf %23, %26 : vector<1x128xf32>
      %c0_24 = arith.constant 0 : index
      %c0_25 = arith.constant 0 : index
      %28 = vector.load %arg7[%c0_24, %c0_25] : memref<1x128xf32, #tpu.memory_space<vmem>>, vector<1x128xf32>
      tpu.vector_store %arg7[%c0_24, %c0_25], %27 {strides = array<i32>} : memref<1x128xf32, #tpu.memory_space<vmem>>, vector<1x128xf32>,
    } else {
    }
    return
  }
  func.func @transform_0(%arg0: i32, %arg1: i32, %arg2: i32) -> (i32, i32) {
    %c0_i32 = arith.constant 0 : i32
    return %arg1, %arg2 : i32, i32
  }
  func.func @transform_1(%arg0: i32, %arg1: i32, %arg2: i32) -> (i32, i32) {
    %c0_i32 = arith.constant 0 : i32
    return %arg2, %arg0 : i32, i32
  }
  func.func @transform_2(%arg0: i32, %arg1: i32, %arg2: i32) -> (i32, i32) {
    %c0_i32 = arith.constant 0 : i32
    return %arg1, %arg0 : i32, i32
  }
  func.func @transform_3(%arg0: i32, %arg1: i32, %arg2: i32) -> (i32, i32) {
    %c0_i32 = arith.constant 0 : i32
    %c0_i32_0 = arith.constant 0 : i32
    return %c0_i32, %arg0 : i32, i32
  }
  func.func @transform_4(%arg0: i32, %arg1: i32, %arg2: i32) -> (i32, i32) {
    %c0_i32 = arith.constant 0 : i32
    %c0_i32_0 = arith.constant 0 : i32
    return %c0_i32, %arg0 : i32, i32
  }
}

module attributes {stable_mosaic.version = 11 : i64} {
  func.func @_norm_act_kernel(%arg0: i32, %arg1: i32, %arg2: memref<256x128xf32, #tpu.memory_space<vmem>>, %arg3: memref<1x128xf32, #tpu.memory_space<vmem>>, %arg4: memref<1x128xf32, #tpu.memory_space<vmem>>, %arg5: memref<256x128xbf16, #tpu.memory_space<vmem>>) attributes {dimension_semantics = [#tpu.dimension_semantics<parallel>, #tpu.dimension_semantics<parallel>], iteration_bounds = array<i64: 2, 1>, scalar_prefetch = 0 : i64, scratch_operands = 0 : i64, tpu.core_type = #tpu.core_type<tc>, window_params = [{transform_indices = @transform_0, window_bounds = array<i64: 256, 128>}, {transform_indices = @transform_1, window_bounds = array<i64: 1, 128>}, {transform_indices = @transform_2, window_bounds = array<i64: 1, 128>}, {transform_indices = @transform_3, window_bounds = array<i64: 256, 128>}]} {
    %c0 = arith.constant 0 : index
    %c0_0 = arith.constant 0 : index
    %0 = vector.load %arg2[%c0, %c0_0] : memref<256x128xf32, #tpu.memory_space<vmem>>, vector<256x128xf32>
    %c0_1 = arith.constant 0 : index
    %c0_2 = arith.constant 0 : index
    %1 = vector.load %arg3[%c0_1, %c0_2] : memref<1x128xf32, #tpu.memory_space<vmem>>, vector<1x128xf32>
    %2 = vector.broadcast %1 : vector<1x128xf32> to vector<256x128xf32>
    %3 = arith.mulf %0, %2 : vector<256x128xf32>
    %c0_3 = arith.constant 0 : index
    %c0_4 = arith.constant 0 : index
    %4 = vector.load %arg4[%c0_3, %c0_4] : memref<1x128xf32, #tpu.memory_space<vmem>>, vector<1x128xf32>
    %5 = vector.broadcast %4 : vector<1x128xf32> to vector<256x128xf32>
    %6 = arith.addf %3, %5 : vector<256x128xf32>
    %cst = arith.constant 0.000000e+00 : f32
    %7 = vector.broadcast %cst : f32 to vector<256x128xf32>
    %8 = arith.maximumf %6, %7 : vector<256x128xf32>
    %9 = arith.truncf %8 : vector<256x128xf32> to vector<256x128xbf16>
    %c0_5 = arith.constant 0 : index
    %c0_6 = arith.constant 0 : index
    %10 = vector.load %arg5[%c0_5, %c0_6] : memref<256x128xbf16, #tpu.memory_space<vmem>>, vector<256x128xbf16>
    tpu.vector_store %arg5[%c0_5, %c0_6], %9 {strides = array<i32>} : memref<256x128xbf16, #tpu.memory_space<vmem>>, vector<256x128xbf16>,
    return
  }
  func.func @transform_0(%arg0: i32, %arg1: i32) -> (i32, i32) {
    %c0_i32 = arith.constant 0 : i32
    return %arg0, %arg1 : i32, i32
  }
  func.func @transform_1(%arg0: i32, %arg1: i32) -> (i32, i32) {
    %c0_i32 = arith.constant 0 : i32
    %c0_i32_0 = arith.constant 0 : i32
    return %c0_i32, %arg1 : i32, i32
  }
  func.func @transform_2(%arg0: i32, %arg1: i32) -> (i32, i32) {
    %c0_i32 = arith.constant 0 : i32
    %c0_i32_0 = arith.constant 0 : i32
    return %c0_i32, %arg1 : i32, i32
  }
  func.func @transform_3(%arg0: i32, %arg1: i32) -> (i32, i32) {
    %c0_i32 = arith.constant 0 : i32
    return %arg0, %arg1 : i32, i32
  }
}

module attributes {stable_mosaic.version = 11 : i64} {
  func.func @_matmul_stats_kernel(%arg0: i32, %arg1: i32, %arg2: i32, %arg3: memref<256x128xbf16, #tpu.memory_space<vmem>>, %arg4: memref<128x4xbf16, #tpu.memory_space<vmem>>, %arg5: memref<256x4xf32, #tpu.memory_space<vmem>>, %arg6: memref<1x4xf32, #tpu.memory_space<vmem>>, %arg7: memref<1x4xf32, #tpu.memory_space<vmem>>, %arg8: memref<256x4xf32, #tpu.memory_space<vmem>>) attributes {dimension_semantics = [#tpu.dimension_semantics<parallel>, #tpu.dimension_semantics<arbitrary>, #tpu.dimension_semantics<arbitrary>], iteration_bounds = array<i64: 1, 2, 1>, scalar_prefetch = 0 : i64, scratch_operands = 1 : i64, tpu.core_type = #tpu.core_type<tc>, window_params = [{transform_indices = @transform_0, window_bounds = array<i64: 256, 128>}, {transform_indices = @transform_1, window_bounds = array<i64: 128, 4>}, {transform_indices = @transform_2, window_bounds = array<i64: 256, 4>}, {transform_indices = @transform_3, window_bounds = array<i64: 1, 4>}, {transform_indices = @transform_4, window_bounds = array<i64: 1, 4>}]} {
    %c0_i32 = arith.constant 0 : i32
    %0 = arith.cmpi eq, %arg2, %c0_i32 : i32
    %c0_i32_0 = arith.constant 0 : i32
    %1 = arith.cmpi eq, %arg2, %c0_i32_0 : i32
    %2 = arith.extui %1 : i1 to i32
    %c0_i32_1 = arith.constant 0 : i32
    %3 = arith.cmpi ne, %2, %c0_i32_1 : i32
    scf.if %3 {
      %cst_12 = arith.constant 0.000000e+00 : f32
      %16 = vector.broadcast %cst_12 : f32 to vector<256x4xf32>
      %c0_13 = arith.constant 0 : index
      %c0_14 = arith.constant 0 : index
      %17 = vector.load %arg8[%c0_13, %c0_14] : memref<256x4xf32, #tpu.memory_space<vmem>>, vector<256x4xf32>
      tpu.vector_store %arg8[%c0_13, %c0_14], %16 {strides = array<i32>} : memref<256x4xf32, #tpu.memory_space<vmem>>, vector<256x4xf32>,
    } else {
    }
    %c0 = arith.constant 0 : index
    %c0_2 = arith.constant 0 : index
    %4 = vector.load %arg8[%c0, %c0_2] : memref<256x4xf32, #tpu.memory_space<vmem>>, vector<256x4xf32>
    %c0_3 = arith.constant 0 : index
    %c0_4 = arith.constant 0 : index
    %5 = vector.load %arg3[%c0_3, %c0_4] : memref<256x128xbf16, #tpu.memory_space<vmem>>, vector<256x128xbf16>
    %c0_5 = arith.constant 0 : index
    %c0_6 = arith.constant 0 : index
    %6 = vector.load %arg4[%c0_5, %c0_6] : memref<128x4xbf16, #tpu.memory_space<vmem>>, vector<128x4xbf16>
    %cst = arith.constant dense<0.000000e+00> : vector<256x4xf32>
    %7 = tpu.matmul %5, %6, %cst {dimension_numbers = #tpu.dot_dimension_numbers<[1], [0], [0], [1], [0, 0, 1, 1], [], []>} : vector<256x128xbf16>, vector<128x4xbf16>, vector<256x4xf32> -> vector<256x4xf32>
    %8 = arith.addf %4, %7 : vector<256x4xf32>
    %c0_7 = arith.constant 0 : index
    %c0_8 = arith.constant 0 : index
    %9 = vector.load %arg8[%c0_7, %c0_8] : memref<256x4xf32, #tpu.memory_space<vmem>>, vector<256x4xf32>
    tpu.vector_store %arg8[%c0_7, %c0_8], %8 {strides = array<i32>} : memref<256x4xf32, #tpu.memory_space<vmem>>, vector<256x4xf32>,
    %c0_i32_9 = arith.constant 0 : i32
    %10 = arith.cmpi eq, %arg1, %c0_i32_9 : i32
    %11 = arith.andi %0, %10 : i1
    %12 = arith.extui %11 : i1 to i32
    %c0_i32_10 = arith.constant 0 : i32
    %13 = arith.cmpi ne, %12, %c0_i32_10 : i32
    scf.if %13 {
      %cst_12 = arith.constant 0.000000e+00 : f32
      %16 = vector.broadcast %cst_12 : f32 to vector<1x4xf32>
      %c0_13 = arith.constant 0 : index
      %c0_14 = arith.constant 0 : index
      %17 = vector.load %arg6[%c0_13, %c0_14] : memref<1x4xf32, #tpu.memory_space<vmem>>, vector<1x4xf32>
      tpu.vector_store %arg6[%c0_13, %c0_14], %16 {strides = array<i32>} : memref<1x4xf32, #tpu.memory_space<vmem>>, vector<1x4xf32>,
      %cst_15 = arith.constant 0.000000e+00 : f32
      %18 = vector.broadcast %cst_15 : f32 to vector<1x4xf32>
      %c0_16 = arith.constant 0 : index
      %c0_17 = arith.constant 0 : index
      %19 = vector.load %arg7[%c0_16, %c0_17] : memref<1x4xf32, #tpu.memory_space<vmem>>, vector<1x4xf32>
      tpu.vector_store %arg7[%c0_16, %c0_17], %18 {strides = array<i32>} : memref<1x4xf32, #tpu.memory_space<vmem>>, vector<1x4xf32>,
    } else {
    }
    %14 = arith.extui %0 : i1 to i32
    %c0_i32_11 = arith.constant 0 : i32
    %15 = arith.cmpi ne, %14, %c0_i32_11 : i32
    scf.if %15 {
      %c0_12 = arith.constant 0 : index
      %c0_13 = arith.constant 0 : index
      %16 = vector.load %arg8[%c0_12, %c0_13] : memref<256x4xf32, #tpu.memory_space<vmem>>, vector<256x4xf32>
      %c0_14 = arith.constant 0 : index
      %c0_15 = arith.constant 0 : index
      %17 = vector.load %arg5[%c0_14, %c0_15] : memref<256x4xf32, #tpu.memory_space<vmem>>, vector<256x4xf32>
      tpu.vector_store %arg5[%c0_14, %c0_15], %16 {strides = array<i32>} : memref<256x4xf32, #tpu.memory_space<vmem>>, vector<256x4xf32>,
      %c0_16 = arith.constant 0 : index
      %c0_17 = arith.constant 0 : index
      %18 = vector.load %arg6[%c0_16, %c0_17] : memref<1x4xf32, #tpu.memory_space<vmem>>, vector<1x4xf32>
      %cst_18 = arith.constant dense<0.000000e+00> : vector<4xf32>
      %19 = vector.multi_reduction <add>, %16, %cst_18 [0] : vector<256x4xf32> to vector<4xf32>
      %20 = vector.shape_cast %19 : vector<4xf32> to vector<1x4xf32>
      %21 = arith.addf %18, %20 : vector<1x4xf32>
      %c0_19 = arith.constant 0 : index
      %c0_20 = arith.constant 0 : index
      %22 = vector.load %arg6[%c0_19, %c0_20] : memref<1x4xf32, #tpu.memory_space<vmem>>, vector<1x4xf32>
      tpu.vector_store %arg6[%c0_19, %c0_20], %21 {strides = array<i32>} : memref<1x4xf32, #tpu.memory_space<vmem>>, vector<1x4xf32>,
      %c0_21 = arith.constant 0 : index
      %c0_22 = arith.constant 0 : index
      %23 = vector.load %arg7[%c0_21, %c0_22] : memref<1x4xf32, #tpu.memory_space<vmem>>, vector<1x4xf32>
      %24 = arith.mulf %16, %16 : vector<256x4xf32>
      %cst_23 = arith.constant dense<0.000000e+00> : vector<4xf32>
      %25 = vector.multi_reduction <add>, %24, %cst_23 [0] : vector<256x4xf32> to vector<4xf32>
      %26 = vector.shape_cast %25 : vector<4xf32> to vector<1x4xf32>
      %27 = arith.addf %23, %26 : vector<1x4xf32>
      %c0_24 = arith.constant 0 : index
      %c0_25 = arith.constant 0 : index
      %28 = vector.load %arg7[%c0_24, %c0_25] : memref<1x4xf32, #tpu.memory_space<vmem>>, vector<1x4xf32>
      tpu.vector_store %arg7[%c0_24, %c0_25], %27 {strides = array<i32>} : memref<1x4xf32, #tpu.memory_space<vmem>>, vector<1x4xf32>,
    } else {
    }
    return
  }
  func.func @transform_0(%arg0: i32, %arg1: i32, %arg2: i32) -> (i32, i32) {
    %c0_i32 = arith.constant 0 : i32
    return %arg1, %arg2 : i32, i32
  }
  func.func @transform_1(%arg0: i32, %arg1: i32, %arg2: i32) -> (i32, i32) {
    %c0_i32 = arith.constant 0 : i32
    return %arg2, %arg0 : i32, i32
  }
  func.func @transform_2(%arg0: i32, %arg1: i32, %arg2: i32) -> (i32, i32) {
    %c0_i32 = arith.constant 0 : i32
    return %arg1, %arg0 : i32, i32
  }
  func.func @transform_3(%arg0: i32, %arg1: i32, %arg2: i32) -> (i32, i32) {
    %c0_i32 = arith.constant 0 : i32
    %c0_i32_0 = arith.constant 0 : i32
    return %c0_i32, %arg0 : i32, i32
  }
  func.func @transform_4(%arg0: i32, %arg1: i32, %arg2: i32) -> (i32, i32) {
    %c0_i32 = arith.constant 0 : i32
    %c0_i32_0 = arith.constant 0 : i32
    return %c0_i32, %arg0 : i32, i32
  }
}

module attributes {stable_mosaic.version = 11 : i64} {
  func.func @_norm_act_kernel(%arg0: i32, %arg1: i32, %arg2: memref<256x4xf32, #tpu.memory_space<vmem>>, %arg3: memref<1x4xf32, #tpu.memory_space<vmem>>, %arg4: memref<1x4xf32, #tpu.memory_space<vmem>>, %arg5: memref<256x4xf32, #tpu.memory_space<vmem>>) attributes {dimension_semantics = [#tpu.dimension_semantics<parallel>, #tpu.dimension_semantics<parallel>], iteration_bounds = array<i64: 2, 1>, scalar_prefetch = 0 : i64, scratch_operands = 0 : i64, tpu.core_type = #tpu.core_type<tc>, window_params = [{transform_indices = @transform_0, window_bounds = array<i64: 256, 4>}, {transform_indices = @transform_1, window_bounds = array<i64: 1, 4>}, {transform_indices = @transform_2, window_bounds = array<i64: 1, 4>}, {transform_indices = @transform_3, window_bounds = array<i64: 256, 4>}]} {
    %c0 = arith.constant 0 : index
    %c0_0 = arith.constant 0 : index
    %0 = vector.load %arg2[%c0, %c0_0] : memref<256x4xf32, #tpu.memory_space<vmem>>, vector<256x4xf32>
    %c0_1 = arith.constant 0 : index
    %c0_2 = arith.constant 0 : index
    %1 = vector.load %arg3[%c0_1, %c0_2] : memref<1x4xf32, #tpu.memory_space<vmem>>, vector<1x4xf32>
    %2 = vector.broadcast %1 : vector<1x4xf32> to vector<256x4xf32>
    %3 = arith.mulf %0, %2 : vector<256x4xf32>
    %c0_3 = arith.constant 0 : index
    %c0_4 = arith.constant 0 : index
    %4 = vector.load %arg4[%c0_3, %c0_4] : memref<1x4xf32, #tpu.memory_space<vmem>>, vector<1x4xf32>
    %5 = vector.broadcast %4 : vector<1x4xf32> to vector<256x4xf32>
    %6 = arith.addf %3, %5 : vector<256x4xf32>
    %7 = arith.negf %6 : vector<256x4xf32>
    %8 = math.exp %7 : vector<256x4xf32>
    %cst = arith.constant 1.000000e+00 : f32
    %9 = vector.broadcast %cst : f32 to vector<256x4xf32>
    %10 = arith.addf %9, %8 : vector<256x4xf32>
    %11 = arith.divf %9, %10 : vector<256x4xf32>
    %c0_5 = arith.constant 0 : index
    %c0_6 = arith.constant 0 : index
    %12 = vector.load %arg5[%c0_5, %c0_6] : memref<256x4xf32, #tpu.memory_space<vmem>>, vector<256x4xf32>
    tpu.vector_store %arg5[%c0_5, %c0_6], %11 {strides = array<i32>} : memref<256x4xf32, #tpu.memory_space<vmem>>, vector<256x4xf32>,
    return
  }
  func.func @transform_0(%arg0: i32, %arg1: i32) -> (i32, i32) {
    %c0_i32 = arith.constant 0 : i32
    return %arg0, %arg1 : i32, i32
  }
  func.func @transform_1(%arg0: i32, %arg1: i32) -> (i32, i32) {
    %c0_i32 = arith.constant 0 : i32
    %c0_i32_0 = arith.constant 0 : i32
    return %c0_i32, %arg1 : i32, i32
  }
  func.func @transform_2(%arg0: i32, %arg1: i32) -> (i32, i32) {
    %c0_i32 = arith.constant 0 : i32
    %c0_i32_0 = arith.constant 0 : i32
    return %c0_i32, %arg1 : i32, i32
  }
  func.func @transform_3(%arg0: i32, %arg1: i32) -> (i32, i32) {
    %c0_i32 = arith.constant 0 : i32
    return %arg0, %arg1 : i32, i32
  }
}

</mosaic_0001>

<llo_original>
// kernel: move_analyser_forward.7
$region0: #{move_analyser_forward.7}
  #allocation0 [shape = 'u32[]', space=smem, size = 0x4, offset = 0x4, fixed_abs, tag = 'smem constant byte address 0x4 - core index']
  #allocation1 [shape = 'u32[144,128]{1,0:T(1,128)}', space=vmem, size = 0x12000, scoped, tag = 'internal scratch']
  %s0 = inlined_call_operand.vmem [shape: f32[512,256], index: 0, kind: input, shape index: {}]
  %s1 = inlined_call_operand.vmem [shape: f32[1,256], index: 1, kind: input, shape index: {}]
  %s2 = inlined_call_operand.vmem [shape: f32[1,256], index: 2, kind: input, shape index: {}]
  %s3 = inlined_call_operand.vmem [shape: bf16[512,256], index: 3, kind: output, shape index: {}]
  %s4 = sld [smem:[#allocation0]]
  $region45: #{move_analyser_forward.7} parent=0
    _
  %s6 = ssub.s32 1, %s4
  %s7 = scalar_select 0, %s6, %s4
  loop: start=0, step=1, limit=4
  $region2: #{move_analyser_forward.7} parent=0 // loop_pre_header
    _
  $region3: #{move_analyser_forward.7} parent=0 // loop_header
    %s9 = sphi 0, %s13
    %p10 = scmp.ge.s32.totalorder %s9, 4
    %s16 = sphi 0, %s28
    %s17 = sphi 0, %s24
    %s18 = sphi 0, %s16
    %s19 = sphi 0, %s17
    %s20 = sphi 0, %s18
    %s21 = sphi 0, %s19
    %s33 = sphi 0, %s35
    %s36 = sphi 0, %s33
    %s37 = sphi 0, %s36
    %s53 = sphi 0, %s37
    %s59 = sphi 0, %s61
    %s62 = sphi 0, %s59
    %s63 = sphi 0, %s62
    %s79 = sphi 0, %s63
    %s85 = sphi 0, %s87
    %s88 = sphi 0, %s85
    %s89 = sphi 0, %s88
    %s105 = sphi 0, %s89
    %s113 = sphi 0, %s115
    %s116 = sphi 0, %s113
    %s117 = sphi 0, %s116
    %s133 = sphi 0, %s117
  $region4: #{move_analyser_forward.7} parent=0 // loop_header_branch
    %12 = sbr.rel (%p10) target = $region8
  $region5: #{move_analyser_forward.7} parent=0 // loop_body
    %s14 = ssub.s32 %s9, 1
    %s15 = ssub.s32 %s9, 2
    %s22 = sadd.s32 1, %s17
    %p23 = scmp.ge.s32.totalorder %s22, 1
    %s24 = scalar_select %p23, 0, %s22
    %s25 = sadd.s32 1, %s16
    %s26 = scalar_select %p23, %s25, %s16
    %p27 = scmp.ge.s32.totalorder %s26, 2
    %s28 = scalar_select %p27, 0, %s26
    %s29 = ssub.s32 %s16, %s28
    %s30 = ssub.s32 %s17, %s24
    %s31 = sor.u32 %s29, %s30
    %p32 = scmp.eq.s32.totalorder %s31, 0
    %s34 = sadd.s32 %s33, 1
    %s35 = scalar_select %p32, %s33, %s34
    %p38 = pneg %p32
    %p39 = scmp.eq.s32.totalorder %s9, 1
    %p40 = por %p38, %p39
    %p41 = scmp.ne.s32.totalorder %s33, %s36
    %p42 = scmp.eq.s32.totalorder %s9, 0
    %p43 = por %p41, %p42
    %p44 = scmp.ne.s32.totalorder %s33, %s36
    %p45 = scmp.eq.s32.totalorder %s14, 1
    %p46 = por %p44, %p45
    %p47 = scmp.ne.s32.totalorder %s36, %s37
    %p48 = scmp.eq.s32.totalorder %s14, 0
    %p49 = por %p47, %p48
    %p50 = scmp.ne.s32.totalorder %s36, %s37
    %p51 = scmp.eq.s32.totalorder %s15, 1
    %p52 = por %p50, %p51
    %p54 = scmp.ne.s32.totalorder %s37, %s53
    %p55 = scmp.eq.s32.totalorder %s15, 0
    %p56 = por %p54, %p55
    %s57 = ssub.s32 %s17, %s24
    %p58 = scmp.eq.s32.totalorder %s57, 0
    %s60 = sadd.s32 %s59, 1
    %s61 = scalar_select %p58, %s59, %s60
    %p64 = pneg %p58
    %p65 = scmp.eq.s32.totalorder %s9, 1
    %p66 = por %p64, %p65
    %p67 = scmp.ne.s32.totalorder %s59, %s62
    %p68 = scmp.eq.s32.totalorder %s9, 0
    %p69 = por %p67, %p68
    %p70 = scmp.ne.s32.totalorder %s59, %s62
    %p71 = scmp.eq.s32.totalorder %s14, 1
    %p72 = por %p70, %p71
    %p73 = scmp.ne.s32.totalorder %s62, %s63
    %p74 = scmp.eq.s32.totalorder %s14, 0
    %p75 = por %p73, %p74
    %p76 = scmp.ne.s32.totalorder %s62, %s63
    %p77 = scmp.eq.s32.totalorder %s15, 1
    %p78 = por %p76, %p77
    %p80 = scmp.ne.s32.totalorder %s63, %s79
    %p81 = scmp.eq.s32.totalorder %s15, 0
    %p82 = por %p80, %p81
    %s83 = ssub.s32 %s17, %s24
    %p84 = scmp.eq.s32.totalorder %s83, 0
    %s86 = sadd.s32 %s85, 1
    %s87 = scalar_select %p84, %s85, %s86
    %p90 = pneg %p84
    %p91 = scmp.eq.s32.totalorder %s9, 1
    %p92 = por %p90, %p91
    %p93 = scmp.ne.s32.totalorder %s85, %s88
    %p94 = scmp.eq.s32.totalorder %s9, 0
    %p95 = por %p93, %p94
    %p96 = scmp.ne.s32.totalorder %s85, %s88
    %p97 = scmp.eq.s32.totalorder %s14, 1
    %p98 = por %p96, %p97
    %p99 = scmp.ne.s32.totalorder %s88, %s89
    %p100 = scmp.eq.s32.totalorder %s14, 0
    %p101 = por %p99, %p100
    %p102 = scmp.ne.s32.totalorder %s88, %s89
    %p103 = scmp.eq.s32.totalorder %s15, 1
    %p104 = por %p102, %p103
    %p106 = scmp.ne.s32.totalorder %s89, %s105
    %p107 = scmp.eq.s32.totalorder %s15, 0
    %p108 = por %p106, %p107
    %s109 = ssub.s32 %s16, %s28
    %s110 = ssub.s32 %s17, %s24
    %s111 = sor.u32 %s109, %s110
    %p112 = scmp.eq.s32.totalorder %s111, 0
    %s114 = sadd.s32 %s113, 1
    %s115 = scalar_select %p112, %s113, %s114
    %p118 = pneg %p112
    %p119 = scmp.eq.s32.totalorder %s9, 1
    %p120 = por %p118, %p119
    %p121 = scmp.ne.s32.totalorder %s113, %s116
    %p122 = scmp.eq.s32.totalorder %s9, 0
    %p123 = por %p121, %p122
    %p124 = scmp.ne.s32.totalorder %s113, %s116
    %p125 = scmp.eq.s32.totalorder %s14, 1
    %p126 = por %p124, %p125
    %p127 = scmp.ne.s32.totalorder %s116, %s117
    %p128 = scmp.eq.s32.totalorder %s14, 0
    %p129 = por %p127, %p128
    %p130 = scmp.ne.s32.totalorder %s116, %s117
    %p131 = scmp.eq.s32.totalorder %s15, 1
    %p132 = por %p130, %p131
    %p134 = scmp.ne.s32.totalorder %s117, %s133
    %p135 = scmp.eq.s32.totalorder %s15, 0
    %p136 = por %p134, %p135
    %p137 = scmp.le.s32.totalorder 1, %s9
    %p138 = scmp.lt.s32.totalorder %s9, 3
    %p139 = pnand %p137, %p138
    %p140 = pneg %p139
    // Predicated region
    $region9: #{move_analyser_forward.7} parent=5 // pred_check
      _
    $region10: #{move_analyser_forward.7} parent=5 // pred_check_branch
      %142 = sbr.rel (%p139) target = $region12
    $region11: #{move_analyser_forward.7} parent=5 // pred_region
      %s143 = ssub.s32 %s9, 1
      // Predicated region
      $region13: #{move_analyser_forward.7} parent=11 // pred_check
        %p144 = pneg %p75
      $region14: #{move_analyser_forward.7} parent=11 // pred_check_branch
        %146 = sbr.rel (%p144) target = $region16
      $region15: #{move_analyser_forward.7} parent=11 // pred_region
        %s147 = smul.u32 2, %s19
        %p148 = scmp.lt.s32.totalorder %s147, 1
        %s149 = scalar_select %p148, %s147, 1
        %s150 = scalar_lea.vmem %s1, %s149
        %s151 = smul.u32 2, %s19
      $region16: #{move_analyser_forward.7} parent=11 // pred_fallthru
        _
      // Predicated region
      $region17: #{move_analyser_forward.7} parent=11 // pred_check
        %p152 = pneg %p101
      $region18: #{move_analyser_forward.7} parent=11 // pred_check_branch
        %154 = sbr.rel (%p152) target = $region20
      $region19: #{move_analyser_forward.7} parent=11 // pred_region
        %s155 = smul.u32 2, %s19
        %p156 = scmp.lt.s32.totalorder %s155, 1
        %s157 = scalar_select %p156, %s155, 1
        %s158 = scalar_lea.vmem %s2, %s157
        %s159 = smul.u32 2, %s19
      $region20: #{move_analyser_forward.7} parent=11 // pred_fallthru
        _
    $region12: #{move_analyser_forward.7} parent=5 // pred_fallthru
      _
    %p160 = scmp.lt.s32.totalorder %s9, 2
    // Predicated region
    $region21: #{move_analyser_forward.7} parent=5 // pred_check
      %p161 = pneg %p160
    $region22: #{move_analyser_forward.7} parent=5 // pred_check_branch
      %163 = sbr.rel (%p161) target = $region24
    $region23: #{move_analyser_forward.7} parent=5 // pred_region
      // Predicated region
      $region25: #{move_analyser_forward.7} parent=23 // pred_check
        %p164 = pneg %p43
      $region26: #{move_analyser_forward.7} parent=23 // pred_check_branch
        %166 = sbr.rel (%p164) target = $region28
      $region27: #{move_analyser_forward.7} parent=23 // pred_region
        %s167 = smul.u32 32, %s16
        %s168 = smul.u32 2, %s17
        %p169 = scmp.lt.s32.totalorder %s167, 63
        %s170 = scalar_select %p169, %s167, 63
        %p171 = scmp.lt.s32.totalorder %s168, 1
        %s172 = scalar_select %p171, %s168, 1
        %s173 = smul.addr %s170, 2
        %s174 = sadd.s32 %s172, %s173
        %s175 = smul.addr %s174, 8
        %s176 = scalar_lea.vmem %s0, %s175
        %s177 = smul.u32 32, %s16
        %s178 = smul.u32 2, %s17
      $region28: #{move_analyser_forward.7} parent=23 // pred_fallthru
        _
    $region24: #{move_analyser_forward.7} parent=5 // pred_fallthru
      _
    %p179 = scmp.le.s32.totalorder 1, %s9
    %p180 = scmp.lt.s32.totalorder %s9, 3
    %p181 = pnand %p179, %p180
    %p182 = pneg %p181
    // Predicated region
    $region29: #{move_analyser_forward.7} parent=5 // pred_check
      _
    $region30: #{move_analyser_forward.7} parent=5 // pred_check_branch
      %184 = sbr.rel (%p181) target = $region32
    $region31: #{move_analyser_forward.7} parent=5 // pred_region
      %s185 = ssub.s32 %s9, 1
      %s186 = smul.u32 32, %s18
      %s187 = smul.u32 2, %s19
      %p188 = scmp.lt.s32.totalorder %s186, 63
      %s189 = scalar_select %p188, %s186, 63
      %p190 = scmp.lt.s32.totalorder %s187, 1
      %s191 = scalar_select %p190, %s187, 1
      %s192 = smul.addr %s189, 2
      %s193 = sadd.s32 %s191, %s192
      %s194 = smul.addr %s193, 8
      %s195 = scalar_lea.vmem %s0, %s194
      %p196 = pneg %p49
      %p197 = pneg %p46
      %s198 = smul.u32 2, %s19
      %p199 = scmp.lt.s32.totalorder %s198, 1
      %s200 = scalar_select %p199, %s198, 1
      %s201 = scalar_lea.vmem %s1, %s200
      %p202 = pneg %p75
      %p203 = pneg %p72
      %s204 = smul.u32 2, %s19
      %p205 = scmp.lt.s32.totalorder %s204, 1
      %s206 = scalar_select %p205, %s204, 1
      %s207 = scalar_lea.vmem %s2, %s206
      %p208 = pneg %p101
      %p209 = pneg %p98
      %p210 = pneg %p129
      %p211 = pneg %p126
      %s212 = smul.u32 32, %s18
      %s213 = smul.u32 2, %s19
      %p214 = scmp.lt.s32.totalorder %s212, 63
      %s215 = scalar_select %p214, %s212, 63
      %p216 = scmp.lt.s32.totalorder %s213, 1
      %s217 = scalar_select %p216, %s213, 1
      %s218 = smul.addr %s215, 2
      %s219 = sadd.s32 %s217, %s218
      %s220 = smul.addr %s219, 4
      %s221 = scalar_lea.vmem %s3, %s220
      %s222 = smul.u32 32, %s18
      %s223 = smul.u32 2, %s19
      %p224 = scmp.lt.s32.totalorder %s222, 63
      %s225 = scalar_select %p224, %s222, 63
      %p226 = scmp.lt.s32.totalorder %s223, 1
      %s227 = scalar_select %p226, %s223, 1
      %s228 = smul.addr %s225, 2
      %s229 = sadd.s32 %s227, %s228
      %s230 = smul.addr %s229, 8
      %s231 = scalar_lea.vmem %s0, %s230
      %s232 = smul.u32 32, %s18
      %s233 = smul.u32 2, %s19
      %s234 = smul.u32 2, %s19
      %p235 = scmp.lt.s32.totalorder %s234, 1
      %s236 = scalar_select %p235, %s234, 1
      %s237 = scalar_lea.vmem %s1, %s236
      %s238 = smul.u32 2, %s19
      %s239 = smul.u32 2, %s19
      %p240 = scmp.lt.s32.totalorder %s239, 1
      %s241 = scalar_select %p240, %s239, 1
      %s242 = scalar_lea.vmem %s2, %s241
      %s243 = smul.u32 2, %s19
      %s244 = smul.u32 32, %s18
      %s245 = smul.u32 2, %s19
      %p246 = scmp.lt.s32.totalorder %s244, 63
      %s247 = scalar_select %p246, %s244, 63
      %p248 = scmp.lt.s32.totalorder %s245, 1
      %s249 = scalar_select %p248, %s245, 1
      %s250 = smul.addr %s247, 2
      %s251 = sadd.s32 %s249, %s250
      %s252 = smul.addr %s251, 4
      %s253 = scalar_lea.vmem %s3, %s252
      %s254 = smul.u32 32, %s18
      %s255 = smul.u32 2, %s19
      %v256 = vld [vmem:[%s231] sm:$0xff]
      %v257 = vld [vmem:[%s231 + $0x8] sm:$0xff]
      %v258 = vld [vmem:[%s231 + $0x10] sm:$0xff]
      %v259 = vld [vmem:[%s231 + $0x18] sm:$0xff]
      %v260 = vld [vmem:[%s231 + $0x20] sm:$0xff]
      %v261 = vld [vmem:[%s231 + $0x28] sm:$0xff]
      %v262 = vld [vmem:[%s231 + $0x30] sm:$0xff]
      %v263 = vld [vmem:[%s231 + $0x38] sm:$0xff]
      %v264 = vld [vmem:[%s231 + $0x40] sm:$0xff]
      %v265 = vld [vmem:[%s231 + $0x48] sm:$0xff]
      %v266 = vld [vmem:[%s231 + $0x50] sm:$0xff]
      %v267 = vld [vmem:[%s231 + $0x58] sm:$0xff]
      %v268 = vld [vmem:[%s231 + $0x60] sm:$0xff]
      %v269 = vld [vmem:[%s231 + $0x68] sm:$0xff]
      %v270 = vld [vmem:[%s231 + $0x70] sm:$0xff]
      %v271 = vld [vmem:[%s231 + $0x78] sm:$0xff]
      %v272 = vld [vmem:[%s231 + $0x80] sm:$0xff]
      %v273 = vld [vmem:[%s231 + $0x88] sm:$0xff]
      %v274 = vld [vmem:[%s231 + $0x90] sm:$0xff]
      %v275 = vld [vmem:[%s231 + $0x98] sm:$0xff]
      %v276 = vld [vmem:[%s231 + $0xa0] sm:$0xff]
      %v277 = vld [vmem:[%s231 + $0xa8] sm:$0xff]
      %v278 = vld [vmem:[%s231 + $0xb0] sm:$0xff]
      %v279 = vld [vmem:[%s231 + $0xb8] sm:$0xff]
      %v280 = vld [vmem:[%s231 + $0xc0] sm:$0xff]
      %v281 = vld [vmem:[%s231 + $0xc8] sm:$0xff]
      %v282 = vld [vmem:[%s231 + $0xd0] sm:$0xff]
      %v283 = vld [vmem:[%s231 + $0xd8] sm:$0xff]
      %v284 = vld [vmem:[%s231 + $0xe0] sm:$0xff]
      %v285 = vld [vmem:[%s231 + $0xe8] sm:$0xff]
      %v286 = vld [vmem:[%s231 + $0xf0] sm:$0xff]
      %v287 = vld [vmem:[%s231 + $0xf8] sm:$0xff]
      %v288 = vld [vmem:[%s231 + $0x100] sm:$0xff]
      %v289 = vld [vmem:[%s231 + $0x108] sm:$0xff]
      %v290 = vld [vmem:[%s231 + $0x110] sm:$0xff]
      %v291 = vld [vmem:[%s231 + $0x118] sm:$0xff]
      %v292 = vld [vmem:[%s231 + $0x120] sm:$0xff]
      %v293 = vld [vmem:[%s231 + $0x128] sm:$0xff]
      %v294 = vld [vmem:[%s231 + $0x130] sm:$0xff]
      %v295 = vld [vmem:[%s231 + $0x138] sm:$0xff]
      %v296 = vld [vmem:[%s231 + $0x140] sm:$0xff]
      %v297 = vld [vmem:[%s231 + $0x148] sm:$0xff]
      %v298 = vld [vmem:[%s231 + $0x150] sm:$0xff]
      %v299 = vld [vmem:[%s231 + $0x158] sm:$0xff]
      %v300 = vld [vmem:[%s231 + $0x160] sm:$0xff]
      %v301 = vld [vmem:[%s231 + $0x168] sm:$0xff]
      %v302 = vld [vmem:[%s231 + $0x170] sm:$0xff]
      %v303 = vld [vmem:[%s231 + $0x178] sm:$0xff]
      %v304 = vld [vmem:[%s231 + $0x180] sm:$0xff]
      %v305 = vld [vmem:[%s231 + $0x188] sm:$0xff]
      %v306 = vld [vmem:[%s231 + $0x190] sm:$0xff]
      %v307 = vld [vmem:[%s231 + $0x198] sm:$0xff]
      %v308 = vld [vmem:[%s231 + $0x1a0] sm:$0xff]
      %v309 = vld [vmem:[%s231 + $0x1a8] sm:$0xff]
      %v310 = vld [vmem:[%s231 + $0x1b0] sm:$0xff]
      %v311 = vld [vmem:[%s231 + $0x1b8] sm:$0xff]
      %v312 = vld [vmem:[%s231 + $0x1c0] sm:$0xff]
      %v313 = vld [vmem:[%s231 + $0x1c8] sm:$0xff]
      %v314 = vld [vmem:[%s231 + $0x1d0] sm:$0xff]
      %v315 = vld [vmem:[%s231 + $0x1d8] sm:$0xff]
      %v316 = vld [vmem:[%s231 + $0x1e0] sm:$0xff]
      %v317 = vld [vmem:[%s231 + $0x1e8] sm:$0xff]
      %v318 = vld [vmem:[%s231 + $0x1f0] sm:$0xff]
      %v319 = vld [vmem:[%s231 + $0x1f8] sm:$0xff]
      %v320 = vld [vmem:[%s237] sm:$0x3]
      %v322 = vlaneseq
      %v323 = vshrl.u32 %v322, 7
      %v324 = vsub.s32 0, %v323
      %v325 = vrot.slane %v320, %v324
      %v326 = vlaneseq
      %v327 = vshrl.u32 %v326, 7
      %v328 = vsub.s32 1, %v327
      %v329 = vrot.slane %v320, %v328
      %v332 = vmul.f32 %v256, %v325
      %v333 = vmul.f32 %v257, %v329
      %v334 = vmul.f32 %v258, %v325
      %v335 = vmul.f32 %v259, %v329
      %v336 = vmul.f32 %v260, %v325
      %v337 = vmul.f32 %v261, %v329
      %v338 = vmul.f32 %v262, %v325
      %v339 = vmul.f32 %v263, %v329
      %v340 = vmul.f32 %v264, %v325
      %v341 = vmul.f32 %v265, %v329
      %v342 = vmul.f32 %v266, %v325
      %v343 = vmul.f32 %v267, %v329
      %v344 = vmul.f32 %v268, %v325
      %v345 = vmul.f32 %v269, %v329
      %v346 = vmul.f32 %v270, %v325
      %v347 = vmul.f32 %v271, %v329
      %v348 = vmul.f32 %v272, %v325
      %v349 = vmul.f32 %v273, %v329
      %v350 = vmul.f32 %v274, %v325
      %v351 = vmul.f32 %v275, %v329
      %v352 = vmul.f32 %v276, %v325
      %v353 = vmul.f32 %v277, %v329
      %v354 = vmul.f32 %v278, %v325
      %v355 = vmul.f32 %v279, %v329
      %v356 = vmul.f32 %v280, %v325
      %v357 = vmul.f32 %v281, %v329
      %v358 = vmul.f32 %v282, %v325
      %v359 = vmul.f32 %v283, %v329
      %v360 = vmul.f32 %v284, %v325
      %v361 = vmul.f32 %v285, %v329
      %v362 = vmul.f32 %v286, %v325
      %v363 = vmul.f32 %v287, %v329
      %v364 = vmul.f32 %v288, %v325
      %v365 = vmul.f32 %v289, %v329
      %v366 = vmul.f32 %v290, %v325
      %v367 = vmul.f32 %v291, %v329
      %v368 = vmul.f32 %v292, %v325
      %v369 = vmul.f32 %v293, %v329
      %v370 = vmul.f32 %v294, %v325
      %v371 = vmul.f32 %v295, %v329
      %v372 = vmul.f32 %v296, %v325
      %v373 = vmul.f32 %v297, %v329
      %v374 = vmul.f32 %v298, %v325
      %v375 = vmul.f32 %v299, %v329
      %v376 = vmul.f32 %v300, %v325
      %v377 = vmul.f32 %v301, %v329
      %v378 = vmul.f32 %v302, %v325
      %v379 = vmul.f32 %v303, %v329
      %v380 = vmul.f32 %v304, %v325
      %v381 = vmul.f32 %v305, %v329
      %v382 = vmul.f32 %v306, %v325
      %v383 = vmul.f32 %v307, %v329
      %v384 = vmul.f32 %v308, %v325
      %v385 = vmul.f32 %v309, %v329
      %v386 = vmul.f32 %v310, %v325
      %v387 = vmul.f32 %v311, %v329
      %v388 = vmul.f32 %v312, %v325
      %v389 = vmul.f32 %v313, %v329
      %v390 = vmul.f32 %v314, %v325
      %v391 = vmul.f32 %v315, %v329
      %v392 = vmul.f32 %v316, %v325
      %v393 = vmul.f32 %v317, %v329
      %v394 = vmul.f32 %v318, %v325
      %v395 = vmul.f32 %v319, %v329
      %v396 = vld [vmem:[%s242] sm:$0x3]
      %v398 = vlaneseq
      %v399 = vshrl.u32 %v398, 7
      %v400 = vsub.s32 0, %v399
      %v401 = vrot.slane %v396, %v400
      %v402 = vlaneseq
      %v403 = vshrl.u32 %v402, 7
      %v404 = vsub.s32 1, %v403
      %v405 = vrot.slane %v396, %v404
      %v408 = vadd.f32 %v332, %v401
      %v409 = vadd.f32 %v333, %v405
      %v410 = vadd.f32 %v334, %v401
      %v411 = vadd.f32 %v335, %v405
      %v412 = vadd.f32 %v336, %v401
      %v413 = vadd.f32 %v337, %v405
      %v414 = vadd.f32 %v338, %v401
      %v415 = vadd.f32 %v339, %v405
      %v416 = vadd.f32 %v340, %v401
      %v417 = vadd.f32 %v341, %v405
      %v418 = vadd.f32 %v342, %v401
      %v419 = vadd.f32 %v343, %v405
      %v420 = vadd.f32 %v344, %v401
      %v421 = vadd.f32 %v345, %v405
      %v422 = vadd.f32 %v346, %v401
      %v423 = vadd.f32 %v347, %v405
      %v424 = vadd.f32 %v348, %v401
      %v425 = vadd.f32 %v349, %v405
      %v426 = vadd.f32 %v350, %v401
      %v427 = vadd.f32 %v351, %v405
      %v428 = vadd.f32 %v352, %v401
      %v429 = vadd.f32 %v353, %v405
      %v430 = vadd.f32 %v354, %v401
      %v431 = vadd.f32 %v355, %v405
      %v432 = vadd.f32 %v356, %v401
      %v433 = vadd.f32 %v357, %v405
      %v434 = vadd.f32 %v358, %v401
      %v435 = vadd.f32 %v359, %v405
      %v436 = vadd.f32 %v360, %v401
      %v437 = vadd.f32 %v361, %v405
      %v438 = vadd.f32 %v362, %v401
      %v439 = vadd.f32 %v363, %v405
      %v440 = vadd.f32 %v364, %v401
      %v441 = vadd.f32 %v365, %v405
      %v442 = vadd.f32 %v366, %v401
      %v443 = vadd.f32 %v367, %v405
      %v444 = vadd.f32 %v368, %v401
      %v445 = vadd.f32 %v369, %v405
      %v446 = vadd.f32 %v370, %v401
      %v447 = vadd.f32 %v371, %v405
      %v448 = vadd.f32 %v372, %v401
      %v449 = vadd.f32 %v373, %v405
      %v450 = vadd.f32 %v374, %v401
      %v451 = vadd.f32 %v375, %v405
      %v452 = vadd.f32 %v376, %v401
      %v453 = vadd.f32 %v377, %v405
      %v454 = vadd.f32 %v378, %v401
      %v455 = vadd.f32 %v379, %v405
      %v456 = vadd.f32 %v380, %v401
      %v457 = vadd.f32 %v381, %v405
      %v458 = vadd.f32 %v382, %v401
      %v459 = vadd.f32 %v383, %v405
      %v460 = vadd.f32 %v384, %v401
      %v461 = vadd.f32 %v385, %v405
      %v462 = vadd.f32 %v386, %v401
      %v463 = vadd.f32 %v387, %v405
      %v464 = vadd.f32 %v388, %v401
      %v465 = vadd.f32 %v389, %v405
      %v466 = vadd.f32 %v390, %v401
      %v467 = vadd.f32 %v391, %v405
      %v468 = vadd.f32 %v392, %v401
      %v469 = vadd.f32 %v393, %v405
      %v470 = vadd.f32 %v394, %v401
      %v471 = vadd.f32 %v395, %v405
      %v472 = vmax.f32 %v408, 0.0
      %v473 = vmax.f32 %v409, 0.0
      %v474 = vmax.f32 %v410, 0.0
      %v475 = vmax.f32 %v411, 0.0
      %v476 = vmax.f32 %v412, 0.0
      %v477 = vmax.f32 %v413, 0.0
      %v478 = vmax.f32 %v414, 0.0
      %v479 = vmax.f32 %v415, 0.0
      %v480 = vmax.f32 %v416, 0.0
      %v481 = vmax.f32 %v417, 0.0
      %v482 = vmax.f32 %v418, 0.0
      %v483 = vmax.f32 %v419, 0.0
      %v484 = vmax.f32 %v420, 0.0
      %v485 = vmax.f32 %v421, 0.0
      %v486 = vmax.f32 %v422, 0.0
      %v487 = vmax.f32 %v423, 0.0
      %v488 = vmax.f32 %v424, 0.0
      %v489 = vmax.f32 %v425, 0.0
      %v490 = vmax.f32 %v426, 0.0
      %v491 = vmax.f32 %v427, 0.0
      %v492 = vmax.f32 %v428, 0.0
      %v493 = vmax.f32 %v429, 0.0
      %v494 = vmax.f32 %v430, 0.0
      %v495 = vmax.f32 %v431, 0.0
      %v496 = vmax.f32 %v432, 0.0
      %v497 = vmax.f32 %v433, 0.0
      %v498 = vmax.f32 %v434, 0.0
      %v499 = vmax.f32 %v435, 0.0
      %v500 = vmax.f32 %v436, 0.0
      %v501 = vmax.f32 %v437, 0.0
      %v502 = vmax.f32 %v438, 0.0
      %v503 = vmax.f32 %v439, 0.0
      %v504 = vmax.f32 %v440, 0.0
      %v505 = vmax.f32 %v441, 0.0
      %v506 = vmax.f32 %v442, 0.0
      %v507 = vmax.f32 %v443, 0.0
      %v508 = vmax.f32 %v444, 0.0
      %v509 = vmax.f32 %v445, 0.0
      %v510 = vmax.f32 %v446, 0.0
      %v511 = vmax.f32 %v447, 0.0
      %v512 = vmax.f32 %v448, 0.0
      %v513 = vmax.f32 %v449, 0.0
      %v514 = vmax.f32 %v450, 0.0
      %v515 = vmax.f32 %v451, 0.0
      %v516 = vmax.f32 %v452, 0.0
      %v517 = vmax.f32 %v453, 0.0
      %v518 = vmax.f32 %v454, 0.0
      %v519 = vmax.f32 %v455, 0.0
      %v520 = vmax.f32 %v456, 0.0
      %v521 = vmax.f32 %v457, 0.0
      %v522 = vmax.f32 %v458, 0.0
      %v523 = vmax.f32 %v459, 0.0
      %v524 = vmax.f32 %v460, 0.0
      %v525 = vmax.f32 %v461, 0.0
      %v526 = vmax.f32 %v462, 0.0
      %v527 = vmax.f32 %v463, 0.0
      %v528 = vmax.f32 %v464, 0.0
      %v529 = vmax.f32 %v465, 0.0
      %v530 = vmax.f32 %v466, 0.0
      %v531 = vmax.f32 %v467, 0.0
      %v532 = vmax.f32 %v468, 0.0
      %v533 = vmax.f32 %v469, 0.0
      %v534 = vmax.f32 %v470, 0.0
      %v535 = vmax.f32 %v471, 0.0
      %v536 = vpack.c.bf16 %v474, %v472
      %v537 = vpack.c.bf16 %v475, %v473
      %v538 = vpack.c.bf16 %v478, %v476
      %v539 = vpack.c.bf16 %v479, %v477
      %v540 = vpack.c.bf16 %v482, %v480
      %v541 = vpack.c.bf16 %v483, %v481
      %v542 = vpack.c.bf16 %v486, %v484
      %v543 = vpack.c.bf16 %v487, %v485
      %v544 = vpack.c.bf16 %v490, %v488
      %v545 = vpack.c.bf16 %v491, %v489
      %v546 = vpack.c.bf16 %v494, %v492
      %v547 = vpack.c.bf16 %v495, %v493
      %v548 = vpack.c.bf16 %v498, %v496
      %v549 = vpack.c.bf16 %v499, %v497
      %v550 = vpack.c.bf16 %v502, %v500
      %v551 = vpack.c.bf16 %v503, %v501
      %v552 = vpack.c.bf16 %v506, %v504
      %v553 = vpack.c.bf16 %v507, %v505
      %v554 = vpack.c.bf16 %v510, %v508
      %v555 = vpack.c.bf16 %v511, %v509
      %v556 = vpack.c.bf16 %v514, %v512
      %v557 = vpack.c.bf16 %v515, %v513
      %v558 = vpack.c.bf16 %v518, %v516
      %v559 = vpack.c.bf16 %v519, %v517
      %v560 = vpack.c.bf16 %v522, %v520
      %v561 = vpack.c.bf16 %v523, %v521
      %v562 = vpack.c.bf16 %v526, %v524
      %v563 = vpack.c.bf16 %v527, %v525
      %v564 = vpack.c.bf16 %v530, %v528
      %v565 = vpack.c.bf16 %v531, %v529
      %v566 = vpack.c.bf16 %v534, %v532
      %v567 = vpack.c.bf16 %v535, %v533
      %v600 = vunpack.c.l.b16 %v536
      %v601 = vunpack.c.l.b16 %v537
      %v602 = vunpack.c.h.b16 %v536
      %v603 = vunpack.c.h.b16 %v537
      %v604 = vunpack.c.l.b16 %v538
      %v605 = vunpack.c.l.b16 %v539
      %v606 = vunpack.c.h.b16 %v538
      %v607 = vunpack.c.h.b16 %v539
      %v608 = vunpack.c.l.b16 %v540
      %v609 = vunpack.c.l.b16 %v541
      %v610 = vunpack.c.h.b16 %v540
      %v611 = vunpack.c.h.b16 %v541
      %v612 = vunpack.c.l.b16 %v542
      %v613 = vunpack.c.l.b16 %v543
      %v614 = vunpack.c.h.b16 %v542
      %v615 = vunpack.c.h.b16 %v543
      %v616 = vunpack.c.l.b16 %v544
      %v617 = vunpack.c.l.b16 %v545
      %v618 = vunpack.c.h.b16 %v544
      %v619 = vunpack.c.h.b16 %v545
      %v620 = vunpack.c.l.b16 %v546
      %v621 = vunpack.c.l.b16 %v547
      %v622 = vunpack.c.h.b16 %v546
      %v623 = vunpack.c.h.b16 %v547
      %v624 = vunpack.c.l.b16 %v548
      %v625 = vunpack.c.l.b16 %v549
      %v626 = vunpack.c.h.b16 %v548
      %v627 = vunpack.c.h.b16 %v549
      %v628 = vunpack.c.l.b16 %v550
      %v629 = vunpack.c.l.b16 %v551
      %v630 = vunpack.c.h.b16 %v550
      %v631 = vunpack.c.h.b16 %v551
      %v632 = vunpack.c.l.b16 %v552
      %v633 = vunpack.c.l.b16 %v553
      %v634 = vunpack.c.h.b16 %v552
      %v635 = vunpack.c.h.b16 %v553
      %v636 = vunpack.c.l.b16 %v554
      %v637 = vunpack.c.l.b16 %v555
      %v638 = vunpack.c.h.b16 %v554
      %v639 = vunpack.c.h.b16 %v555
      %v640 = vunpack.c.l.b16 %v556
      %v641 = vunpack.c.l.b16 %v557
      %v642 = vunpack.c.h.b16 %v556
      %v643 = vunpack.c.h.b16 %v557
      %v644 = vunpack.c.l.b16 %v558
      %v645 = vunpack.c.l.b16 %v559
      %v646 = vunpack.c.h.b16 %v558
      %v647 = vunpack.c.h.b16 %v559
      %v648 = vunpack.c.l.b16 %v560
      %v649 = vunpack.c.l.b16 %v561
      %v650 = vunpack.c.h.b16 %v560
      %v651 = vunpack.c.h.b16 %v561
      %v652 = vunpack.c.l.b16 %v562
      %v653 = vunpack.c.l.b16 %v563
      %v654 = vunpack.c.h.b16 %v562
      %v655 = vunpack.c.h.b16 %v563
      %v656 = vunpack.c.l.b16 %v564
      %v657 = vunpack.c.l.b16 %v565
      %v658 = vunpack.c.h.b16 %v564
      %v659 = vunpack.c.h.b16 %v565
      %v660 = vunpack.c.l.b16 %v566
      %v661 = vunpack.c.l.b16 %v567
      %v662 = vunpack.c.h.b16 %v566
      %v663 = vunpack.c.h.b16 %v567
      %v664 = vpack.c.b16 %v601, %v600
      %v665 = vpack.c.b16 %v603, %v602
      %v666 = vpack.c.b16 %v605, %v604
      %v667 = vpack.c.b16 %v607, %v606
      %v668 = vpack.c.b16 %v609, %v608
      %v669 = vpack.c.b16 %v611, %v610
      %v670 = vpack.c.b16 %v613, %v612
      %v671 = vpack.c.b16 %v615, %v614
      %v672 = vpack.c.b16 %v617, %v616
      %v673 = vpack.c.b16 %v619, %v618
      %v674 = vpack.c.b16 %v621, %v620
      %v675 = vpack.c.b16 %v623, %v622
      %v676 = vpack.c.b16 %v625, %v624
      %v677 = vpack.c.b16 %v627, %v626
      %v678 = vpack.c.b16 %v629, %v628
      %v679 = vpack.c.b16 %v631, %v630
      %v680 = vpack.c.b16 %v633, %v632
      %v681 = vpack.c.b16 %v635, %v634
      %v682 = vpack.c.b16 %v637, %v636
      %v683 = vpack.c.b16 %v639, %v638
      %v684 = vpack.c.b16 %v641, %v640
      %v685 = vpack.c.b16 %v643, %v642
      %v686 = vpack.c.b16 %v645, %v644
      %v687 = vpack.c.b16 %v647, %v646
      %v688 = vpack.c.b16 %v649, %v648
      %v689 = vpack.c.b16 %v651, %v650
      %v690 = vpack.c.b16 %v653, %v652
      %v691 = vpack.c.b16 %v655, %v654
      %v692 = vpack.c.b16 %v657, %v656
      %v693 = vpack.c.b16 %v659, %v658
      %v694 = vpack.c.b16 %v661, %v660
      %v695 = vpack.c.b16 %v663, %v662
      %728 = vst [vmem:[%s253] sm:$0xff] %v664
      %729 = vst [vmem:[%s253 + $0x8] sm:$0xff] %v665
      %730 = vst [vmem:[%s253 + $0x10] sm:$0xff] %v666
      %731 = vst [vmem:[%s253 + $0x18] sm:$0xff] %v667
      %732 = vst [vmem:[%s253 + $0x20] sm:$0xff] %v668
      %733 = vst [vmem:[%s253 + $0x28] sm:$0xff] %v669
      %734 = vst [vmem:[%s253 + $0x30] sm:$0xff] %v670
      %735 = vst [vmem:[%s253 + $0x38] sm:$0xff] %v671
      %736 = vst [vmem:[%s253 + $0x40] sm:$0xff] %v672
      %737 = vst [vmem:[%s253 + $0x48] sm:$0xff] %v673
      %738 = vst [vmem:[%s253 + $0x50] sm:$0xff] %v674
      %739 = vst [vmem:[%s253 + $0x58] sm:$0xff] %v675
      %740 = vst [vmem:[%s253 + $0x60] sm:$0xff] %v676
      %741 = vst [vmem:[%s253 + $0x68] sm:$0xff] %v677
      %742 = vst [vmem:[%s253 + $0x70] sm:$0xff] %v678
      %743 = vst [vmem:[%s253 + $0x78] sm:$0xff] %v679
      %744 = vst [vmem:[%s253 + $0x80] sm:$0xff] %v680
      %745 = vst [vmem:[%s253 + $0x88] sm:$0xff] %v681
      %746 = vst [vmem:[%s253 + $0x90] sm:$0xff] %v682
      %747 = vst [vmem:[%s253 + $0x98] sm:$0xff] %v683
      %748 = vst [vmem:[%s253 + $0xa0] sm:$0xff] %v684
      %749 = vst [vmem:[%s253 + $0xa8] sm:$0xff] %v685
      %750 = vst [vmem:[%s253 + $0xb0] sm:$0xff] %v686
      %751 = vst [vmem:[%s253 + $0xb8] sm:$0xff] %v687
      %752 = vst [vmem:[%s253 + $0xc0] sm:$0xff] %v688
      %753 = vst [vmem:[%s253 + $0xc8] sm:$0xff] %v689
      %754 = vst [vmem:[%s253 + $0xd0] sm:$0xff] %v690
      %755 = vst [vmem:[%s253 + $0xd8] sm:$0xff] %v691
      %756 = vst [vmem:[%s253 + $0xe0] sm:$0xff] %v692
      %757 = vst [vmem:[%s253 + $0xe8] sm:$0xff] %v693
      %758 = vst [vmem:[%s253 + $0xf0] sm:$0xff] %v694
      %759 = vst [vmem:[%s253 + $0xf8] sm:$0xff] %v695
      %s760 = smul.u32 32, %s18
      %s761 = smul.u32 2, %s19
      %p762 = scmp.lt.s32.totalorder %s760, 63
      %s763 = scalar_select %p762, %s760, 63
      %p764 = scmp.lt.s32.totalorder %s761, 1
      %s765 = scalar_select %p764, %s761, 1
      %s766 = smul.addr %s763, 2
      %s767 = sadd.s32 %s765, %s766
      %s768 = smul.addr %s767, 4
      %s769 = scalar_lea.vmem %s3, %s768
      // Predicated region
      $region33: #{move_analyser_forward.7} parent=31 // pred_check
        %p770 = pneg %p126
      $region34: #{move_analyser_forward.7} parent=31 // pred_check_branch
        %772 = sbr.rel (%p770) target = $region36
      $region35: #{move_analyser_forward.7} parent=31 // pred_region
        %s773 = smul.u32 32, %s18
        %s774 = smul.u32 2, %s19
      $region36: #{move_analyser_forward.7} parent=31 // pred_fallthru
        _
    $region32: #{move_analyser_forward.7} parent=5 // pred_fallthru
      _
    %p775 = scmp.le.s32.totalorder 2, %s9
    // Predicated region
    $region37: #{move_analyser_forward.7} parent=5 // pred_check
      %p776 = pneg %p775
    $region38: #{move_analyser_forward.7} parent=5 // pred_check_branch
      %778 = sbr.rel (%p776) target = $region40
    $region39: #{move_analyser_forward.7} parent=5 // pred_region
      %s779 = ssub.s32 %s9, 2
      // Predicated region
      $region41: #{move_analyser_forward.7} parent=39 // pred_check
        %p780 = pneg %p132
      $region42: #{move_analyser_forward.7} parent=39 // pred_check_branch
        %782 = sbr.rel (%p780) target = $region44
      $region43: #{move_analyser_forward.7} parent=39 // pred_region
        %s783 = smul.u32 32, %s20
        %s784 = smul.u32 2, %s21
        %p785 = scmp.lt.s32.totalorder %s783, 63
        %s786 = scalar_select %p785, %s783, 63
        %p787 = scmp.lt.s32.totalorder %s784, 1
        %s788 = scalar_select %p787, %s784, 1
        %s789 = smul.addr %s786, 2
        %s790 = sadd.s32 %s788, %s789
        %s791 = smul.addr %s790, 4
        %s792 = scalar_lea.vmem %s3, %s791
      $region44: #{move_analyser_forward.7} parent=39 // pred_fallthru
        _
    $region40: #{move_analyser_forward.7} parent=5 // pred_fallthru
      _
  $region6: #{move_analyser_forward.7} parent=0 // loop_footer
    %s13 = sadd.s32 1, %s9
  $region7: #{move_analyser_forward.7} parent=0 // loop_footer_branch
    %8 = sbr.rel target = $region3
  $region8: #{move_analyser_forward.7} parent=0 // loop_exit
    _

// kernel: move_analyser_forward.6
$region0: #{move_analyser_forward.6}
  #allocation0 [shape = 'u32[]', space=smem, size = 0x4, offset = 0x4, fixed_abs, tag = 'smem constant byte address 0x4 - core index']
  #allocation1 [shape = 'u32[144,128]{1,0:T(1,128)}', space=vmem, size = 0x12000, scoped, tag = 'internal scratch']
  #allocation2 [shape = 'f32[256,256]{1,0:T(8,128)}', space=vmem, size = 0x40000, scoped, tag = 'scratch operand']
  %s0 = inlined_call_operand.vmem [shape: bf16[512,512], index: 0, kind: input, shape index: {}]
  %s1 = inlined_call_operand.vmem [shape: bf16[512,256], index: 1, kind: input, shape index: {}]
  %s2 = inlined_call_operand.vmem [shape: f32[512,256], index: 2, kind: output, shape index: {0}]
  %s3 = inlined_call_operand.vmem [shape: f32[1,256], index: 3, kind: output, shape index: {1}]
  %s4 = inlined_call_operand.vmem [shape: f32[1,256], index: 4, kind: output, shape index: {2}]
  %5 = xla_tuple %s2, %s3, %s4
  %s6 = sld [smem:[#allocation0]]
  $region107: #{move_analyser_forward.6} parent=0
    _
  %s8 = ssub.s32 1, %s6
  %s9 = scalar_select 0, %s8, %s6
  $region1: #{move_analyser_forward.6} parent=0
    #allocation3 [shape = 'u8[262144]{0}', space=vmem, size = 0x40000, scoped, tag = 'input window, operand 0']
    loop: start=0, step=1, limit=6
    $region2: #{move_analyser_forward.6} parent=1 // loop_pre_header
      _
    $region3: #{move_analyser_forward.6} parent=1 // loop_header
      %s11 = sphi 0, %s15
      %p12 = scmp.ge.s32.totalorder %s11, 6
      %s18 = sphi 0, %s37
      %s19 = sphi 0, %s33
      %s20 = sphi 0, %s29
      %s21 = sphi 0, %s18
      %s22 = sphi 0, %s19
      %s23 = sphi 0, %s20
      %s24 = sphi 0, %s21
      %s25 = sphi 0, %s22
      %s26 = sphi 0, %s23
      %s42 = sphi 0, %s44
      %s45 = sphi 0, %s42
      %s46 = sphi 0, %s45
      %s62 = sphi 0, %s46
      %s70 = sphi 0, %s72
      %s73 = sphi 0, %s70
      %s74 = sphi 0, %s73
      %s90 = sphi 0, %s74
      %s98 = sphi 0, %s100
      %s101 = sphi 0, %s98
      %s102 = sphi 0, %s101
      %s118 = sphi 0, %s102
      %s124 = sphi 0, %s126
      %s127 = sphi 0, %s124
      %s128 = sphi 0, %s127
      %s144 = sphi 0, %s128
      %s150 = sphi 0, %s152
      %s153 = sphi 0, %s150
      %s154 = sphi 0, %s153
      %s170 = sphi 0, %s154
    $region4: #{move_analyser_forward.6} parent=1 // loop_header_branch
      %14 = sbr.rel (%p12) target = $region8
    $region5: #{move_analyser_forward.6} parent=1 // loop_body
      %s16 = ssub.s32 %s11, 1
      %s17 = ssub.s32 %s11, 2
      %s27 = sadd.s32 1, %s20
      %p28 = scmp.ge.s32.totalorder %s27, 2
      %s29 = scalar_select %p28, 0, %s27
      %s30 = sadd.s32 1, %s19
      %s31 = scalar_select %p28, %s30, %s19
      %p32 = scmp.ge.s32.totalorder %s31, 2
      %s33 = scalar_select %p32, 0, %s31
      %s34 = sadd.s32 1, %s18
      %s35 = scalar_select %p32, %s34, %s18
      %p36 = scmp.ge.s32.totalorder %s35, 1
      %s37 = scalar_select %p36, 0, %s35
      %s38 = ssub.s32 %s19, %s33
      %s39 = ssub.s32 %s20, %s29
      %s40 = sor.u32 %s38, %s39
      %p41 = scmp.eq.s32.totalorder %s40, 0
      %s43 = sadd.s32 %s42, 1
      %s44 = scalar_select %p41, %s42, %s43
      %p47 = pneg %p41
      %p48 = scmp.eq.s32.totalorder %s11, 3
      %p49 = por %p47, %p48
      %p50 = scmp.ne.s32.totalorder %s42, %s45
      %p51 = scmp.eq.s32.totalorder %s11, 0
      %p52 = por %p50, %p51
      %p53 = scmp.ne.s32.totalorder %s42, %s45
      %p54 = scmp.eq.s32.totalorder %s16, 3
      %p55 = por %p53, %p54
      %p56 = scmp.ne.s32.totalorder %s45, %s46
      %p57 = scmp.eq.s32.totalorder %s16, 0
      %p58 = por %p56, %p57
      %p59 = scmp.ne.s32.totalorder %s45, %s46
      %p60 = scmp.eq.s32.totalorder %s17, 3
      %p61 = por %p59, %p60
      %p63 = scmp.ne.s32.totalorder %s46, %s62
      %p64 = scmp.eq.s32.totalorder %s17, 0
      %p65 = por %p63, %p64
      %s66 = ssub.s32 %s20, %s29
      %s67 = ssub.s32 %s18, %s37
      %s68 = sor.u32 %s66, %s67
      %p69 = scmp.eq.s32.totalorder %s68, 0
      %s71 = sadd.s32 %s70, 1
      %s72 = scalar_select %p69, %s70, %s71
      %p75 = pneg %p69
      %p76 = scmp.eq.s32.totalorder %s11, 3
      %p77 = por %p75, %p76
      %p78 = scmp.ne.s32.totalorder %s70, %s73
      %p79 = scmp.eq.s32.totalorder %s11, 0
      %p80 = por %p78, %p79
      %p81 = scmp.ne.s32.totalorder %s70, %s73
      %p82 = scmp.eq.s32.totalorder %s16, 3
      %p83 = por %p81, %p82
      %p84 = scmp.ne.s32.totalorder %s73, %s74
      %p85 = scmp.eq.s32.totalorder %s16, 0
      %p86 = por %p84, %p85
      %p87 = scmp.ne.s32.totalorder %s73, %s74
      %p88 = scmp.eq.s32.totalorder %s17, 3
      %p89 = por %p87, %p88
      %p91 = scmp.ne.s32.totalorder %s74, %s90
      %p92 = scmp.eq.s32.totalorder %s17, 0
      %p93 = por %p91, %p92
      %s94 = ssub.s32 %s19, %s33
      %s95 = ssub.s32 %s18, %s37
      %s96 = sor.u32 %s94, %s95
      %p97 = scmp.eq.s32.totalorder %s96, 0
      %s99 = sadd.s32 %s98, 1
      %s100 = scalar_select %p97, %s98, %s99
      %p103 = pneg %p97
      %p104 = scmp.eq.s32.totalorder %s11, 3
      %p105 = por %p103, %p104
      %p106 = scmp.ne.s32.totalorder %s98, %s101
      %p107 = scmp.eq.s32.totalorder %s11, 0
      %p108 = por %p106, %p107
      %p109 = scmp.ne.s32.totalorder %s98, %s101
      %p110 = scmp.eq.s32.totalorder %s16, 3
      %p111 = por %p109, %p110
      %p112 = scmp.ne.s32.totalorder %s101, %s102
      %p113 = scmp.eq.s32.totalorder %s16, 0
      %p114 = por %p112, %p113
      %p115 = scmp.ne.s32.totalorder %s101, %s102
      %p116 = scmp.eq.s32.totalorder %s17, 3
      %p117 = por %p115, %p116
      %p119 = scmp.ne.s32.totalorder %s102, %s118
      %p120 = scmp.eq.s32.totalorder %s17, 0
      %p121 = por %p119, %p120
      %s122 = ssub.s32 %s18, %s37
      %p123 = scmp.eq.s32.totalorder %s122, 0
      %s125 = sadd.s32 %s124, 1
      %s126 = scalar_select %p123, %s124, %s125
      %p129 = pneg %p123
      %p130 = scmp.eq.s32.totalorder %s11, 3
      %p131 = por %p129, %p130
      %p132 = scmp.ne.s32.totalorder %s124, %s127
      %p133 = scmp.eq.s32.totalorder %s11, 0
      %p134 = por %p132, %p133
      %p135 = scmp.ne.s32.totalorder %s124, %s127
      %p136 = scmp.eq.s32.totalorder %s16, 3
      %p137 = por %p135, %p136
      %p138 = scmp.ne.s32.totalorder %s127, %s128
      %p139 = scmp.eq.s32.totalorder %s16, 0
      %p140 = por %p138, %p139
      %p141 = scmp.ne.s32.totalorder %s127, %s128
      %p142 = scmp.eq.s32.totalorder %s17, 3
      %p143 = por %p141, %p142
      %p145 = scmp.ne.s32.totalorder %s128, %s144
      %p146 = scmp.eq.s32.totalorder %s17, 0
      %p147 = por %p145, %p146
      %s148 = ssub.s32 %s18, %s37
      %p149 = scmp.eq.s32.totalorder %s148, 0
      %s151 = sadd.s32 %s150, 1
      %s152 = scalar_select %p149, %s150, %s151
      %p155 = pneg %p149
      %p156 = scmp.eq.s32.totalorder %s11, 3
      %p157 = por %p155, %p156
      %p158 = scmp.ne.s32.totalorder %s150, %s153
      %p159 = scmp.eq.s32.totalorder %s11, 0
      %p160 = por %p158, %p159
      %p161 = scmp.ne.s32.totalorder %s150, %s153
      %p162 = scmp.eq.s32.totalorder %s16, 3
      %p163 = por %p161, %p162
      %p164 = scmp.ne.s32.totalorder %s153, %s154
      %p165 = scmp.eq.s32.totalorder %s16, 0
      %p166 = por %p164, %p165
      %p167 = scmp.ne.s32.totalorder %s153, %s154
      %p168 = scmp.eq.s32.totalorder %s17, 3
      %p169 = por %p167, %p168
      %p171 = scmp.ne.s32.totalorder %s154, %s170
      %p172 = scmp.eq.s32.totalorder %s17, 0
      %p173 = por %p171, %p172
      %p174 = scmp.le.s32.totalorder 1, %s11
      %p175 = scmp.lt.s32.totalorder %s11, 5
      %p176 = pnand %p174, %p175
      %p177 = pneg %p176
      // Predicated region
      $region9: #{move_analyser_forward.6} parent=5 // pred_check
        _
      $region10: #{move_analyser_forward.6} parent=5 // pred_check_branch
        %179 = sbr.rel (%p176) target = $region12
      $region11: #{move_analyser_forward.6} parent=5 // pred_region
        %s180 = ssub.s32 %s11, 1
      $region12: #{move_analyser_forward.6} parent=5 // pred_fallthru
        _
      %p181 = scmp.lt.s32.totalorder %s11, 4
      // Predicated region
      $region13: #{move_analyser_forward.6} parent=5 // pred_check
        %p182 = pneg %p181
      $region14: #{move_analyser_forward.6} parent=5 // pred_check_branch
        %184 = sbr.rel (%p182) target = $region16
      $region15: #{move_analyser_forward.6} parent=5 // pred_region
        // Predicated region
        $region17: #{move_analyser_forward.6} parent=15 // pred_check
          %p185 = pneg %p52
        $region18: #{move_analyser_forward.6} parent=15 // pred_check_branch
          %187 = sbr.rel (%p185) target = $region20
        $region19: #{move_analyser_forward.6} parent=15 // pred_region
          %s188 = sand.u32 %s42, 1
          %s189 = sand.u32 %s42, 1
          %s190 = smul.addr %s189, 256
          %s191 = scalar_lea.vmem [#allocation3], %s190
          %s192 = smul.u32 32, %s19
          %s193 = smul.u32 2, %s20
          %s194 = smul.addr %s192, 4
          %s195 = sadd.s32 %s193, %s194
          %s196 = smul.addr %s195, 4
          %s197 = scalar_lea.vmem %s0, %s196
          // Predicated region
          $region21: #{move_analyser_forward.6} parent=19 // pred_check
            _
          $region22: #{move_analyser_forward.6} parent=19 // pred_check_branch
            %199 = sbr.rel (0) target = $region24
          $region23: #{move_analyser_forward.6} parent=19 // pred_region
            // Predicated region
            $region25: #{move_analyser_forward.6} parent=23 // pred_check
              _
            $region26: #{move_analyser_forward.6} parent=23 // pred_check_branch
              %201 = sbr.rel (0) target = $region28
            $region27: #{move_analyser_forward.6} parent=23 // pred_region
              // Predicated region
              $region40: #{move_analyser_forward.6} parent=27 // pred_check
                _
              $region41: #{move_analyser_forward.6} parent=27 // pred_check_branch
                %279 = sbr.rel (0) target = $region43
              $region42: #{move_analyser_forward.6} parent=27 // pred_region
                loop: start=0, step=1, limit=1
                $region44: #{move_analyser_forward.6} parent=42 // loop_pre_header
                  _
                $region45: #{move_analyser_forward.6} parent=42 // loop_header
                  %s281 = sphi 0, %s285
                  %p282 = scmp.ge.s32.totalorder %s281, 1
                  %s286 = sphi %s197, %s197
                  %s287 = sphi %s191, %s191
                $region46: #{move_analyser_forward.6} parent=42 // loop_header_branch
                  %284 = sbr.rel (%p282) target = $region50
                $region47: #{move_analyser_forward.6} parent=42 // loop_body
                  %v288 = vld [vmem:[%s286] sm:$0xff]
                  %289 = vst [vmem:[%s287] sm:$0xff] %v288
                  %v290 = vld [vmem:[%s286 + $0x10] sm:$0xff]
                  %291 = vst [vmem:[%s287 + $0x8] sm:$0xff] %v290
                  %v292 = vld [vmem:[%s286 + $0x20] sm:$0xff]
                  %293 = vst [vmem:[%s287 + $0x10] sm:$0xff] %v292
                  %v294 = vld [vmem:[%s286 + $0x30] sm:$0xff]
                  %295 = vst [vmem:[%s287 + $0x18] sm:$0xff] %v294
                  %v296 = vld [vmem:[%s286 + $0x40] sm:$0xff]
                  %297 = vst [vmem:[%s287 + $0x20] sm:$0xff] %v296
                  %v298 = vld [vmem:[%s286 + $0x50] sm:$0xff]
                  %299 = vst [vmem:[%s287 + $0x28] sm:$0xff] %v298
                  %v300 = vld [vmem:[%s286 + $0x60] sm:$0xff]
                  %301 = vst [vmem:[%s287 + $0x30] sm:$0xff] %v300
                  %v302 = vld [vmem:[%s286 + $0x70] sm:$0xff]
                  %303 = vst [vmem:[%s287 + $0x38] sm:$0xff] %v302
                  %v304 = vld [vmem:[%s286 + $0x80] sm:$0xff]
                  %305 = vst [vmem:[%s287 + $0x40] sm:$0xff] %v304
                  %v306 = vld [vmem:[%s286 + $0x90] sm:$0xff]
                  %307 = vst [vmem:[%s287 + $0x48] sm:$0xff] %v306
                  %v308 = vld [vmem:[%s286 + $0xa0] sm:$0xff]
                  %309 = vst [vmem:[%s287 + $0x50] sm:$0xff] %v308
                  %v310 = vld [vmem:[%s286 + $0xb0] sm:$0xff]
                  %311 = vst [vmem:[%s287 + $0x58] sm:$0xff] %v310
                  %v312 = vld [vmem:[%s286 + $0xc0] sm:$0xff]
                  %313 = vst [vmem:[%s287 + $0x60] sm:$0xff] %v312
                  %v314 = vld [vmem:[%s286 + $0xd0] sm:$0xff]
                  %315 = vst [vmem:[%s287 + $0x68] sm:$0xff] %v314
                  %v316 = vld [vmem:[%s286 + $0xe0] sm:$0xff]
                  %317 = vst [vmem:[%s287 + $0x70] sm:$0xff] %v316
                  %v318 = vld [vmem:[%s286 + $0xf0] sm:$0xff]
                  %319 = vst [vmem:[%s287 + $0x78] sm:$0xff] %v318
                  %v320 = vld [vmem:[%s286 + $0x100] sm:$0xff]
                  %321 = vst [vmem:[%s287 + $0x80] sm:$0xff] %v320
                  %v322 = vld [vmem:[%s286 + $0x110] sm:$0xff]
                  %323 = vst [vmem:[%s287 + $0x88] sm:$0xff] %v322
                  %v324 = vld [vmem:[%s286 + $0x120] sm:$0xff]
                  %325 = vst [vmem:[%s287 + $0x90] sm:$0xff] %v324
                  %v326 = vld [vmem:[%s286 + $0x130] sm:$0xff]
                  %327 = vst [vmem:[%s287 + $0x98] sm:$0xff] %v326
                  %v328 = vld [vmem:[%s286 + $0x140] sm:$0xff]
                  %329 = vst [vmem:[%s287 + $0xa0] sm:$0xff] %v328
                  %v330 = vld [vmem:[%s286 + $0x150] sm:$0xff]
                  %331 = vst [vmem:[%s287 + $0xa8] sm:$0xff] %v330
                  %v332 = vld [vmem:[%s286 + $0x160] sm:$0xff]
                  %333 = vst [vmem:[%s287 + $0xb0] sm:$0xff] %v332
                  %v334 = vld [vmem:[%s286 + $0x170] sm:$0xff]
                  %335 = vst [vmem:[%s287 + $0xb8] sm:$0xff] %v334
                  %v336 = vld [vmem:[%s286 + $0x180] sm:$0xff]
                  %337 = vst [vmem:[%s287 + $0xc0] sm:$0xff] %v336
                  %v338 = vld [vmem:[%s286 + $0x190] sm:$0xff]
                  %339 = vst [vmem:[%s287 + $0xc8] sm:$0xff] %v338
                  %v340 = vld [vmem:[%s286 + $0x1a0] sm:$0xff]
                  %341 = vst [vmem:[%s287 + $0xd0] sm:$0xff] %v340
                  %v342 = vld [vmem:[%s286 + $0x1b0] sm:$0xff]
                  %343 = vst [vmem:[%s287 + $0xd8] sm:$0xff] %v342
                  %v344 = vld [vmem:[%s286 + $0x1c0] sm:$0xff]
                  %345 = vst [vmem:[%s287 + $0xe0] sm:$0xff] %v344
                  %v346 = vld [vmem:[%s286 + $0x1d0] sm:$0xff]
                  %347 = vst [vmem:[%s287 + $0xe8] sm:$0xff] %v346
                  %v348 = vld [vmem:[%s286 + $0x1e0] sm:$0xff]
                  %349 = vst [vmem:[%s287 + $0xf0] sm:$0xff] %v348
                  %v350 = vld [vmem:[%s286 + $0x1f0] sm:$0xff]
                  %351 = vst [vmem:[%s287 + $0xf8] sm:$0xff] %v350
                $region48: #{move_analyser_forward.6} parent=42 // loop_footer
                  %s285 = sadd.s32 1, %s281
                $region49: #{move_analyser_forward.6} parent=42 // loop_footer_branch
                  %280 = sbr.rel target = $region45
                $region50: #{move_analyser_forward.6} parent=42 // loop_exit
                  _
              $region43: #{move_analyser_forward.6} parent=27 // pred_fallthru
                _
              // Predicated region
              $region51: #{move_analyser_forward.6} parent=27 // pred_check
                _
              $region52: #{move_analyser_forward.6} parent=27 // pred_check_branch
                %353 = sbr.rel target = $region54
              $region53: #{move_analyser_forward.6} parent=27 // pred_region
                _
              $region54: #{move_analyser_forward.6} parent=27 // pred_fallthru
                _
            $region28: #{move_analyser_forward.6} parent=23 // pred_fallthru
              _
            // Predicated region
            $region29: #{move_analyser_forward.6} parent=23 // pred_check
              _
            $region30: #{move_analyser_forward.6} parent=23 // pred_check_branch
              %203 = sbr.rel target = $region32
            $region31: #{move_analyser_forward.6} parent=23 // pred_region
              %s205 = ssub.s32 256, 1
              loop: start=0, step=1, limit=1
              $region33: #{move_analyser_forward.6} parent=31 // loop_pre_header
                _
              $region34: #{move_analyser_forward.6} parent=31 // loop_header
                %s207 = sphi 0, %s211
                %p208 = scmp.ge.s32.totalorder %s207, 1
                %s212 = sphi %s197, %s197
                %s213 = sphi %s191, %s191
              $region35: #{move_analyser_forward.6} parent=31 // loop_header_branch
                %210 = sbr.rel (%p208) target = $region39
              $region36: #{move_analyser_forward.6} parent=31 // loop_body
                %v214 = vld [vmem:[%s212] sm:%s205]
                %215 = vst [vmem:[%s213] sm:%s205] %v214
                %v216 = vld [vmem:[%s212 + $0x10] sm:%s205]
                %217 = vst [vmem:[%s213 + $0x8] sm:%s205] %v216
                %v218 = vld [vmem:[%s212 + $0x20] sm:%s205]
                %219 = vst [vmem:[%s213 + $0x10] sm:%s205] %v218
                %v220 = vld [vmem:[%s212 + $0x30] sm:%s205]
                %221 = vst [vmem:[%s213 + $0x18] sm:%s205] %v220
                %v222 = vld [vmem:[%s212 + $0x40] sm:%s205]
                %223 = vst [vmem:[%s213 + $0x20] sm:%s205] %v222
                %v224 = vld [vmem:[%s212 + $0x50] sm:%s205]
                %225 = vst [vmem:[%s213 + $0x28] sm:%s205] %v224
                %v226 = vld [vmem:[%s212 + $0x60] sm:%s205]
                %227 = vst [vmem:[%s213 + $0x30] sm:%s205] %v226
                %v228 = vld [vmem:[%s212 + $0x70] sm:%s205]
                %229 = vst [vmem:[%s213 + $0x38] sm:%s205] %v228
                %v230 = vld [vmem:[%s212 + $0x80] sm:%s205]
                %231 = vst [vmem:[%s213 + $0x40] sm:%s205] %v230
                %v232 = vld [vmem:[%s212 + $0x90] sm:%s205]
                %233 = vst [vmem:[%s213 + $0x48] sm:%s205] %v232
                %v234 = vld [vmem:[%s212 + $0xa0] sm:%s205]
                %235 = vst [vmem:[%s213 + $0x50] sm:%s205] %v234
                %v236 = vld [vmem:[%s212 + $0xb0] sm:%s205]
                %237 = vst [vmem:[%s213 + $0x58] sm:%s205] %v236
                %v238 = vld [vmem:[%s212 + $0xc0] sm:%s205]
                %239 = vst [vmem:[%s213 + $0x60] sm:%s205] %v238
                %v240 = vld [vmem:[%s212 + $0xd0] sm:%s205]
                %241 = vst [vmem:[%s213 + $0x68] sm:%s205] %v240
                %v242 = vld [vmem:[%s212 + $0xe0] sm:%s205]
                %243 = vst [vmem:[%s213 + $0x70] sm:%s205] %v242
                %v244 = vld [vmem:[%s212 + $0xf0] sm:%s205]
                %245 = vst [vmem:[%s213 + $0x78] sm:%s205] %v244
                %v246 = vld [vmem:[%s212 + $0x100] sm:%s205]
                %247 = vst [vmem:[%s213 + $0x80] sm:%s205] %v246
                %v248 = vld [vmem:[%s212 + $0x110] sm:%s205]
                %249 = vst [vmem:[%s213 + $0x88] sm:%s205] %v248
                %v250 = vld [vmem:[%s212 + $0x120] sm:%s205]
                %251 = vst [vmem:[%s213 + $0x90] sm:%s205] %v250
                %v252 = vld [vmem:[%s212 + $0x130] sm:%s205]
                %253 = vst [vmem:[%s213 + $0x98] sm:%s205] %v252
                %v254 = vld [vmem:[%s212 + $0x140] sm:%s205]
                %255 = vst [vmem:[%s213 + $0xa0] sm:%s205] %v254
                %v256 = vld [vmem:[%s212 + $0x150] sm:%s205]
                %257 = vst [vmem:[%s213 + $0xa8] sm:%s205] %v256
                %v258 = vld [vmem:[%s212 + $0x160] sm:%s205]
                %259 = vst [vmem:[%s213 + $0xb0] sm:%s205] %v258
                %v260 = vld [vmem:[%s212 + $0x170] sm:%s205]
                %261 = vst [vmem:[%s213 + $0xb8] sm:%s205] %v260
                %v262 = vld [vmem:[%s212 + $0x180] sm:%s205]
                %263 = vst [vmem:[%s213 + $0xc0] sm:%s205] %v262
                %v264 = vld [vmem:[%s212 + $0x190] sm:%s205]
                %265 = vst [vmem:[%s213 + $0xc8] sm:%s205] %v264
                %v266 = vld [vmem:[%s212 + $0x1a0] sm:%s205]
                %267 = vst [vmem:[%s213 + $0xd0] sm:%s205] %v266
                %v268 = vld [vmem:[%s212 + $0x1b0] sm:%s205]
                %269 = vst [vmem:[%s213 + $0xd8] sm:%s205] %v268
                %v270 = vld [vmem:[%s212 + $0x1c0] sm:%s205]
                %271 = vst [vmem:[%s213 + $0xe0] sm:%s205] %v270
                %v272 = vld [vmem:[%s212 + $0x1d0] sm:%s205]
                %273 = vst [vmem:[%s213 + $0xe8] sm:%s205] %v272
                %v274 = vld [vmem:[%s212 + $0x1e0] sm:%s205]
                %275 = vst [vmem:[%s213 + $0xf0] sm:%s205] %v274
                %v276 = vld [vmem:[%s212 + $0x1f0] sm:%s205]
                %277 = vst [vmem:[%s213 + $0xf8] sm:%s205] %v276
              $region37: #{move_analyser_forward.6} parent=31 // loop_footer
                %s211 = sadd.s32 1, %s207
              $region38: #{move_analyser_forward.6} parent=31 // loop_footer_branch
                %206 = sbr.rel target = $region34
              $region39: #{move_analyser_forward.6} parent=31 // loop_exit
                _
            $region32: #{move_analyser_forward.6} parent=23 // pred_fallthru
              _
          $region24: #{move_analyser_forward.6} parent=19 // pred_fallthru
            _
          %354 = vnop
        $region20: #{move_analyser_forward.6} parent=15 // pred_fallthru
          _
        // Predicated region
        $region55: #{move_analyser_forward.6} parent=15 // pred_check
          %p355 = pneg %p80
        $region56: #{move_analyser_forward.6} parent=15 // pred_check_branch
          %357 = sbr.rel (%p355) target = $region58
        $region57: #{move_analyser_forward.6} parent=15 // pred_region
          %s358 = smul.u32 32, %s20
          %s359 = smul.u32 2, %s18
          %p360 = scmp.lt.s32.totalorder %s358, 63
          %s361 = scalar_select %p360, %s358, 63
          %p362 = scmp.lt.s32.totalorder %s359, 1
          %s363 = scalar_select %p362, %s359, 1
          %s364 = smul.addr %s361, 2
          %s365 = sadd.s32 %s363, %s364
          %s366 = smul.addr %s365, 4
          %s367 = scalar_lea.vmem %s1, %s366
          %s368 = smul.u32 32, %s20
          %s369 = smul.u32 2, %s18
        $region58: #{move_analyser_forward.6} parent=15 // pred_fallthru
          _
      $region16: #{move_analyser_forward.6} parent=5 // pred_fallthru
        _
      %p370 = scmp.le.s32.totalorder 1, %s11
      %p371 = scmp.lt.s32.totalorder %s11, 5
      %p372 = pnand %p370, %p371
      %p373 = pneg %p372
      // Predicated region
      $region59: #{move_analyser_forward.6} parent=5 // pred_check
        _
      $region60: #{move_analyser_forward.6} parent=5 // pred_check_branch
        %375 = sbr.rel (%p372) target = $region62
      $region61: #{move_analyser_forward.6} parent=5 // pred_region
        %s376 = ssub.s32 %s11, 1
        %s377 = sand.u32 %s45, 1
        %s378 = sand.u32 %s45, 1
        %s379 = smul.addr %s378, 256
        %s380 = scalar_lea.vmem [#allocation3], %s379
        // Predicated region
        $region63: #{move_analyser_forward.6} parent=61 // pred_check
          %p381 = pneg %p58
        $region64: #{move_analyser_forward.6} parent=61 // pred_check_branch
          %383 = sbr.rel (%p381) target = $region66
        $region65: #{move_analyser_forward.6} parent=61 // pred_region
          _
        $region66: #{move_analyser_forward.6} parent=61 // pred_fallthru
          _
        %s384 = sand.u32 %s45, 1
        %s385 = sand.u32 %s45, 1
        %s386 = smul.addr %s385, 256
        %s387 = scalar_lea.vmem [#allocation3], %s386
        %p388 = pneg %p58
        %p389 = pneg %p55
        %s390 = smul.u32 32, %s23
        %s391 = smul.u32 2, %s21
        %p392 = scmp.lt.s32.totalorder %s390, 63
        %s393 = scalar_select %p392, %s390, 63
        %p394 = scmp.lt.s32.totalorder %s391, 1
        %s395 = scalar_select %p394, %s391, 1
        %s396 = smul.addr %s393, 2
        %s397 = sadd.s32 %s395, %s396
        %s398 = smul.addr %s397, 4
        %s399 = scalar_lea.vmem %s1, %s398
        %p400 = pneg %p86
        %p401 = pneg %p83
        %p402 = pneg %p114
        %p403 = pneg %p111
        %s404 = smul.u32 32, %s22
        %s405 = smul.u32 2, %s21
        %p406 = scmp.lt.s32.totalorder %s404, 63
        %s407 = scalar_select %p406, %s404, 63
        %p408 = scmp.lt.s32.totalorder %s405, 1
        %s409 = scalar_select %p408, %s405, 1
        %s410 = smul.addr %s407, 2
        %s411 = sadd.s32 %s409, %s410
        %s412 = smul.addr %s411, 8
        %s413 = scalar_lea.vmem %s2, %s412
        %p414 = pneg %p140
        %p415 = pneg %p137
        %s416 = smul.u32 2, %s21
        %p417 = scmp.lt.s32.totalorder %s416, 1
        %s418 = scalar_select %p417, %s416, 1
        %s419 = scalar_lea.vmem %s3, %s418
        %p420 = pneg %p166
        %p421 = pneg %p163
        %s422 = smul.u32 2, %s21
        %p423 = scmp.lt.s32.totalorder %s422, 1
        %s424 = scalar_select %p423, %s422, 1
        %s425 = scalar_lea.vmem %s4, %s424
        %s426 = smul.u32 32, %s22
        %s427 = smul.u32 2, %s23
        %s428 = smul.u32 32, %s23
        %s429 = smul.u32 2, %s21
        %p430 = scmp.lt.s32.totalorder %s428, 63
        %s431 = scalar_select %p430, %s428, 63
        %p432 = scmp.lt.s32.totalorder %s429, 1
        %s433 = scalar_select %p432, %s429, 1
        %s434 = smul.addr %s431, 2
        %s435 = sadd.s32 %s433, %s434
        %s436 = smul.addr %s435, 4
        %s437 = scalar_lea.vmem %s1, %s436
        %s438 = smul.u32 32, %s23
        %s439 = smul.u32 2, %s21
        %s440 = smul.u32 32, %s22
        %s441 = smul.u32 2, %s21
        %p442 = scmp.lt.s32.totalorder %s440, 63
        %s443 = scalar_select %p442, %s440, 63
        %p444 = scmp.lt.s32.totalorder %s441, 1
        %s445 = scalar_select %p444, %s441, 1
        %s446 = smul.addr %s443, 2
        %s447 = sadd.s32 %s445, %s446
        %s448 = smul.addr %s447, 8
        %s449 = scalar_lea.vmem %s2, %s448
        %s450 = smul.u32 32, %s22
        %s451 = smul.u32 2, %s21
        %s452 = smul.u32 2, %s21
        %p453 = scmp.lt.s32.totalorder %s452, 1
        %s454 = scalar_select %p453, %s452, 1
        %s455 = scalar_lea.vmem %s3, %s454
        %s456 = smul.u32 2, %s21
        %s457 = smul.u32 2, %s21
        %p458 = scmp.lt.s32.totalorder %s457, 1
        %s459 = scalar_select %p458, %s457, 1
        %s460 = scalar_lea.vmem %s4, %s459
        %s461 = smul.u32 2, %s21
        %p462 = scmp.eq.s32.totalorder %s23, 1
        %p463 = scmp.eq.s32.totalorder %s23, 0
        // Predicated region
        $region67: #{move_analyser_forward.6} parent=61 // pred_check
          %p464 = pneg %p463
        $region68: #{move_analyser_forward.6} parent=61 // pred_check_branch
          %466 = sbr.rel (%p464) target = $region70
        $region69: #{move_analyser_forward.6} parent=61 // pred_region
          %467 = vst [vmem:[#allocation2] sm:$0xff] 0.0
          %468 = vst [vmem:[#allocation2 + $0x8] sm:$0xff] 0.0
          %469 = vst [vmem:[#allocation2 + $0x10] sm:$0xff] 0.0
          %470 = vst [vmem:[#allocation2 + $0x18] sm:$0xff] 0.0
          %471 = vst [vmem:[#allocation2 + $0x20] sm:$0xff] 0.0
          %472 = vst [vmem:[#allocation2 + $0x28] sm:$0xff] 0.0
          %473 = vst [vmem:[#allocation2 + $0x30] sm:$0xff] 0.0
          %474 = vst [vmem:[#allocation2 + $0x38] sm:$0xff] 0.0
          %475 = vst [vmem:[#allocation2 + $0x40] sm:$0xff] 0.0
          %476 = vst [vmem:[#allocation2 + $0x48] sm:$0xff] 0.0
          %477 = vst [vmem:[#allocation2 + $0x50] sm:$0xff] 0.0
          %478 = vst [vmem:[#allocation2 + $0x58] sm:$0xff] 0.0
          %479 = vst [vmem:[#allocation2 + $0x60] sm:$0xff] 0.0
          %480 = vst [vmem:[#allocation2 + $0x68] sm:$0xff] 0.0
          %481 = vst [vmem:[#allocation2 + $0x70] sm:$0xff] 0.0
          %482 = vst [vmem:[#allocation2 + $0x78] sm:$0xff] 0.0
          %483 = vst [vmem:[#allocation2 + $0x80] sm:$0xff] 0.0
          %484 = vst [vmem:[#allocation2 + $0x88] sm:$0xff] 0.0
          %485 = vst [vmem:[#allocation2 + $0x90] sm:$0xff] 0.0
          %486 = vst [vmem:[#allocation2 + $0x98] sm:$0xff] 0.0
          %487 = vst [vmem:[#allocation2 + $0xa0] sm:$0xff] 0.0
          %488 = vst [vmem:[#allocation2 + $0xa8] sm:$0xff] 0.0
          %489 = vst [vmem:[#allocation2 + $0xb0] sm:$0xff] 0.0
          %490 = vst [vmem:[#allocation2 + $0xb8] sm:$0xff] 0.0
          %491 = vst [vmem:[#allocation2 + $0xc0] sm:$0xff] 0.0
          %492 = vst [vmem:[#allocation2 + $0xc8] sm:$0xff] 0.0
          %493 = vst [vmem:[#allocation2 + $0xd0] sm:$0xff] 0.0
          %494 = vst [vmem:[#allocation2 + $0xd8] sm:$0xff] 0.0
          %495 = vst [vmem:[#allocation2 + $0xe0] sm:$0xff] 0.0
          %496 = vst [vmem:[#allocation2 + $0xe8] sm:$0xff] 0.0
          %497 = vst [vmem:[#allocation2 + $0xf0] sm:$0xff] 0.0
          %498 = vst [vmem:[#allocation2 + $0xf8] sm:$0xff] 0.0
          %499 = vst [vmem:[#allocation2 + $0x100] sm:$0xff] 0.0
          %500 = vst [vmem:[#allocation2 + $0x108] sm:$0xff] 0.0
          %501 = vst [vmem:[#allocation2 + $0x110] sm:$0xff] 0.0
          %502 = vst [vmem:[#allocation2 + $0x118] sm:$0xff] 0.0
          %503 = vst [vmem:[#allocation2 + $0x120] sm:$0xff] 0.0
          %504 = vst [vmem:[#allocation2 + $0x128] sm:$0xff] 0.0
          %505 = vst [vmem:[#allocation2 + $0x130] sm:$0xff] 0.0
          %506 = vst [vmem:[#allocation2 + $0x138] sm:$0xff] 0.0
          %507 = vst [vmem:[#allocation2 + $0x140] sm:$0xff] 0.0
          %508 = vst [vmem:[#allocation2 + $0x148] sm:$0xff] 0.0
          %509 = vst [vmem:[#allocation2 + $0x150] sm:$0xff] 0.0
          %510 = vst [vmem:[#allocation2 + $0x158] sm:$0xff] 0.0
          %511 = vst [vmem:[#allocation2 + $0x160] sm:$0xff] 0.0
          %512 = vst [vmem:[#allocation2 + $0x168] sm:$0xff] 0.0
          %513 = vst [vmem:[#allocation2 + $0x170] sm:$0xff] 0.0
          %514 = vst [vmem:[#allocation2 + $0x178] sm:$0xff] 0.0
          %515 = vst [vmem:[#allocation2 + $0x180] sm:$0xff] 0.0
          %516 = vst [vmem:[#allocation2 + $0x188] sm:$0xff] 0.0
          %517 = vst [vmem:[#allocation2 + $0x190] sm:$0xff] 0.0
          %518 = vst [vmem:[#allocation2 + $0x198] sm:$0xff] 0.0
          %519 = vst [vmem:[#allocation2 + $0x1a0] sm:$0xff] 0.0
          %520 = vst [vmem:[#allocation2 + $0x1a8] sm:$0xff] 0.0
          %521 = vst [vmem:[#allocation2 + $0x1b0] sm:$0xff] 0.0
          %522 = vst [vmem:[#allocation2 + $0x1b8] sm:$0xff] 0.0
          %523 = vst [vmem:[#allocation2 + $0x1c0] sm:$0xff] 0.0
          %524 = vst [vmem:[#allocation2 + $0x1c8] sm:$0xff] 0.0
          %525 = vst [vmem:[#allocation2 + $0x1d0] sm:$0xff] 0.0
          %526 = vst [vmem:[#allocation2 + $0x1d8] sm:$0xff] 0.0
          %527 = vst [vmem:[#allocation2 + $0x1e0] sm:$0xff] 0.0
          %528 = vst [vmem:[#allocation2 + $0x1e8] sm:$0xff] 0.0
          %529 = vst [vmem:[#allocation2 + $0x1f0] sm:$0xff] 0.0
          %530 = vst [vmem:[#allocation2 + $0x1f8] sm:$0xff] 0.0
        $region70: #{move_analyser_forward.6} parent=61 // pred_fallthru
          _
        %v531 = vld [vmem:[#allocation2] sm:$0xff]
        %v532 = vld [vmem:[#allocation2 + $0x8] sm:$0xff]
        %v533 = vld [vmem:[#allocation2 + $0x10] sm:$0xff]
        %v534 = vld [vmem:[#allocation2 + $0x18] sm:$0xff]
        %v535 = vld [vmem:[#allocation2 + $0x20] sm:$0xff]
        %v536 = vld [vmem:[#allocation2 + $0x28] sm:$0xff]
        %v537 = vld [vmem:[#allocation2 + $0x30] sm:$0xff]
        %v538 = vld [vmem:[#allocation2 + $0x38] sm:$0xff]
        %v539 = vld [vmem:[#allocation2 + $0x40] sm:$0xff]
        %v540 = vld [vmem:[#allocation2 + $0x48] sm:$0xff]
        %v541 = vld [vmem:[#allocation2 + $0x50] sm:$0xff]
        %v542 = vld [vmem:[#allocation2 + $0x58] sm:$0xff]
        %v543 = vld [vmem:[#allocation2 + $0x60] sm:$0xff]
        %v544 = vld [vmem:[#allocation2 + $0x68] sm:$0xff]
        %v545 = vld [vmem:[#allocation2 + $0x70] sm:$0xff]
        %v546 = vld [vmem:[#allocation2 + $0x78] sm:$0xff]
        %v547 = vld [vmem:[#allocation2 + $0x80] sm:$0xff]
        %v548 = vld [vmem:[#allocation2 + $0x88] sm:$0xff]
        %v549 = vld [vmem:[#allocation2 + $0x90] sm:$0xff]
        %v550 = vld [vmem:[#allocation2 + $0x98] sm:$0xff]
        %v551 = vld [vmem:[#allocation2 + $0xa0] sm:$0xff]
        %v552 = vld [vmem:[#allocation2 + $0xa8] sm:$0xff]
        %v553 = vld [vmem:[#allocation2 + $0xb0] sm:$0xff]
        %v554 = vld [vmem:[#allocation2 + $0xb8] sm:$0xff]
        %v555 = vld [vmem:[#allocation2 + $0xc0] sm:$0xff]
        %v556 = vld [vmem:[#allocation2 + $0xc8] sm:$0xff]
        %v557 = vld [vmem:[#allocation2 + $0xd0] sm:$0xff]
        %v558 = vld [vmem:[#allocation2 + $0xd8] sm:$0xff]
        %v559 = vld [vmem:[#allocation2 + $0xe0] sm:$0xff]
        %v560 = vld [vmem:[#allocation2 + $0xe8] sm:$0xff]
        %v561 = vld [vmem:[#allocation2 + $0xf0] sm:$0xff]
        %v562 = vld [vmem:[#allocation2 + $0xf8] sm:$0xff]
        %v563 = vld [vmem:[#allocation2 + $0x100] sm:$0xff]
        %v564 = vld [vmem:[#allocation2 + $0x108] sm:$0xff]
        %v565 = vld [vmem:[#allocation2 + $0x110] sm:$0xff]
        %v566 = vld [vmem:[#allocation2 + $0x118] sm:$0xff]
        %v567 = vld [vmem:[#allocation2 + $0x120] sm:$0xff]
        %v568 = vld [vmem:[#allocation2 + $0x128] sm:$0xff]
        %v569 = vld [vmem:[#allocation2 + $0x130] sm:$0xff]
        %v570 = vld [vmem:[#allocation2 + $0x138] sm:$0xff]
        %v571 = vld [vmem:[#allocation2 + $0x140] sm:$0xff]
        %v572 = vld [vmem:[#allocation2 + $0x148] sm:$0xff]
        %v573 = vld [vmem:[#allocation2 + $0x150] sm:$0xff]
        %v574 = vld [vmem:[#allocation2 + $0x158] sm:$0xff]
        %v575 = vld [vmem:[#allocation2 + $0x160] sm:$0xff]
        %v576 = vld [vmem:[#allocation2 + $0x168] sm:$0xff]
        %v577 = vld [vmem:[#allocation2 + $0x170] sm:$0xff]
        %v578 = vld [vmem:[#allocation2 + $0x178] sm:$0xff]
        %v579 = vld [vmem:[#allocation2 + $0x180] sm:$0xff]
        %v580 = vld [vmem:[#allocation2 + $0x188] sm:$0xff]
        %v581 = vld [vmem:[#allocation2 + $0x190] sm:$0xff]
        %v582 = vld [vmem:[#allocation2 + $0x198] sm:$0xff]
        %v583 = vld [vmem:[#allocation2 + $0x1a0] sm:$0xff]
        %v584 = vld [vmem:[#allocation2 + $0x1a8] sm:$0xff]
        %v585 = vld [vmem:[#allocation2 + $0x1b0] sm:$0xff]
        %v586 = vld [vmem:[#allocation2 + $0x1b8] sm:$0xff]
        %v587 = vld [vmem:[#allocation2 + $0x1c0] sm:$0xff]
        %v588 = vld [vmem:[#allocation2 + $0x1c8] sm:$0xff]
        %v589 = vld [vmem:[#allocation2 + $0x1d0] sm:$0xff]
        %v590 = vld [vmem:[#allocation2 + $0x1d8] sm:$0xff]
        %v591 = vld [vmem:[#allocation2 + $0x1e0] sm:$0xff]
        %v592 = vld [vmem:[#allocation2 + $0x1e8] sm:$0xff]
        %v593 = vld [vmem:[#allocation2 + $0x1f0] sm:$0xff]
        %v594 = vld [vmem:[#allocation2 + $0x1f8] sm:$0xff]
        %v595 = vld [vmem:[%s380] sm:$0xff]
        %v596 = vld [vmem:[%s380 + $0x8] sm:$0xff]
        %v597 = vld [vmem:[%s380 + $0x10] sm:$0xff]
        %v598 = vld [vmem:[%s380 + $0x18] sm:$0xff]
        %v599 = vld [vmem:[%s380 + $0x20] sm:$0xff]
        %v600 = vld [vmem:[%s380 + $0x28] sm:$0xff]
        %v601 = vld [vmem:[%s380 + $0x30] sm:$0xff]
        %v602 = vld [vmem:[%s380 + $0x38] sm:$0xff]
        %v603 = vld [vmem:[%s380 + $0x40] sm:$0xff]
        %v604 = vld [vmem:[%s380 + $0x48] sm:$0xff]
        %v605 = vld [vmem:[%s380 + $0x50] sm:$0xff]
        %v606 = vld [vmem:[%s380 + $0x58] sm:$0xff]
        %v607 = vld [vmem:[%s380 + $0x60] sm:$0xff]
        %v608 = vld [vmem:[%s380 + $0x68] sm:$0xff]
        %v609 = vld [vmem:[%s380 + $0x70] sm:$0xff]
        %v610 = vld [vmem:[%s380 + $0x78] sm:$0xff]
        %v611 = vld [vmem:[%s380 + $0x80] sm:$0xff]
        %v612 = vld [vmem:[%s380 + $0x88] sm:$0xff]
        %v613 = vld [vmem:[%s380 + $0x90] sm:$0xff]
        %v614 = vld [vmem:[%s380 + $0x98] sm:$0xff]
        %v615 = vld [vmem:[%s380 + $0xa0] sm:$0xff]
        %v616 = vld [vmem:[%s380 + $0xa8] sm:$0xff]
        %v617 = vld [vmem:[%s380 + $0xb0] sm:$0xff]
        %v618 = vld [vmem:[%s380 + $0xb8] sm:$0xff]
        %v619 = vld [vmem:[%s380 + $0xc0] sm:$0xff]
        %v620 = vld [vmem:[%s380 + $0xc8] sm:$0xff]
        %v621 = vld [vmem:[%s380 + $0xd0] sm:$0xff]
        %v622 = vld [vmem:[%s380 + $0xd8] sm:$0xff]
        %v623 = vld [vmem:[%s380 + $0xe0] sm:$0xff]
        %v624 = vld [vmem:[%s380 + $0xe8] sm:$0xff]
        %v625 = vld [vmem:[%s380 + $0xf0] sm:$0xff]
        %v626 = vld [vmem:[%s380 + $0xf8] sm:$0xff]
        %v627 = vld [vmem:[%s437] sm:$0xff]
        %v628 = vld [vmem:[%s437 + $0x8] sm:$0xff]
        %v629 = vld [vmem:[%s437 + $0x10] sm:$0xff]
        %v630 = vld [vmem:[%s437 + $0x18] sm:$0xff]
        %v631 = vld [vmem:[%s437 + $0x20] sm:$0xff]
        %v632 = vld [vmem:[%s437 + $0x28] sm:$0xff]
        %v633 = vld [vmem:[%s437 + $0x30] sm:$0xff]
        %v634 = vld [vmem:[%s437 + $0x38] sm:$0xff]
        %v635 = vld [vmem:[%s437 + $0x40] sm:$0xff]
        %v636 = vld [vmem:[%s437 + $0x48] sm:$0xff]
        %v637 = vld [vmem:[%s437 + $0x50] sm:$0xff]
        %v638 = vld [vmem:[%s437 + $0x58] sm:$0xff]
        %v639 = vld [vmem:[%s437 + $0x60] sm:$0xff]
        %v640 = vld [vmem:[%s437 + $0x68] sm:$0xff]
        %v641 = vld [vmem:[%s437 + $0x70] sm:$0xff]
        %v642 = vld [vmem:[%s437 + $0x78] sm:$0xff]
        %v643 = vld [vmem:[%s437 + $0x80] sm:$0xff]
        %v644 = vld [vmem:[%s437 + $0x88] sm:$0xff]
        %v645 = vld [vmem:[%s437 + $0x90] sm:$0xff]
        %v646 = vld [vmem:[%s437 + $0x98] sm:$0xff]
        %v647 = vld [vmem:[%s437 + $0xa0] sm:$0xff]
        %v648 = vld [vmem:[%s437 + $0xa8] sm:$0xff]
        %v649 = vld [vmem:[%s437 + $0xb0] sm:$0xff]
        %v650 = vld [vmem:[%s437 + $0xb8] sm:$0xff]
        %v651 = vld [vmem:[%s437 + $0xc0] sm:$0xff]
        %v652 = vld [vmem:[%s437 + $0xc8] sm:$0xff]
        %v653 = vld [vmem:[%s437 + $0xd0] sm:$0xff]
        %v654 = vld [vmem:[%s437 + $0xd8] sm:$0xff]
        %v655 = vld [vmem:[%s437 + $0xe0] sm:$0xff]
        %v656 = vld [vmem:[%s437 + $0xe8] sm:$0xff]
        %v657 = vld [vmem:[%s437 + $0xf0] sm:$0xff]
        %v658 = vld [vmem:[%s437 + $0xf8] sm:$0xff]
        %v691 = vunpack.c.l.b16 %v595
        %v692 = vunpack.c.h.b16 %v595
        %v693 = vunpack.c.l.b16 %v596
        %v694 = vunpack.c.h.b16 %v596
        %v695 = vunpack.c.l.b16 %v597
        %v696 = vunpack.c.h.b16 %v597
        %v697 = vunpack.c.l.b16 %v598
        %v698 = vunpack.c.h.b16 %v598
        %v699 = vunpack.c.l.b16 %v599
        %v700 = vunpack.c.h.b16 %v599
        %v701 = vunpack.c.l.b16 %v600
        %v702 = vunpack.c.h.b16 %v600
        %v703 = vunpack.c.l.b16 %v601
        %v704 = vunpack.c.h.b16 %v601
        %v705 = vunpack.c.l.b16 %v602
        %v706 = vunpack.c.h.b16 %v602
        %v707 = vunpack.c.l.b16 %v603
        %v708 = vunpack.c.h.b16 %v603
        %v709 = vunpack.c.l.b16 %v604
        %v710 = vunpack.c.h.b16 %v604
        %v711 = vunpack.c.l.b16 %v605
        %v712 = vunpack.c.h.b16 %v605
        %v713 = vunpack.c.l.b16 %v606
        %v714 = vunpack.c.h.b16 %v606
        %v715 = vunpack.c.l.b16 %v607
        %v716 = vunpack.c.h.b16 %v607
        %v717 = vunpack.c.l.b16 %v608
        %v718 = vunpack.c.h.b16 %v608
        %v719 = vunpack.c.l.b16 %v609
        %v720 = vunpack.c.h.b16 %v609
        %v721 = vunpack.c.l.b16 %v610
        %v722 = vunpack.c.h.b16 %v610
        %v723 = vunpack.c.l.b16 %v611
        %v724 = vunpack.c.h.b16 %v611
        %v725 = vunpack.c.l.b16 %v612
        %v726 = vunpack.c.h.b16 %v612
        %v727 = vunpack.c.l.b16 %v613
        %v728 = vunpack.c.h.b16 %v613
        %v729 = vunpack.c.l.b16 %v614
        %v730 = vunpack.c.h.b16 %v614
        %v731 = vunpack.c.l.b16 %v615
        %v732 = vunpack.c.h.b16 %v615
        %v733 = vunpack.c.l.b16 %v616
        %v734 = vunpack.c.h.b16 %v616
        %v735 = vunpack.c.l.b16 %v617
        %v736 = vunpack.c.h.b16 %v617
        %v737 = vunpack.c.l.b16 %v618
        %v738 = vunpack.c.h.b16 %v618
        %v739 = vunpack.c.l.b16 %v619
        %v740 = vunpack.c.h.b16 %v619
        %v741 = vunpack.c.l.b16 %v620
        %v742 = vunpack.c.h.b16 %v620
        %v743 = vunpack.c.l.b16 %v621
        %v744 = vunpack.c.h.b16 %v621
        %v745 = vunpack.c.l.b16 %v622
        %v746 = vunpack.c.h.b16 %v622
        %v747 = vunpack.c.l.b16 %v623
        %v748 = vunpack.c.h.b16 %v623
        %v749 = vunpack.c.l.b16 %v624
        %v750 = vunpack.c.h.b16 %v624
        %v751 = vunpack.c.l.b16 %v625
        %v752 = vunpack.c.h.b16 %v625
        %v753 = vunpack.c.l.b16 %v626
        %v754 = vunpack.c.h.b16 %v626
        %v755 = vpack.c.b16 %v693, %v691
        %v756 = vpack.c.b16 %v694, %v692
        %v757 = vpack.c.b16 %v697, %v695
        %v758 = vpack.c.b16 %v698, %v696
        %v759 = vpack.c.b16 %v701, %v699
        %v760 = vpack.c.b16 %v702, %v700
        %v761 = vpack.c.b16 %v705, %v703
        %v762 = vpack.c.b16 %v706, %v704
        %v763 = vpack.c.b16 %v709, %v707
        %v764 = vpack.c.b16 %v710, %v708
        %v765 = vpack.c.b16 %v713, %v711
        %v766 = vpack.c.b16 %v714, %v712
        %v767 = vpack.c.b16 %v717, %v715
        %v768 = vpack.c.b16 %v718, %v716
        %v769 = vpack.c.b16 %v721, %v719
        %v770 = vpack.c.b16 %v722, %v720
        %v771 = vpack.c.b16 %v725, %v723
        %v772 = vpack.c.b16 %v726, %v724
        %v773 = vpack.c.b16 %v729, %v727
        %v774 = vpack.c.b16 %v730, %v728
        %v775 = vpack.c.b16 %v733, %v731
        %v776 = vpack.c.b16 %v734, %v732
        %v777 = vpack.c.b16 %v737, %v735
        %v778 = vpack.c.b16 %v738, %v736
        %v779 = vpack.c.b16 %v741, %v739
        %v780 = vpack.c.b16 %v742, %v740
        %v781 = vpack.c.b16 %v745, %v743
        %v782 = vpack.c.b16 %v746, %v744
        %v783 = vpack.c.b16 %v749, %v747
        %v784 = vpack.c.b16 %v750, %v748
        %v785 = vpack.c.b16 %v753, %v751
        %v786 = vpack.c.b16 %v754, %v752
        %v851 = vunpack.c.l.b16 %v627
        %v852 = vunpack.c.h.b16 %v627
        %v853 = vunpack.c.l.b16 %v628
        %v854 = vunpack.c.h.b16 %v628
        %v855 = vunpack.c.l.b16 %v629
        %v856 = vunpack.c.h.b16 %v629
        %v857 = vunpack.c.l.b16 %v630
        %v858 = vunpack.c.h.b16 %v630
        %v859 = vunpack.c.l.b16 %v631
        %v860 = vunpack.c.h.b16 %v631
        %v861 = vunpack.c.l.b16 %v632
        %v862 = vunpack.c.h.b16 %v632
        %v863 = vunpack.c.l.b16 %v633
        %v864 = vunpack.c.h.b16 %v633
        %v865 = vunpack.c.l.b16 %v634
        %v866 = vunpack.c.h.b16 %v634
        %v867 = vunpack.c.l.b16 %v635
        %v868 = vunpack.c.h.b16 %v635
        %v869 = vunpack.c.l.b16 %v636
        %v870 = vunpack.c.h.b16 %v636
        %v871 = vunpack.c.l.b16 %v637
        %v872 = vunpack.c.h.b16 %v637
        %v873 = vunpack.c.l.b16 %v638
        %v874 = vunpack.c.h.b16 %v638
        %v875 = vunpack.c.l.b16 %v639
        %v876 = vunpack.c.h.b16 %v639
        %v877 = vunpack.c.l.b16 %v640
        %v878 = vunpack.c.h.b16 %v640
        %v879 = vunpack.c.l.b16 %v641
        %v880 = vunpack.c.h.b16 %v641
        %v881 = vunpack.c.l.b16 %v642
        %v882 = vunpack.c.h.b16 %v642
        %v883 = vunpack.c.l.b16 %v643
        %v884 = vunpack.c.h.b16 %v643
        %v885 = vunpack.c.l.b16 %v644
        %v886 = vunpack.c.h.b16 %v644
        %v887 = vunpack.c.l.b16 %v645
        %v888 = vunpack.c.h.b16 %v645
        %v889 = vunpack.c.l.b16 %v646
        %v890 = vunpack.c.h.b16 %v646
        %v891 = vunpack.c.l.b16 %v647
        %v892 = vunpack.c.h.b16 %v647
        %v893 = vunpack.c.l.b16 %v648
        %v894 = vunpack.c.h.b16 %v648
        %v895 = vunpack.c.l.b16 %v649
        %v896 = vunpack.c.h.b16 %v649
        %v897 = vunpack.c.l.b16 %v650
        %v898 = vunpack.c.h.b16 %v650
        %v899 = vunpack.c.l.b16 %v651
        %v900 = vunpack.c.h.b16 %v651
        %v901 = vunpack.c.l.b16 %v652
        %v902 = vunpack.c.h.b16 %v652
        %v903 = vunpack.c.l.b16 %v653
        %v904 = vunpack.c.h.b16 %v653
        %v905 = vunpack.c.l.b16 %v654
        %v906 = vunpack.c.h.b16 %v654
        %v907 = vunpack.c.l.b16 %v655
        %v908 = vunpack.c.h.b16 %v655
        %v909 = vunpack.c.l.b16 %v656
        %v910 = vunpack.c.h.b16 %v656
        %v911 = vunpack.c.l.b16 %v657
        %v912 = vunpack.c.h.b16 %v657
        %v913 = vunpack.c.l.b16 %v658
        %v914 = vunpack.c.h.b16 %v658
        %v915 = vpack.c.b16 %v853, %v851
        %v916 = vpack.c.b16 %v854, %v852
        %v917 = vpack.c.b16 %v857, %v855
        %v918 = vpack.c.b16 %v858, %v856
        %v919 = vpack.c.b16 %v861, %v859
        %v920 = vpack.c.b16 %v862, %v860
        %v921 = vpack.c.b16 %v865, %v863
        %v922 = vpack.c.b16 %v866, %v864
        %v923 = vpack.c.b16 %v869, %v867
        %v924 = vpack.c.b16 %v870, %v868
        %v925 = vpack.c.b16 %v873, %v871
        %v926 = vpack.c.b16 %v874, %v872
        %v927 = vpack.c.b16 %v877, %v875
        %v928 = vpack.c.b16 %v878, %v876
        %v929 = vpack.c.b16 %v881, %v879
        %v930 = vpack.c.b16 %v882, %v880
        %v931 = vpack.c.b16 %v885, %v883
        %v932 = vpack.c.b16 %v886, %v884
        %v933 = vpack.c.b16 %v889, %v887
        %v934 = vpack.c.b16 %v890, %v888
        %v935 = vpack.c.b16 %v893, %v891
        %v936 = vpack.c.b16 %v894, %v892
        %v937 = vpack.c.b16 %v897, %v895
        %v938 = vpack.c.b16 %v898, %v896
        %v939 = vpack.c.b16 %v901, %v899
        %v940 = vpack.c.b16 %v902, %v900
        %v941 = vpack.c.b16 %v905, %v903
        %v942 = vpack.c.b16 %v906, %v904
        %v943 = vpack.c.b16 %v909, %v907
        %v944 = vpack.c.b16 %v910, %v908
        %v945 = vpack.c.b16 %v913, %v911
        %v946 = vpack.c.b16 %v914, %v912
        %979 = vmatprep.subr.bf16.mxu0 %v930
        %980 = vmatpush1.bf16.msra.mxu0 %v929
        %981 = vmatprep.subr.bf16.mxu0 %v928
        %982 = vmatpush1.bf16.msra.mxu0 %v927
        %983 = vmatprep.subr.bf16.mxu0 %v926
        %984 = vmatpush1.bf16.msra.mxu0 %v925
        %985 = vmatprep.subr.bf16.mxu0 %v924
        %986 = vmatpush1.bf16.msra.mxu0 %v923
        %987 = vmatprep.subr.bf16.mxu0 %v922
        %988 = vmatpush1.bf16.msra.mxu0 %v921
        %989 = vmatprep.subr.bf16.mxu0 %v920
        %990 = vmatpush1.bf16.msra.mxu0 %v919
        %991 = vmatprep.subr.bf16.mxu0 %v918
        %992 = vmatpush1.bf16.msra.mxu0 %v917
        %993 = vmatprep.subr.bf16.mxu0 %v916
        %994 = vmatpush1.bf16.msra.mxu0 %v915
        %995 = vmatprep.subr.bf16.mxu0 %v946
        %996 = vmatpush2.bf16.msra.mxu0 %v945
        %997 = vmatprep.subr.bf16.mxu0 %v944
        %998 = vmatpush2.bf16.msra.mxu0 %v943
        %999 = vmatprep.subr.bf16.mxu0 %v942
        %1000 = vmatpush2.bf16.msra.mxu0 %v941
        %1001 = vmatprep.subr.bf16.mxu0 %v940
        %1002 = vmatpush2.bf16.msra.mxu0 %v939
        %1003 = vmatprep.subr.bf16.mxu0 %v938
        %1004 = vmatpush2.bf16.msra.mxu0 %v937
        %1005 = vmatprep.subr.bf16.mxu0 %v936
        %1006 = vmatpush2.bf16.msra.mxu0 %v935
        %1007 = vmatprep.subr.bf16.mxu0 %v934
        %1008 = vmatpush2.bf16.msra.mxu0 %v933
        %1009 = vmatprep.subr.bf16.mxu0 %v932
        %1010 = vmatpush2.bf16.msra.mxu0 %v931
        %1011 = vmatprep.mubr.bf16.mxu0 %v756
        %1012 = vmatmul.mubr.bf16.gmra.mxu0 %v755
        %v1013 = vpop.f32.mrf.mxu0
        %v1014 = vadd.f32 0.0, %v1013
        %v1015 = vpop.f32.mrf.mxu0
        %v1016 = vadd.f32 0.0, %v1015
        %v1017 = vpop.f32.mrf.mxu0
        %v1018 = vadd.f32 0.0, %v1017
        %v1019 = vpop.f32.mrf.mxu0
        %v1020 = vadd.f32 0.0, %v1019
        %1021 = vmatprep.mubr.bf16.mxu0 %v758
        %1022 = vmatmul.mubr.bf16.gmra.mxu0 %v757
        %v1023 = vpop.f32.mrf.mxu0
        %v1024 = vadd.f32 0.0, %v1023
        %v1025 = vpop.f32.mrf.mxu0
        %v1026 = vadd.f32 0.0, %v1025
        %v1027 = vpop.f32.mrf.mxu0
        %v1028 = vadd.f32 0.0, %v1027
        %v1029 = vpop.f32.mrf.mxu0
        %v1030 = vadd.f32 0.0, %v1029
        %1031 = vmatprep.mubr.bf16.mxu0 %v760
        %1032 = vmatmul.mubr.bf16.gmra.mxu0 %v759
        %v1033 = vpop.f32.mrf.mxu0
        %v1034 = vadd.f32 0.0, %v1033
        %v1035 = vpop.f32.mrf.mxu0
        %v1036 = vadd.f32 0.0, %v1035
        %v1037 = vpop.f32.mrf.mxu0
        %v1038 = vadd.f32 0.0, %v1037
        %v1039 = vpop.f32.mrf.mxu0
        %v1040 = vadd.f32 0.0, %v1039
        %1041 = vmatprep.mubr.bf16.mxu0 %v762
        %1042 = vmatmul.mubr.bf16.gmra.mxu0 %v761
        %v1043 = vpop.f32.mrf.mxu0
        %v1044 = vadd.f32 0.0, %v1043
        %v1045 = vpop.f32.mrf.mxu0
        %v1046 = vadd.f32 0.0, %v1045
        %v1047 = vpop.f32.mrf.mxu0
        %v1048 = vadd.f32 0.0, %v1047
        %v1049 = vpop.f32.mrf.mxu0
        %v1050 = vadd.f32 0.0, %v1049
        %1051 = vmatprep.mubr.bf16.mxu0 %v764
        %1052 = vmatmul.mubr.bf16.gmra.mxu0 %v763
        %v1053 = vpop.f32.mrf.mxu0
        %v1054 = vadd.f32 0.0, %v1053
        %v1055 = vpop.f32.mrf.mxu0
        %v1056 = vadd.f32 0.0, %v1055
        %v1057 = vpop.f32.mrf.mxu0
        %v1058 = vadd.f32 0.0, %v1057
        %v1059 = vpop.f32.mrf.mxu0
        %v1060 = vadd.f32 0.0, %v1059
        %1061 = vmatprep.mubr.bf16.mxu0 %v766
        %1062 = vmatmul.mubr.bf16.gmra.mxu0 %v765
        %v1063 = vpop.f32.mrf.mxu0
        %v1064 = vadd.f32 0.0, %v1063
        %v1065 = vpop.f32.mrf.mxu0
        %v1066 = vadd.f32 0.0, %v1065
        %v1067 = vpop.f32.mrf.mxu0
        %v1068 = vadd.f32 0.0, %v1067
        %v1069 = vpop.f32.mrf.mxu0
        %v1070 = vadd.f32 0.0, %v1069
        %1071 = vmatprep.mubr.bf16.mxu0 %v768
        %1072 = vmatmul.mubr.bf16.gmra.mxu0 %v767
        %v1073 = vpop.f32.mrf.mxu0
        %v1074 = vadd.f32 0.0, %v1073
        %v1075 = vpop.f32.mrf.mxu0
        %v1076 = vadd.f32 0.0, %v1075
        %v1077 = vpop.f32.mrf.mxu0
        %v1078 = vadd.f32 0.0, %v1077
        %v1079 = vpop.f32.mrf.mxu0
        %v1080 = vadd.f32 0.0, %v1079
        %1081 = vmatprep.mubr.bf16.mxu0 %v770
        %1082 = vmatmul.mubr.bf16.gmra.mxu0 %v769
        %v1083 = vpop.f32.mrf.mxu0
        %v1084 = vadd.f32 0.0, %v1083
        %v1085 = vpop.f32.mrf.mxu0
        %v1086 = vadd.f32 0.0, %v1085
        %v1087 = vpop.f32.mrf.mxu0
        %v1088 = vadd.f32 0.0, %v1087
        %v1089 = vpop.f32.mrf.mxu0
        %v1090 = vadd.f32 0.0, %v1089
        %1091 = vmatprep.mubr.bf16.mxu0 %v772
        %1092 = vmatmul.mubr.bf16.gmra.mxu0 %v771
        %v1093 = vpop.f32.mrf.mxu0
        %v1094 = vadd.f32 0.0, %v1093
        %v1095 = vpop.f32.mrf.mxu0
        %v1096 = vadd.f32 0.0, %v1095
        %v1097 = vpop.f32.mrf.mxu0
        %v1098 = vadd.f32 0.0, %v1097
        %v1099 = vpop.f32.mrf.mxu0
        %v1100 = vadd.f32 0.0, %v1099
        %1101 = vmatprep.mubr.bf16.mxu0 %v774
        %1102 = vmatmul.mubr.bf16.gmra.mxu0 %v773
        %v1103 = vpop.f32.mrf.mxu0
        %v1104 = vadd.f32 0.0, %v1103
        %v1105 = vpop.f32.mrf.mxu0
        %v1106 = vadd.f32 0.0, %v1105
        %v1107 = vpop.f32.mrf.mxu0
        %v1108 = vadd.f32 0.0, %v1107
        %v1109 = vpop.f32.mrf.mxu0
        %v1110 = vadd.f32 0.0, %v1109
        %1111 = vmatprep.mubr.bf16.mxu0 %v776
        %1112 = vmatmul.mubr.bf16.gmra.mxu0 %v775
        %v1113 = vpop.f32.mrf.mxu0
        %v1114 = vadd.f32 0.0, %v1113
        %v1115 = vpop.f32.mrf.mxu0
        %v1116 = vadd.f32 0.0, %v1115
        %v1117 = vpop.f32.mrf.mxu0
        %v1118 = vadd.f32 0.0, %v1117
        %v1119 = vpop.f32.mrf.mxu0
        %v1120 = vadd.f32 0.0, %v1119
        %1121 = vmatprep.mubr.bf16.mxu0 %v778
        %1122 = vmatmul.mubr.bf16.gmra.mxu0 %v777
        %v1123 = vpop.f32.mrf.mxu0
        %v1124 = vadd.f32 0.0, %v1123
        %v1125 = vpop.f32.mrf.mxu0
        %v1126 = vadd.f32 0.0, %v1125
        %v1127 = vpop.f32.mrf.mxu0
        %v1128 = vadd.f32 0.0, %v1127
        %v1129 = vpop.f32.mrf.mxu0
        %v1130 = vadd.f32 0.0, %v1129
        %1131 = vmatprep.mubr.bf16.mxu0 %v780
        %1132 = vmatmul.mubr.bf16.gmra.mxu0 %v779
        %v1133 = vpop.f32.mrf.mxu0
        %v1134 = vadd.f32 0.0, %v1133
        %v1135 = vpop.f32.mrf.mxu0
        %v1136 = vadd.f32 0.0, %v1135
        %v1137 = vpop.f32.mrf.mxu0
        %v1138 = vadd.f32 0.0, %v1137
        %v1139 = vpop.f32.mrf.mxu0
        %v1140 = vadd.f32 0.0, %v1139
        %1141 = vmatprep.mubr.bf16.mxu0 %v782
        %1142 = vmatmul.mubr.bf16.gmra.mxu0 %v781
        %v1143 = vpop.f32.mrf.mxu0
        %v1144 = vadd.f32 0.0, %v1143
        %v1145 = vpop.f32.mrf.mxu0
        %v1146 = vadd.f32 0.0, %v1145
        %v1147 = vpop.f32.mrf.mxu0
        %v1148 = vadd.f32 0.0, %v1147
        %v1149 = vpop.f32.mrf.mxu0
        %v1150 = vadd.f32 0.0, %v1149
        %1151 = vmatprep.mubr.bf16.mxu0 %v784
        %1152 = vmatmul.mubr.bf16.gmra.mxu0 %v783
        %v1153 = vpop.f32.mrf.mxu0
        %v1154 = vadd.f32 0.0, %v1153
        %v1155 = vpop.f32.mrf.mxu0
        %v1156 = vadd.f32 0.0, %v1155
        %v1157 = vpop.f32.mrf.mxu0
        %v1158 = vadd.f32 0.0, %v1157
        %v1159 = vpop.f32.mrf.mxu0
        %v1160 = vadd.f32 0.0, %v1159
        %1161 = vmatprep.mubr.bf16.mxu0 %v786
        %1162 = vmatmul.mubr.bf16.gmra.mxu0 %v785
        %v1163 = vpop.f32.mrf.mxu0
        %v1164 = vadd.f32 0.0, %v1163
        %v1165 = vpop.f32.mrf.mxu0
        %v1166 = vadd.f32 0.0, %v1165
        %v1167 = vpop.f32.mrf.mxu0
        %v1168 = vadd.f32 0.0, %v1167
        %v1169 = vpop.f32.mrf.mxu0
        %v1170 = vadd.f32 0.0, %v1169
        %1171 = vdwg.mxu0
        %v1172 = vadd.f32 %v531, %v1014
        %v1173 = vadd.f32 %v532, %v1016
        %v1174 = vadd.f32 %v533, %v1018
        %v1175 = vadd.f32 %v534, %v1020
        %v1176 = vadd.f32 %v535, %v1024
        %v1177 = vadd.f32 %v536, %v1026
        %v1178 = vadd.f32 %v537, %v1028
        %v1179 = vadd.f32 %v538, %v1030
        %v1180 = vadd.f32 %v539, %v1034
        %v1181 = vadd.f32 %v540, %v1036
        %v1182 = vadd.f32 %v541, %v1038
        %v1183 = vadd.f32 %v542, %v1040
        %v1184 = vadd.f32 %v543, %v1044
        %v1185 = vadd.f32 %v544, %v1046
        %v1186 = vadd.f32 %v545, %v1048
        %v1187 = vadd.f32 %v546, %v1050
        %v1188 = vadd.f32 %v547, %v1054
        %v1189 = vadd.f32 %v548, %v1056
        %v1190 = vadd.f32 %v549, %v1058
        %v1191 = vadd.f32 %v550, %v1060
        %v1192 = vadd.f32 %v551, %v1064
        %v1193 = vadd.f32 %v552, %v1066
        %v1194 = vadd.f32 %v553, %v1068
        %v1195 = vadd.f32 %v554, %v1070
        %v1196 = vadd.f32 %v555, %v1074
        %v1197 = vadd.f32 %v556, %v1076
        %v1198 = vadd.f32 %v557, %v1078
        %v1199 = vadd.f32 %v558, %v1080
        %v1200 = vadd.f32 %v559, %v1084
        %v1201 = vadd.f32 %v560, %v1086
        %v1202 = vadd.f32 %v561, %v1088
        %v1203 = vadd.f32 %v562, %v1090
        %v1204 = vadd.f32 %v563, %v1094
        %v1205 = vadd.f32 %v564, %v1096
        %v1206 = vadd.f32 %v565, %v1098
        %v1207 = vadd.f32 %v566, %v1100
        %v1208 = vadd.f32 %v567, %v1104
        %v1209 = vadd.f32 %v568, %v1106
        %v1210 = vadd.f32 %v569, %v1108
        %v1211 = vadd.f32 %v570, %v1110
        %v1212 = vadd.f32 %v571, %v1114
        %v1213 = vadd.f32 %v572, %v1116
        %v1214 = vadd.f32 %v573, %v1118
        %v1215 = vadd.f32 %v574, %v1120
        %v1216 = vadd.f32 %v575, %v1124
        %v1217 = vadd.f32 %v576, %v1126
        %v1218 = vadd.f32 %v577, %v1128
        %v1219 = vadd.f32 %v578, %v1130
        %v1220 = vadd.f32 %v579, %v1134
        %v1221 = vadd.f32 %v580, %v1136
        %v1222 = vadd.f32 %v581, %v1138
        %v1223 = vadd.f32 %v582, %v1140
        %v1224 = vadd.f32 %v583, %v1144
        %v1225 = vadd.f32 %v584, %v1146
        %v1226 = vadd.f32 %v585, %v1148
        %v1227 = vadd.f32 %v586, %v1150
        %v1228 = vadd.f32 %v587, %v1154
        %v1229 = vadd.f32 %v588, %v1156
        %v1230 = vadd.f32 %v589, %v1158
        %v1231 = vadd.f32 %v590, %v1160
        %v1232 = vadd.f32 %v591, %v1164
        %v1233 = vadd.f32 %v592, %v1166
        %v1234 = vadd.f32 %v593, %v1168
        %v1235 = vadd.f32 %v594, %v1170
        %1236 = vst [vmem:[#allocation2] sm:$0xff] %v1172
        %1237 = vst [vmem:[#allocation2 + $0x8] sm:$0xff] %v1173
        %1238 = vst [vmem:[#allocation2 + $0x10] sm:$0xff] %v1174
        %1239 = vst [vmem:[#allocation2 + $0x18] sm:$0xff] %v1175
        %1240 = vst [vmem:[#allocation2 + $0x20] sm:$0xff] %v1176
        %1241 = vst [vmem:[#allocation2 + $0x28] sm:$0xff] %v1177
        %1242 = vst [vmem:[#allocation2 + $0x30] sm:$0xff] %v1178
        %1243 = vst [vmem:[#allocation2 + $0x38] sm:$0xff] %v1179
        %1244 = vst [vmem:[#allocation2 + $0x40] sm:$0xff] %v1180
        %1245 = vst [vmem:[#allocation2 + $0x48] sm:$0xff] %v1181
        %1246 = vst [vmem:[#allocation2 + $0x50] sm:$0xff] %v1182
        %1247 = vst [vmem:[#allocation2 + $0x58] sm:$0xff] %v1183
        %1248 = vst [vmem:[#allocation2 + $0x60] sm:$0xff] %v1184
        %1249 = vst [vmem:[#allocation2 + $0x68] sm:$0xff] %v1185
        %1250 = vst [vmem:[#allocation2 + $0x70] sm:$0xff] %v1186
        %1251 = vst [vmem:[#allocation2 + $0x78] sm:$0xff] %v1187
        %1252 = vst [vmem:[#allocation2 + $0x80] sm:$0xff] %v1188
        %1253 = vst [vmem:[#allocation2 + $0x88] sm:$0xff] %v1189
        %1254 = vst [vmem:[#allocation2 + $0x90] sm:$0xff] %v1190
        %1255 = vst [vmem:[#allocation2 + $0x98] sm:$0xff] %v1191
        %1256 = vst [vmem:[#allocation2 + $0xa0] sm:$0xff] %v1192
        %1257 = vst [vmem:[#allocation2 + $0xa8] sm:$0xff] %v1193
        %1258 = vst [vmem:[#allocation2 + $0xb0] sm:$0xff] %v1194
        %1259 = vst [vmem:[#allocation2 + $0xb8] sm:$0xff] %v1195
        %1260 = vst [vmem:[#allocation2 + $0xc0] sm:$0xff] %v1196
        %1261 = vst [vmem:[#allocation2 + $0xc8] sm:$0xff] %v1197
        %1262 = vst [vmem:[#allocation2 + $0xd0] sm:$0xff] %v1198
        %1263 = vst [vmem:[#allocation2 + $0xd8] sm:$0xff] %v1199
        %1264 = vst [vmem:[#allocation2 + $0xe0] sm:$0xff] %v1200
        %1265 = vst [vmem:[#allocation2 + $0xe8] sm:$0xff] %v1201
        %1266 = vst [vmem:[#allocation2 + $0xf0] sm:$0xff] %v1202
        %1267 = vst [vmem:[#allocation2 + $0xf8] sm:$0xff] %v1203
        %1268 = vst [vmem:[#allocation2 + $0x100] sm:$0xff] %v1204
        %1269 = vst [vmem:[#allocation2 + $0x108] sm:$0xff] %v1205
        %1270 = vst [vmem:[#allocation2 + $0x110] sm:$0xff] %v1206
        %1271 = vst [vmem:[#allocation2 + $0x118] sm:$0xff] %v1207
        %1272 = vst [vmem:[#allocation2 + $0x120] sm:$0xff] %v1208
        %1273 = vst [vmem:[#allocation2 + $0x128] sm:$0xff] %v1209
        %1274 = vst [vmem:[#allocation2 + $0x130] sm:$0xff] %v1210
        %1275 = vst [vmem:[#allocation2 + $0x138] sm:$0xff] %v1211
        %1276 = vst [vmem:[#allocation2 + $0x140] sm:$0xff] %v1212
        %1277 = vst [vmem:[#allocation2 + $0x148] sm:$0xff] %v1213
        %1278 = vst [vmem:[#allocation2 + $0x150] sm:$0xff] %v1214
        %1279 = vst [vmem:[#allocation2 + $0x158] sm:$0xff] %v1215
        %1280 = vst [vmem:[#allocation2 + $0x160] sm:$0xff] %v1216
        %1281 = vst [vmem:[#allocation2 + $0x168] sm:$0xff] %v1217
        %1282 = vst [vmem:[#allocation2 + $0x170] sm:$0xff] %v1218
        %1283 = vst [vmem:[#allocation2 + $0x178] sm:$0xff] %v1219
        %1284 = vst [vmem:[#allocation2 + $0x180] sm:$0xff] %v1220
        %1285 = vst [vmem:[#allocation2 + $0x188] sm:$0xff] %v1221
        %1286 = vst [vmem:[#allocation2 + $0x190] sm:$0xff] %v1222
        %1287 = vst [vmem:[#allocation2 + $0x198] sm:$0xff] %v1223
        %1288 = vst [vmem:[#allocation2 + $0x1a0] sm:$0xff] %v1224
        %1289 = vst [vmem:[#allocation2 + $0x1a8] sm:$0xff] %v1225
        %1290 = vst [vmem:[#allocation2 + $0x1b0] sm:$0xff] %v1226
        %1291 = vst [vmem:[#allocation2 + $0x1b8] sm:$0xff] %v1227
        %1292 = vst [vmem:[#allocation2 + $0x1c0] sm:$0xff] %v1228
        %1293 = vst [vmem:[#allocation2 + $0x1c8] sm:$0xff] %v1229
        %1294 = vst [vmem:[#allocation2 + $0x1d0] sm:$0xff] %v1230
        %1295 = vst [vmem:[#allocation2 + $0x1d8] sm:$0xff] %v1231
        %1296 = vst [vmem:[#allocation2 + $0x1e0] sm:$0xff] %v1232
        %1297 = vst [vmem:[#allocation2 + $0x1e8] sm:$0xff] %v1233
        %1298 = vst [vmem:[#allocation2 + $0x1f0] sm:$0xff] %v1234
        %1299 = vst [vmem:[#allocation2 + $0x1f8] sm:$0xff] %v1235
        %p1300 = scmp.eq.s32.totalorder %s22, 0
        %p1301 = pnand %p462, %p1300
        %p1302 = pneg %p1301
        // Predicated region
        $region71: #{move_analyser_forward.6} parent=61 // pred_check
          _
        $region72: #{move_analyser_forward.6} parent=61 // pred_check_branch
          %1304 = sbr.rel (%p1301) target = $region74
        $region73: #{move_analyser_forward.6} parent=61 // pred_region
          %v1305 = vlaneseq
          %vm1306 = vcmp.ge.s32.totalorder %v1305, 0
          %vm1307 = vcmp.lt.s32.totalorder %v1305, 256
          %vm1308 = vmand %vm1306, %vm1307
          %1309 = vst.msk [vmem:[%s455] sm:$0x3] %vm1308, 0.0
          %1310 = vst.msk [vmem:[%s460] sm:$0x3] %vm1308, 0.0
        $region74: #{move_analyser_forward.6} parent=61 // pred_fallthru
          _
        // Predicated region
        $region75: #{move_analyser_forward.6} parent=61 // pred_check
          %p1311 = pneg %p462
        $region76: #{move_analyser_forward.6} parent=61 // pred_check_branch
          %1313 = sbr.rel (%p1311) target = $region78
        $region77: #{move_analyser_forward.6} parent=61 // pred_region
          %v1314 = vld [vmem:[#allocation2] sm:$0xff]
          %v1315 = vld [vmem:[#allocation2 + $0x8] sm:$0xff]
          %v1316 = vld [vmem:[#allocation2 + $0x10] sm:$0xff]
          %v1317 = vld [vmem:[#allocation2 + $0x18] sm:$0xff]
          %v1318 = vld [vmem:[#allocation2 + $0x20] sm:$0xff]
          %v1319 = vld [vmem:[#allocation2 + $0x28] sm:$0xff]
          %v1320 = vld [vmem:[#allocation2 + $0x30] sm:$0xff]
          %v1321 = vld [vmem:[#allocation2 + $0x38] sm:$0xff]
          %v1322 = vld [vmem:[#allocation2 + $0x40] sm:$0xff]
          %v1323 = vld [vmem:[#allocation2 + $0x48] sm:$0xff]
          %v1324 = vld [vmem:[#allocation2 + $0x50] sm:$0xff]
          %v1325 = vld [vmem:[#allocation2 + $0x58] sm:$0xff]
          %v1326 = vld [vmem:[#allocation2 + $0x60] sm:$0xff]
          %v1327 = vld [vmem:[#allocation2 + $0x68] sm:$0xff]
          %v1328 = vld [vmem:[#allocation2 + $0x70] sm:$0xff]
          %v1329 = vld [vmem:[#allocation2 + $0x78] sm:$0xff]
          %v1330 = vld [vmem:[#allocation2 + $0x80] sm:$0xff]
          %v1331 = vld [vmem:[#allocation2 + $0x88] sm:$0xff]
          %v1332 = vld [vmem:[#allocation2 + $0x90] sm:$0xff]
          %v1333 = vld [vmem:[#allocation2 + $0x98] sm:$0xff]
          %v1334 = vld [vmem:[#allocation2 + $0xa0] sm:$0xff]
          %v1335 = vld [vmem:[#allocation2 + $0xa8] sm:$0xff]
          %v1336 = vld [vmem:[#allocation2 + $0xb0] sm:$0xff]
          %v1337 = vld [vmem:[#allocation2 + $0xb8] sm:$0xff]
          %v1338 = vld [vmem:[#allocation2 + $0xc0] sm:$0xff]
          %v1339 = vld [vmem:[#allocation2 + $0xc8] sm:$0xff]
          %v1340 = vld [vmem:[#allocation2 + $0xd0] sm:$0xff]
          %v1341 = vld [vmem:[#allocation2 + $0xd8] sm:$0xff]
          %v1342 = vld [vmem:[#allocation2 + $0xe0] sm:$0xff]
          %v1343 = vld [vmem:[#allocation2 + $0xe8] sm:$0xff]
          %v1344 = vld [vmem:[#allocation2 + $0xf0] sm:$0xff]
          %v1345 = vld [vmem:[#allocation2 + $0xf8] sm:$0xff]
          %v1346 = vld [vmem:[#allocation2 + $0x100] sm:$0xff]
          %v1347 = vld [vmem:[#allocation2 + $0x108] sm:$0xff]
          %v1348 = vld [vmem:[#allocation2 + $0x110] sm:$0xff]
          %v1349 = vld [vmem:[#allocation2 + $0x118] sm:$0xff]
          %v1350 = vld [vmem:[#allocation2 + $0x120] sm:$0xff]
          %v1351 = vld [vmem:[#allocation2 + $0x128] sm:$0xff]
          %v1352 = vld [vmem:[#allocation2 + $0x130] sm:$0xff]
          %v1353 = vld [vmem:[#allocation2 + $0x138] sm:$0xff]
          %v1354 = vld [vmem:[#allocation2 + $0x140] sm:$0xff]
          %v1355 = vld [vmem:[#allocation2 + $0x148] sm:$0xff]
          %v1356 = vld [vmem:[#allocation2 + $0x150] sm:$0xff]
          %v1357 = vld [vmem:[#allocation2 + $0x158] sm:$0xff]
          %v1358 = vld [vmem:[#allocation2 + $0x160] sm:$0xff]
          %v1359 = vld [vmem:[#allocation2 + $0x168] sm:$0xff]
          %v1360 = vld [vmem:[#allocation2 + $0x170] sm:$0xff]
          %v1361 = vld [vmem:[#allocation2 + $0x178] sm:$0xff]
          %v1362 = vld [vmem:[#allocation2 + $0x180] sm:$0xff]
          %v1363 = vld [vmem:[#allocation2 + $0x188] sm:$0xff]
          %v1364 = vld [vmem:[#allocation2 + $0x190] sm:$0xff]
          %v1365 = vld [vmem:[#allocation2 + $0x198] sm:$0xff]
          %v1366 = vld [vmem:[#allocation2 + $0x1a0] sm:$0xff]
          %v1367 = vld [vmem:[#allocation2 + $0x1a8] sm:$0xff]
          %v1368 = vld [vmem:[#allocation2 + $0x1b0] sm:$0xff]
          %v1369 = vld [vmem:[#allocation2 + $0x1b8] sm:$0xff]
          %v1370 = vld [vmem:[#allocation2 + $0x1c0] sm:$0xff]
          %v1371 = vld [vmem:[#allocation2 + $0x1c8] sm:$0xff]
          %v1372 = vld [vmem:[#allocation2 + $0x1d0] sm:$0xff]
          %v1373 = vld [vmem:[#allocation2 + $0x1d8] sm:$0xff]
          %v1374 = vld [vmem:[#allocation2 + $0x1e0] sm:$0xff]
          %v1375 = vld [vmem:[#allocation2 + $0x1e8] sm:$0xff]
          %v1376 = vld [vmem:[#allocation2 + $0x1f0] sm:$0xff]
          %v1377 = vld [vmem:[#allocation2 + $0x1f8] sm:$0xff]
          %1378 = vst [vmem:[%s449] sm:$0xff] %v1314
          %1379 = vst [vmem:[%s449 + $0x8] sm:$0xff] %v1315
          %1380 = vst [vmem:[%s449 + $0x10] sm:$0xff] %v1316
          %1381 = vst [vmem:[%s449 + $0x18] sm:$0xff] %v1317
          %1382 = vst [vmem:[%s449 + $0x20] sm:$0xff] %v1318
          %1383 = vst [vmem:[%s449 + $0x28] sm:$0xff] %v1319
          %1384 = vst [vmem:[%s449 + $0x30] sm:$0xff] %v1320
          %1385 = vst [vmem:[%s449 + $0x38] sm:$0xff] %v1321
          %1386 = vst [vmem:[%s449 + $0x40] sm:$0xff] %v1322
          %1387 = vst [vmem:[%s449 + $0x48] sm:$0xff] %v1323
          %1388 = vst [vmem:[%s449 + $0x50] sm:$0xff] %v1324
          %1389 = vst [vmem:[%s449 + $0x58] sm:$0xff] %v1325
          %1390 = vst [vmem:[%s449 + $0x60] sm:$0xff] %v1326
          %1391 = vst [vmem:[%s449 + $0x68] sm:$0xff] %v1327
          %1392 = vst [vmem:[%s449 + $0x70] sm:$0xff] %v1328
          %1393 = vst [vmem:[%s449 + $0x78] sm:$0xff] %v1329
          %1394 = vst [vmem:[%s449 + $0x80] sm:$0xff] %v1330
          %1395 = vst [vmem:[%s449 + $0x88] sm:$0xff] %v1331
          %1396 = vst [vmem:[%s449 + $0x90] sm:$0xff] %v1332
          %1397 = vst [vmem:[%s449 + $0x98] sm:$0xff] %v1333
          %1398 = vst [vmem:[%s449 + $0xa0] sm:$0xff] %v1334
          %1399 = vst [vmem:[%s449 + $0xa8] sm:$0xff] %v1335
          %1400 = vst [vmem:[%s449 + $0xb0] sm:$0xff] %v1336
          %1401 = vst [vmem:[%s449 + $0xb8] sm:$0xff] %v1337
          %1402 = vst [vmem:[%s449 + $0xc0] sm:$0xff] %v1338
          %1403 = vst [vmem:[%s449 + $0xc8] sm:$0xff] %v1339
          %1404 = vst [vmem:[%s449 + $0xd0] sm:$0xff] %v1340
          %1405 = vst [vmem:[%s449 + $0xd8] sm:$0xff] %v1341
          %1406 = vst [vmem:[%s449 + $0xe0] sm:$0xff] %v1342
          %1407 = vst [vmem:[%s449 + $0xe8] sm:$0xff] %v1343
          %1408 = vst [vmem:[%s449 + $0xf0] sm:$0xff] %v1344
          %1409 = vst [vmem:[%s449 + $0xf8] sm:$0xff] %v1345
          %1410 = vst [vmem:[%s449 + $0x100] sm:$0xff] %v1346
          %1411 = vst [vmem:[%s449 + $0x108] sm:$0xff] %v1347
          %1412 = vst [vmem:[%s449 + $0x110] sm:$0xff] %v1348
          %1413 = vst [vmem:[%s449 + $0x118] sm:$0xff] %v1349
          %1414 = vst [vmem:[%s449 + $0x120] sm:$0xff] %v1350
          %1415 = vst [vmem:[%s449 + $0x128] sm:$0xff] %v1351
          %1416 = vst [vmem:[%s449 + $0x130] sm:$0xff] %v1352
          %1417 = vst [vmem:[%s449 + $0x138] sm:$0xff] %v1353
          %1418 = vst [vmem:[%s449 + $0x140] sm:$0xff] %v1354
          %1419 = vst [vmem:[%s449 + $0x148] sm:$0xff] %v1355
          %1420 = vst [vmem:[%s449 + $0x150] sm:$0xff] %v1356
          %1421 = vst [vmem:[%s449 + $0x158] sm:$0xff] %v1357
          %1422 = vst [vmem:[%s449 + $0x160] sm:$0xff] %v1358
          %1423 = vst [vmem:[%s449 + $0x168] sm:$0xff] %v1359
          %1424 = vst [vmem:[%s449 + $0x170] sm:$0xff] %v1360
          %1425 = vst [vmem:[%s449 + $0x178] sm:$0xff] %v1361
          %1426 = vst [vmem:[%s449 + $0x180] sm:$0xff] %v1362
          %1427 = vst [vmem:[%s449 + $0x188] sm:$0xff] %v1363
          %1428 = vst [vmem:[%s449 + $0x190] sm:$0xff] %v1364
          %1429 = vst [vmem:[%s449 + $0x198] sm:$0xff] %v1365
          %1430 = vst [vmem:[%s449 + $0x1a0] sm:$0xff] %v1366
          %1431 = vst [vmem:[%s449 + $0x1a8] sm:$0xff] %v1367
          %1432 = vst [vmem:[%s449 + $0x1b0] sm:$0xff] %v1368
          %1433 = vst [vmem:[%s449 + $0x1b8] sm:$0xff] %v1369
          %1434 = vst [vmem:[%s449 + $0x1c0] sm:$0xff] %v1370
          %1435 = vst [vmem:[%s449 + $0x1c8] sm:$0xff] %v1371
          %1436 = vst [vmem:[%s449 + $0x1d0] sm:$0xff] %v1372
          %1437 = vst [vmem:[%s449 + $0x1d8] sm:$0xff] %v1373
          %1438 = vst [vmem:[%s449 + $0x1e0] sm:$0xff] %v1374
          %1439 = vst [vmem:[%s449 + $0x1e8] sm:$0xff] %v1375
          %1440 = vst [vmem:[%s449 + $0x1f0] sm:$0xff] %v1376
          %1441 = vst [vmem:[%s449 + $0x1f8] sm:$0xff] %v1377
          %v1442 = vld [vmem:[%s455] sm:$0x3]
          %v1443 = vadd.f32 %v1314, %v1316
          %v1444 = vadd.f32 %v1443, %v1318
          %v1445 = vadd.f32 %v1444, %v1320
          %v1446 = vadd.f32 %v1445, %v1322
          %v1447 = vadd.f32 %v1446, %v1324
          %v1448 = vadd.f32 %v1447, %v1326
          %v1449 = vadd.f32 %v1448, %v1328
          %v1450 = vadd.f32 %v1449, %v1330
          %v1451 = vadd.f32 %v1450, %v1332
          %v1452 = vadd.f32 %v1451, %v1334
          %v1453 = vadd.f32 %v1452, %v1336
          %v1454 = vadd.f32 %v1453, %v1338
          %v1455 = vadd.f32 %v1454, %v1340
          %v1456 = vadd.f32 %v1455, %v1342
          %v1457 = vadd.f32 %v1456, %v1344
          %v1458 = vadd.f32 %v1457, %v1346
          %v1459 = vadd.f32 %v1458, %v1348
          %v1460 = vadd.f32 %v1459, %v1350
          %v1461 = vadd.f32 %v1460, %v1352
          %v1462 = vadd.f32 %v1461, %v1354
          %v1463 = vadd.f32 %v1462, %v1356
          %v1464 = vadd.f32 %v1463, %v1358
          %v1465 = vadd.f32 %v1464, %v1360
          %v1466 = vadd.f32 %v1465, %v1362
          %v1467 = vadd.f32 %v1466, %v1364
          %v1468 = vadd.f32 %v1467, %v1366
          %v1469 = vadd.f32 %v1468, %v1368
          %v1470 = vadd.f32 %v1469, %v1370
          %v1471 = vadd.f32 %v1470, %v1372
          %v1472 = vadd.f32 %v1471, %v1374
          %v1473 = vadd.f32 %v1472, %v1376
          %v1474 = vrot.slane %v1473, 4
          %v1475 = vadd.f32 %v1473, %v1474
          %v1476 = vrot.slane %v1475, 2
          %v1477 = vadd.f32 %v1475, %v1476
          %v1478 = vrot.slane %v1477, 1
          %v1479 = vadd.f32 %v1477, %v1478
          %v1480 = vadd.f32 %v1315, %v1317
          %v1481 = vadd.f32 %v1480, %v1319
          %v1482 = vadd.f32 %v1481, %v1321
          %v1483 = vadd.f32 %v1482, %v1323
          %v1484 = vadd.f32 %v1483, %v1325
          %v1485 = vadd.f32 %v1484, %v1327
          %v1486 = vadd.f32 %v1485, %v1329
          %v1487 = vadd.f32 %v1486, %v1331
          %v1488 = vadd.f32 %v1487, %v1333
          %v1489 = vadd.f32 %v1488, %v1335
          %v1490 = vadd.f32 %v1489, %v1337
          %v1491 = vadd.f32 %v1490, %v1339
          %v1492 = vadd.f32 %v1491, %v1341
          %v1493 = vadd.f32 %v1492, %v1343
          %v1494 = vadd.f32 %v1493, %v1345
          %v1495 = vadd.f32 %v1494, %v1347
          %v1496 = vadd.f32 %v1495, %v1349
          %v1497 = vadd.f32 %v1496, %v1351
          %v1498 = vadd.f32 %v1497, %v1353
          %v1499 = vadd.f32 %v1498, %v1355
          %v1500 = vadd.f32 %v1499, %v1357
          %v1501 = vadd.f32 %v1500, %v1359
          %v1502 = vadd.f32 %v1501, %v1361
          %v1503 = vadd.f32 %v1502, %v1363
          %v1504 = vadd.f32 %v1503, %v1365
          %v1505 = vadd.f32 %v1504, %v1367
          %v1506 = vadd.f32 %v1505, %v1369
          %v1507 = vadd.f32 %v1506, %v1371
          %v1508 = vadd.f32 %v1507, %v1373
          %v1509 = vadd.f32 %v1508, %v1375
          %v1510 = vadd.f32 %v1509, %v1377
          %v1511 = vrot.slane %v1510, 4
          %v1512 = vadd.f32 %v1510, %v1511
          %v1513 = vrot.slane %v1512, 2
          %v1514 = vadd.f32 %v1512, %v1513
          %v1515 = vrot.slane %v1514, 1
          %v1516 = vadd.f32 %v1514, %v1515
          %v1519 = vcombine.low %v1479, %v1516
          %v1521 = vunpack.c.l.s4 1966171168
          %v1522 = vunpack.c.0.s8 %v1521
          %v1523 = vlaneseq
          %v1524 = vshrl.u32 %v1523, 7
          %v1525 = vsub.s32 %v1522, %v1524
          %v1526 = vrot.slane %v1519, %v1525
          %v1528 = vunpack.c.l.s4 1966171168
          %v1529 = vunpack.c.0.s8 %v1528
          %v1530 = vlaneseq
          %v1531 = vshrl.u32 %v1530, 7
          %v1532 = vsub.s32 %v1529, %v1531
          %v1533 = vrot.slane %v1526, %v1532
          %v1535 = vadd.f32 %v1442, %v1533
          %v1536 = vlaneseq
          %vm1537 = vcmp.ge.s32.totalorder %v1536, 0
          %vm1538 = vcmp.lt.s32.totalorder %v1536, 256
          %vm1539 = vmand %vm1537, %vm1538
          %1540 = vst.msk [vmem:[%s455] sm:$0x3] %vm1539, %v1535
          %v1541 = vld [vmem:[%s460] sm:$0x3]
          %v1542 = vmul.f32 %v1314, %v1314
          %v1543 = vmul.f32 %v1315, %v1315
          %v1544 = vmul.f32 %v1316, %v1316
          %v1545 = vmul.f32 %v1317, %v1317
          %v1546 = vmul.f32 %v1318, %v1318
          %v1547 = vmul.f32 %v1319, %v1319
          %v1548 = vmul.f32 %v1320, %v1320
          %v1549 = vmul.f32 %v1321, %v1321
          %v1550 = vmul.f32 %v1322, %v1322
          %v1551 = vmul.f32 %v1323, %v1323
          %v1552 = vmul.f32 %v1324, %v1324
          %v1553 = vmul.f32 %v1325, %v1325
          %v1554 = vmul.f32 %v1326, %v1326
          %v1555 = vmul.f32 %v1327, %v1327
          %v1556 = vmul.f32 %v1328, %v1328
          %v1557 = vmul.f32 %v1329, %v1329
          %v1558 = vmul.f32 %v1330, %v1330
          %v1559 = vmul.f32 %v1331, %v1331
          %v1560 = vmul.f32 %v1332, %v1332
          %v1561 = vmul.f32 %v1333, %v1333
          %v1562 = vmul.f32 %v1334, %v1334
          %v1563 = vmul.f32 %v1335, %v1335
          %v1564 = vmul.f32 %v1336, %v1336
          %v1565 = vmul.f32 %v1337, %v1337
          %v1566 = vmul.f32 %v1338, %v1338
          %v1567 = vmul.f32 %v1339, %v1339
          %v1568 = vmul.f32 %v1340, %v1340
          %v1569 = vmul.f32 %v1341, %v1341
          %v1570 = vmul.f32 %v1342, %v1342
          %v1571 = vmul.f32 %v1343, %v1343
          %v1572 = vmul.f32 %v1344, %v1344
          %v1573 = vmul.f32 %v1345, %v1345
          %v1574 = vmul.f32 %v1346, %v1346
          %v1575 = vmul.f32 %v1347, %v1347
          %v1576 = vmul.f32 %v1348, %v1348
          %v1577 = vmul.f32 %v1349, %v1349
          %v1578 = vmul.f32 %v1350, %v1350
          %v1579 = vmul.f32 %v1351, %v1351
          %v1580 = vmul.f32 %v1352, %v1352
          %v1581 = vmul.f32 %v1353, %v1353
          %v1582 = vmul.f32 %v1354, %v1354
          %v1583 = vmul.f32 %v1355, %v1355
          %v1584 = vmul.f32 %v1356, %v1356
          %v1585 = vmul.f32 %v1357, %v1357
          %v1586 = vmul.f32 %v1358, %v1358
          %v1587 = vmul.f32 %v1359, %v1359
          %v1588 = vmul.f32 %v1360, %v1360
          %v1589 = vmul.f32 %v1361, %v1361
          %v1590 = vmul.f32 %v1362, %v1362
          %v1591 = vmul.f32 %v1363, %v1363
          %v1592 = vmul.f32 %v1364, %v1364
          %v1593 = vmul.f32 %v1365, %v1365
          %v1594 = vmul.f32 %v1366, %v1366
          %v1595 = vmul.f32 %v1367, %v1367
          %v1596 = vmul.f32 %v1368, %v1368
          %v1597 = vmul.f32 %v1369, %v1369
          %v1598 = vmul.f32 %v1370, %v1370
          %v1599 = vmul.f32 %v1371, %v1371
          %v1600 = vmul.f32 %v1372, %v1372
          %v1601 = vmul.f32 %v1373, %v1373
          %v1602 = vmul.f32 %v1374, %v1374
          %v1603 = vmul.f32 %v1375, %v1375
          %v1604 = vmul.f32 %v1376, %v1376
          %v1605 = vmul.f32 %v1377, %v1377
          %v1606 = vadd.f32 %v1542, %v1544
          %v1607 = vadd.f32 %v1606, %v1546
          %v1608 = vadd.f32 %v1607, %v1548
          %v1609 = vadd.f32 %v1608, %v1550
          %v1610 = vadd.f32 %v1609, %v1552
          %v1611 = vadd.f32 %v1610, %v1554
          %v1612 = vadd.f32 %v1611, %v1556
          %v1613 = vadd.f32 %v1612, %v1558
          %v1614 = vadd.f32 %v1613, %v1560
          %v1615 = vadd.f32 %v1614, %v1562
          %v1616 = vadd.f32 %v1615, %v1564
          %v1617 = vadd.f32 %v1616, %v1566
          %v1618 = vadd.f32 %v1617, %v1568
          %v1619 = vadd.f32 %v1618, %v1570
          %v1620 = vadd.f32 %v1619, %v1572
          %v1621 = vadd.f32 %v1620, %v1574
          %v1622 = vadd.f32 %v1621, %v1576
          %v1623 = vadd.f32 %v1622, %v1578
          %v1624 = vadd.f32 %v1623, %v1580
          %v1625 = vadd.f32 %v1624, %v1582
          %v1626 = vadd.f32 %v1625, %v1584
          %v1627 = vadd.f32 %v1626, %v1586
          %v1628 = vadd.f32 %v1627, %v1588
          %v1629 = vadd.f32 %v1628, %v1590
          %v1630 = vadd.f32 %v1629, %v1592
          %v1631 = vadd.f32 %v1630, %v1594
          %v1632 = vadd.f32 %v1631, %v1596
          %v1633 = vadd.f32 %v1632, %v1598
          %v1634 = vadd.f32 %v1633, %v1600
          %v1635 = vadd.f32 %v1634, %v1602
          %v1636 = vadd.f32 %v1635, %v1604
          %v1637 = vrot.slane %v1636, 4
          %v1638 = vadd.f32 %v1636, %v1637
          %v1639 = vrot.slane %v1638, 2
          %v1640 = vadd.f32 %v1638, %v1639
          %v1641 = vrot.slane %v1640, 1
          %v1642 = vadd.f32 %v1640, %v1641
          %v1643 = vadd.f32 %v1543, %v1545
          %v1644 = vadd.f32 %v1643, %v1547
          %v1645 = vadd.f32 %v1644, %v1549
          %v1646 = vadd.f32 %v1645, %v1551
          %v1647 = vadd.f32 %v1646, %v1553
          %v1648 = vadd.f32 %v1647, %v1555
          %v1649 = vadd.f32 %v1648, %v1557
          %v1650 = vadd.f32 %v1649, %v1559
          %v1651 = vadd.f32 %v1650, %v1561
          %v1652 = vadd.f32 %v1651, %v1563
          %v1653 = vadd.f32 %v1652, %v1565
          %v1654 = vadd.f32 %v1653, %v1567
          %v1655 = vadd.f32 %v1654, %v1569
          %v1656 = vadd.f32 %v1655, %v1571
          %v1657 = vadd.f32 %v1656, %v1573
          %v1658 = vadd.f32 %v1657, %v1575
          %v1659 = vadd.f32 %v1658, %v1577
          %v1660 = vadd.f32 %v1659, %v1579
          %v1661 = vadd.f32 %v1660, %v1581
          %v1662 = vadd.f32 %v1661, %v1583
          %v1663 = vadd.f32 %v1662, %v1585
          %v1664 = vadd.f32 %v1663, %v1587
          %v1665 = vadd.f32 %v1664, %v1589
          %v1666 = vadd.f32 %v1665, %v1591
          %v1667 = vadd.f32 %v1666, %v1593
          %v1668 = vadd.f32 %v1667, %v1595
          %v1669 = vadd.f32 %v1668, %v1597
          %v1670 = vadd.f32 %v1669, %v1599
          %v1671 = vadd.f32 %v1670, %v1601
          %v1672 = vadd.f32 %v1671, %v1603
          %v1673 = vadd.f32 %v1672, %v1605
          %v1674 = vrot.slane %v1673, 4
          %v1675 = vadd.f32 %v1673, %v1674
          %v1676 = vrot.slane %v1675, 2
          %v1677 = vadd.f32 %v1675, %v1676
          %v1678 = vrot.slane %v1677, 1
          %v1679 = vadd.f32 %v1677, %v1678
          %v1682 = vcombine.low %v1642, %v1679
          %v1684 = vunpack.c.l.s4 1966171168
          %v1685 = vunpack.c.0.s8 %v1684
          %v1686 = vlaneseq
          %v1687 = vshrl.u32 %v1686, 7
          %v1688 = vsub.s32 %v1685, %v1687
          %v1689 = vrot.slane %v1682, %v1688
          %v1691 = vunpack.c.l.s4 1966171168
          %v1692 = vunpack.c.0.s8 %v1691
          %v1693 = vlaneseq
          %v1694 = vshrl.u32 %v1693, 7
          %v1695 = vsub.s32 %v1692, %v1694
          %v1696 = vrot.slane %v1689, %v1695
          %v1698 = vadd.f32 %v1541, %v1696
          %1699 = vst.msk [vmem:[%s460] sm:$0x3] %vm1539, %v1698
        $region78: #{move_analyser_forward.6} parent=61 // pred_fallthru
          _
        %s1700 = smul.u32 32, %s22
        %s1701 = smul.u32 2, %s21
        %p1702 = scmp.lt.s32.totalorder %s1700, 63
        %s1703 = scalar_select %p1702, %s1700, 63
        %p1704 = scmp.lt.s32.totalorder %s1701, 1
        %s1705 = scalar_select %p1704, %s1701, 1
        %s1706 = smul.addr %s1703, 2
        %s1707 = sadd.s32 %s1705, %s1706
        %s1708 = smul.addr %s1707, 8
        %s1709 = scalar_lea.vmem %s2, %s1708
        %s1710 = smul.u32 2, %s21
        %p1711 = scmp.lt.s32.totalorder %s1710, 1
        %s1712 = scalar_select %p1711, %s1710, 1
        %s1713 = scalar_lea.vmem %s3, %s1712
        %s1714 = smul.u32 2, %s21
        %p1715 = scmp.lt.s32.totalorder %s1714, 1
        %s1716 = scalar_select %p1715, %s1714, 1
        %s1717 = scalar_lea.vmem %s4, %s1716
        // Predicated region
        $region79: #{move_analyser_forward.6} parent=61 // pred_check
          %p1718 = pneg %p111
        $region80: #{move_analyser_forward.6} parent=61 // pred_check_branch
          %1720 = sbr.rel (%p1718) target = $region82
        $region81: #{move_analyser_forward.6} parent=61 // pred_region
          %s1721 = smul.u32 32, %s22
          %s1722 = smul.u32 2, %s21
        $region82: #{move_analyser_forward.6} parent=61 // pred_fallthru
          _
        // Predicated region
        $region83: #{move_analyser_forward.6} parent=61 // pred_check
          %p1723 = pneg %p137
        $region84: #{move_analyser_forward.6} parent=61 // pred_check_branch
          %1725 = sbr.rel (%p1723) target = $region86
        $region85: #{move_analyser_forward.6} parent=61 // pred_region
          %s1726 = smul.u32 2, %s21
        $region86: #{move_analyser_forward.6} parent=61 // pred_fallthru
          _
        // Predicated region
        $region87: #{move_analyser_forward.6} parent=61 // pred_check
          %p1727 = pneg %p163
        $region88: #{move_analyser_forward.6} parent=61 // pred_check_branch
          %1729 = sbr.rel (%p1727) target = $region90
        $region89: #{move_analyser_forward.6} parent=61 // pred_region
          %s1730 = smul.u32 2, %s21
        $region90: #{move_analyser_forward.6} parent=61 // pred_fallthru
          _
        // Predicated region
        $region91: #{move_analyser_forward.6} parent=61 // pred_check
          %p1731 = pneg %p137
        $region92: #{move_analyser_forward.6} parent=61 // pred_check_branch
          %1733 = sbr.rel (%p1731) target = $region94
        $region93: #{move_analyser_forward.6} parent=61 // pred_region
          %s1734 = smul.u32 2, %s21
          %p1735 = scmp.lt.s32.totalorder %s1734, 1
          %s1736 = scalar_select %p1735, %s1734, 1
          %s1737 = scalar_lea.vmem %s3, %s1736
        $region94: #{move_analyser_forward.6} parent=61 // pred_fallthru
          _
        // Predicated region
        $region95: #{move_analyser_forward.6} parent=61 // pred_check
          %p1738 = pneg %p163
        $region96: #{move_analyser_forward.6} parent=61 // pred_check_branch
          %1740 = sbr.rel (%p1738) target = $region98
        $region97: #{move_analyser_forward.6} parent=61 // pred_region
          %s1741 = smul.u32 2, %s21
          %p1742 = scmp.lt.s32.totalorder %s1741, 1
          %s1743 = scalar_select %p1742, %s1741, 1
          %s1744 = scalar_lea.vmem %s4, %s1743
        $region98: #{move_analyser_forward.6} parent=61 // pred_fallthru
          _
      $region62: #{move_analyser_forward.6} parent=5 // pred_fallthru
        _
      %p1745 = scmp.le.s32.totalorder 2, %s11
      // Predicated region
      $region99: #{move_analyser_forward.6} parent=5 // pred_check
        %p1746 = pneg %p1745
      $region100: #{move_analyser_forward.6} parent=5 // pred_check_branch
        %1748 = sbr.rel (%p1746) target = $region102
      $region101: #{move_analyser_forward.6} parent=5 // pred_region
        %s1749 = ssub.s32 %s11, 2
        // Predicated region
        $region103: #{move_analyser_forward.6} parent=101 // pred_check
          %p1750 = pneg %p117
        $region104: #{move_analyser_forward.6} parent=101 // pred_check_branch
          %1752 = sbr.rel (%p1750) target = $region106
        $region105: #{move_analyser_forward.6} parent=101 // pred_region
          %s1753 = smul.u32 32, %s25
          %s1754 = smul.u32 2, %s24
          %p1755 = scmp.lt.s32.totalorder %s1753, 63
          %s1756 = scalar_select %p1755, %s1753, 63
          %p1757 = scmp.lt.s32.totalorder %s1754, 1
          %s1758 = scalar_select %p1757, %s1754, 1
          %s1759 = smul.addr %s1756, 2
          %s1760 = sadd.s32 %s1758, %s1759
          %s1761 = smul.addr %s1760, 8
          %s1762 = scalar_lea.vmem %s2, %s1761
        $region106: #{move_analyser_forward.6} parent=101 // pred_fallthru
          _
      $region102: #{move_analyser_forward.6} parent=5 // pred_fallthru
        _
    $region6: #{move_analyser_forward.6} parent=1 // loop_footer
      %s15 = sadd.s32 1, %s11
    $region7: #{move_analyser_forward.6} parent=1 // loop_footer_branch
      %10 = sbr.rel target = $region3
    $region8: #{move_analyser_forward.6} parent=1 // loop_exit
      _

// kernel: move_analyser_forward.9
$region0: #{move_analyser_forward.9}
  #allocation0 [shape = 'u32[]', space=smem, size = 0x4, offset = 0x4, fixed_abs, tag = 'smem constant byte address 0x4 - core index']
  #allocation1 [shape = 'u32[144,128]{1,0:T(1,128)}', space=vmem, size = 0x12000, scoped, tag = 'internal scratch']
  %s0 = inlined_call_operand.vmem [shape: f32[512,128], index: 0, kind: input, shape index: {}]
  %s1 = inlined_call_operand.vmem [shape: f32[1,128], index: 1, kind: input, shape index: {}]
  %s2 = inlined_call_operand.vmem [shape: f32[1,128], index: 2, kind: input, shape index: {}]
  %s3 = inlined_call_operand.vmem [shape: bf16[512,128], index: 3, kind: output, shape index: {}]
  %s4 = sld [smem:[#allocation0]]
  $region45: #{move_analyser_forward.9} parent=0
    _
  %s6 = ssub.s32 1, %s4
  %s7 = scalar_select 0, %s6, %s4
  loop: start=0, step=1, limit=4
  $region2: #{move_analyser_forward.9} parent=0 // loop_pre_header
    _
  $region3: #{move_analyser_forward.9} parent=0 // loop_header
    %s9 = sphi 0, %s13
    %p10 = scmp.ge.s32.totalorder %s9, 4
    %s16 = sphi 0, %s28
    %s17 = sphi 0, %s24
    %s18 = sphi 0, %s16
    %s19 = sphi 0, %s17
    %s20 = sphi 0, %s18
    %s21 = sphi 0, %s19
    %s33 = sphi 0, %s35
    %s36 = sphi 0, %s33
    %s37 = sphi 0, %s36
    %s53 = sphi 0, %s37
    %s59 = sphi 0, %s61
    %s62 = sphi 0, %s59
    %s63 = sphi 0, %s62
    %s79 = sphi 0, %s63
    %s85 = sphi 0, %s87
    %s88 = sphi 0, %s85
    %s89 = sphi 0, %s88
    %s105 = sphi 0, %s89
    %s113 = sphi 0, %s115
    %s116 = sphi 0, %s113
    %s117 = sphi 0, %s116
    %s133 = sphi 0, %s117
  $region4: #{move_analyser_forward.9} parent=0 // loop_header_branch
    %12 = sbr.rel (%p10) target = $region8
  $region5: #{move_analyser_forward.9} parent=0 // loop_body
    %s14 = ssub.s32 %s9, 1
    %s15 = ssub.s32 %s9, 2
    %s22 = sadd.s32 1, %s17
    %p23 = scmp.ge.s32.totalorder %s22, 1
    %s24 = scalar_select %p23, 0, %s22
    %s25 = sadd.s32 1, %s16
    %s26 = scalar_select %p23, %s25, %s16
    %p27 = scmp.ge.s32.totalorder %s26, 2
    %s28 = scalar_select %p27, 0, %s26
    %s29 = ssub.s32 %s16, %s28
    %s30 = ssub.s32 %s17, %s24
    %s31 = sor.u32 %s29, %s30
    %p32 = scmp.eq.s32.totalorder %s31, 0
    %s34 = sadd.s32 %s33, 1
    %s35 = scalar_select %p32, %s33, %s34
    %p38 = pneg %p32
    %p39 = scmp.eq.s32.totalorder %s9, 1
    %p40 = por %p38, %p39
    %p41 = scmp.ne.s32.totalorder %s33, %s36
    %p42 = scmp.eq.s32.totalorder %s9, 0
    %p43 = por %p41, %p42
    %p44 = scmp.ne.s32.totalorder %s33, %s36
    %p45 = scmp.eq.s32.totalorder %s14, 1
    %p46 = por %p44, %p45
    %p47 = scmp.ne.s32.totalorder %s36, %s37
    %p48 = scmp.eq.s32.totalorder %s14, 0
    %p49 = por %p47, %p48
    %p50 = scmp.ne.s32.totalorder %s36, %s37
    %p51 = scmp.eq.s32.totalorder %s15, 1
    %p52 = por %p50, %p51
    %p54 = scmp.ne.s32.totalorder %s37, %s53
    %p55 = scmp.eq.s32.totalorder %s15, 0
    %p56 = por %p54, %p55
    %s57 = ssub.s32 %s17, %s24
    %p58 = scmp.eq.s32.totalorder %s57, 0
    %s60 = sadd.s32 %s59, 1
    %s61 = scalar_select %p58, %s59, %s60
    %p64 = pneg %p58
    %p65 = scmp.eq.s32.totalorder %s9, 1
    %p66 = por %p64, %p65
    %p67 = scmp.ne.s32.totalorder %s59, %s62
    %p68 = scmp.eq.s32.totalorder %s9, 0
    %p69 = por %p67, %p68
    %p70 = scmp.ne.s32.totalorder %s59, %s62
    %p71 = scmp.eq.s32.totalorder %s14, 1
    %p72 = por %p70, %p71
    %p73 = scmp.ne.s32.totalorder %s62, %s63
    %p74 = scmp.eq.s32.totalorder %s14, 0
    %p75 = por %p73, %p74
    %p76 = scmp.ne.s32.totalorder %s62, %s63
    %p77 = scmp.eq.s32.totalorder %s15, 1
    %p78 = por %p76, %p77
    %p80 = scmp.ne.s32.totalorder %s63, %s79
    %p81 = scmp.eq.s32.totalorder %s15, 0
    %p82 = por %p80, %p81
    %s83 = ssub.s32 %s17, %s24
    %p84 = scmp.eq.s32.totalorder %s83, 0
    %s86 = sadd.s32 %s85, 1
    %s87 = scalar_select %p84, %s85, %s86
    %p90 = pneg %p84
    %p91 = scmp.eq.s32.totalorder %s9, 1
    %p92 = por %p90, %p91
    %p93 = scmp.ne.s32.totalorder %s85, %s88
    %p94 = scmp.eq.s32.totalorder %s9, 0
    %p95 = por %p93, %p94
    %p96 = scmp.ne.s32.totalorder %s85, %s88
    %p97 = scmp.eq.s32.totalorder %s14, 1
    %p98 = por %p96, %p97
    %p99 = scmp.ne.s32.totalorder %s88, %s89
    %p100 = scmp.eq.s32.totalorder %s14, 0
    %p101 = por %p99, %p100
    %p102 = scmp.ne.s32.totalorder %s88, %s89
    %p103 = scmp.eq.s32.totalorder %s15, 1
    %p104 = por %p102, %p103
    %p106 = scmp.ne.s32.totalorder %s89, %s105
    %p107 = scmp.eq.s32.totalorder %s15, 0
    %p108 = por %p106, %p107
    %s109 = ssub.s32 %s16, %s28
    %s110 = ssub.s32 %s17, %s24
    %s111 = sor.u32 %s109, %s110
    %p112 = scmp.eq.s32.totalorder %s111, 0
    %s114 = sadd.s32 %s113, 1
    %s115 = scalar_select %p112, %s113, %s114
    %p118 = pneg %p112
    %p119 = scmp.eq.s32.totalorder %s9, 1
    %p120 = por %p118, %p119
    %p121 = scmp.ne.s32.totalorder %s113, %s116
    %p122 = scmp.eq.s32.totalorder %s9, 0
    %p123 = por %p121, %p122
    %p124 = scmp.ne.s32.totalorder %s113, %s116
    %p125 = scmp.eq.s32.totalorder %s14, 1
    %p126 = por %p124, %p125
    %p127 = scmp.ne.s32.totalorder %s116, %s117
    %p128 = scmp.eq.s32.totalorder %s14, 0
    %p129 = por %p127, %p128
    %p130 = scmp.ne.s32.totalorder %s116, %s117
    %p131 = scmp.eq.s32.totalorder %s15, 1
    %p132 = por %p130, %p131
    %p134 = scmp.ne.s32.totalorder %s117, %s133
    %p135 = scmp.eq.s32.totalorder %s15, 0
    %p136 = por %p134, %p135
    %p137 = scmp.le.s32.totalorder 1, %s9
    %p138 = scmp.lt.s32.totalorder %s9, 3
    %p139 = pnand %p137, %p138
    %p140 = pneg %p139
    // Predicated region
    $region9: #{move_analyser_forward.9} parent=5 // pred_check
      _
    $region10: #{move_analyser_forward.9} parent=5 // pred_check_branch
      %142 = sbr.rel (%p139) target = $region12
    $region11: #{move_analyser_forward.9} parent=5 // pred_region
      %s143 = ssub.s32 %s9, 1
      // Predicated region
      $region13: #{move_analyser_forward.9} parent=11 // pred_check
        %p144 = pneg %p75
      $region14: #{move_analyser_forward.9} parent=11 // pred_check_branch
        %146 = sbr.rel (%p144) target = $region16
      $region15: #{move_analyser_forward.9} parent=11 // pred_region
        %p147 = scmp.lt.s32.totalorder %s19, 0
        %s148 = scalar_select %p147, %s19, 0
        %s149 = scalar_lea.vmem %s1, %s148
      $region16: #{move_analyser_forward.9} parent=11 // pred_fallthru
        _
      // Predicated region
      $region17: #{move_analyser_forward.9} parent=11 // pred_check
        %p150 = pneg %p101
      $region18: #{move_analyser_forward.9} parent=11 // pred_check_branch
        %152 = sbr.rel (%p150) target = $region20
      $region19: #{move_analyser_forward.9} parent=11 // pred_region
        %p153 = scmp.lt.s32.totalorder %s19, 0
        %s154 = scalar_select %p153, %s19, 0
        %s155 = scalar_lea.vmem %s2, %s154
      $region20: #{move_analyser_forward.9} parent=11 // pred_fallthru
        _
    $region12: #{move_analyser_forward.9} parent=5 // pred_fallthru
      _
    %p156 = scmp.lt.s32.totalorder %s9, 2
    // Predicated region
    $region21: #{move_analyser_forward.9} parent=5 // pred_check
      %p157 = pneg %p156
    $region22: #{move_analyser_forward.9} parent=5 // pred_check_branch
      %159 = sbr.rel (%p157) target = $region24
    $region23: #{move_analyser_forward.9} parent=5 // pred_region
      // Predicated region
      $region25: #{move_analyser_forward.9} parent=23 // pred_check
        %p160 = pneg %p43
      $region26: #{move_analyser_forward.9} parent=23 // pred_check_branch
        %162 = sbr.rel (%p160) target = $region28
      $region27: #{move_analyser_forward.9} parent=23 // pred_region
        %s163 = smul.u32 32, %s16
        %p164 = scmp.lt.s32.totalorder %s163, 63
        %s165 = scalar_select %p164, %s163, 63
        %p166 = scmp.lt.s32.totalorder %s17, 0
        %s167 = scalar_select %p166, %s17, 0
        %s168 = sadd.s32 %s167, %s165
        %s169 = smul.addr %s168, 8
        %s170 = scalar_lea.vmem %s0, %s169
        %s171 = smul.u32 32, %s16
      $region28: #{move_analyser_forward.9} parent=23 // pred_fallthru
        _
    $region24: #{move_analyser_forward.9} parent=5 // pred_fallthru
      _
    %p172 = scmp.le.s32.totalorder 1, %s9
    %p173 = scmp.lt.s32.totalorder %s9, 3
    %p174 = pnand %p172, %p173
    %p175 = pneg %p174
    // Predicated region
    $region29: #{move_analyser_forward.9} parent=5 // pred_check
      _
    $region30: #{move_analyser_forward.9} parent=5 // pred_check_branch
      %177 = sbr.rel (%p174) target = $region32
    $region31: #{move_analyser_forward.9} parent=5 // pred_region
      %s178 = ssub.s32 %s9, 1
      %s179 = smul.u32 32, %s18
      %p180 = scmp.lt.s32.totalorder %s179, 63
      %s181 = scalar_select %p180, %s179, 63
      %p182 = scmp.lt.s32.totalorder %s19, 0
      %s183 = scalar_select %p182, %s19, 0
      %s184 = sadd.s32 %s183, %s181
      %s185 = smul.addr %s184, 8
      %s186 = scalar_lea.vmem %s0, %s185
      %p187 = pneg %p49
      %p188 = pneg %p46
      %p189 = scmp.lt.s32.totalorder %s19, 0
      %s190 = scalar_select %p189, %s19, 0
      %s191 = scalar_lea.vmem %s1, %s190
      %p192 = pneg %p75
      %p193 = pneg %p72
      %p194 = scmp.lt.s32.totalorder %s19, 0
      %s195 = scalar_select %p194, %s19, 0
      %s196 = scalar_lea.vmem %s2, %s195
      %p197 = pneg %p101
      %p198 = pneg %p98
      %p199 = pneg %p129
      %p200 = pneg %p126
      %s201 = smul.u32 32, %s18
      %p202 = scmp.lt.s32.totalorder %s201, 63
      %s203 = scalar_select %p202, %s201, 63
      %p204 = scmp.lt.s32.totalorder %s19, 0
      %s205 = scalar_select %p204, %s19, 0
      %s206 = sadd.s32 %s205, %s203
      %s207 = smul.addr %s206, 4
      %s208 = scalar_lea.vmem %s3, %s207
      %s209 = smul.u32 32, %s18
      %p210 = scmp.lt.s32.totalorder %s209, 63
      %s211 = scalar_select %p210, %s209, 63
      %p212 = scmp.lt.s32.totalorder %s19, 0
      %s213 = scalar_select %p212, %s19, 0
      %s214 = sadd.s32 %s213, %s211
      %s215 = smul.addr %s214, 8
      %s216 = scalar_lea.vmem %s0, %s215
      %s217 = smul.u32 32, %s18
      %p218 = scmp.lt.s32.totalorder %s19, 0
      %s219 = scalar_select %p218, %s19, 0
      %s220 = scalar_lea.vmem %s1, %s219
      %p221 = scmp.lt.s32.totalorder %s19, 0
      %s222 = scalar_select %p221, %s19, 0
      %s223 = scalar_lea.vmem %s2, %s222
      %s224 = smul.u32 32, %s18
      %p225 = scmp.lt.s32.totalorder %s224, 63
      %s226 = scalar_select %p225, %s224, 63
      %p227 = scmp.lt.s32.totalorder %s19, 0
      %s228 = scalar_select %p227, %s19, 0
      %s229 = sadd.s32 %s228, %s226
      %s230 = smul.addr %s229, 4
      %s231 = scalar_lea.vmem %s3, %s230
      %s232 = smul.u32 32, %s18
      %v233 = vld [vmem:[%s216] sm:$0xff]
      %v234 = vld [vmem:[%s216 + $0x8] sm:$0xff]
      %v235 = vld [vmem:[%s216 + $0x10] sm:$0xff]
      %v236 = vld [vmem:[%s216 + $0x18] sm:$0xff]
      %v237 = vld [vmem:[%s216 + $0x20] sm:$0xff]
      %v238 = vld [vmem:[%s216 + $0x28] sm:$0xff]
      %v239 = vld [vmem:[%s216 + $0x30] sm:$0xff]
      %v240 = vld [vmem:[%s216 + $0x38] sm:$0xff]
      %v241 = vld [vmem:[%s216 + $0x40] sm:$0xff]
      %v242 = vld [vmem:[%s216 + $0x48] sm:$0xff]
      %v243 = vld [vmem:[%s216 + $0x50] sm:$0xff]
      %v244 = vld [vmem:[%s216 + $0x58] sm:$0xff]
      %v245 = vld [vmem:[%s216 + $0x60] sm:$0xff]
      %v246 = vld [vmem:[%s216 + $0x68] sm:$0xff]
      %v247 = vld [vmem:[%s216 + $0x70] sm:$0xff]
      %v248 = vld [vmem:[%s216 + $0x78] sm:$0xff]
      %v249 = vld [vmem:[%s216 + $0x80] sm:$0xff]
      %v250 = vld [vmem:[%s216 + $0x88] sm:$0xff]
      %v251 = vld [vmem:[%s216 + $0x90] sm:$0xff]
      %v252 = vld [vmem:[%s216 + $0x98] sm:$0xff]
      %v253 = vld [vmem:[%s216 + $0xa0] sm:$0xff]
      %v254 = vld [vmem:[%s216 + $0xa8] sm:$0xff]
      %v255 = vld [vmem:[%s216 + $0xb0] sm:$0xff]
      %v256 = vld [vmem:[%s216 + $0xb8] sm:$0xff]
      %v257 = vld [vmem:[%s216 + $0xc0] sm:$0xff]
      %v258 = vld [vmem:[%s216 + $0xc8] sm:$0xff]
      %v259 = vld [vmem:[%s216 + $0xd0] sm:$0xff]
      %v260 = vld [vmem:[%s216 + $0xd8] sm:$0xff]
      %v261 = vld [vmem:[%s216 + $0xe0] sm:$0xff]
      %v262 = vld [vmem:[%s216 + $0xe8] sm:$0xff]
      %v263 = vld [vmem:[%s216 + $0xf0] sm:$0xff]
      %v264 = vld [vmem:[%s216 + $0xf8] sm:$0xff]
      %v265 = vld [vmem:[%s220] sm:$0x1]
      %v267 = vlaneseq
      %v268 = vshrl.u32 %v267, 7
      %v269 = vsub.s32 0, %v268
      %v270 = vrot.slane %v265, %v269
      %v272 = vmul.f32 %v233, %v270
      %v273 = vmul.f32 %v234, %v270
      %v274 = vmul.f32 %v235, %v270
      %v275 = vmul.f32 %v236, %v270
      %v276 = vmul.f32 %v237, %v270
      %v277 = vmul.f32 %v238, %v270
      %v278 = vmul.f32 %v239, %v270
      %v279 = vmul.f32 %v240, %v270
      %v280 = vmul.f32 %v241, %v270
      %v281 = vmul.f32 %v242, %v270
      %v282 = vmul.f32 %v243, %v270
      %v283 = vmul.f32 %v244, %v270
      %v284 = vmul.f32 %v245, %v270
      %v285 = vmul.f32 %v246, %v270
      %v286 = vmul.f32 %v247, %v270
      %v287 = vmul.f32 %v248, %v270
      %v288 = vmul.f32 %v249, %v270
      %v289 = vmul.f32 %v250, %v270
      %v290 = vmul.f32 %v251, %v270
      %v291 = vmul.f32 %v252, %v270
      %v292 = vmul.f32 %v253, %v270
      %v293 = vmul.f32 %v254, %v270
      %v294 = vmul.f32 %v255, %v270
      %v295 = vmul.f32 %v256, %v270
      %v296 = vmul.f32 %v257, %v270
      %v297 = vmul.f32 %v258, %v270
      %v298 = vmul.f32 %v259, %v270
      %v299 = vmul.f32 %v260, %v270
      %v300 = vmul.f32 %v261, %v270
      %v301 = vmul.f32 %v262, %v270
      %v302 = vmul.f32 %v263, %v270
      %v303 = vmul.f32 %v264, %v270
      %v304 = vld [vmem:[%s223] sm:$0x1]
      %v306 = vlaneseq
      %v307 = vshrl.u32 %v306, 7
      %v308 = vsub.s32 0, %v307
      %v309 = vrot.slane %v304, %v308
      %v311 = vadd.f32 %v272, %v309
      %v312 = vadd.f32 %v273, %v309
      %v313 = vadd.f32 %v274, %v309
      %v314 = vadd.f32 %v275, %v309
      %v315 = vadd.f32 %v276, %v309
      %v316 = vadd.f32 %v277, %v309
      %v317 = vadd.f32 %v278, %v309
      %v318 = vadd.f32 %v279, %v309
      %v319 = vadd.f32 %v280, %v309
      %v320 = vadd.f32 %v281, %v309
      %v321 = vadd.f32 %v282, %v309
      %v322 = vadd.f32 %v283, %v309
      %v323 = vadd.f32 %v284, %v309
      %v324 = vadd.f32 %v285, %v309
      %v325 = vadd.f32 %v286, %v309
      %v326 = vadd.f32 %v287, %v309
      %v327 = vadd.f32 %v288, %v309
      %v328 = vadd.f32 %v289, %v309
      %v329 = vadd.f32 %v290, %v309
      %v330 = vadd.f32 %v291, %v309
      %v331 = vadd.f32 %v292, %v309
      %v332 = vadd.f32 %v293, %v309
      %v333 = vadd.f32 %v294, %v309
      %v334 = vadd.f32 %v295, %v309
      %v335 = vadd.f32 %v296, %v309
      %v336 = vadd.f32 %v297, %v309
      %v337 = vadd.f32 %v298, %v309
      %v338 = vadd.f32 %v299, %v309
      %v339 = vadd.f32 %v300, %v309
      %v340 = vadd.f32 %v301, %v309
      %v341 = vadd.f32 %v302, %v309
      %v342 = vadd.f32 %v303, %v309
      %v343 = vmax.f32 %v311, 0.0
      %v344 = vmax.f32 %v312, 0.0
      %v345 = vmax.f32 %v313, 0.0
      %v346 = vmax.f32 %v314, 0.0
      %v347 = vmax.f32 %v315, 0.0
      %v348 = vmax.f32 %v316, 0.0
      %v349 = vmax.f32 %v317, 0.0
      %v350 = vmax.f32 %v318, 0.0
      %v351 = vmax.f32 %v319, 0.0
      %v352 = vmax.f32 %v320, 0.0
      %v353 = vmax.f32 %v321, 0.0
      %v354 = vmax.f32 %v322, 0.0
      %v355 = vmax.f32 %v323, 0.0
      %v356 = vmax.f32 %v324, 0.0
      %v357 = vmax.f32 %v325, 0.0
      %v358 = vmax.f32 %v326, 0.0
      %v359 = vmax.f32 %v327, 0.0
      %v360 = vmax.f32 %v328, 0.0
      %v361 = vmax.f32 %v329, 0.0
      %v362 = vmax.f32 %v330, 0.0
      %v363 = vmax.f32 %v331, 0.0
      %v364 = vmax.f32 %v332, 0.0
      %v365 = vmax.f32 %v333, 0.0
      %v366 = vmax.f32 %v334, 0.0
      %v367 = vmax.f32 %v335, 0.0
      %v368 = vmax.f32 %v336, 0.0
      %v369 = vmax.f32 %v337, 0.0
      %v370 = vmax.f32 %v338, 0.0
      %v371 = vmax.f32 %v339, 0.0
      %v372 = vmax.f32 %v340, 0.0
      %v373 = vmax.f32 %v341, 0.0
      %v374 = vmax.f32 %v342, 0.0
      %v375 = vpack.c.bf16 %v344, %v343
      %v376 = vpack.c.bf16 %v346, %v345
      %v377 = vpack.c.bf16 %v348, %v347
      %v378 = vpack.c.bf16 %v350, %v349
      %v379 = vpack.c.bf16 %v352, %v351
      %v380 = vpack.c.bf16 %v354, %v353
      %v381 = vpack.c.bf16 %v356, %v355
      %v382 = vpack.c.bf16 %v358, %v357
      %v383 = vpack.c.bf16 %v360, %v359
      %v384 = vpack.c.bf16 %v362, %v361
      %v385 = vpack.c.bf16 %v364, %v363
      %v386 = vpack.c.bf16 %v366, %v365
      %v387 = vpack.c.bf16 %v368, %v367
      %v388 = vpack.c.bf16 %v370, %v369
      %v389 = vpack.c.bf16 %v372, %v371
      %v390 = vpack.c.bf16 %v374, %v373
      %v407 = vunpack.c.l.b16 %v375
      %v408 = vunpack.c.h.b16 %v375
      %v409 = vunpack.c.l.b16 %v376
      %v410 = vunpack.c.h.b16 %v376
      %v411 = vunpack.c.l.b16 %v377
      %v412 = vunpack.c.h.b16 %v377
      %v413 = vunpack.c.l.b16 %v378
      %v414 = vunpack.c.h.b16 %v378
      %v415 = vunpack.c.l.b16 %v379
      %v416 = vunpack.c.h.b16 %v379
      %v417 = vunpack.c.l.b16 %v380
      %v418 = vunpack.c.h.b16 %v380
      %v419 = vunpack.c.l.b16 %v381
      %v420 = vunpack.c.h.b16 %v381
      %v421 = vunpack.c.l.b16 %v382
      %v422 = vunpack.c.h.b16 %v382
      %v423 = vunpack.c.l.b16 %v383
      %v424 = vunpack.c.h.b16 %v383
      %v425 = vunpack.c.l.b16 %v384
      %v426 = vunpack.c.h.b16 %v384
      %v427 = vunpack.c.l.b16 %v385
      %v428 = vunpack.c.h.b16 %v385
      %v429 = vunpack.c.l.b16 %v386
      %v430 = vunpack.c.h.b16 %v386
      %v431 = vunpack.c.l.b16 %v387
      %v432 = vunpack.c.h.b16 %v387
      %v433 = vunpack.c.l.b16 %v388
      %v434 = vunpack.c.h.b16 %v388
      %v435 = vunpack.c.l.b16 %v389
      %v436 = vunpack.c.h.b16 %v389
      %v437 = vunpack.c.l.b16 %v390
      %v438 = vunpack.c.h.b16 %v390
      %v439 = vpack.c.b16 %v407, %v407
      %v440 = vpack.c.b16 %v408, %v408
      %v441 = vpack.c.b16 %v409, %v409
      %v442 = vpack.c.b16 %v410, %v410
      %v443 = vpack.c.b16 %v411, %v411
      %v444 = vpack.c.b16 %v412, %v412
      %v445 = vpack.c.b16 %v413, %v413
      %v446 = vpack.c.b16 %v414, %v414
      %v447 = vpack.c.b16 %v415, %v415
      %v448 = vpack.c.b16 %v416, %v416
      %v449 = vpack.c.b16 %v417, %v417
      %v450 = vpack.c.b16 %v418, %v418
      %v451 = vpack.c.b16 %v419, %v419
      %v452 = vpack.c.b16 %v420, %v420
      %v453 = vpack.c.b16 %v421, %v421
      %v454 = vpack.c.b16 %v422, %v422
      %v455 = vpack.c.b16 %v423, %v423
      %v456 = vpack.c.b16 %v424, %v424
      %v457 = vpack.c.b16 %v425, %v425
      %v458 = vpack.c.b16 %v426, %v426
      %v459 = vpack.c.b16 %v427, %v427
      %v460 = vpack.c.b16 %v428, %v428
      %v461 = vpack.c.b16 %v429, %v429
      %v462 = vpack.c.b16 %v430, %v430
      %v463 = vpack.c.b16 %v431, %v431
      %v464 = vpack.c.b16 %v432, %v432
      %v465 = vpack.c.b16 %v433, %v433
      %v466 = vpack.c.b16 %v434, %v434
      %v467 = vpack.c.b16 %v435, %v435
      %v468 = vpack.c.b16 %v436, %v436
      %v469 = vpack.c.b16 %v437, %v437
      %v470 = vpack.c.b16 %v438, %v438
      %503 = vst [vmem:[%s231] sm:$0xf] %v439
      %504 = vst [vmem:[%s231 + $0x4] sm:$0xf] %v440
      %505 = vst [vmem:[%s231 + $0x8] sm:$0xf] %v441
      %506 = vst [vmem:[%s231 + $0xc] sm:$0xf] %v442
      %507 = vst [vmem:[%s231 + $0x10] sm:$0xf] %v443
      %508 = vst [vmem:[%s231 + $0x14] sm:$0xf] %v444
      %509 = vst [vmem:[%s231 + $0x18] sm:$0xf] %v445
      %510 = vst [vmem:[%s231 + $0x1c] sm:$0xf] %v446
      %511 = vst [vmem:[%s231 + $0x20] sm:$0xf] %v447
      %512 = vst [vmem:[%s231 + $0x24] sm:$0xf] %v448
      %513 = vst [vmem:[%s231 + $0x28] sm:$0xf] %v449
      %514 = vst [vmem:[%s231 + $0x2c] sm:$0xf] %v450
      %515 = vst [vmem:[%s231 + $0x30] sm:$0xf] %v451
      %516 = vst [vmem:[%s231 + $0x34] sm:$0xf] %v452
      %517 = vst [vmem:[%s231 + $0x38] sm:$0xf] %v453
      %518 = vst [vmem:[%s231 + $0x3c] sm:$0xf] %v454
      %519 = vst [vmem:[%s231 + $0x40] sm:$0xf] %v455
      %520 = vst [vmem:[%s231 + $0x44] sm:$0xf] %v456
      %521 = vst [vmem:[%s231 + $0x48] sm:$0xf] %v457
      %522 = vst [vmem:[%s231 + $0x4c] sm:$0xf] %v458
      %523 = vst [vmem:[%s231 + $0x50] sm:$0xf] %v459
      %524 = vst [vmem:[%s231 + $0x54] sm:$0xf] %v460
      %525 = vst [vmem:[%s231 + $0x58] sm:$0xf] %v461
      %526 = vst [vmem:[%s231 + $0x5c] sm:$0xf] %v462
      %527 = vst [vmem:[%s231 + $0x60] sm:$0xf] %v463
      %528 = vst [vmem:[%s231 + $0x64] sm:$0xf] %v464
      %529 = vst [vmem:[%s231 + $0x68] sm:$0xf] %v465
      %530 = vst [vmem:[%s231 + $0x6c] sm:$0xf] %v466
      %531 = vst [vmem:[%s231 + $0x70] sm:$0xf] %v467
      %532 = vst [vmem:[%s231 + $0x74] sm:$0xf] %v468
      %533 = vst [vmem:[%s231 + $0x78] sm:$0xf] %v469
      %534 = vst [vmem:[%s231 + $0x7c] sm:$0xf] %v470
      %s535 = smul.u32 32, %s18
      %p536 = scmp.lt.s32.totalorder %s535, 63
      %s537 = scalar_select %p536, %s535, 63
      %p538 = scmp.lt.s32.totalorder %s19, 0
      %s539 = scalar_select %p538, %s19, 0
      %s540 = sadd.s32 %s539, %s537
      %s541 = smul.addr %s540, 4
      %s542 = scalar_lea.vmem %s3, %s541
      // Predicated region
      $region33: #{move_analyser_forward.9} parent=31 // pred_check
        %p543 = pneg %p126
      $region34: #{move_analyser_forward.9} parent=31 // pred_check_branch
        %545 = sbr.rel (%p543) target = $region36
      $region35: #{move_analyser_forward.9} parent=31 // pred_region
        %s546 = smul.u32 32, %s18
      $region36: #{move_analyser_forward.9} parent=31 // pred_fallthru
        _
    $region32: #{move_analyser_forward.9} parent=5 // pred_fallthru
      _
    %p547 = scmp.le.s32.totalorder 2, %s9
    // Predicated region
    $region37: #{move_analyser_forward.9} parent=5 // pred_check
      %p548 = pneg %p547
    $region38: #{move_analyser_forward.9} parent=5 // pred_check_branch
      %550 = sbr.rel (%p548) target = $region40
    $region39: #{move_analyser_forward.9} parent=5 // pred_region
      %s551 = ssub.s32 %s9, 2
      // Predicated region
      $region41: #{move_analyser_forward.9} parent=39 // pred_check
        %p552 = pneg %p132
      $region42: #{move_analyser_forward.9} parent=39 // pred_check_branch
        %554 = sbr.rel (%p552) target = $region44
      $region43: #{move_analyser_forward.9} parent=39 // pred_region
        %s555 = smul.u32 32, %s20
        %p556 = scmp.lt.s32.totalorder %s555, 63
        %s557 = scalar_select %p556, %s555, 63
        %p558 = scmp.lt.s32.totalorder %s21, 0
        %s559 = scalar_select %p558, %s21, 0
        %s560 = sadd.s32 %s559, %s557
        %s561 = smul.addr %s560, 4
        %s562 = scalar_lea.vmem %s3, %s561
      $region44: #{move_analyser_forward.9} parent=39 // pred_fallthru
        _
    $region40: #{move_analyser_forward.9} parent=5 // pred_fallthru
      _
  $region6: #{move_analyser_forward.9} parent=0 // loop_footer
    %s13 = sadd.s32 1, %s9
  $region7: #{move_analyser_forward.9} parent=0 // loop_footer_branch
    %8 = sbr.rel target = $region3
  $region8: #{move_analyser_forward.9} parent=0 // loop_exit
    _

// kernel: move_analyser_forward.8
$region0: #{move_analyser_forward.8}
  #allocation0 [shape = 'u32[]', space=smem, size = 0x4, offset = 0x4, fixed_abs, tag = 'smem constant byte address 0x4 - core index']
  #allocation1 [shape = 'u32[144,128]{1,0:T(1,128)}', space=vmem, size = 0x12000, scoped, tag = 'internal scratch']
  #allocation2 [shape = 'f32[256,128]{1,0:T(8,128)}', space=vmem, size = 0x20000, scoped, tag = 'scratch operand']
  %s0 = inlined_call_operand.vmem [shape: bf16[512,256], index: 0, kind: input, shape index: {}]
  %s1 = inlined_call_operand.vmem [shape: bf16[256,128], index: 1, kind: input, shape index: {}]
  %s2 = inlined_call_operand.vmem [shape: f32[512,128], index: 2, kind: output, shape index: {0}]
  %s3 = inlined_call_operand.vmem [shape: f32[1,128], index: 3, kind: output, shape index: {1}]
  %s4 = inlined_call_operand.vmem [shape: f32[1,128], index: 4, kind: output, shape index: {2}]
  %5 = xla_tuple %s2, %s3, %s4
  %s6 = sld [smem:[#allocation0]]
  $region69: #{move_analyser_forward.8} parent=0
    _
  %s8 = ssub.s32 1, %s6
  %s9 = scalar_select 0, %s8, %s6
  loop: start=0, step=1, limit=4
  $region2: #{move_analyser_forward.8} parent=0 // loop_pre_header
    _
  $region3: #{move_analyser_forward.8} parent=0 // loop_header
    %s11 = sphi 0, %s15
    %p12 = scmp.ge.s32.totalorder %s11, 4
    %s18 = sphi 0, %s37
    %s19 = sphi 0, %s33
    %s20 = sphi 0, %s29
    %s21 = sphi 0, %s18
    %s22 = sphi 0, %s19
    %s23 = sphi 0, %s20
    %s24 = sphi 0, %s21
    %s25 = sphi 0, %s22
    %s26 = sphi 0, %s23
    %s42 = sphi 0, %s44
    %s45 = sphi 0, %s42
    %s46 = sphi 0, %s45
    %s62 = sphi 0, %s46
    %s70 = sphi 0, %s72
    %s73 = sphi 0, %s70
    %s74 = sphi 0, %s73
    %s90 = sphi 0, %s74
    %s98 = sphi 0, %s100
    %s101 = sphi 0, %s98
    %s102 = sphi 0, %s101
    %s118 = sphi 0, %s102
    %s124 = sphi 0, %s126
    %s127 = sphi 0, %s124
    %s128 = sphi 0, %s127
    %s144 = sphi 0, %s128
    %s150 = sphi 0, %s152
    %s153 = sphi 0, %s150
    %s154 = sphi 0, %s153
    %s170 = sphi 0, %s154
  $region4: #{move_analyser_forward.8} parent=0 // loop_header_branch
    %14 = sbr.rel (%p12) target = $region8
  $region5: #{move_analyser_forward.8} parent=0 // loop_body
    %s16 = ssub.s32 %s11, 1
    %s17 = ssub.s32 %s11, 2
    %s27 = sadd.s32 1, %s20
    %p28 = scmp.ge.s32.totalorder %s27, 1
    %s29 = scalar_select %p28, 0, %s27
    %s30 = sadd.s32 1, %s19
    %s31 = scalar_select %p28, %s30, %s19
    %p32 = scmp.ge.s32.totalorder %s31, 2
    %s33 = scalar_select %p32, 0, %s31
    %s34 = sadd.s32 1, %s18
    %s35 = scalar_select %p32, %s34, %s18
    %p36 = scmp.ge.s32.totalorder %s35, 1
    %s37 = scalar_select %p36, 0, %s35
    %s38 = ssub.s32 %s19, %s33
    %s39 = ssub.s32 %s20, %s29
    %s40 = sor.u32 %s38, %s39
    %p41 = scmp.eq.s32.totalorder %s40, 0
    %s43 = sadd.s32 %s42, 1
    %s44 = scalar_select %p41, %s42, %s43
    %p47 = pneg %p41
    %p48 = scmp.eq.s32.totalorder %s11, 1
    %p49 = por %p47, %p48
    %p50 = scmp.ne.s32.totalorder %s42, %s45
    %p51 = scmp.eq.s32.totalorder %s11, 0
    %p52 = por %p50, %p51
    %p53 = scmp.ne.s32.totalorder %s42, %s45
    %p54 = scmp.eq.s32.totalorder %s16, 1
    %p55 = por %p53, %p54
    %p56 = scmp.ne.s32.totalorder %s45, %s46
    %p57 = scmp.eq.s32.totalorder %s16, 0
    %p58 = por %p56, %p57
    %p59 = scmp.ne.s32.totalorder %s45, %s46
    %p60 = scmp.eq.s32.totalorder %s17, 1
    %p61 = por %p59, %p60
    %p63 = scmp.ne.s32.totalorder %s46, %s62
    %p64 = scmp.eq.s32.totalorder %s17, 0
    %p65 = por %p63, %p64
    %s66 = ssub.s32 %s20, %s29
    %s67 = ssub.s32 %s18, %s37
    %s68 = sor.u32 %s66, %s67
    %p69 = scmp.eq.s32.totalorder %s68, 0
    %s71 = sadd.s32 %s70, 1
    %s72 = scalar_select %p69, %s70, %s71
    %p75 = pneg %p69
    %p76 = scmp.eq.s32.totalorder %s11, 1
    %p77 = por %p75, %p76
    %p78 = scmp.ne.s32.totalorder %s70, %s73
    %p79 = scmp.eq.s32.totalorder %s11, 0
    %p80 = por %p78, %p79
    %p81 = scmp.ne.s32.totalorder %s70, %s73
    %p82 = scmp.eq.s32.totalorder %s16, 1
    %p83 = por %p81, %p82
    %p84 = scmp.ne.s32.totalorder %s73, %s74
    %p85 = scmp.eq.s32.totalorder %s16, 0
    %p86 = por %p84, %p85
    %p87 = scmp.ne.s32.totalorder %s73, %s74
    %p88 = scmp.eq.s32.totalorder %s17, 1
    %p89 = por %p87, %p88
    %p91 = scmp.ne.s32.totalorder %s74, %s90
    %p92 = scmp.eq.s32.totalorder %s17, 0
    %p93 = por %p91, %p92
    %s94 = ssub.s32 %s19, %s33
    %s95 = ssub.s32 %s18, %s37
    %s96 = sor.u32 %s94, %s95
    %p97 = scmp.eq.s32.totalorder %s96, 0
    %s99 = sadd.s32 %s98, 1
    %s100 = scalar_select %p97, %s98, %s99
    %p103 = pneg %p97
    %p104 = scmp.eq.s32.totalorder %s11, 1
    %p105 = por %p103, %p104
    %p106 = scmp.ne.s32.totalorder %s98, %s101
    %p107 = scmp.eq.s32.totalorder %s11, 0
    %p108 = por %p106, %p107
    %p109 = scmp.ne.s32.totalorder %s98, %s101
    %p110 = scmp.eq.s32.totalorder %s16, 1
    %p111 = por %p109, %p110
    %p112 = scmp.ne.s32.totalorder %s101, %s102
    %p113 = scmp.eq.s32.totalorder %s16, 0
    %p114 = por %p112, %p113
    %p115 = scmp.ne.s32.totalorder %s101, %s102
    %p116 = scmp.eq.s32.totalorder %s17, 1
    %p117 = por %p115, %p116
    %p119 = scmp.ne.s32.totalorder %s102, %s118
    %p120 = scmp.eq.s32.totalorder %s17, 0
    %p121 = por %p119, %p120
    %s122 = ssub.s32 %s18, %s37
    %p123 = scmp.eq.s32.totalorder %s122, 0
    %s125 = sadd.s32 %s124, 1
    %s126 = scalar_select %p123, %s124, %s125
    %p129 = pneg %p123
    %p130 = scmp.eq.s32.totalorder %s11, 1
    %p131 = por %p129, %p130
    %p132 = scmp.ne.s32.totalorder %s124, %s127
    %p133 = scmp.eq.s32.totalorder %s11, 0
    %p134 = por %p132, %p133
    %p135 = scmp.ne.s32.totalorder %s124, %s127
    %p136 = scmp.eq.s32.totalorder %s16, 1
    %p137 = por %p135, %p136
    %p138 = scmp.ne.s32.totalorder %s127, %s128
    %p139 = scmp.eq.s32.totalorder %s16, 0
    %p140 = por %p138, %p139
    %p141 = scmp.ne.s32.totalorder %s127, %s128
    %p142 = scmp.eq.s32.totalorder %s17, 1
    %p143 = por %p141, %p142
    %p145 = scmp.ne.s32.totalorder %s128, %s144
    %p146 = scmp.eq.s32.totalorder %s17, 0
    %p147 = por %p145, %p146
    %s148 = ssub.s32 %s18, %s37
    %p149 = scmp.eq.s32.totalorder %s148, 0
    %s151 = sadd.s32 %s150, 1
    %s152 = scalar_select %p149, %s150, %s151
    %p155 = pneg %p149
    %p156 = scmp.eq.s32.totalorder %s11, 1
    %p157 = por %p155, %p156
    %p158 = scmp.ne.s32.totalorder %s150, %s153
    %p159 = scmp.eq.s32.totalorder %s11, 0
    %p160 = por %p158, %p159
    %p161 = scmp.ne.s32.totalorder %s150, %s153
    %p162 = scmp.eq.s32.totalorder %s16, 1
    %p163 = por %p161, %p162
    %p164 = scmp.ne.s32.totalorder %s153, %s154
    %p165 = scmp.eq.s32.totalorder %s16, 0
    %p166 = por %p164, %p165
    %p167 = scmp.ne.s32.totalorder %s153, %s154
    %p168 = scmp.eq.s32.totalorder %s17, 1
    %p169 = por %p167, %p168
    %p171 = scmp.ne.s32.totalorder %s154, %s170
    %p172 = scmp.eq.s32.totalorder %s17, 0
    %p173 = por %p171, %p172
    %p174 = scmp.le.s32.totalorder 1, %s11
    %p175 = scmp.lt.s32.totalorder %s11, 3
    %p176 = pnand %p174, %p175
    %p177 = pneg %p176
    // Predicated region
    $region9: #{move_analyser_forward.8} parent=5 // pred_check
      _
    $region10: #{move_analyser_forward.8} parent=5 // pred_check_branch
      %179 = sbr.rel (%p176) target = $region12
    $region11: #{move_analyser_forward.8} parent=5 // pred_region
      %s180 = ssub.s32 %s11, 1
      // Predicated region
      $region13: #{move_analyser_forward.8} parent=11 // pred_check
        %p181 = pneg %p86
      $region14: #{move_analyser_forward.8} parent=11 // pred_check_branch
        %183 = sbr.rel (%p181) target = $region16
      $region15: #{move_analyser_forward.8} parent=11 // pred_region
        %s184 = smul.u32 32, %s23
        %p185 = scmp.lt.s32.totalorder %s184, 31
        %s186 = scalar_select %p185, %s184, 31
        %p187 = scmp.lt.s32.totalorder %s21, 0
        %s188 = scalar_select %p187, %s21, 0
        %s189 = sadd.s32 %s188, %s186
        %s190 = smul.addr %s189, 4
        %s191 = scalar_lea.vmem %s1, %s190
        %s192 = smul.u32 32, %s23
      $region16: #{move_analyser_forward.8} parent=11 // pred_fallthru
        _
    $region12: #{move_analyser_forward.8} parent=5 // pred_fallthru
      _
    %p193 = scmp.lt.s32.totalorder %s11, 2
    // Predicated region
    $region17: #{move_analyser_forward.8} parent=5 // pred_check
      %p194 = pneg %p193
    $region18: #{move_analyser_forward.8} parent=5 // pred_check_branch
      %196 = sbr.rel (%p194) target = $region20
    $region19: #{move_analyser_forward.8} parent=5 // pred_region
      // Predicated region
      $region21: #{move_analyser_forward.8} parent=19 // pred_check
        %p197 = pneg %p52
      $region22: #{move_analyser_forward.8} parent=19 // pred_check_branch
        %199 = sbr.rel (%p197) target = $region24
      $region23: #{move_analyser_forward.8} parent=19 // pred_region
        %s200 = smul.u32 32, %s19
        %s201 = smul.u32 2, %s20
        %p202 = scmp.lt.s32.totalorder %s200, 63
        %s203 = scalar_select %p202, %s200, 63
        %p204 = scmp.lt.s32.totalorder %s201, 1
        %s205 = scalar_select %p204, %s201, 1
        %s206 = smul.addr %s203, 2
        %s207 = sadd.s32 %s205, %s206
        %s208 = smul.addr %s207, 4
        %s209 = scalar_lea.vmem %s0, %s208
        %s210 = smul.u32 32, %s19
        %s211 = smul.u32 2, %s20
      $region24: #{move_analyser_forward.8} parent=19 // pred_fallthru
        _
    $region20: #{move_analyser_forward.8} parent=5 // pred_fallthru
      _
    %p212 = scmp.le.s32.totalorder 1, %s11
    %p213 = scmp.lt.s32.totalorder %s11, 3
    %p214 = pnand %p212, %p213
    %p215 = pneg %p214
    // Predicated region
    $region25: #{move_analyser_forward.8} parent=5 // pred_check
      _
    $region26: #{move_analyser_forward.8} parent=5 // pred_check_branch
      %217 = sbr.rel (%p214) target = $region28
    $region27: #{move_analyser_forward.8} parent=5 // pred_region
      %s218 = ssub.s32 %s11, 1
      %s219 = smul.u32 32, %s22
      %s220 = smul.u32 2, %s23
      %p221 = scmp.lt.s32.totalorder %s219, 63
      %s222 = scalar_select %p221, %s219, 63
      %p223 = scmp.lt.s32.totalorder %s220, 1
      %s224 = scalar_select %p223, %s220, 1
      %s225 = smul.addr %s222, 2
      %s226 = sadd.s32 %s224, %s225
      %s227 = smul.addr %s226, 4
      %s228 = scalar_lea.vmem %s0, %s227
      %p229 = pneg %p58
      %p230 = pneg %p55
      %s231 = smul.u32 32, %s23
      %p232 = scmp.lt.s32.totalorder %s231, 31
      %s233 = scalar_select %p232, %s231, 31
      %p234 = scmp.lt.s32.totalorder %s21, 0
      %s235 = scalar_select %p234, %s21, 0
      %s236 = sadd.s32 %s235, %s233
      %s237 = smul.addr %s236, 4
      %s238 = scalar_lea.vmem %s1, %s237
      %p239 = pneg %p86
      %p240 = pneg %p83
      %p241 = pneg %p114
      %p242 = pneg %p111
      %s243 = smul.u32 32, %s22
      %p244 = scmp.lt.s32.totalorder %s243, 63
      %s245 = scalar_select %p244, %s243, 63
      %p246 = scmp.lt.s32.totalorder %s21, 0
      %s247 = scalar_select %p246, %s21, 0
      %s248 = sadd.s32 %s247, %s245
      %s249 = smul.addr %s248, 8
      %s250 = scalar_lea.vmem %s2, %s249
      %p251 = pneg %p140
      %p252 = pneg %p137
      %p253 = scmp.lt.s32.totalorder %s21, 0
      %s254 = scalar_select %p253, %s21, 0
      %s255 = scalar_lea.vmem %s3, %s254
      %p256 = pneg %p166
      %p257 = pneg %p163
      %p258 = scmp.lt.s32.totalorder %s21, 0
      %s259 = scalar_select %p258, %s21, 0
      %s260 = scalar_lea.vmem %s4, %s259
      %s261 = smul.u32 32, %s22
      %s262 = smul.u32 2, %s23
      %p263 = scmp.lt.s32.totalorder %s261, 63
      %s264 = scalar_select %p263, %s261, 63
      %p265 = scmp.lt.s32.totalorder %s262, 1
      %s266 = scalar_select %p265, %s262, 1
      %s267 = smul.addr %s264, 2
      %s268 = sadd.s32 %s266, %s267
      %s269 = smul.addr %s268, 4
      %s270 = scalar_lea.vmem %s0, %s269
      %s271 = smul.u32 32, %s22
      %s272 = smul.u32 2, %s23
      %s273 = smul.u32 32, %s23
      %p274 = scmp.lt.s32.totalorder %s273, 31
      %s275 = scalar_select %p274, %s273, 31
      %p276 = scmp.lt.s32.totalorder %s21, 0
      %s277 = scalar_select %p276, %s21, 0
      %s278 = sadd.s32 %s277, %s275
      %s279 = smul.addr %s278, 4
      %s280 = scalar_lea.vmem %s1, %s279
      %s281 = smul.u32 32, %s23
      %s282 = smul.u32 32, %s22
      %p283 = scmp.lt.s32.totalorder %s282, 63
      %s284 = scalar_select %p283, %s282, 63
      %p285 = scmp.lt.s32.totalorder %s21, 0
      %s286 = scalar_select %p285, %s21, 0
      %s287 = sadd.s32 %s286, %s284
      %s288 = smul.addr %s287, 8
      %s289 = scalar_lea.vmem %s2, %s288
      %s290 = smul.u32 32, %s22
      %p291 = scmp.lt.s32.totalorder %s21, 0
      %s292 = scalar_select %p291, %s21, 0
      %s293 = scalar_lea.vmem %s3, %s292
      %p294 = scmp.lt.s32.totalorder %s21, 0
      %s295 = scalar_select %p294, %s21, 0
      %s296 = scalar_lea.vmem %s4, %s295
      %p298 = scmp.eq.s32.totalorder %s23, 0
      // Predicated region
      $region29: #{move_analyser_forward.8} parent=27 // pred_check
        %p299 = pneg %p298
      $region30: #{move_analyser_forward.8} parent=27 // pred_check_branch
        %301 = sbr.rel (%p299) target = $region32
      $region31: #{move_analyser_forward.8} parent=27 // pred_region
        %302 = vst [vmem:[#allocation2] sm:$0xff] 0.0
        %303 = vst [vmem:[#allocation2 + $0x8] sm:$0xff] 0.0
        %304 = vst [vmem:[#allocation2 + $0x10] sm:$0xff] 0.0
        %305 = vst [vmem:[#allocation2 + $0x18] sm:$0xff] 0.0
        %306 = vst [vmem:[#allocation2 + $0x20] sm:$0xff] 0.0
        %307 = vst [vmem:[#allocation2 + $0x28] sm:$0xff] 0.0
        %308 = vst [vmem:[#allocation2 + $0x30] sm:$0xff] 0.0
        %309 = vst [vmem:[#allocation2 + $0x38] sm:$0xff] 0.0
        %310 = vst [vmem:[#allocation2 + $0x40] sm:$0xff] 0.0
        %311 = vst [vmem:[#allocation2 + $0x48] sm:$0xff] 0.0
        %312 = vst [vmem:[#allocation2 + $0x50] sm:$0xff] 0.0
        %313 = vst [vmem:[#allocation2 + $0x58] sm:$0xff] 0.0
        %314 = vst [vmem:[#allocation2 + $0x60] sm:$0xff] 0.0
        %315 = vst [vmem:[#allocation2 + $0x68] sm:$0xff] 0.0
        %316 = vst [vmem:[#allocation2 + $0x70] sm:$0xff] 0.0
        %317 = vst [vmem:[#allocation2 + $0x78] sm:$0xff] 0.0
        %318 = vst [vmem:[#allocation2 + $0x80] sm:$0xff] 0.0
        %319 = vst [vmem:[#allocation2 + $0x88] sm:$0xff] 0.0
        %320 = vst [vmem:[#allocation2 + $0x90] sm:$0xff] 0.0
        %321 = vst [vmem:[#allocation2 + $0x98] sm:$0xff] 0.0
        %322 = vst [vmem:[#allocation2 + $0xa0] sm:$0xff] 0.0
        %323 = vst [vmem:[#allocation2 + $0xa8] sm:$0xff] 0.0
        %324 = vst [vmem:[#allocation2 + $0xb0] sm:$0xff] 0.0
        %325 = vst [vmem:[#allocation2 + $0xb8] sm:$0xff] 0.0
        %326 = vst [vmem:[#allocation2 + $0xc0] sm:$0xff] 0.0
        %327 = vst [vmem:[#allocation2 + $0xc8] sm:$0xff] 0.0
        %328 = vst [vmem:[#allocation2 + $0xd0] sm:$0xff] 0.0
        %329 = vst [vmem:[#allocation2 + $0xd8] sm:$0xff] 0.0
        %330 = vst [vmem:[#allocation2 + $0xe0] sm:$0xff] 0.0
        %331 = vst [vmem:[#allocation2 + $0xe8] sm:$0xff] 0.0
        %332 = vst [vmem:[#allocation2 + $0xf0] sm:$0xff] 0.0
        %333 = vst [vmem:[#allocation2 + $0xf8] sm:$0xff] 0.0
      $region32: #{move_analyser_forward.8} parent=27 // pred_fallthru
        _
      %v334 = vld [vmem:[#allocation2] sm:$0xff]
      %v335 = vld [vmem:[#allocation2 + $0x8] sm:$0xff]
      %v336 = vld [vmem:[#allocation2 + $0x10] sm:$0xff]
      %v337 = vld [vmem:[#allocation2 + $0x18] sm:$0xff]
      %v338 = vld [vmem:[#allocation2 + $0x20] sm:$0xff]
      %v339 = vld [vmem:[#allocation2 + $0x28] sm:$0xff]
      %v340 = vld [vmem:[#allocation2 + $0x30] sm:$0xff]
      %v341 = vld [vmem:[#allocation2 + $0x38] sm:$0xff]
      %v342 = vld [vmem:[#allocation2 + $0x40] sm:$0xff]
      %v343 = vld [vmem:[#allocation2 + $0x48] sm:$0xff]
      %v344 = vld [vmem:[#allocation2 + $0x50] sm:$0xff]
      %v345 = vld [vmem:[#allocation2 + $0x58] sm:$0xff]
      %v346 = vld [vmem:[#allocation2 + $0x60] sm:$0xff]
      %v347 = vld [vmem:[#allocation2 + $0x68] sm:$0xff]
      %v348 = vld [vmem:[#allocation2 + $0x70] sm:$0xff]
      %v349 = vld [vmem:[#allocation2 + $0x78] sm:$0xff]
      %v350 = vld [vmem:[#allocation2 + $0x80] sm:$0xff]
      %v351 = vld [vmem:[#allocation2 + $0x88] sm:$0xff]
      %v352 = vld [vmem:[#allocation2 + $0x90] sm:$0xff]
      %v353 = vld [vmem:[#allocation2 + $0x98] sm:$0xff]
      %v354 = vld [vmem:[#allocation2 + $0xa0] sm:$0xff]
      %v355 = vld [vmem:[#allocation2 + $0xa8] sm:$0xff]
      %v356 = vld [vmem:[#allocation2 + $0xb0] sm:$0xff]
      %v357 = vld [vmem:[#allocation2 + $0xb8] sm:$0xff]
      %v358 = vld [vmem:[#allocation2 + $0xc0] sm:$0xff]
      %v359 = vld [vmem:[#allocation2 + $0xc8] sm:$0xff]
      %v360 = vld [vmem:[#allocation2 + $0xd0] sm:$0xff]
      %v361 = vld [vmem:[#allocation2 + $0xd8] sm:$0xff]
      %v362 = vld [vmem:[#allocation2 + $0xe0] sm:$0xff]
      %v363 = vld [vmem:[#allocation2 + $0xe8] sm:$0xff]
      %v364 = vld [vmem:[#allocation2 + $0xf0] sm:$0xff]
      %v365 = vld [vmem:[#allocation2 + $0xf8] sm:$0xff]
      %v366 = vld [vmem:[%s270] sm:$0xff]
      %v367 = vld [vmem:[%s270 + $0x8] sm:$0xff]
      %v368 = vld [vmem:[%s270 + $0x10] sm:$0xff]
      %v369 = vld [vmem:[%s270 + $0x18] sm:$0xff]
      %v370 = vld [vmem:[%s270 + $0x20] sm:$0xff]
      %v371 = vld [vmem:[%s270 + $0x28] sm:$0xff]
      %v372 = vld [vmem:[%s270 + $0x30] sm:$0xff]
      %v373 = vld [vmem:[%s270 + $0x38] sm:$0xff]
      %v374 = vld [vmem:[%s270 + $0x40] sm:$0xff]
      %v375 = vld [vmem:[%s270 + $0x48] sm:$0xff]
      %v376 = vld [vmem:[%s270 + $0x50] sm:$0xff]
      %v377 = vld [vmem:[%s270 + $0x58] sm:$0xff]
      %v378 = vld [vmem:[%s270 + $0x60] sm:$0xff]
      %v379 = vld [vmem:[%s270 + $0x68] sm:$0xff]
      %v380 = vld [vmem:[%s270 + $0x70] sm:$0xff]
      %v381 = vld [vmem:[%s270 + $0x78] sm:$0xff]
      %v382 = vld [vmem:[%s270 + $0x80] sm:$0xff]
      %v383 = vld [vmem:[%s270 + $0x88] sm:$0xff]
      %v384 = vld [vmem:[%s270 + $0x90] sm:$0xff]
      %v385 = vld [vmem:[%s270 + $0x98] sm:$0xff]
      %v386 = vld [vmem:[%s270 + $0xa0] sm:$0xff]
      %v387 = vld [vmem:[%s270 + $0xa8] sm:$0xff]
      %v388 = vld [vmem:[%s270 + $0xb0] sm:$0xff]
      %v389 = vld [vmem:[%s270 + $0xb8] sm:$0xff]
      %v390 = vld [vmem:[%s270 + $0xc0] sm:$0xff]
      %v391 = vld [vmem:[%s270 + $0xc8] sm:$0xff]
      %v392 = vld [vmem:[%s270 + $0xd0] sm:$0xff]
      %v393 = vld [vmem:[%s270 + $0xd8] sm:$0xff]
      %v394 = vld [vmem:[%s270 + $0xe0] sm:$0xff]
      %v395 = vld [vmem:[%s270 + $0xe8] sm:$0xff]
      %v396 = vld [vmem:[%s270 + $0xf0] sm:$0xff]
      %v397 = vld [vmem:[%s270 + $0xf8] sm:$0xff]
      %v398 = vld [vmem:[%s280] sm:$0xf]
      %v399 = vld [vmem:[%s280 + $0x4] sm:$0xf]
      %v400 = vld [vmem:[%s280 + $0x8] sm:$0xf]
      %v401 = vld [vmem:[%s280 + $0xc] sm:$0xf]
      %v402 = vld [vmem:[%s280 + $0x10] sm:$0xf]
      %v403 = vld [vmem:[%s280 + $0x14] sm:$0xf]
      %v404 = vld [vmem:[%s280 + $0x18] sm:$0xf]
      %v405 = vld [vmem:[%s280 + $0x1c] sm:$0xf]
      %v406 = vld [vmem:[%s280 + $0x20] sm:$0xf]
      %v407 = vld [vmem:[%s280 + $0x24] sm:$0xf]
      %v408 = vld [vmem:[%s280 + $0x28] sm:$0xf]
      %v409 = vld [vmem:[%s280 + $0x2c] sm:$0xf]
      %v410 = vld [vmem:[%s280 + $0x30] sm:$0xf]
      %v411 = vld [vmem:[%s280 + $0x34] sm:$0xf]
      %v412 = vld [vmem:[%s280 + $0x38] sm:$0xf]
      %v413 = vld [vmem:[%s280 + $0x3c] sm:$0xf]
      %v414 = vld [vmem:[%s280 + $0x40] sm:$0xf]
      %v415 = vld [vmem:[%s280 + $0x44] sm:$0xf]
      %v416 = vld [vmem:[%s280 + $0x48] sm:$0xf]
      %v417 = vld [vmem:[%s280 + $0x4c] sm:$0xf]
      %v418 = vld [vmem:[%s280 + $0x50] sm:$0xf]
      %v419 = vld [vmem:[%s280 + $0x54] sm:$0xf]
      %v420 = vld [vmem:[%s280 + $0x58] sm:$0xf]
      %v421 = vld [vmem:[%s280 + $0x5c] sm:$0xf]
      %v422 = vld [vmem:[%s280 + $0x60] sm:$0xf]
      %v423 = vld [vmem:[%s280 + $0x64] sm:$0xf]
      %v424 = vld [vmem:[%s280 + $0x68] sm:$0xf]
      %v425 = vld [vmem:[%s280 + $0x6c] sm:$0xf]
      %v426 = vld [vmem:[%s280 + $0x70] sm:$0xf]
      %v427 = vld [vmem:[%s280 + $0x74] sm:$0xf]
      %v428 = vld [vmem:[%s280 + $0x78] sm:$0xf]
      %v429 = vld [vmem:[%s280 + $0x7c] sm:$0xf]
      %v462 = vunpack.c.l.b16 %v366
      %v463 = vunpack.c.h.b16 %v366
      %v464 = vunpack.c.l.b16 %v367
      %v465 = vunpack.c.h.b16 %v367
      %v466 = vunpack.c.l.b16 %v368
      %v467 = vunpack.c.h.b16 %v368
      %v468 = vunpack.c.l.b16 %v369
      %v469 = vunpack.c.h.b16 %v369
      %v470 = vunpack.c.l.b16 %v370
      %v471 = vunpack.c.h.b16 %v370
      %v472 = vunpack.c.l.b16 %v371
      %v473 = vunpack.c.h.b16 %v371
      %v474 = vunpack.c.l.b16 %v372
      %v475 = vunpack.c.h.b16 %v372
      %v476 = vunpack.c.l.b16 %v373
      %v477 = vunpack.c.h.b16 %v373
      %v478 = vunpack.c.l.b16 %v374
      %v479 = vunpack.c.h.b16 %v374
      %v480 = vunpack.c.l.b16 %v375
      %v481 = vunpack.c.h.b16 %v375
      %v482 = vunpack.c.l.b16 %v376
      %v483 = vunpack.c.h.b16 %v376
      %v484 = vunpack.c.l.b16 %v377
      %v485 = vunpack.c.h.b16 %v377
      %v486 = vunpack.c.l.b16 %v378
      %v487 = vunpack.c.h.b16 %v378
      %v488 = vunpack.c.l.b16 %v379
      %v489 = vunpack.c.h.b16 %v379
      %v490 = vunpack.c.l.b16 %v380
      %v491 = vunpack.c.h.b16 %v380
      %v492 = vunpack.c.l.b16 %v381
      %v493 = vunpack.c.h.b16 %v381
      %v494 = vunpack.c.l.b16 %v382
      %v495 = vunpack.c.h.b16 %v382
      %v496 = vunpack.c.l.b16 %v383
      %v497 = vunpack.c.h.b16 %v383
      %v498 = vunpack.c.l.b16 %v384
      %v499 = vunpack.c.h.b16 %v384
      %v500 = vunpack.c.l.b16 %v385
      %v501 = vunpack.c.h.b16 %v385
      %v502 = vunpack.c.l.b16 %v386
      %v503 = vunpack.c.h.b16 %v386
      %v504 = vunpack.c.l.b16 %v387
      %v505 = vunpack.c.h.b16 %v387
      %v506 = vunpack.c.l.b16 %v388
      %v507 = vunpack.c.h.b16 %v388
      %v508 = vunpack.c.l.b16 %v389
      %v509 = vunpack.c.h.b16 %v389
      %v510 = vunpack.c.l.b16 %v390
      %v511 = vunpack.c.h.b16 %v390
      %v512 = vunpack.c.l.b16 %v391
      %v513 = vunpack.c.h.b16 %v391
      %v514 = vunpack.c.l.b16 %v392
      %v515 = vunpack.c.h.b16 %v392
      %v516 = vunpack.c.l.b16 %v393
      %v517 = vunpack.c.h.b16 %v393
      %v518 = vunpack.c.l.b16 %v394
      %v519 = vunpack.c.h.b16 %v394
      %v520 = vunpack.c.l.b16 %v395
      %v521 = vunpack.c.h.b16 %v395
      %v522 = vunpack.c.l.b16 %v396
      %v523 = vunpack.c.h.b16 %v396
      %v524 = vunpack.c.l.b16 %v397
      %v525 = vunpack.c.h.b16 %v397
      %v526 = vpack.c.b16 %v464, %v462
      %v527 = vpack.c.b16 %v465, %v463
      %v528 = vpack.c.b16 %v468, %v466
      %v529 = vpack.c.b16 %v469, %v467
      %v530 = vpack.c.b16 %v472, %v470
      %v531 = vpack.c.b16 %v473, %v471
      %v532 = vpack.c.b16 %v476, %v474
      %v533 = vpack.c.b16 %v477, %v475
      %v534 = vpack.c.b16 %v480, %v478
      %v535 = vpack.c.b16 %v481, %v479
      %v536 = vpack.c.b16 %v484, %v482
      %v537 = vpack.c.b16 %v485, %v483
      %v538 = vpack.c.b16 %v488, %v486
      %v539 = vpack.c.b16 %v489, %v487
      %v540 = vpack.c.b16 %v492, %v490
      %v541 = vpack.c.b16 %v493, %v491
      %v542 = vpack.c.b16 %v496, %v494
      %v543 = vpack.c.b16 %v497, %v495
      %v544 = vpack.c.b16 %v500, %v498
      %v545 = vpack.c.b16 %v501, %v499
      %v546 = vpack.c.b16 %v504, %v502
      %v547 = vpack.c.b16 %v505, %v503
      %v548 = vpack.c.b16 %v508, %v506
      %v549 = vpack.c.b16 %v509, %v507
      %v550 = vpack.c.b16 %v512, %v510
      %v551 = vpack.c.b16 %v513, %v511
      %v552 = vpack.c.b16 %v516, %v514
      %v553 = vpack.c.b16 %v517, %v515
      %v554 = vpack.c.b16 %v520, %v518
      %v555 = vpack.c.b16 %v521, %v519
      %v556 = vpack.c.b16 %v524, %v522
      %v557 = vpack.c.b16 %v525, %v523
      %v622 = vunpack.c.l.b16 %v398
      %v623 = vunpack.c.l.b16 %v399
      %v624 = vunpack.c.l.b16 %v400
      %v625 = vunpack.c.l.b16 %v401
      %v626 = vunpack.c.l.b16 %v402
      %v627 = vunpack.c.l.b16 %v403
      %v628 = vunpack.c.l.b16 %v404
      %v629 = vunpack.c.l.b16 %v405
      %v630 = vunpack.c.l.b16 %v406
      %v631 = vunpack.c.l.b16 %v407
      %v632 = vunpack.c.l.b16 %v408
      %v633 = vunpack.c.l.b16 %v409
      %v634 = vunpack.c.l.b16 %v410
      %v635 = vunpack.c.l.b16 %v411
      %v636 = vunpack.c.l.b16 %v412
      %v637 = vunpack.c.l.b16 %v413
      %v638 = vunpack.c.l.b16 %v414
      %v639 = vunpack.c.l.b16 %v415
      %v640 = vunpack.c.l.b16 %v416
      %v641 = vunpack.c.l.b16 %v417
      %v642 = vunpack.c.l.b16 %v418
      %v643 = vunpack.c.l.b16 %v419
      %v644 = vunpack.c.l.b16 %v420
      %v645 = vunpack.c.l.b16 %v421
      %v646 = vunpack.c.l.b16 %v422
      %v647 = vunpack.c.l.b16 %v423
      %v648 = vunpack.c.l.b16 %v424
      %v649 = vunpack.c.l.b16 %v425
      %v650 = vunpack.c.l.b16 %v426
      %v651 = vunpack.c.l.b16 %v427
      %v652 = vunpack.c.l.b16 %v428
      %v653 = vunpack.c.l.b16 %v429
      %v654 = vpack.c.b16 %v623, %v622
      %v655 = vpack.c.b16 %v625, %v624
      %v656 = vpack.c.b16 %v627, %v626
      %v657 = vpack.c.b16 %v629, %v628
      %v658 = vpack.c.b16 %v631, %v630
      %v659 = vpack.c.b16 %v633, %v632
      %v660 = vpack.c.b16 %v635, %v634
      %v661 = vpack.c.b16 %v637, %v636
      %v662 = vpack.c.b16 %v639, %v638
      %v663 = vpack.c.b16 %v641, %v640
      %v664 = vpack.c.b16 %v643, %v642
      %v665 = vpack.c.b16 %v645, %v644
      %v666 = vpack.c.b16 %v647, %v646
      %v667 = vpack.c.b16 %v649, %v648
      %v668 = vpack.c.b16 %v651, %v650
      %v669 = vpack.c.b16 %v653, %v652
      %686 = vmatprep.subr.bf16.mxu0 0
      %687 = vmatpush1.bf16.msra.mxu0 %v661
      %688 = vmatprep.subr.bf16.mxu0 0
      %689 = vmatpush1.bf16.msra.mxu0 %v660
      %690 = vmatprep.subr.bf16.mxu0 0
      %691 = vmatpush1.bf16.msra.mxu0 %v659
      %692 = vmatprep.subr.bf16.mxu0 0
      %693 = vmatpush1.bf16.msra.mxu0 %v658
      %694 = vmatprep.subr.bf16.mxu0 0
      %695 = vmatpush1.bf16.msra.mxu0 %v657
      %696 = vmatprep.subr.bf16.mxu0 0
      %697 = vmatpush1.bf16.msra.mxu0 %v656
      %698 = vmatprep.subr.bf16.mxu0 0
      %699 = vmatpush1.bf16.msra.mxu0 %v655
      %700 = vmatprep.subr.bf16.mxu0 0
      %701 = vmatpush1.bf16.msra.mxu0 %v654
      %702 = vmatprep.subr.bf16.mxu0 0
      %703 = vmatpush2.bf16.msra.mxu0 %v669
      %704 = vmatprep.subr.bf16.mxu0 0
      %705 = vmatpush2.bf16.msra.mxu0 %v668
      %706 = vmatprep.subr.bf16.mxu0 0
      %707 = vmatpush2.bf16.msra.mxu0 %v667
      %708 = vmatprep.subr.bf16.mxu0 0
      %709 = vmatpush2.bf16.msra.mxu0 %v666
      %710 = vmatprep.subr.bf16.mxu0 0
      %711 = vmatpush2.bf16.msra.mxu0 %v665
      %712 = vmatprep.subr.bf16.mxu0 0
      %713 = vmatpush2.bf16.msra.mxu0 %v664
      %714 = vmatprep.subr.bf16.mxu0 0
      %715 = vmatpush2.bf16.msra.mxu0 %v663
      %716 = vmatprep.subr.bf16.mxu0 0
      %717 = vmatpush2.bf16.msra.mxu0 %v662
      %718 = vmatprep.mubr.bf16.mxu0 %v527
      %719 = vmatmul.mubr.bf16.gmra.mxu0 %v526
      %v720 = vpop.f32.mrf.mxu0
      %v721 = vadd.f32 0.0, %v720
      %v722 = vpop.f32.mrf.mxu0
      %v723 = vpop.f32.mrf.mxu0
      %v724 = vadd.f32 0.0, %v723
      %v725 = vpop.f32.mrf.mxu0
      %726 = vmatprep.mubr.bf16.mxu0 %v529
      %727 = vmatmul.mubr.bf16.gmra.mxu0 %v528
      %v728 = vpop.f32.mrf.mxu0
      %v729 = vadd.f32 0.0, %v728
      %v730 = vpop.f32.mrf.mxu0
      %v731 = vpop.f32.mrf.mxu0
      %v732 = vadd.f32 0.0, %v731
      %v733 = vpop.f32.mrf.mxu0
      %734 = vmatprep.mubr.bf16.mxu0 %v531
      %735 = vmatmul.mubr.bf16.gmra.mxu0 %v530
      %v736 = vpop.f32.mrf.mxu0
      %v737 = vadd.f32 0.0, %v736
      %v738 = vpop.f32.mrf.mxu0
      %v739 = vpop.f32.mrf.mxu0
      %v740 = vadd.f32 0.0, %v739
      %v741 = vpop.f32.mrf.mxu0
      %742 = vmatprep.mubr.bf16.mxu0 %v533
      %743 = vmatmul.mubr.bf16.gmra.mxu0 %v532
      %v744 = vpop.f32.mrf.mxu0
      %v745 = vadd.f32 0.0, %v744
      %v746 = vpop.f32.mrf.mxu0
      %v747 = vpop.f32.mrf.mxu0
      %v748 = vadd.f32 0.0, %v747
      %v749 = vpop.f32.mrf.mxu0
      %750 = vmatprep.mubr.bf16.mxu0 %v535
      %751 = vmatmul.mubr.bf16.gmra.mxu0 %v534
      %v752 = vpop.f32.mrf.mxu0
      %v753 = vadd.f32 0.0, %v752
      %v754 = vpop.f32.mrf.mxu0
      %v755 = vpop.f32.mrf.mxu0
      %v756 = vadd.f32 0.0, %v755
      %v757 = vpop.f32.mrf.mxu0
      %758 = vmatprep.mubr.bf16.mxu0 %v537
      %759 = vmatmul.mubr.bf16.gmra.mxu0 %v536
      %v760 = vpop.f32.mrf.mxu0
      %v761 = vadd.f32 0.0, %v760
      %v762 = vpop.f32.mrf.mxu0
      %v763 = vpop.f32.mrf.mxu0
      %v764 = vadd.f32 0.0, %v763
      %v765 = vpop.f32.mrf.mxu0
      %766 = vmatprep.mubr.bf16.mxu0 %v539
      %767 = vmatmul.mubr.bf16.gmra.mxu0 %v538
      %v768 = vpop.f32.mrf.mxu0
      %v769 = vadd.f32 0.0, %v768
      %v770 = vpop.f32.mrf.mxu0
      %v771 = vpop.f32.mrf.mxu0
      %v772 = vadd.f32 0.0, %v771
      %v773 = vpop.f32.mrf.mxu0
      %774 = vmatprep.mubr.bf16.mxu0 %v541
      %775 = vmatmul.mubr.bf16.gmra.mxu0 %v540
      %v776 = vpop.f32.mrf.mxu0
      %v777 = vadd.f32 0.0, %v776
      %v778 = vpop.f32.mrf.mxu0
      %v779 = vpop.f32.mrf.mxu0
      %v780 = vadd.f32 0.0, %v779
      %v781 = vpop.f32.mrf.mxu0
      %782 = vmatprep.mubr.bf16.mxu0 %v543
      %783 = vmatmul.mubr.bf16.gmra.mxu0 %v542
      %v784 = vpop.f32.mrf.mxu0
      %v785 = vadd.f32 0.0, %v784
      %v786 = vpop.f32.mrf.mxu0
      %v787 = vpop.f32.mrf.mxu0
      %v788 = vadd.f32 0.0, %v787
      %v789 = vpop.f32.mrf.mxu0
      %790 = vmatprep.mubr.bf16.mxu0 %v545
      %791 = vmatmul.mubr.bf16.gmra.mxu0 %v544
      %v792 = vpop.f32.mrf.mxu0
      %v793 = vadd.f32 0.0, %v792
      %v794 = vpop.f32.mrf.mxu0
      %v795 = vpop.f32.mrf.mxu0
      %v796 = vadd.f32 0.0, %v795
      %v797 = vpop.f32.mrf.mxu0
      %798 = vmatprep.mubr.bf16.mxu0 %v547
      %799 = vmatmul.mubr.bf16.gmra.mxu0 %v546
      %v800 = vpop.f32.mrf.mxu0
      %v801 = vadd.f32 0.0, %v800
      %v802 = vpop.f32.mrf.mxu0
      %v803 = vpop.f32.mrf.mxu0
      %v804 = vadd.f32 0.0, %v803
      %v805 = vpop.f32.mrf.mxu0
      %806 = vmatprep.mubr.bf16.mxu0 %v549
      %807 = vmatmul.mubr.bf16.gmra.mxu0 %v548
      %v808 = vpop.f32.mrf.mxu0
      %v809 = vadd.f32 0.0, %v808
      %v810 = vpop.f32.mrf.mxu0
      %v811 = vpop.f32.mrf.mxu0
      %v812 = vadd.f32 0.0, %v811
      %v813 = vpop.f32.mrf.mxu0
      %814 = vmatprep.mubr.bf16.mxu0 %v551
      %815 = vmatmul.mubr.bf16.gmra.mxu0 %v550
      %v816 = vpop.f32.mrf.mxu0
      %v817 = vadd.f32 0.0, %v816
      %v818 = vpop.f32.mrf.mxu0
      %v819 = vpop.f32.mrf.mxu0
      %v820 = vadd.f32 0.0, %v819
      %v821 = vpop.f32.mrf.mxu0
      %822 = vmatprep.mubr.bf16.mxu0 %v553
      %823 = vmatmul.mubr.bf16.gmra.mxu0 %v552
      %v824 = vpop.f32.mrf.mxu0
      %v825 = vadd.f32 0.0, %v824
      %v826 = vpop.f32.mrf.mxu0
      %v827 = vpop.f32.mrf.mxu0
      %v828 = vadd.f32 0.0, %v827
      %v829 = vpop.f32.mrf.mxu0
      %830 = vmatprep.mubr.bf16.mxu0 %v555
      %831 = vmatmul.mubr.bf16.gmra.mxu0 %v554
      %v832 = vpop.f32.mrf.mxu0
      %v833 = vadd.f32 0.0, %v832
      %v834 = vpop.f32.mrf.mxu0
      %v835 = vpop.f32.mrf.mxu0
      %v836 = vadd.f32 0.0, %v835
      %v837 = vpop.f32.mrf.mxu0
      %838 = vmatprep.mubr.bf16.mxu0 %v557
      %839 = vmatmul.mubr.bf16.gmra.mxu0 %v556
      %v840 = vpop.f32.mrf.mxu0
      %v841 = vadd.f32 0.0, %v840
      %v842 = vpop.f32.mrf.mxu0
      %v843 = vpop.f32.mrf.mxu0
      %v844 = vadd.f32 0.0, %v843
      %v845 = vpop.f32.mrf.mxu0
      %846 = vdwg.mxu0
      %v847 = vadd.f32 %v334, %v721
      %v848 = vadd.f32 %v335, %v724
      %v849 = vadd.f32 %v336, %v729
      %v850 = vadd.f32 %v337, %v732
      %v851 = vadd.f32 %v338, %v737
      %v852 = vadd.f32 %v339, %v740
      %v853 = vadd.f32 %v340, %v745
      %v854 = vadd.f32 %v341, %v748
      %v855 = vadd.f32 %v342, %v753
      %v856 = vadd.f32 %v343, %v756
      %v857 = vadd.f32 %v344, %v761
      %v858 = vadd.f32 %v345, %v764
      %v859 = vadd.f32 %v346, %v769
      %v860 = vadd.f32 %v347, %v772
      %v861 = vadd.f32 %v348, %v777
      %v862 = vadd.f32 %v349, %v780
      %v863 = vadd.f32 %v350, %v785
      %v864 = vadd.f32 %v351, %v788
      %v865 = vadd.f32 %v352, %v793
      %v866 = vadd.f32 %v353, %v796
      %v867 = vadd.f32 %v354, %v801
      %v868 = vadd.f32 %v355, %v804
      %v869 = vadd.f32 %v356, %v809
      %v870 = vadd.f32 %v357, %v812
      %v871 = vadd.f32 %v358, %v817
      %v872 = vadd.f32 %v359, %v820
      %v873 = vadd.f32 %v360, %v825
      %v874 = vadd.f32 %v361, %v828
      %v875 = vadd.f32 %v362, %v833
      %v876 = vadd.f32 %v363, %v836
      %v877 = vadd.f32 %v364, %v841
      %v878 = vadd.f32 %v365, %v844
      %879 = vst [vmem:[#allocation2] sm:$0xff] %v847
      %880 = vst [vmem:[#allocation2 + $0x8] sm:$0xff] %v848
      %881 = vst [vmem:[#allocation2 + $0x10] sm:$0xff] %v849
      %882 = vst [vmem:[#allocation2 + $0x18] sm:$0xff] %v850
      %883 = vst [vmem:[#allocation2 + $0x20] sm:$0xff] %v851
      %884 = vst [vmem:[#allocation2 + $0x28] sm:$0xff] %v852
      %885 = vst [vmem:[#allocation2 + $0x30] sm:$0xff] %v853
      %886 = vst [vmem:[#allocation2 + $0x38] sm:$0xff] %v854
      %887 = vst [vmem:[#allocation2 + $0x40] sm:$0xff] %v855
      %888 = vst [vmem:[#allocation2 + $0x48] sm:$0xff] %v856
      %889 = vst [vmem:[#allocation2 + $0x50] sm:$0xff] %v857
      %890 = vst [vmem:[#allocation2 + $0x58] sm:$0xff] %v858
      %891 = vst [vmem:[#allocation2 + $0x60] sm:$0xff] %v859
      %892 = vst [vmem:[#allocation2 + $0x68] sm:$0xff] %v860
      %893 = vst [vmem:[#allocation2 + $0x70] sm:$0xff] %v861
      %894 = vst [vmem:[#allocation2 + $0x78] sm:$0xff] %v862
      %895 = vst [vmem:[#allocation2 + $0x80] sm:$0xff] %v863
      %896 = vst [vmem:[#allocation2 + $0x88] sm:$0xff] %v864
      %897 = vst [vmem:[#allocation2 + $0x90] sm:$0xff] %v865
      %898 = vst [vmem:[#allocation2 + $0x98] sm:$0xff] %v866
      %899 = vst [vmem:[#allocation2 + $0xa0] sm:$0xff] %v867
      %900 = vst [vmem:[#allocation2 + $0xa8] sm:$0xff] %v868
      %901 = vst [vmem:[#allocation2 + $0xb0] sm:$0xff] %v869
      %902 = vst [vmem:[#allocation2 + $0xb8] sm:$0xff] %v870
      %903 = vst [vmem:[#allocation2 + $0xc0] sm:$0xff] %v871
      %904 = vst [vmem:[#allocation2 + $0xc8] sm:$0xff] %v872
      %905 = vst [vmem:[#allocation2 + $0xd0] sm:$0xff] %v873
      %906 = vst [vmem:[#allocation2 + $0xd8] sm:$0xff] %v874
      %907 = vst [vmem:[#allocation2 + $0xe0] sm:$0xff] %v875
      %908 = vst [vmem:[#allocation2 + $0xe8] sm:$0xff] %v876
      %909 = vst [vmem:[#allocation2 + $0xf0] sm:$0xff] %v877
      %910 = vst [vmem:[#allocation2 + $0xf8] sm:$0xff] %v878
      %p911 = scmp.eq.s32.totalorder %s22, 0
      %p912 = pnand %p298, %p911
      %p913 = pneg %p912
      // Predicated region
      $region33: #{move_analyser_forward.8} parent=27 // pred_check
        _
      $region34: #{move_analyser_forward.8} parent=27 // pred_check_branch
        %915 = sbr.rel (%p912) target = $region36
      $region35: #{move_analyser_forward.8} parent=27 // pred_region
        %916 = vst [vmem:[%s293] sm:$0x1] 0.0
        %917 = vst [vmem:[%s296] sm:$0x1] 0.0
      $region36: #{move_analyser_forward.8} parent=27 // pred_fallthru
        _
      // Predicated region
      $region37: #{move_analyser_forward.8} parent=27 // pred_check
        %p918 = pneg %p298
      $region38: #{move_analyser_forward.8} parent=27 // pred_check_branch
        %920 = sbr.rel (%p918) target = $region40
      $region39: #{move_analyser_forward.8} parent=27 // pred_region
        %v921 = vld [vmem:[#allocation2] sm:$0xff]
        %v922 = vld [vmem:[#allocation2 + $0x8] sm:$0xff]
        %v923 = vld [vmem:[#allocation2 + $0x10] sm:$0xff]
        %v924 = vld [vmem:[#allocation2 + $0x18] sm:$0xff]
        %v925 = vld [vmem:[#allocation2 + $0x20] sm:$0xff]
        %v926 = vld [vmem:[#allocation2 + $0x28] sm:$0xff]
        %v927 = vld [vmem:[#allocation2 + $0x30] sm:$0xff]
        %v928 = vld [vmem:[#allocation2 + $0x38] sm:$0xff]
        %v929 = vld [vmem:[#allocation2 + $0x40] sm:$0xff]
        %v930 = vld [vmem:[#allocation2 + $0x48] sm:$0xff]
        %v931 = vld [vmem:[#allocation2 + $0x50] sm:$0xff]
        %v932 = vld [vmem:[#allocation2 + $0x58] sm:$0xff]
        %v933 = vld [vmem:[#allocation2 + $0x60] sm:$0xff]
        %v934 = vld [vmem:[#allocation2 + $0x68] sm:$0xff]
        %v935 = vld [vmem:[#allocation2 + $0x70] sm:$0xff]
        %v936 = vld [vmem:[#allocation2 + $0x78] sm:$0xff]
        %v937 = vld [vmem:[#allocation2 + $0x80] sm:$0xff]
        %v938 = vld [vmem:[#allocation2 + $0x88] sm:$0xff]
        %v939 = vld [vmem:[#allocation2 + $0x90] sm:$0xff]
        %v940 = vld [vmem:[#allocation2 + $0x98] sm:$0xff]
        %v941 = vld [vmem:[#allocation2 + $0xa0] sm:$0xff]
        %v942 = vld [vmem:[#allocation2 + $0xa8] sm:$0xff]
        %v943 = vld [vmem:[#allocation2 + $0xb0] sm:$0xff]
        %v944 = vld [vmem:[#allocation2 + $0xb8] sm:$0xff]
        %v945 = vld [vmem:[#allocation2 + $0xc0] sm:$0xff]
        %v946 = vld [vmem:[#allocation2 + $0xc8] sm:$0xff]
        %v947 = vld [vmem:[#allocation2 + $0xd0] sm:$0xff]
        %v948 = vld [vmem:[#allocation2 + $0xd8] sm:$0xff]
        %v949 = vld [vmem:[#allocation2 + $0xe0] sm:$0xff]
        %v950 = vld [vmem:[#allocation2 + $0xe8] sm:$0xff]
        %v951 = vld [vmem:[#allocation2 + $0xf0] sm:$0xff]
        %v952 = vld [vmem:[#allocation2 + $0xf8] sm:$0xff]
        %953 = vst [vmem:[%s289] sm:$0xff] %v921
        %954 = vst [vmem:[%s289 + $0x8] sm:$0xff] %v922
        %955 = vst [vmem:[%s289 + $0x10] sm:$0xff] %v923
        %956 = vst [vmem:[%s289 + $0x18] sm:$0xff] %v924
        %957 = vst [vmem:[%s289 + $0x20] sm:$0xff] %v925
        %958 = vst [vmem:[%s289 + $0x28] sm:$0xff] %v926
        %959 = vst [vmem:[%s289 + $0x30] sm:$0xff] %v927
        %960 = vst [vmem:[%s289 + $0x38] sm:$0xff] %v928
        %961 = vst [vmem:[%s289 + $0x40] sm:$0xff] %v929
        %962 = vst [vmem:[%s289 + $0x48] sm:$0xff] %v930
        %963 = vst [vmem:[%s289 + $0x50] sm:$0xff] %v931
        %964 = vst [vmem:[%s289 + $0x58] sm:$0xff] %v932
        %965 = vst [vmem:[%s289 + $0x60] sm:$0xff] %v933
        %966 = vst [vmem:[%s289 + $0x68] sm:$0xff] %v934
        %967 = vst [vmem:[%s289 + $0x70] sm:$0xff] %v935
        %968 = vst [vmem:[%s289 + $0x78] sm:$0xff] %v936
        %969 = vst [vmem:[%s289 + $0x80] sm:$0xff] %v937
        %970 = vst [vmem:[%s289 + $0x88] sm:$0xff] %v938
        %971 = vst [vmem:[%s289 + $0x90] sm:$0xff] %v939
        %972 = vst [vmem:[%s289 + $0x98] sm:$0xff] %v940
        %973 = vst [vmem:[%s289 + $0xa0] sm:$0xff] %v941
        %974 = vst [vmem:[%s289 + $0xa8] sm:$0xff] %v942
        %975 = vst [vmem:[%s289 + $0xb0] sm:$0xff] %v943
        %976 = vst [vmem:[%s289 + $0xb8] sm:$0xff] %v944
        %977 = vst [vmem:[%s289 + $0xc0] sm:$0xff] %v945
        %978 = vst [vmem:[%s289 + $0xc8] sm:$0xff] %v946
        %979 = vst [vmem:[%s289 + $0xd0] sm:$0xff] %v947
        %980 = vst [vmem:[%s289 + $0xd8] sm:$0xff] %v948
        %981 = vst [vmem:[%s289 + $0xe0] sm:$0xff] %v949
        %982 = vst [vmem:[%s289 + $0xe8] sm:$0xff] %v950
        %983 = vst [vmem:[%s289 + $0xf0] sm:$0xff] %v951
        %984 = vst [vmem:[%s289 + $0xf8] sm:$0xff] %v952
        %v985 = vld [vmem:[%s293] sm:$0x1]
        %v986 = vadd.f32 %v921, %v922
        %v987 = vadd.f32 %v986, %v923
        %v988 = vadd.f32 %v987, %v924
        %v989 = vadd.f32 %v988, %v925
        %v990 = vadd.f32 %v989, %v926
        %v991 = vadd.f32 %v990, %v927
        %v992 = vadd.f32 %v991, %v928
        %v993 = vadd.f32 %v992, %v929
        %v994 = vadd.f32 %v993, %v930
        %v995 = vadd.f32 %v994, %v931
        %v996 = vadd.f32 %v995, %v932
        %v997 = vadd.f32 %v996, %v933
        %v998 = vadd.f32 %v997, %v934
        %v999 = vadd.f32 %v998, %v935
        %v1000 = vadd.f32 %v999, %v936
        %v1001 = vadd.f32 %v1000, %v937
        %v1002 = vadd.f32 %v1001, %v938
        %v1003 = vadd.f32 %v1002, %v939
        %v1004 = vadd.f32 %v1003, %v940
        %v1005 = vadd.f32 %v1004, %v941
        %v1006 = vadd.f32 %v1005, %v942
        %v1007 = vadd.f32 %v1006, %v943
        %v1008 = vadd.f32 %v1007, %v944
        %v1009 = vadd.f32 %v1008, %v945
        %v1010 = vadd.f32 %v1009, %v946
        %v1011 = vadd.f32 %v1010, %v947
        %v1012 = vadd.f32 %v1011, %v948
        %v1013 = vadd.f32 %v1012, %v949
        %v1014 = vadd.f32 %v1013, %v950
        %v1015 = vadd.f32 %v1014, %v951
        %v1016 = vadd.f32 %v1015, %v952
        %v1017 = vrot.slane %v1016, 4
        %v1018 = vadd.f32 %v1016, %v1017
        %v1019 = vrot.slane %v1018, 2
        %v1020 = vadd.f32 %v1018, %v1019
        %v1021 = vrot.slane %v1020, 1
        %v1022 = vadd.f32 %v1020, %v1021
        %v1023 = vadd.f32 %v985, %v1022
        %1024 = vst [vmem:[%s293] sm:$0x1] %v1023
        %v1025 = vld [vmem:[%s296] sm:$0x1]
        %v1026 = vmul.f32 %v921, %v921
        %v1027 = vmul.f32 %v922, %v922
        %v1028 = vmul.f32 %v923, %v923
        %v1029 = vmul.f32 %v924, %v924
        %v1030 = vmul.f32 %v925, %v925
        %v1031 = vmul.f32 %v926, %v926
        %v1032 = vmul.f32 %v927, %v927
        %v1033 = vmul.f32 %v928, %v928
        %v1034 = vmul.f32 %v929, %v929
        %v1035 = vmul.f32 %v930, %v930
        %v1036 = vmul.f32 %v931, %v931
        %v1037 = vmul.f32 %v932, %v932
        %v1038 = vmul.f32 %v933, %v933
        %v1039 = vmul.f32 %v934, %v934
        %v1040 = vmul.f32 %v935, %v935
        %v1041 = vmul.f32 %v936, %v936
        %v1042 = vmul.f32 %v937, %v937
        %v1043 = vmul.f32 %v938, %v938
        %v1044 = vmul.f32 %v939, %v939
        %v1045 = vmul.f32 %v940, %v940
        %v1046 = vmul.f32 %v941, %v941
        %v1047 = vmul.f32 %v942, %v942
        %v1048 = vmul.f32 %v943, %v943
        %v1049 = vmul.f32 %v944, %v944
        %v1050 = vmul.f32 %v945, %v945
        %v1051 = vmul.f32 %v946, %v946
        %v1052 = vmul.f32 %v947, %v947
        %v1053 = vmul.f32 %v948, %v948
        %v1054 = vmul.f32 %v949, %v949
        %v1055 = vmul.f32 %v950, %v950
        %v1056 = vmul.f32 %v951, %v951
        %v1057 = vmul.f32 %v952, %v952
        %v1058 = vadd.f32 %v1026, %v1027
        %v1059 = vadd.f32 %v1058, %v1028
        %v1060 = vadd.f32 %v1059, %v1029
        %v1061 = vadd.f32 %v1060, %v1030
        %v1062 = vadd.f32 %v1061, %v1031
        %v1063 = vadd.f32 %v1062, %v1032
        %v1064 = vadd.f32 %v1063, %v1033
        %v1065 = vadd.f32 %v1064, %v1034
        %v1066 = vadd.f32 %v1065, %v1035
        %v1067 = vadd.f32 %v1066, %v1036
        %v1068 = vadd.f32 %v1067, %v1037
        %v1069 = vadd.f32 %v1068, %v1038
        %v1070 = vadd.f32 %v1069, %v1039
        %v1071 = vadd.f32 %v1070, %v1040
        %v1072 = vadd.f32 %v1071, %v1041
        %v1073 = vadd.f32 %v1072, %v1042
        %v1074 = vadd.f32 %v1073, %v1043
        %v1075 = vadd.f32 %v1074, %v1044
        %v1076 = vadd.f32 %v1075, %v1045
        %v1077 = vadd.f32 %v1076, %v1046
        %v1078 = vadd.f32 %v1077, %v1047
        %v1079 = vadd.f32 %v1078, %v1048
        %v1080 = vadd.f32 %v1079, %v1049
        %v1081 = vadd.f32 %v1080, %v1050
        %v1082 = vadd.f32 %v1081, %v1051
        %v1083 = vadd.f32 %v1082, %v1052
        %v1084 = vadd.f32 %v1083, %v1053
        %v1085 = vadd.f32 %v1084, %v1054
        %v1086 = vadd.f32 %v1085, %v1055
        %v1087 = vadd.f32 %v1086, %v1056
        %v1088 = vadd.f32 %v1087, %v1057
        %v1089 = vrot.slane %v1088, 4
        %v1090 = vadd.f32 %v1088, %v1089
        %v1091 = vrot.slane %v1090, 2
        %v1092 = vadd.f32 %v1090, %v1091
        %v1093 = vrot.slane %v1092, 1
        %v1094 = vadd.f32 %v1092, %v1093
        %v1095 = vadd.f32 %v1025, %v1094
        %1096 = vst [vmem:[%s296] sm:$0x1] %v1095
      $region40: #{move_analyser_forward.8} parent=27 // pred_fallthru
        _
      %s1097 = smul.u32 32, %s22
      %p1098 = scmp.lt.s32.totalorder %s1097, 63
      %s1099 = scalar_select %p1098, %s1097, 63
      %p1100 = scmp.lt.s32.totalorder %s21, 0
      %s1101 = scalar_select %p1100, %s21, 0
      %s1102 = sadd.s32 %s1101, %s1099
      %s1103 = smul.addr %s1102, 8
      %s1104 = scalar_lea.vmem %s2, %s1103
      %p1105 = scmp.lt.s32.totalorder %s21, 0
      %s1106 = scalar_select %p1105, %s21, 0
      %s1107 = scalar_lea.vmem %s3, %s1106
      %p1108 = scmp.lt.s32.totalorder %s21, 0
      %s1109 = scalar_select %p1108, %s21, 0
      %s1110 = scalar_lea.vmem %s4, %s1109
      // Predicated region
      $region41: #{move_analyser_forward.8} parent=27 // pred_check
        %p1111 = pneg %p111
      $region42: #{move_analyser_forward.8} parent=27 // pred_check_branch
        %1113 = sbr.rel (%p1111) target = $region44
      $region43: #{move_analyser_forward.8} parent=27 // pred_region
        %s1114 = smul.u32 32, %s22
      $region44: #{move_analyser_forward.8} parent=27 // pred_fallthru
        _
      // Predicated region
      $region45: #{move_analyser_forward.8} parent=27 // pred_check
        %p1115 = pneg %p137
      $region46: #{move_analyser_forward.8} parent=27 // pred_check_branch
        %1117 = sbr.rel (%p1115) target = $region48
      $region47: #{move_analyser_forward.8} parent=27 // pred_region
        _
      $region48: #{move_analyser_forward.8} parent=27 // pred_fallthru
        _
      // Predicated region
      $region49: #{move_analyser_forward.8} parent=27 // pred_check
        %p1118 = pneg %p163
      $region50: #{move_analyser_forward.8} parent=27 // pred_check_branch
        %1120 = sbr.rel (%p1118) target = $region52
      $region51: #{move_analyser_forward.8} parent=27 // pred_region
        _
      $region52: #{move_analyser_forward.8} parent=27 // pred_fallthru
        _
      // Predicated region
      $region53: #{move_analyser_forward.8} parent=27 // pred_check
        %p1121 = pneg %p137
      $region54: #{move_analyser_forward.8} parent=27 // pred_check_branch
        %1123 = sbr.rel (%p1121) target = $region56
      $region55: #{move_analyser_forward.8} parent=27 // pred_region
        %p1124 = scmp.lt.s32.totalorder %s21, 0
        %s1125 = scalar_select %p1124, %s21, 0
        %s1126 = scalar_lea.vmem %s3, %s1125
      $region56: #{move_analyser_forward.8} parent=27 // pred_fallthru
        _
      // Predicated region
      $region57: #{move_analyser_forward.8} parent=27 // pred_check
        %p1127 = pneg %p163
      $region58: #{move_analyser_forward.8} parent=27 // pred_check_branch
        %1129 = sbr.rel (%p1127) target = $region60
      $region59: #{move_analyser_forward.8} parent=27 // pred_region
        %p1130 = scmp.lt.s32.totalorder %s21, 0
        %s1131 = scalar_select %p1130, %s21, 0
        %s1132 = scalar_lea.vmem %s4, %s1131
      $region60: #{move_analyser_forward.8} parent=27 // pred_fallthru
        _
    $region28: #{move_analyser_forward.8} parent=5 // pred_fallthru
      _
    %p1133 = scmp.le.s32.totalorder 2, %s11
    // Predicated region
    $region61: #{move_analyser_forward.8} parent=5 // pred_check
      %p1134 = pneg %p1133
    $region62: #{move_analyser_forward.8} parent=5 // pred_check_branch
      %1136 = sbr.rel (%p1134) target = $region64
    $region63: #{move_analyser_forward.8} parent=5 // pred_region
      %s1137 = ssub.s32 %s11, 2
      // Predicated region
      $region65: #{move_analyser_forward.8} parent=63 // pred_check
        %p1138 = pneg %p117
      $region66: #{move_analyser_forward.8} parent=63 // pred_check_branch
        %1140 = sbr.rel (%p1138) target = $region68
      $region67: #{move_analyser_forward.8} parent=63 // pred_region
        %s1141 = smul.u32 32, %s25
        %p1142 = scmp.lt.s32.totalorder %s1141, 63
        %s1143 = scalar_select %p1142, %s1141, 63
        %p1144 = scmp.lt.s32.totalorder %s24, 0
        %s1145 = scalar_select %p1144, %s24, 0
        %s1146 = sadd.s32 %s1145, %s1143
        %s1147 = smul.addr %s1146, 8
        %s1148 = scalar_lea.vmem %s2, %s1147
      $region68: #{move_analyser_forward.8} parent=63 // pred_fallthru
        _
    $region64: #{move_analyser_forward.8} parent=5 // pred_fallthru
      _
  $region6: #{move_analyser_forward.8} parent=0 // loop_footer
    %s15 = sadd.s32 1, %s11
  $region7: #{move_analyser_forward.8} parent=0 // loop_footer_branch
    %10 = sbr.rel target = $region3
  $region8: #{move_analyser_forward.8} parent=0 // loop_exit
    _

// kernel: move_analyser_forward.11
$region0: #{move_analyser_forward.11}
  #allocation0 [shape = 'u32[]', space=smem, size = 0x4, offset = 0x4, fixed_abs, tag = 'smem constant byte address 0x4 - core index']
  #allocation1 [shape = 'u32[144,128]{1,0:T(1,128)}', space=vmem, size = 0x12000, scoped, tag = 'internal scratch']
  %s0 = inlined_call_operand.vmem [shape: f32[512,4], index: 0, kind: input, shape index: {}]
  %s1 = inlined_call_operand.vmem [shape: f32[1,4], index: 1, kind: input, shape index: {}]
  %s2 = inlined_call_operand.vmem [shape: f32[1,4], index: 2, kind: input, shape index: {}]
  %s3 = inlined_call_operand.vmem [shape: f32[512,4], index: 3, kind: output, shape index: {}]
  %s4 = sld [smem:[#allocation0]]
  $region45: #{move_analyser_forward.11} parent=0
    _
  %s6 = ssub.s32 1, %s4
  %s7 = scalar_select 0, %s6, %s4
  loop: start=0, step=1, limit=4
  $region2: #{move_analyser_forward.11} parent=0 // loop_pre_header
    _
  $region3: #{move_analyser_forward.11} parent=0 // loop_header
    %s9 = sphi 0, %s13
    %p10 = scmp.ge.s32.totalorder %s9, 4
    %s16 = sphi 0, %s28
    %s17 = sphi 0, %s24
    %s18 = sphi 0, %s16
    %s19 = sphi 0, %s17
    %s20 = sphi 0, %s18
    %s21 = sphi 0, %s19
    %s33 = sphi 0, %s35
    %s36 = sphi 0, %s33
    %s37 = sphi 0, %s36
    %s53 = sphi 0, %s37
    %s59 = sphi 0, %s61
    %s62 = sphi 0, %s59
    %s63 = sphi 0, %s62
    %s79 = sphi 0, %s63
    %s85 = sphi 0, %s87
    %s88 = sphi 0, %s85
    %s89 = sphi 0, %s88
    %s105 = sphi 0, %s89
    %s113 = sphi 0, %s115
    %s116 = sphi 0, %s113
    %s117 = sphi 0, %s116
    %s133 = sphi 0, %s117
  $region4: #{move_analyser_forward.11} parent=0 // loop_header_branch
    %12 = sbr.rel (%p10) target = $region8
  $region5: #{move_analyser_forward.11} parent=0 // loop_body
    %s14 = ssub.s32 %s9, 1
    %s15 = ssub.s32 %s9, 2
    %s22 = sadd.s32 1, %s17
    %p23 = scmp.ge.s32.totalorder %s22, 1
    %s24 = scalar_select %p23, 0, %s22
    %s25 = sadd.s32 1, %s16
    %s26 = scalar_select %p23, %s25, %s16
    %p27 = scmp.ge.s32.totalorder %s26, 2
    %s28 = scalar_select %p27, 0, %s26
    %s29 = ssub.s32 %s16, %s28
    %s30 = ssub.s32 %s17, %s24
    %s31 = sor.u32 %s29, %s30
    %p32 = scmp.eq.s32.totalorder %s31, 0
    %s34 = sadd.s32 %s33, 1
    %s35 = scalar_select %p32, %s33, %s34
    %p38 = pneg %p32
    %p39 = scmp.eq.s32.totalorder %s9, 1
    %p40 = por %p38, %p39
    %p41 = scmp.ne.s32.totalorder %s33, %s36
    %p42 = scmp.eq.s32.totalorder %s9, 0
    %p43 = por %p41, %p42
    %p44 = scmp.ne.s32.totalorder %s33, %s36
    %p45 = scmp.eq.s32.totalorder %s14, 1
    %p46 = por %p44, %p45
    %p47 = scmp.ne.s32.totalorder %s36, %s37
    %p48 = scmp.eq.s32.totalorder %s14, 0
    %p49 = por %p47, %p48
    %p50 = scmp.ne.s32.totalorder %s36, %s37
    %p51 = scmp.eq.s32.totalorder %s15, 1
    %p52 = por %p50, %p51
    %p54 = scmp.ne.s32.totalorder %s37, %s53
    %p55 = scmp.eq.s32.totalorder %s15, 0
    %p56 = por %p54, %p55
    %s57 = ssub.s32 %s17, %s24
    %p58 = scmp.eq.s32.totalorder %s57, 0
    %s60 = sadd.s32 %s59, 1
    %s61 = scalar_select %p58, %s59, %s60
    %p64 = pneg %p58
    %p65 = scmp.eq.s32.totalorder %s9, 1
    %p66 = por %p64, %p65
    %p67 = scmp.ne.s32.totalorder %s59, %s62
    %p68 = scmp.eq.s32.totalorder %s9, 0
    %p69 = por %p67, %p68
    %p70 = scmp.ne.s32.totalorder %s59, %s62
    %p71 = scmp.eq.s32.totalorder %s14, 1
    %p72 = por %p70, %p71
    %p73 = scmp.ne.s32.totalorder %s62, %s63
    %p74 = scmp.eq.s32.totalorder %s14, 0
    %p75 = por %p73, %p74
    %p76 = scmp.ne.s32.totalorder %s62, %s63
    %p77 = scmp.eq.s32.totalorder %s15, 1
    %p78 = por %p76, %p77
    %p80 = scmp.ne.s32.totalorder %s63, %s79
    %p81 = scmp.eq.s32.totalorder %s15, 0
    %p82 = por %p80, %p81
    %s83 = ssub.s32 %s17, %s24
    %p84 = scmp.eq.s32.totalorder %s83, 0
    %s86 = sadd.s32 %s85, 1
    %s87 = scalar_select %p84, %s85, %s86
    %p90 = pneg %p84
    %p91 = scmp.eq.s32.totalorder %s9, 1
    %p92 = por %p90, %p91
    %p93 = scmp.ne.s32.totalorder %s85, %s88
    %p94 = scmp.eq.s32.totalorder %s9, 0
    %p95 = por %p93, %p94
    %p96 = scmp.ne.s32.totalorder %s85, %s88
    %p97 = scmp.eq.s32.totalorder %s14, 1
    %p98 = por %p96, %p97
    %p99 = scmp.ne.s32.totalorder %s88, %s89
    %p100 = scmp.eq.s32.totalorder %s14, 0
    %p101 = por %p99, %p100
    %p102 = scmp.ne.s32.totalorder %s88, %s89
    %p103 = scmp.eq.s32.totalorder %s15, 1
    %p104 = por %p102, %p103
    %p106 = scmp.ne.s32.totalorder %s89, %s105
    %p107 = scmp.eq.s32.totalorder %s15, 0
    %p108 = por %p106, %p107
    %s109 = ssub.s32 %s16, %s28
    %s110 = ssub.s32 %s17, %s24
    %s111 = sor.u32 %s109, %s110
    %p112 = scmp.eq.s32.totalorder %s111, 0
    %s114 = sadd.s32 %s113, 1
    %s115 = scalar_select %p112, %s113, %s114
    %p118 = pneg %p112
    %p119 = scmp.eq.s32.totalorder %s9, 1
    %p120 = por %p118, %p119
    %p121 = scmp.ne.s32.totalorder %s113, %s116
    %p122 = scmp.eq.s32.totalorder %s9, 0
    %p123 = por %p121, %p122
    %p124 = scmp.ne.s32.totalorder %s113, %s116
    %p125 = scmp.eq.s32.totalorder %s14, 1
    %p126 = por %p124, %p125
    %p127 = scmp.ne.s32.totalorder %s116, %s117
    %p128 = scmp.eq.s32.totalorder %s14, 0
    %p129 = por %p127, %p128
    %p130 = scmp.ne.s32.totalorder %s116, %s117
    %p131 = scmp.eq.s32.totalorder %s15, 1
    %p132 = por %p130, %p131
    %p134 = scmp.ne.s32.totalorder %s117, %s133
    %p135 = scmp.eq.s32.totalorder %s15, 0
    %p136 = por %p134, %p135
    %p137 = scmp.le.s32.totalorder 1, %s9
    %p138 = scmp.lt.s32.totalorder %s9, 3
    %p139 = pnand %p137, %p138
    %p140 = pneg %p139
    // Predicated region
    $region9: #{move_analyser_forward.11} parent=5 // pred_check
      _
    $region10: #{move_analyser_forward.11} parent=5 // pred_check_branch
      %142 = sbr.rel (%p139) target = $region12
    $region11: #{move_analyser_forward.11} parent=5 // pred_region
      %s143 = ssub.s32 %s9, 1
      // Predicated region
      $region13: #{move_analyser_forward.11} parent=11 // pred_check
        %p144 = pneg %p75
      $region14: #{move_analyser_forward.11} parent=11 // pred_check_branch
        %146 = sbr.rel (%p144) target = $region16
      $region15: #{move_analyser_forward.11} parent=11 // pred_region
        %p147 = scmp.lt.s32.totalorder %s19, 0
        %s148 = scalar_select %p147, %s19, 0
        %s149 = scalar_lea.vmem %s1, %s148
      $region16: #{move_analyser_forward.11} parent=11 // pred_fallthru
        _
      // Predicated region
      $region17: #{move_analyser_forward.11} parent=11 // pred_check
        %p150 = pneg %p101
      $region18: #{move_analyser_forward.11} parent=11 // pred_check_branch
        %152 = sbr.rel (%p150) target = $region20
      $region19: #{move_analyser_forward.11} parent=11 // pred_region
        %p153 = scmp.lt.s32.totalorder %s19, 0
        %s154 = scalar_select %p153, %s19, 0
        %s155 = scalar_lea.vmem %s2, %s154
      $region20: #{move_analyser_forward.11} parent=11 // pred_fallthru
        _
    $region12: #{move_analyser_forward.11} parent=5 // pred_fallthru
      _
    %p156 = scmp.lt.s32.totalorder %s9, 2
    // Predicated region
    $region21: #{move_analyser_forward.11} parent=5 // pred_check
      %p157 = pneg %p156
    $region22: #{move_analyser_forward.11} parent=5 // pred_check_branch
      %159 = sbr.rel (%p157) target = $region24
    $region23: #{move_analyser_forward.11} parent=5 // pred_region
      // Predicated region
      $region25: #{move_analyser_forward.11} parent=23 // pred_check
        %p160 = pneg %p43
      $region26: #{move_analyser_forward.11} parent=23 // pred_check_branch
        %162 = sbr.rel (%p160) target = $region28
      $region27: #{move_analyser_forward.11} parent=23 // pred_region
        %s163 = smul.u32 32, %s16
        %p164 = scmp.lt.s32.totalorder %s163, 63
        %s165 = scalar_select %p164, %s163, 63
        %p166 = scmp.lt.s32.totalorder %s17, 0
        %s167 = scalar_select %p166, %s17, 0
        %s168 = sadd.s32 %s167, %s165
        %s169 = smul.addr %s168, 8
        %s170 = scalar_lea.vmem %s0, %s169
        %s171 = smul.u32 32, %s16
      $region28: #{move_analyser_forward.11} parent=23 // pred_fallthru
        _
    $region24: #{move_analyser_forward.11} parent=5 // pred_fallthru
      _
    %p172 = scmp.le.s32.totalorder 1, %s9
    %p173 = scmp.lt.s32.totalorder %s9, 3
    %p174 = pnand %p172, %p173
    %p175 = pneg %p174
    // Predicated region
    $region29: #{move_analyser_forward.11} parent=5 // pred_check
      _
    $region30: #{move_analyser_forward.11} parent=5 // pred_check_branch
      %177 = sbr.rel (%p174) target = $region32
    $region31: #{move_analyser_forward.11} parent=5 // pred_region
      %s178 = ssub.s32 %s9, 1
      %s179 = smul.u32 32, %s18
      %p180 = scmp.lt.s32.totalorder %s179, 63
      %s181 = scalar_select %p180, %s179, 63
      %p182 = scmp.lt.s32.totalorder %s19, 0
      %s183 = scalar_select %p182, %s19, 0
      %s184 = sadd.s32 %s183, %s181
      %s185 = smul.addr %s184, 8
      %s186 = scalar_lea.vmem %s0, %s185
      %p187 = pneg %p49
      %p188 = pneg %p46
      %p189 = scmp.lt.s32.totalorder %s19, 0
      %s190 = scalar_select %p189, %s19, 0
      %s191 = scalar_lea.vmem %s1, %s190
      %p192 = pneg %p75
      %p193 = pneg %p72
      %p194 = scmp.lt.s32.totalorder %s19, 0
      %s195 = scalar_select %p194, %s19, 0
      %s196 = scalar_lea.vmem %s2, %s195
      %p197 = pneg %p101
      %p198 = pneg %p98
      %p199 = pneg %p129
      %p200 = pneg %p126
      %s201 = smul.u32 32, %s18
      %p202 = scmp.lt.s32.totalorder %s201, 63
      %s203 = scalar_select %p202, %s201, 63
      %p204 = scmp.lt.s32.totalorder %s19, 0
      %s205 = scalar_select %p204, %s19, 0
      %s206 = sadd.s32 %s205, %s203
      %s207 = smul.addr %s206, 8
      %s208 = scalar_lea.vmem %s3, %s207
      %s209 = smul.u32 32, %s18
      %p210 = scmp.lt.s32.totalorder %s209, 63
      %s211 = scalar_select %p210, %s209, 63
      %p212 = scmp.lt.s32.totalorder %s19, 0
      %s213 = scalar_select %p212, %s19, 0
      %s214 = sadd.s32 %s213, %s211
      %s215 = smul.addr %s214, 8
      %s216 = scalar_lea.vmem %s0, %s215
      %s217 = smul.u32 32, %s18
      %p218 = scmp.lt.s32.totalorder %s19, 0
      %s219 = scalar_select %p218, %s19, 0
      %s220 = scalar_lea.vmem %s1, %s219
      %p221 = scmp.lt.s32.totalorder %s19, 0
      %s222 = scalar_select %p221, %s19, 0
      %s223 = scalar_lea.vmem %s2, %s222
      %s224 = smul.u32 32, %s18
      %p225 = scmp.lt.s32.totalorder %s224, 63
      %s226 = scalar_select %p225, %s224, 63
      %p227 = scmp.lt.s32.totalorder %s19, 0
      %s228 = scalar_select %p227, %s19, 0
      %s229 = sadd.s32 %s228, %s226
      %s230 = smul.addr %s229, 8
      %s231 = scalar_lea.vmem %s3, %s230
      %s232 = smul.u32 32, %s18
      %v233 = vld [vmem:[%s216] sm:$0xff]
      %v234 = vld [vmem:[%s216 + $0x8] sm:$0xff]
      %v235 = vld [vmem:[%s216 + $0x10] sm:$0xff]
      %v236 = vld [vmem:[%s216 + $0x18] sm:$0xff]
      %v237 = vld [vmem:[%s216 + $0x20] sm:$0xff]
      %v238 = vld [vmem:[%s216 + $0x28] sm:$0xff]
      %v239 = vld [vmem:[%s216 + $0x30] sm:$0xff]
      %v240 = vld [vmem:[%s216 + $0x38] sm:$0xff]
      %v241 = vld [vmem:[%s216 + $0x40] sm:$0xff]
      %v242 = vld [vmem:[%s216 + $0x48] sm:$0xff]
      %v243 = vld [vmem:[%s216 + $0x50] sm:$0xff]
      %v244 = vld [vmem:[%s216 + $0x58] sm:$0xff]
      %v245 = vld [vmem:[%s216 + $0x60] sm:$0xff]
      %v246 = vld [vmem:[%s216 + $0x68] sm:$0xff]
      %v247 = vld [vmem:[%s216 + $0x70] sm:$0xff]
      %v248 = vld [vmem:[%s216 + $0x78] sm:$0xff]
      %v249 = vld [vmem:[%s216 + $0x80] sm:$0xff]
      %v250 = vld [vmem:[%s216 + $0x88] sm:$0xff]
      %v251 = vld [vmem:[%s216 + $0x90] sm:$0xff]
      %v252 = vld [vmem:[%s216 + $0x98] sm:$0xff]
      %v253 = vld [vmem:[%s216 + $0xa0] sm:$0xff]
      %v254 = vld [vmem:[%s216 + $0xa8] sm:$0xff]
      %v255 = vld [vmem:[%s216 + $0xb0] sm:$0xff]
      %v256 = vld [vmem:[%s216 + $0xb8] sm:$0xff]
      %v257 = vld [vmem:[%s216 + $0xc0] sm:$0xff]
      %v258 = vld [vmem:[%s216 + $0xc8] sm:$0xff]
      %v259 = vld [vmem:[%s216 + $0xd0] sm:$0xff]
      %v260 = vld [vmem:[%s216 + $0xd8] sm:$0xff]
      %v261 = vld [vmem:[%s216 + $0xe0] sm:$0xff]
      %v262 = vld [vmem:[%s216 + $0xe8] sm:$0xff]
      %v263 = vld [vmem:[%s216 + $0xf0] sm:$0xff]
      %v264 = vld [vmem:[%s216 + $0xf8] sm:$0xff]
      %v265 = vld [vmem:[%s220] sm:$0x1]
      %v267 = vlaneseq
      %v268 = vshrl.u32 %v267, 7
      %v269 = vsub.s32 0, %v268
      %v270 = vrot.slane %v265, %v269
      %v272 = vmul.f32 %v233, %v270
      %v273 = vmul.f32 %v234, %v270
      %v274 = vmul.f32 %v235, %v270
      %v275 = vmul.f32 %v236, %v270
      %v276 = vmul.f32 %v237, %v270
      %v277 = vmul.f32 %v238, %v270
      %v278 = vmul.f32 %v239, %v270
      %v279 = vmul.f32 %v240, %v270
      %v280 = vmul.f32 %v241, %v270
      %v281 = vmul.f32 %v242, %v270
      %v282 = vmul.f32 %v243, %v270
      %v283 = vmul.f32 %v244, %v270
      %v284 = vmul.f32 %v245, %v270
      %v285 = vmul.f32 %v246, %v270
      %v286 = vmul.f32 %v247, %v270
      %v287 = vmul.f32 %v248, %v270
      %v288 = vmul.f32 %v249, %v270
      %v289 = vmul.f32 %v250, %v270
      %v290 = vmul.f32 %v251, %v270
      %v291 = vmul.f32 %v252, %v270
      %v292 = vmul.f32 %v253, %v270
      %v293 = vmul.f32 %v254, %v270
      %v294 = vmul.f32 %v255, %v270
      %v295 = vmul.f32 %v256, %v270
      %v296 = vmul.f32 %v257, %v270
      %v297 = vmul.f32 %v258, %v270
      %v298 = vmul.f32 %v259, %v270
      %v299 = vmul.f32 %v260, %v270
      %v300 = vmul.f32 %v261, %v270
      %v301 = vmul.f32 %v262, %v270
      %v302 = vmul.f32 %v263, %v270
      %v303 = vmul.f32 %v264, %v270
      %v304 = vld [vmem:[%s223] sm:$0x1]
      %v306 = vlaneseq
      %v307 = vshrl.u32 %v306, 7
      %v308 = vsub.s32 0, %v307
      %v309 = vrot.slane %v304, %v308
      %v311 = vadd.f32 %v272, %v309
      %v312 = vadd.f32 %v273, %v309
      %v313 = vadd.f32 %v274, %v309
      %v314 = vadd.f32 %v275, %v309
      %v315 = vadd.f32 %v276, %v309
      %v316 = vadd.f32 %v277, %v309
      %v317 = vadd.f32 %v278, %v309
      %v318 = vadd.f32 %v279, %v309
      %v319 = vadd.f32 %v280, %v309
      %v320 = vadd.f32 %v281, %v309
      %v321 = vadd.f32 %v282, %v309
      %v322 = vadd.f32 %v283, %v309
      %v323 = vadd.f32 %v284, %v309
      %v324 = vadd.f32 %v285, %v309
      %v325 = vadd.f32 %v286, %v309
      %v326 = vadd.f32 %v287, %v309
      %v327 = vadd.f32 %v288, %v309
      %v328 = vadd.f32 %v289, %v309
      %v329 = vadd.f32 %v290, %v309
      %v330 = vadd.f32 %v291, %v309
      %v331 = vadd.f32 %v292, %v309
      %v332 = vadd.f32 %v293, %v309
      %v333 = vadd.f32 %v294, %v309
      %v334 = vadd.f32 %v295, %v309
      %v335 = vadd.f32 %v296, %v309
      %v336 = vadd.f32 %v297, %v309
      %v337 = vadd.f32 %v298, %v309
      %v338 = vadd.f32 %v299, %v309
      %v339 = vadd.f32 %v300, %v309
      %v340 = vadd.f32 %v301, %v309
      %v341 = vadd.f32 %v302, %v309
      %v342 = vadd.f32 %v303, %v309
      %v343 = vxor.u32 %v311, 2147483648
      %v344 = vxor.u32 %v312, 2147483648
      %v345 = vxor.u32 %v313, 2147483648
      %v346 = vxor.u32 %v314, 2147483648
      %v347 = vxor.u32 %v315, 2147483648
      %v348 = vxor.u32 %v316, 2147483648
      %v349 = vxor.u32 %v317, 2147483648
      %v350 = vxor.u32 %v318, 2147483648
      %v351 = vxor.u32 %v319, 2147483648
      %v352 = vxor.u32 %v320, 2147483648
      %v353 = vxor.u32 %v321, 2147483648
      %v354 = vxor.u32 %v322, 2147483648
      %v355 = vxor.u32 %v323, 2147483648
      %v356 = vxor.u32 %v324, 2147483648
      %v357 = vxor.u32 %v325, 2147483648
      %v358 = vxor.u32 %v326, 2147483648
      %v359 = vxor.u32 %v327, 2147483648
      %v360 = vxor.u32 %v328, 2147483648
      %v361 = vxor.u32 %v329, 2147483648
      %v362 = vxor.u32 %v330, 2147483648
      %v363 = vxor.u32 %v331, 2147483648
      %v364 = vxor.u32 %v332, 2147483648
      %v365 = vxor.u32 %v333, 2147483648
      %v366 = vxor.u32 %v334, 2147483648
      %v367 = vxor.u32 %v335, 2147483648
      %v368 = vxor.u32 %v336, 2147483648
      %v369 = vxor.u32 %v337, 2147483648
      %v370 = vxor.u32 %v338, 2147483648
      %v371 = vxor.u32 %v339, 2147483648
      %v372 = vxor.u32 %v340, 2147483648
      %v373 = vxor.u32 %v341, 2147483648
      %v374 = vxor.u32 %v342, 2147483648
      %v375 = vmul.f32 %v343, 1.442695
      %v376 = vpow.pop %v375
      %v377 = vmul.f32 %v344, 1.442695
      %v378 = vpow.pop %v377
      %v379 = vmul.f32 %v345, 1.442695
      %v380 = vpow.pop %v379
      %v381 = vmul.f32 %v346, 1.442695
      %v382 = vpow.pop %v381
      %v383 = vmul.f32 %v347, 1.442695
      %v384 = vpow.pop %v383
      %v385 = vmul.f32 %v348, 1.442695
      %v386 = vpow.pop %v385
      %v387 = vmul.f32 %v349, 1.442695
      %v388 = vpow.pop %v387
      %v389 = vmul.f32 %v350, 1.442695
      %v390 = vpow.pop %v389
      %v391 = vmul.f32 %v351, 1.442695
      %v392 = vpow.pop %v391
      %v393 = vmul.f32 %v352, 1.442695
      %v394 = vpow.pop %v393
      %v395 = vmul.f32 %v353, 1.442695
      %v396 = vpow.pop %v395
      %v397 = vmul.f32 %v354, 1.442695
      %v398 = vpow.pop %v397
      %v399 = vmul.f32 %v355, 1.442695
      %v400 = vpow.pop %v399
      %v401 = vmul.f32 %v356, 1.442695
      %v402 = vpow.pop %v401
      %v403 = vmul.f32 %v357, 1.442695
      %v404 = vpow.pop %v403
      %v405 = vmul.f32 %v358, 1.442695
      %v406 = vpow.pop %v405
      %v407 = vmul.f32 %v359, 1.442695
      %v408 = vpow.pop %v407
      %v409 = vmul.f32 %v360, 1.442695
      %v410 = vpow.pop %v409
      %v411 = vmul.f32 %v361, 1.442695
      %v412 = vpow.pop %v411
      %v413 = vmul.f32 %v362, 1.442695
      %v414 = vpow.pop %v413
      %v415 = vmul.f32 %v363, 1.442695
      %v416 = vpow.pop %v415
      %v417 = vmul.f32 %v364, 1.442695
      %v418 = vpow.pop %v417
      %v419 = vmul.f32 %v365, 1.442695
      %v420 = vpow.pop %v419
      %v421 = vmul.f32 %v366, 1.442695
      %v422 = vpow.pop %v421
      %v423 = vmul.f32 %v367, 1.442695
      %v424 = vpow.pop %v423
      %v425 = vmul.f32 %v368, 1.442695
      %v426 = vpow.pop %v425
      %v427 = vmul.f32 %v369, 1.442695
      %v428 = vpow.pop %v427
      %v429 = vmul.f32 %v370, 1.442695
      %v430 = vpow.pop %v429
      %v431 = vmul.f32 %v371, 1.442695
      %v432 = vpow.pop %v431
      %v433 = vmul.f32 %v372, 1.442695
      %v434 = vpow.pop %v433
      %v435 = vmul.f32 %v373, 1.442695
      %v436 = vpow.pop %v435
      %v437 = vmul.f32 %v374, 1.442695
      %v438 = vpow.pop %v437
      %v439 = vadd.f32 %v376, 1.0
      %v440 = vadd.f32 %v378, 1.0
      %v441 = vadd.f32 %v380, 1.0
      %v442 = vadd.f32 %v382, 1.0
      %v443 = vadd.f32 %v384, 1.0
      %v444 = vadd.f32 %v386, 1.0
      %v445 = vadd.f32 %v388, 1.0
      %v446 = vadd.f32 %v390, 1.0
      %v447 = vadd.f32 %v392, 1.0
      %v448 = vadd.f32 %v394, 1.0
      %v449 = vadd.f32 %v396, 1.0
      %v450 = vadd.f32 %v398, 1.0
      %v451 = vadd.f32 %v400, 1.0
      %v452 = vadd.f32 %v402, 1.0
      %v453 = vadd.f32 %v404, 1.0
      %v454 = vadd.f32 %v406, 1.0
      %v455 = vadd.f32 %v408, 1.0
      %v456 = vadd.f32 %v410, 1.0
      %v457 = vadd.f32 %v412, 1.0
      %v458 = vadd.f32 %v414, 1.0
      %v459 = vadd.f32 %v416, 1.0
      %v460 = vadd.f32 %v418, 1.0
      %v461 = vadd.f32 %v420, 1.0
      %v462 = vadd.f32 %v422, 1.0
      %v463 = vadd.f32 %v424, 1.0
      %v464 = vadd.f32 %v426, 1.0
      %v465 = vadd.f32 %v428, 1.0
      %v466 = vadd.f32 %v430, 1.0
      %v467 = vadd.f32 %v432, 1.0
      %v468 = vadd.f32 %v434, 1.0
      %v469 = vadd.f32 %v436, 1.0
      %v470 = vadd.f32 %v438, 1.0
      %v471 = vrcp.pop %v439
      %v472 = vmul.f32 1.0, %v471
      %v473 = vrcp.pop %v440
      %v474 = vmul.f32 1.0, %v473
      %v475 = vrcp.pop %v441
      %v476 = vmul.f32 1.0, %v475
      %v477 = vrcp.pop %v442
      %v478 = vmul.f32 1.0, %v477
      %v479 = vrcp.pop %v443
      %v480 = vmul.f32 1.0, %v479
      %v481 = vrcp.pop %v444
      %v482 = vmul.f32 1.0, %v481
      %v483 = vrcp.pop %v445
      %v484 = vmul.f32 1.0, %v483
      %v485 = vrcp.pop %v446
      %v486 = vmul.f32 1.0, %v485
      %v487 = vrcp.pop %v447
      %v488 = vmul.f32 1.0, %v487
      %v489 = vrcp.pop %v448
      %v490 = vmul.f32 1.0, %v489
      %v491 = vrcp.pop %v449
      %v492 = vmul.f32 1.0, %v491
      %v493 = vrcp.pop %v450
      %v494 = vmul.f32 1.0, %v493
      %v495 = vrcp.pop %v451
      %v496 = vmul.f32 1.0, %v495
      %v497 = vrcp.pop %v452
      %v498 = vmul.f32 1.0, %v497
      %v499 = vrcp.pop %v453
      %v500 = vmul.f32 1.0, %v499
      %v501 = vrcp.pop %v454
      %v502 = vmul.f32 1.0, %v501
      %v503 = vrcp.pop %v455
      %v504 = vmul.f32 1.0, %v503
      %v505 = vrcp.pop %v456
      %v506 = vmul.f32 1.0, %v505
      %v507 = vrcp.pop %v457
      %v508 = vmul.f32 1.0, %v507
      %v509 = vrcp.pop %v458
      %v510 = vmul.f32 1.0, %v509
      %v511 = vrcp.pop %v459
      %v512 = vmul.f32 1.0, %v511
      %v513 = vrcp.pop %v460
      %v514 = vmul.f32 1.0, %v513
      %v515 = vrcp.pop %v461
      %v516 = vmul.f32 1.0, %v515
      %v517 = vrcp.pop %v462
      %v518 = vmul.f32 1.0, %v517
      %v519 = vrcp.pop %v463
      %v520 = vmul.f32 1.0, %v519
      %v521 = vrcp.pop %v464
      %v522 = vmul.f32 1.0, %v521
      %v523 = vrcp.pop %v465
      %v524 = vmul.f32 1.0, %v523
      %v525 = vrcp.pop %v466
      %v526 = vmul.f32 1.0, %v525
      %v527 = vrcp.pop %v467
      %v528 = vmul.f32 1.0, %v527
      %v529 = vrcp.pop %v468
      %v530 = vmul.f32 1.0, %v529
      %v531 = vrcp.pop %v469
      %v532 = vmul.f32 1.0, %v531
      %v533 = vrcp.pop %v470
      %v534 = vmul.f32 1.0, %v533
      %vm535 = vcmask 31744
      %536 = vst.msk [vmem:[%s231] sm:$0xff] %vm535, %v472
      %537 = vst.msk [vmem:[%s231 + $0x8] sm:$0xff] %vm535, %v474
      %538 = vst.msk [vmem:[%s231 + $0x10] sm:$0xff] %vm535, %v476
      %539 = vst.msk [vmem:[%s231 + $0x18] sm:$0xff] %vm535, %v478
      %540 = vst.msk [vmem:[%s231 + $0x20] sm:$0xff] %vm535, %v480
      %541 = vst.msk [vmem:[%s231 + $0x28] sm:$0xff] %vm535, %v482
      %542 = vst.msk [vmem:[%s231 + $0x30] sm:$0xff] %vm535, %v484
      %543 = vst.msk [vmem:[%s231 + $0x38] sm:$0xff] %vm535, %v486
      %544 = vst.msk [vmem:[%s231 + $0x40] sm:$0xff] %vm535, %v488
      %545 = vst.msk [vmem:[%s231 + $0x48] sm:$0xff] %vm535, %v490
      %546 = vst.msk [vmem:[%s231 + $0x50] sm:$0xff] %vm535, %v492
      %547 = vst.msk [vmem:[%s231 + $0x58] sm:$0xff] %vm535, %v494
      %548 = vst.msk [vmem:[%s231 + $0x60] sm:$0xff] %vm535, %v496
      %549 = vst.msk [vmem:[%s231 + $0x68] sm:$0xff] %vm535, %v498
      %550 = vst.msk [vmem:[%s231 + $0x70] sm:$0xff] %vm535, %v500
      %551 = vst.msk [vmem:[%s231 + $0x78] sm:$0xff] %vm535, %v502
      %552 = vst.msk [vmem:[%s231 + $0x80] sm:$0xff] %vm535, %v504
      %553 = vst.msk [vmem:[%s231 + $0x88] sm:$0xff] %vm535, %v506
      %554 = vst.msk [vmem:[%s231 + $0x90] sm:$0xff] %vm535, %v508
      %555 = vst.msk [vmem:[%s231 + $0x98] sm:$0xff] %vm535, %v510
      %556 = vst.msk [vmem:[%s231 + $0xa0] sm:$0xff] %vm535, %v512
      %557 = vst.msk [vmem:[%s231 + $0xa8] sm:$0xff] %vm535, %v514
      %558 = vst.msk [vmem:[%s231 + $0xb0] sm:$0xff] %vm535, %v516
      %559 = vst.msk [vmem:[%s231 + $0xb8] sm:$0xff] %vm535, %v518
      %560 = vst.msk [vmem:[%s231 + $0xc0] sm:$0xff] %vm535, %v520
      %561 = vst.msk [vmem:[%s231 + $0xc8] sm:$0xff] %vm535, %v522
      %562 = vst.msk [vmem:[%s231 + $0xd0] sm:$0xff] %vm535, %v524
      %563 = vst.msk [vmem:[%s231 + $0xd8] sm:$0xff] %vm535, %v526
      %564 = vst.msk [vmem:[%s231 + $0xe0] sm:$0xff] %vm535, %v528
      %565 = vst.msk [vmem:[%s231 + $0xe8] sm:$0xff] %vm535, %v530
      %566 = vst.msk [vmem:[%s231 + $0xf0] sm:$0xff] %vm535, %v532
      %567 = vst.msk [vmem:[%s231 + $0xf8] sm:$0xff] %vm535, %v534
      %s568 = smul.u32 32, %s18
      %p569 = scmp.lt.s32.totalorder %s568, 63
      %s570 = scalar_select %p569, %s568, 63
      %p571 = scmp.lt.s32.totalorder %s19, 0
      %s572 = scalar_select %p571, %s19, 0
      %s573 = sadd.s32 %s572, %s570
      %s574 = smul.addr %s573, 8
      %s575 = scalar_lea.vmem %s3, %s574
      // Predicated region
      $region33: #{move_analyser_forward.11} parent=31 // pred_check
        %p576 = pneg %p126
      $region34: #{move_analyser_forward.11} parent=31 // pred_check_branch
        %578 = sbr.rel (%p576) target = $region36
      $region35: #{move_analyser_forward.11} parent=31 // pred_region
        %s579 = smul.u32 32, %s18
      $region36: #{move_analyser_forward.11} parent=31 // pred_fallthru
        _
    $region32: #{move_analyser_forward.11} parent=5 // pred_fallthru
      _
    %p580 = scmp.le.s32.totalorder 2, %s9
    // Predicated region
    $region37: #{move_analyser_forward.11} parent=5 // pred_check
      %p581 = pneg %p580
    $region38: #{move_analyser_forward.11} parent=5 // pred_check_branch
      %583 = sbr.rel (%p581) target = $region40
    $region39: #{move_analyser_forward.11} parent=5 // pred_region
      %s584 = ssub.s32 %s9, 2
      // Predicated region
      $region41: #{move_analyser_forward.11} parent=39 // pred_check
        %p585 = pneg %p132
      $region42: #{move_analyser_forward.11} parent=39 // pred_check_branch
        %587 = sbr.rel (%p585) target = $region44
      $region43: #{move_analyser_forward.11} parent=39 // pred_region
        %s588 = smul.u32 32, %s20
        %p589 = scmp.lt.s32.totalorder %s588, 63
        %s590 = scalar_select %p589, %s588, 63
        %p591 = scmp.lt.s32.totalorder %s21, 0
        %s592 = scalar_select %p591, %s21, 0
        %s593 = sadd.s32 %s592, %s590
        %s594 = smul.addr %s593, 8
        %s595 = scalar_lea.vmem %s3, %s594
      $region44: #{move_analyser_forward.11} parent=39 // pred_fallthru
        _
    $region40: #{move_analyser_forward.11} parent=5 // pred_fallthru
      _
  $region6: #{move_analyser_forward.11} parent=0 // loop_footer
    %s13 = sadd.s32 1, %s9
  $region7: #{move_analyser_forward.11} parent=0 // loop_footer_branch
    %8 = sbr.rel target = $region3
  $region8: #{move_analyser_forward.11} parent=0 // loop_exit
    _

// kernel: move_analyser_forward.10
$region0: #{move_analyser_forward.10}
  #allocation0 [shape = 'u32[]', space=smem, size = 0x4, offset = 0x4, fixed_abs, tag = 'smem constant byte address 0x4 - core index']
  #allocation1 [shape = 'u32[144,128]{1,0:T(1,128)}', space=vmem, size = 0x12000, scoped, tag = 'internal scratch']
  #allocation2 [shape = 'f32[256,4]{1,0:T(8,128)}', space=vmem, size = 0x20000, scoped, tag = 'scratch operand']
  %s0 = inlined_call_operand.vmem [shape: bf16[512,128], index: 0, kind: input, shape index: {}]
  %s1 = inlined_call_operand.vmem [shape: bf16[128,4], index: 1, kind: input, shape index: {}]
  %s2 = inlined_call_operand.vmem [shape: f32[512,4], index: 2, kind: output, shape index: {0}]
  %s3 = inlined_call_operand.vmem [shape: f32[1,4], index: 3, kind: output, shape index: {1}]
  %s4 = inlined_call_operand.vmem [shape: f32[1,4], index: 4, kind: output, shape index: {2}]
  %5 = xla_tuple %s2, %s3, %s4
  %s6 = sld [smem:[#allocation0]]
  $region69: #{move_analyser_forward.10} parent=0
    _
  %s8 = ssub.s32 1, %s6
  %s9 = scalar_select 0, %s8, %s6
  loop: start=0, step=1, limit=4
  $region2: #{move_analyser_forward.10} parent=0 // loop_pre_header
    _
  $region3: #{move_analyser_forward.10} parent=0 // loop_header
    %s11 = sphi 0, %s15
    %p12 = scmp.ge.s32.totalorder %s11, 4
    %s18 = sphi 0, %s37
    %s19 = sphi 0, %s33
    %s20 = sphi 0, %s29
    %s21 = sphi 0, %s18
    %s22 = sphi 0, %s19
    %s23 = sphi 0, %s20
    %s24 = sphi 0, %s21
    %s25 = sphi 0, %s22
    %s26 = sphi 0, %s23
    %s42 = sphi 0, %s44
    %s45 = sphi 0, %s42
    %s46 = sphi 0, %s45
    %s62 = sphi 0, %s46
    %s70 = sphi 0, %s72
    %s73 = sphi 0, %s70
    %s74 = sphi 0, %s73
    %s90 = sphi 0, %s74
    %s98 = sphi 0, %s100
    %s101 = sphi 0, %s98
    %s102 = sphi 0, %s101
    %s118 = sphi 0, %s102
    %s124 = sphi 0, %s126
    %s127 = sphi 0, %s124
    %s128 = sphi 0, %s127
    %s144 = sphi 0, %s128
    %s150 = sphi 0, %s152
    %s153 = sphi 0, %s150
    %s154 = sphi 0, %s153
    %s170 = sphi 0, %s154
  $region4: #{move_analyser_forward.10} parent=0 // loop_header_branch
    %14 = sbr.rel (%p12) target = $region8
  $region5: #{move_analyser_forward.10} parent=0 // loop_body
    %s16 = ssub.s32 %s11, 1
    %s17 = ssub.s32 %s11, 2
    %s27 = sadd.s32 1, %s20
    %p28 = scmp.ge.s32.totalorder %s27, 1
    %s29 = scalar_select %p28, 0, %s27
    %s30 = sadd.s32 1, %s19
    %s31 = scalar_select %p28, %s30, %s19
    %p32 = scmp.ge.s32.totalorder %s31, 2
    %s33 = scalar_select %p32, 0, %s31
    %s34 = sadd.s32 1, %s18
    %s35 = scalar_select %p32, %s34, %s18
    %p36 = scmp.ge.s32.totalorder %s35, 1
    %s37 = scalar_select %p36, 0, %s35
    %s38 = ssub.s32 %s19, %s33
    %s39 = ssub.s32 %s20, %s29
    %s40 = sor.u32 %s38, %s39
    %p41 = scmp.eq.s32.totalorder %s40, 0
    %s43 = sadd.s32 %s42, 1
    %s44 = scalar_select %p41, %s42, %s43
    %p47 = pneg %p41
    %p48 = scmp.eq.s32.totalorder %s11, 1
    %p49 = por %p47, %p48
    %p50 = scmp.ne.s32.totalorder %s42, %s45
    %p51 = scmp.eq.s32.totalorder %s11, 0
    %p52 = por %p50, %p51
    %p53 = scmp.ne.s32.totalorder %s42, %s45
    %p54 = scmp.eq.s32.totalorder %s16, 1
    %p55 = por %p53, %p54
    %p56 = scmp.ne.s32.totalorder %s45, %s46
    %p57 = scmp.eq.s32.totalorder %s16, 0
    %p58 = por %p56, %p57
    %p59 = scmp.ne.s32.totalorder %s45, %s46
    %p60 = scmp.eq.s32.totalorder %s17, 1
    %p61 = por %p59, %p60
    %p63 = scmp.ne.s32.totalorder %s46, %s62
    %p64 = scmp.eq.s32.totalorder %s17, 0
    %p65 = por %p63, %p64
    %s66 = ssub.s32 %s20, %s29
    %s67 = ssub.s32 %s18, %s37
    %s68 = sor.u32 %s66, %s67
    %p69 = scmp.eq.s32.totalorder %s68, 0
    %s71 = sadd.s32 %s70, 1
    %s72 = scalar_select %p69, %s70, %s71
    %p75 = pneg %p69
    %p76 = scmp.eq.s32.totalorder %s11, 1
    %p77 = por %p75, %p76
    %p78 = scmp.ne.s32.totalorder %s70, %s73
    %p79 = scmp.eq.s32.totalorder %s11, 0
    %p80 = por %p78, %p79
    %p81 = scmp.ne.s32.totalorder %s70, %s73
    %p82 = scmp.eq.s32.totalorder %s16, 1
    %p83 = por %p81, %p82
    %p84 = scmp.ne.s32.totalorder %s73, %s74
    %p85 = scmp.eq.s32.totalorder %s16, 0
    %p86 = por %p84, %p85
    %p87 = scmp.ne.s32.totalorder %s73, %s74
    %p88 = scmp.eq.s32.totalorder %s17, 1
    %p89 = por %p87, %p88
    %p91 = scmp.ne.s32.totalorder %s74, %s90
    %p92 = scmp.eq.s32.totalorder %s17, 0
    %p93 = por %p91, %p92
    %s94 = ssub.s32 %s19, %s33
    %s95 = ssub.s32 %s18, %s37
    %s96 = sor.u32 %s94, %s95
    %p97 = scmp.eq.s32.totalorder %s96, 0
    %s99 = sadd.s32 %s98, 1
    %s100 = scalar_select %p97, %s98, %s99
    %p103 = pneg %p97
    %p104 = scmp.eq.s32.totalorder %s11, 1
    %p105 = por %p103, %p104
    %p106 = scmp.ne.s32.totalorder %s98, %s101
    %p107 = scmp.eq.s32.totalorder %s11, 0
    %p108 = por %p106, %p107
    %p109 = scmp.ne.s32.totalorder %s98, %s101
    %p110 = scmp.eq.s32.totalorder %s16, 1
    %p111 = por %p109, %p110
    %p112 = scmp.ne.s32.totalorder %s101, %s102
    %p113 = scmp.eq.s32.totalorder %s16, 0
    %p114 = por %p112, %p113
    %p115 = scmp.ne.s32.totalorder %s101, %s102
    %p116 = scmp.eq.s32.totalorder %s17, 1
    %p117 = por %p115, %p116
    %p119 = scmp.ne.s32.totalorder %s102, %s118
    %p120 = scmp.eq.s32.totalorder %s17, 0
    %p121 = por %p119, %p120
    %s122 = ssub.s32 %s18, %s37
    %p123 = scmp.eq.s32.totalorder %s122, 0
    %s125 = sadd.s32 %s124, 1
    %s126 = scalar_select %p123, %s124, %s125
    %p129 = pneg %p123
    %p130 = scmp.eq.s32.totalorder %s11, 1
    %p131 = por %p129, %p130
    %p132 = scmp.ne.s32.totalorder %s124, %s127
    %p133 = scmp.eq.s32.totalorder %s11, 0
    %p134 = por %p132, %p133
    %p135 = scmp.ne.s32.totalorder %s124, %s127
    %p136 = scmp.eq.s32.totalorder %s16, 1
    %p137 = por %p135, %p136
    %p138 = scmp.ne.s32.totalorder %s127, %s128
    %p139 = scmp.eq.s32.totalorder %s16, 0
    %p140 = por %p138, %p139
    %p141 = scmp.ne.s32.totalorder %s127, %s128
    %p142 = scmp.eq.s32.totalorder %s17, 1
    %p143 = por %p141, %p142
    %p145 = scmp.ne.s32.totalorder %s128, %s144
    %p146 = scmp.eq.s32.totalorder %s17, 0
    %p147 = por %p145, %p146
    %s148 = ssub.s32 %s18, %s37
    %p149 = scmp.eq.s32.totalorder %s148, 0
    %s151 = sadd.s32 %s150, 1
    %s152 = scalar_select %p149, %s150, %s151
    %p155 = pneg %p149
    %p156 = scmp.eq.s32.totalorder %s11, 1
    %p157 = por %p155, %p156
    %p158 = scmp.ne.s32.totalorder %s150, %s153
    %p159 = scmp.eq.s32.totalorder %s11, 0
    %p160 = por %p158, %p159
    %p161 = scmp.ne.s32.totalorder %s150, %s153
    %p162 = scmp.eq.s32.totalorder %s16, 1
    %p163 = por %p161, %p162
    %p164 = scmp.ne.s32.totalorder %s153, %s154
    %p165 = scmp.eq.s32.totalorder %s16, 0
    %p166 = por %p164, %p165
    %p167 = scmp.ne.s32.totalorder %s153, %s154
    %p168 = scmp.eq.s32.totalorder %s17, 1
    %p169 = por %p167, %p168
    %p171 = scmp.ne.s32.totalorder %s154, %s170
    %p172 = scmp.eq.s32.totalorder %s17, 0
    %p173 = por %p171, %p172
    %p174 = scmp.le.s32.totalorder 1, %s11
    %p175 = scmp.lt.s32.totalorder %s11, 3
    %p176 = pnand %p174, %p175
    %p177 = pneg %p176
    // Predicated region
    $region9: #{move_analyser_forward.10} parent=5 // pred_check
      _
    $region10: #{move_analyser_forward.10} parent=5 // pred_check_branch
      %179 = sbr.rel (%p176) target = $region12
    $region11: #{move_analyser_forward.10} parent=5 // pred_region
      %s180 = ssub.s32 %s11, 1
      // Predicated region
      $region13: #{move_analyser_forward.10} parent=11 // pred_check
        %p181 = pneg %p86
      $region14: #{move_analyser_forward.10} parent=11 // pred_check_branch
        %183 = sbr.rel (%p181) target = $region16
      $region15: #{move_analyser_forward.10} parent=11 // pred_region
        %s184 = smul.u32 16, %s23
        %p185 = scmp.lt.s32.totalorder %s184, 15
        %s186 = scalar_select %p185, %s184, 15
        %p187 = scmp.lt.s32.totalorder %s21, 0
        %s188 = scalar_select %p187, %s21, 0
        %s189 = sadd.s32 %s188, %s186
        %s190 = smul.addr %s189, 4
        %s191 = scalar_lea.vmem %s1, %s190
        %s192 = smul.u32 16, %s23
      $region16: #{move_analyser_forward.10} parent=11 // pred_fallthru
        _
    $region12: #{move_analyser_forward.10} parent=5 // pred_fallthru
      _
    %p193 = scmp.lt.s32.totalorder %s11, 2
    // Predicated region
    $region17: #{move_analyser_forward.10} parent=5 // pred_check
      %p194 = pneg %p193
    $region18: #{move_analyser_forward.10} parent=5 // pred_check_branch
      %196 = sbr.rel (%p194) target = $region20
    $region19: #{move_analyser_forward.10} parent=5 // pred_region
      // Predicated region
      $region21: #{move_analyser_forward.10} parent=19 // pred_check
        %p197 = pneg %p52
      $region22: #{move_analyser_forward.10} parent=19 // pred_check_branch
        %199 = sbr.rel (%p197) target = $region24
      $region23: #{move_analyser_forward.10} parent=19 // pred_region
        %s200 = smul.u32 32, %s19
        %p201 = scmp.lt.s32.totalorder %s200, 63
        %s202 = scalar_select %p201, %s200, 63
        %p203 = scmp.lt.s32.totalorder %s20, 0
        %s204 = scalar_select %p203, %s20, 0
        %s205 = sadd.s32 %s204, %s202
        %s206 = smul.addr %s205, 4
        %s207 = scalar_lea.vmem %s0, %s206
        %s208 = smul.u32 32, %s19
      $region24: #{move_analyser_forward.10} parent=19 // pred_fallthru
        _
    $region20: #{move_analyser_forward.10} parent=5 // pred_fallthru
      _
    %p209 = scmp.le.s32.totalorder 1, %s11
    %p210 = scmp.lt.s32.totalorder %s11, 3
    %p211 = pnand %p209, %p210
    %p212 = pneg %p211
    // Predicated region
    $region25: #{move_analyser_forward.10} parent=5 // pred_check
      _
    $region26: #{move_analyser_forward.10} parent=5 // pred_check_branch
      %214 = sbr.rel (%p211) target = $region28
    $region27: #{move_analyser_forward.10} parent=5 // pred_region
      %s215 = ssub.s32 %s11, 1
      %s216 = smul.u32 32, %s22
      %p217 = scmp.lt.s32.totalorder %s216, 63
      %s218 = scalar_select %p217, %s216, 63
      %p219 = scmp.lt.s32.totalorder %s23, 0
      %s220 = scalar_select %p219, %s23, 0
      %s221 = sadd.s32 %s220, %s218
      %s222 = smul.addr %s221, 4
      %s223 = scalar_lea.vmem %s0, %s222
      %p224 = pneg %p58
      %p225 = pneg %p55
      %s226 = smul.u32 16, %s23
      %p227 = scmp.lt.s32.totalorder %s226, 15
      %s228 = scalar_select %p227, %s226, 15
      %p229 = scmp.lt.s32.totalorder %s21, 0
      %s230 = scalar_select %p229, %s21, 0
      %s231 = sadd.s32 %s230, %s228
      %s232 = smul.addr %s231, 4
      %s233 = scalar_lea.vmem %s1, %s232
      %p234 = pneg %p86
      %p235 = pneg %p83
      %p236 = pneg %p114
      %p237 = pneg %p111
      %s238 = smul.u32 32, %s22
      %p239 = scmp.lt.s32.totalorder %s238, 63
      %s240 = scalar_select %p239, %s238, 63
      %p241 = scmp.lt.s32.totalorder %s21, 0
      %s242 = scalar_select %p241, %s21, 0
      %s243 = sadd.s32 %s242, %s240
      %s244 = smul.addr %s243, 8
      %s245 = scalar_lea.vmem %s2, %s244
      %p246 = pneg %p140
      %p247 = pneg %p137
      %p248 = scmp.lt.s32.totalorder %s21, 0
      %s249 = scalar_select %p248, %s21, 0
      %s250 = scalar_lea.vmem %s3, %s249
      %p251 = pneg %p166
      %p252 = pneg %p163
      %p253 = scmp.lt.s32.totalorder %s21, 0
      %s254 = scalar_select %p253, %s21, 0
      %s255 = scalar_lea.vmem %s4, %s254
      %s256 = smul.u32 32, %s22
      %p257 = scmp.lt.s32.totalorder %s256, 63
      %s258 = scalar_select %p257, %s256, 63
      %p259 = scmp.lt.s32.totalorder %s23, 0
      %s260 = scalar_select %p259, %s23, 0
      %s261 = sadd.s32 %s260, %s258
      %s262 = smul.addr %s261, 4
      %s263 = scalar_lea.vmem %s0, %s262
      %s264 = smul.u32 32, %s22
      %s265 = smul.u32 16, %s23
      %p266 = scmp.lt.s32.totalorder %s265, 15
      %s267 = scalar_select %p266, %s265, 15
      %p268 = scmp.lt.s32.totalorder %s21, 0
      %s269 = scalar_select %p268, %s21, 0
      %s270 = sadd.s32 %s269, %s267
      %s271 = smul.addr %s270, 4
      %s272 = scalar_lea.vmem %s1, %s271
      %s273 = smul.u32 16, %s23
      %s274 = smul.u32 32, %s22
      %p275 = scmp.lt.s32.totalorder %s274, 63
      %s276 = scalar_select %p275, %s274, 63
      %p277 = scmp.lt.s32.totalorder %s21, 0
      %s278 = scalar_select %p277, %s21, 0
      %s279 = sadd.s32 %s278, %s276
      %s280 = smul.addr %s279, 8
      %s281 = scalar_lea.vmem %s2, %s280
      %s282 = smul.u32 32, %s22
      %p283 = scmp.lt.s32.totalorder %s21, 0
      %s284 = scalar_select %p283, %s21, 0
      %s285 = scalar_lea.vmem %s3, %s284
      %p286 = scmp.lt.s32.totalorder %s21, 0
      %s287 = scalar_select %p286, %s21, 0
      %s288 = scalar_lea.vmem %s4, %s287
      %p290 = scmp.eq.s32.totalorder %s23, 0
      // Predicated region
      $region29: #{move_analyser_forward.10} parent=27 // pred_check
        %p291 = pneg %p290
      $region30: #{move_analyser_forward.10} parent=27 // pred_check_branch
        %293 = sbr.rel (%p291) target = $region32
      $region31: #{move_analyser_forward.10} parent=27 // pred_region
        %vm294 = vcmask 31744
        %295 = vst.msk [vmem:[#allocation2] sm:$0xff] %vm294, 0.0
        %296 = vst.msk [vmem:[#allocation2 + $0x8] sm:$0xff] %vm294, 0.0
        %297 = vst.msk [vmem:[#allocation2 + $0x10] sm:$0xff] %vm294, 0.0
        %298 = vst.msk [vmem:[#allocation2 + $0x18] sm:$0xff] %vm294, 0.0
        %299 = vst.msk [vmem:[#allocation2 + $0x20] sm:$0xff] %vm294, 0.0
        %300 = vst.msk [vmem:[#allocation2 + $0x28] sm:$0xff] %vm294, 0.0
        %301 = vst.msk [vmem:[#allocation2 + $0x30] sm:$0xff] %vm294, 0.0
        %302 = vst.msk [vmem:[#allocation2 + $0x38] sm:$0xff] %vm294, 0.0
        %303 = vst.msk [vmem:[#allocation2 + $0x40] sm:$0xff] %vm294, 0.0
        %304 = vst.msk [vmem:[#allocation2 + $0x48] sm:$0xff] %vm294, 0.0
        %305 = vst.msk [vmem:[#allocation2 + $0x50] sm:$0xff] %vm294, 0.0
        %306 = vst.msk [vmem:[#allocation2 + $0x58] sm:$0xff] %vm294, 0.0
        %307 = vst.msk [vmem:[#allocation2 + $0x60] sm:$0xff] %vm294, 0.0
        %308 = vst.msk [vmem:[#allocation2 + $0x68] sm:$0xff] %vm294, 0.0
        %309 = vst.msk [vmem:[#allocation2 + $0x70] sm:$0xff] %vm294, 0.0
        %310 = vst.msk [vmem:[#allocation2 + $0x78] sm:$0xff] %vm294, 0.0
        %311 = vst.msk [vmem:[#allocation2 + $0x80] sm:$0xff] %vm294, 0.0
        %312 = vst.msk [vmem:[#allocation2 + $0x88] sm:$0xff] %vm294, 0.0
        %313 = vst.msk [vmem:[#allocation2 + $0x90] sm:$0xff] %vm294, 0.0
        %314 = vst.msk [vmem:[#allocation2 + $0x98] sm:$0xff] %vm294, 0.0
        %315 = vst.msk [vmem:[#allocation2 + $0xa0] sm:$0xff] %vm294, 0.0
        %316 = vst.msk [vmem:[#allocation2 + $0xa8] sm:$0xff] %vm294, 0.0
        %317 = vst.msk [vmem:[#allocation2 + $0xb0] sm:$0xff] %vm294, 0.0
        %318 = vst.msk [vmem:[#allocation2 + $0xb8] sm:$0xff] %vm294, 0.0
        %319 = vst.msk [vmem:[#allocation2 + $0xc0] sm:$0xff] %vm294, 0.0
        %320 = vst.msk [vmem:[#allocation2 + $0xc8] sm:$0xff] %vm294, 0.0
        %321 = vst.msk [vmem:[#allocation2 + $0xd0] sm:$0xff] %vm294, 0.0
        %322 = vst.msk [vmem:[#allocation2 + $0xd8] sm:$0xff] %vm294, 0.0
        %323 = vst.msk [vmem:[#allocation2 + $0xe0] sm:$0xff] %vm294, 0.0
        %324 = vst.msk [vmem:[#allocation2 + $0xe8] sm:$0xff] %vm294, 0.0
        %325 = vst.msk [vmem:[#allocation2 + $0xf0] sm:$0xff] %vm294, 0.0
        %326 = vst.msk [vmem:[#allocation2 + $0xf8] sm:$0xff] %vm294, 0.0
      $region32: #{move_analyser_forward.10} parent=27 // pred_fallthru
        _
      %v327 = vld [vmem:[#allocation2] sm:$0xff]
      %v328 = vld [vmem:[#allocation2 + $0x8] sm:$0xff]
      %v329 = vld [vmem:[#allocation2 + $0x10] sm:$0xff]
      %v330 = vld [vmem:[#allocation2 + $0x18] sm:$0xff]
      %v331 = vld [vmem:[#allocation2 + $0x20] sm:$0xff]
      %v332 = vld [vmem:[#allocation2 + $0x28] sm:$0xff]
      %v333 = vld [vmem:[#allocation2 + $0x30] sm:$0xff]
      %v334 = vld [vmem:[#allocation2 + $0x38] sm:$0xff]
      %v335 = vld [vmem:[#allocation2 + $0x40] sm:$0xff]
      %v336 = vld [vmem:[#allocation2 + $0x48] sm:$0xff]
      %v337 = vld [vmem:[#allocation2 + $0x50] sm:$0xff]
      %v338 = vld [vmem:[#allocation2 + $0x58] sm:$0xff]
      %v339 = vld [vmem:[#allocation2 + $0x60] sm:$0xff]
      %v340 = vld [vmem:[#allocation2 + $0x68] sm:$0xff]
      %v341 = vld [vmem:[#allocation2 + $0x70] sm:$0xff]
      %v342 = vld [vmem:[#allocation2 + $0x78] sm:$0xff]
      %v343 = vld [vmem:[#allocation2 + $0x80] sm:$0xff]
      %v344 = vld [vmem:[#allocation2 + $0x88] sm:$0xff]
      %v345 = vld [vmem:[#allocation2 + $0x90] sm:$0xff]
      %v346 = vld [vmem:[#allocation2 + $0x98] sm:$0xff]
      %v347 = vld [vmem:[#allocation2 + $0xa0] sm:$0xff]
      %v348 = vld [vmem:[#allocation2 + $0xa8] sm:$0xff]
      %v349 = vld [vmem:[#allocation2 + $0xb0] sm:$0xff]
      %v350 = vld [vmem:[#allocation2 + $0xb8] sm:$0xff]
      %v351 = vld [vmem:[#allocation2 + $0xc0] sm:$0xff]
      %v352 = vld [vmem:[#allocation2 + $0xc8] sm:$0xff]
      %v353 = vld [vmem:[#allocation2 + $0xd0] sm:$0xff]
      %v354 = vld [vmem:[#allocation2 + $0xd8] sm:$0xff]
      %v355 = vld [vmem:[#allocation2 + $0xe0] sm:$0xff]
      %v356 = vld [vmem:[#allocation2 + $0xe8] sm:$0xff]
      %v357 = vld [vmem:[#allocation2 + $0xf0] sm:$0xff]
      %v358 = vld [vmem:[#allocation2 + $0xf8] sm:$0xff]
      %v359 = vld [vmem:[%s263] sm:$0xf]
      %v360 = vld [vmem:[%s263 + $0x4] sm:$0xf]
      %v361 = vld [vmem:[%s263 + $0x8] sm:$0xf]
      %v362 = vld [vmem:[%s263 + $0xc] sm:$0xf]
      %v363 = vld [vmem:[%s263 + $0x10] sm:$0xf]
      %v364 = vld [vmem:[%s263 + $0x14] sm:$0xf]
      %v365 = vld [vmem:[%s263 + $0x18] sm:$0xf]
      %v366 = vld [vmem:[%s263 + $0x1c] sm:$0xf]
      %v367 = vld [vmem:[%s263 + $0x20] sm:$0xf]
      %v368 = vld [vmem:[%s263 + $0x24] sm:$0xf]
      %v369 = vld [vmem:[%s263 + $0x28] sm:$0xf]
      %v370 = vld [vmem:[%s263 + $0x2c] sm:$0xf]
      %v371 = vld [vmem:[%s263 + $0x30] sm:$0xf]
      %v372 = vld [vmem:[%s263 + $0x34] sm:$0xf]
      %v373 = vld [vmem:[%s263 + $0x38] sm:$0xf]
      %v374 = vld [vmem:[%s263 + $0x3c] sm:$0xf]
      %v375 = vld [vmem:[%s263 + $0x40] sm:$0xf]
      %v376 = vld [vmem:[%s263 + $0x44] sm:$0xf]
      %v377 = vld [vmem:[%s263 + $0x48] sm:$0xf]
      %v378 = vld [vmem:[%s263 + $0x4c] sm:$0xf]
      %v379 = vld [vmem:[%s263 + $0x50] sm:$0xf]
      %v380 = vld [vmem:[%s263 + $0x54] sm:$0xf]
      %v381 = vld [vmem:[%s263 + $0x58] sm:$0xf]
      %v382 = vld [vmem:[%s263 + $0x5c] sm:$0xf]
      %v383 = vld [vmem:[%s263 + $0x60] sm:$0xf]
      %v384 = vld [vmem:[%s263 + $0x64] sm:$0xf]
      %v385 = vld [vmem:[%s263 + $0x68] sm:$0xf]
      %v386 = vld [vmem:[%s263 + $0x6c] sm:$0xf]
      %v387 = vld [vmem:[%s263 + $0x70] sm:$0xf]
      %v388 = vld [vmem:[%s263 + $0x74] sm:$0xf]
      %v389 = vld [vmem:[%s263 + $0x78] sm:$0xf]
      %v390 = vld [vmem:[%s263 + $0x7c] sm:$0xf]
      %v391 = vld [vmem:[%s272] sm:$0xf]
      %v392 = vld [vmem:[%s272 + $0x4] sm:$0xf]
      %v393 = vld [vmem:[%s272 + $0x8] sm:$0xf]
      %v394 = vld [vmem:[%s272 + $0xc] sm:$0xf]
      %v395 = vld [vmem:[%s272 + $0x10] sm:$0xf]
      %v396 = vld [vmem:[%s272 + $0x14] sm:$0xf]
      %v397 = vld [vmem:[%s272 + $0x18] sm:$0xf]
      %v398 = vld [vmem:[%s272 + $0x1c] sm:$0xf]
      %v399 = vld [vmem:[%s272 + $0x20] sm:$0xf]
      %v400 = vld [vmem:[%s272 + $0x24] sm:$0xf]
      %v401 = vld [vmem:[%s272 + $0x28] sm:$0xf]
      %v402 = vld [vmem:[%s272 + $0x2c] sm:$0xf]
      %v403 = vld [vmem:[%s272 + $0x30] sm:$0xf]
      %v404 = vld [vmem:[%s272 + $0x34] sm:$0xf]
      %v405 = vld [vmem:[%s272 + $0x38] sm:$0xf]
      %v406 = vld [vmem:[%s272 + $0x3c] sm:$0xf]
      %v439 = vunpack.c.l.b16 %v359
      %v440 = vunpack.c.l.b16 %v360
      %v441 = vunpack.c.l.b16 %v361
      %v442 = vunpack.c.l.b16 %v362
      %v443 = vunpack.c.l.b16 %v363
      %v444 = vunpack.c.l.b16 %v364
      %v445 = vunpack.c.l.b16 %v365
      %v446 = vunpack.c.l.b16 %v366
      %v447 = vunpack.c.l.b16 %v367
      %v448 = vunpack.c.l.b16 %v368
      %v449 = vunpack.c.l.b16 %v369
      %v450 = vunpack.c.l.b16 %v370
      %v451 = vunpack.c.l.b16 %v371
      %v452 = vunpack.c.l.b16 %v372
      %v453 = vunpack.c.l.b16 %v373
      %v454 = vunpack.c.l.b16 %v374
      %v455 = vunpack.c.l.b16 %v375
      %v456 = vunpack.c.l.b16 %v376
      %v457 = vunpack.c.l.b16 %v377
      %v458 = vunpack.c.l.b16 %v378
      %v459 = vunpack.c.l.b16 %v379
      %v460 = vunpack.c.l.b16 %v380
      %v461 = vunpack.c.l.b16 %v381
      %v462 = vunpack.c.l.b16 %v382
      %v463 = vunpack.c.l.b16 %v383
      %v464 = vunpack.c.l.b16 %v384
      %v465 = vunpack.c.l.b16 %v385
      %v466 = vunpack.c.l.b16 %v386
      %v467 = vunpack.c.l.b16 %v387
      %v468 = vunpack.c.l.b16 %v388
      %v469 = vunpack.c.l.b16 %v389
      %v470 = vunpack.c.l.b16 %v390
      %v471 = vpack.c.b16 %v440, %v439
      %v472 = vpack.c.b16 %v442, %v441
      %v473 = vpack.c.b16 %v444, %v443
      %v474 = vpack.c.b16 %v446, %v445
      %v475 = vpack.c.b16 %v448, %v447
      %v476 = vpack.c.b16 %v450, %v449
      %v477 = vpack.c.b16 %v452, %v451
      %v478 = vpack.c.b16 %v454, %v453
      %v479 = vpack.c.b16 %v456, %v455
      %v480 = vpack.c.b16 %v458, %v457
      %v481 = vpack.c.b16 %v460, %v459
      %v482 = vpack.c.b16 %v462, %v461
      %v483 = vpack.c.b16 %v464, %v463
      %v484 = vpack.c.b16 %v466, %v465
      %v485 = vpack.c.b16 %v468, %v467
      %v486 = vpack.c.b16 %v470, %v469
      %v519 = vunpack.c.l.b16 %v391
      %v520 = vunpack.c.l.b16 %v392
      %v521 = vunpack.c.l.b16 %v393
      %v522 = vunpack.c.l.b16 %v394
      %v523 = vunpack.c.l.b16 %v395
      %v524 = vunpack.c.l.b16 %v396
      %v525 = vunpack.c.l.b16 %v397
      %v526 = vunpack.c.l.b16 %v398
      %v527 = vunpack.c.l.b16 %v399
      %v528 = vunpack.c.l.b16 %v400
      %v529 = vunpack.c.l.b16 %v401
      %v530 = vunpack.c.l.b16 %v402
      %v531 = vunpack.c.l.b16 %v403
      %v532 = vunpack.c.l.b16 %v404
      %v533 = vunpack.c.l.b16 %v405
      %v534 = vunpack.c.l.b16 %v406
      %v535 = vpack.c.b16 %v520, %v519
      %v536 = vpack.c.b16 %v522, %v521
      %v537 = vpack.c.b16 %v524, %v523
      %v538 = vpack.c.b16 %v526, %v525
      %v539 = vpack.c.b16 %v528, %v527
      %v540 = vpack.c.b16 %v530, %v529
      %v541 = vpack.c.b16 %v532, %v531
      %v542 = vpack.c.b16 %v534, %v533
      %551 = vmatprep.subr.bf16.mxu0 0
      %552 = vmatpush1.bf16.msra.mxu0 %v542
      %553 = vmatprep.subr.bf16.mxu0 0
      %554 = vmatpush1.bf16.msra.mxu0 %v541
      %555 = vmatprep.subr.bf16.mxu0 0
      %556 = vmatpush1.bf16.msra.mxu0 %v540
      %557 = vmatprep.subr.bf16.mxu0 0
      %558 = vmatpush1.bf16.msra.mxu0 %v539
      %559 = vmatprep.subr.bf16.mxu0 0
      %560 = vmatpush1.bf16.msra.mxu0 %v538
      %561 = vmatprep.subr.bf16.mxu0 0
      %562 = vmatpush1.bf16.msra.mxu0 %v537
      %563 = vmatprep.subr.bf16.mxu0 0
      %564 = vmatpush1.bf16.msra.mxu0 %v536
      %565 = vmatprep.subr.bf16.mxu0 0
      %566 = vmatpush1.bf16.msra.mxu0 %v535
      %567 = vmatprep.subr.bf16.mxu0 0
      %568 = vmatpush2.bf16.msra.mxu0 0
      %569 = vmatprep.subr.bf16.mxu0 0
      %570 = vmatpush2.bf16.msra.mxu0 0
      %571 = vmatprep.subr.bf16.mxu0 0
      %572 = vmatpush2.bf16.msra.mxu0 0
      %573 = vmatprep.subr.bf16.mxu0 0
      %574 = vmatpush2.bf16.msra.mxu0 0
      %575 = vmatprep.subr.bf16.mxu0 0
      %576 = vmatpush2.bf16.msra.mxu0 0
      %577 = vmatprep.subr.bf16.mxu0 0
      %578 = vmatpush2.bf16.msra.mxu0 0
      %579 = vmatprep.subr.bf16.mxu0 0
      %580 = vmatpush2.bf16.msra.mxu0 0
      %581 = vmatprep.subr.bf16.mxu0 0
      %582 = vmatpush2.bf16.msra.mxu0 0
      %583 = vmatprep.mubr.bf16.mxu0 0
      %584 = vmatmul.mubr.bf16.gmra.mxu0 %v471
      %v585 = vpop.f32.mrf.mxu0
      %v586 = vadd.f32 0.0, %v585
      %v587 = vpop.f32.mrf.mxu0
      %v588 = vpop.f32.mrf.mxu0
      %v589 = vadd.f32 0.0, %v588
      %v590 = vpop.f32.mrf.mxu0
      %591 = vmatprep.mubr.bf16.mxu0 0
      %592 = vmatmul.mubr.bf16.gmra.mxu0 %v472
      %v593 = vpop.f32.mrf.mxu0
      %v594 = vadd.f32 0.0, %v593
      %v595 = vpop.f32.mrf.mxu0
      %v596 = vpop.f32.mrf.mxu0
      %v597 = vadd.f32 0.0, %v596
      %v598 = vpop.f32.mrf.mxu0
      %599 = vmatprep.mubr.bf16.mxu0 0
      %600 = vmatmul.mubr.bf16.gmra.mxu0 %v473
      %v601 = vpop.f32.mrf.mxu0
      %v602 = vadd.f32 0.0, %v601
      %v603 = vpop.f32.mrf.mxu0
      %v604 = vpop.f32.mrf.mxu0
      %v605 = vadd.f32 0.0, %v604
      %v606 = vpop.f32.mrf.mxu0
      %607 = vmatprep.mubr.bf16.mxu0 0
      %608 = vmatmul.mubr.bf16.gmra.mxu0 %v474
      %v609 = vpop.f32.mrf.mxu0
      %v610 = vadd.f32 0.0, %v609
      %v611 = vpop.f32.mrf.mxu0
      %v612 = vpop.f32.mrf.mxu0
      %v613 = vadd.f32 0.0, %v612
      %v614 = vpop.f32.mrf.mxu0
      %615 = vmatprep.mubr.bf16.mxu0 0
      %616 = vmatmul.mubr.bf16.gmra.mxu0 %v475
      %v617 = vpop.f32.mrf.mxu0
      %v618 = vadd.f32 0.0, %v617
      %v619 = vpop.f32.mrf.mxu0
      %v620 = vpop.f32.mrf.mxu0
      %v621 = vadd.f32 0.0, %v620
      %v622 = vpop.f32.mrf.mxu0
      %623 = vmatprep.mubr.bf16.mxu0 0
      %624 = vmatmul.mubr.bf16.gmra.mxu0 %v476
      %v625 = vpop.f32.mrf.mxu0
      %v626 = vadd.f32 0.0, %v625
      %v627 = vpop.f32.mrf.mxu0
      %v628 = vpop.f32.mrf.mxu0
      %v629 = vadd.f32 0.0, %v628
      %v630 = vpop.f32.mrf.mxu0
      %631 = vmatprep.mubr.bf16.mxu0 0
      %632 = vmatmul.mubr.bf16.gmra.mxu0 %v477
      %v633 = vpop.f32.mrf.mxu0
      %v634 = vadd.f32 0.0, %v633
      %v635 = vpop.f32.mrf.mxu0
      %v636 = vpop.f32.mrf.mxu0
      %v637 = vadd.f32 0.0, %v636
      %v638 = vpop.f32.mrf.mxu0
      %639 = vmatprep.mubr.bf16.mxu0 0
      %640 = vmatmul.mubr.bf16.gmra.mxu0 %v478
      %v641 = vpop.f32.mrf.mxu0
      %v642 = vadd.f32 0.0, %v641
      %v643 = vpop.f32.mrf.mxu0
      %v644 = vpop.f32.mrf.mxu0
      %v645 = vadd.f32 0.0, %v644
      %v646 = vpop.f32.mrf.mxu0
      %647 = vmatprep.mubr.bf16.mxu0 0
      %648 = vmatmul.mubr.bf16.gmra.mxu0 %v479
      %v649 = vpop.f32.mrf.mxu0
      %v650 = vadd.f32 0.0, %v649
      %v651 = vpop.f32.mrf.mxu0
      %v652 = vpop.f32.mrf.mxu0
      %v653 = vadd.f32 0.0, %v652
      %v654 = vpop.f32.mrf.mxu0
      %655 = vmatprep.mubr.bf16.mxu0 0
      %656 = vmatmul.mubr.bf16.gmra.mxu0 %v480
      %v657 = vpop.f32.mrf.mxu0
      %v658 = vadd.f32 0.0, %v657
      %v659 = vpop.f32.mrf.mxu0
      %v660 = vpop.f32.mrf.mxu0
      %v661 = vadd.f32 0.0, %v660
      %v662 = vpop.f32.mrf.mxu0
      %663 = vmatprep.mubr.bf16.mxu0 0
      %664 = vmatmul.mubr.bf16.gmra.mxu0 %v481
      %v665 = vpop.f32.mrf.mxu0
      %v666 = vadd.f32 0.0, %v665
      %v667 = vpop.f32.mrf.mxu0
      %v668 = vpop.f32.mrf.mxu0
      %v669 = vadd.f32 0.0, %v668
      %v670 = vpop.f32.mrf.mxu0
      %671 = vmatprep.mubr.bf16.mxu0 0
      %672 = vmatmul.mubr.bf16.gmra.mxu0 %v482
      %v673 = vpop.f32.mrf.mxu0
      %v674 = vadd.f32 0.0, %v673
      %v675 = vpop.f32.mrf.mxu0
      %v676 = vpop.f32.mrf.mxu0
      %v677 = vadd.f32 0.0, %v676
      %v678 = vpop.f32.mrf.mxu0
      %679 = vmatprep.mubr.bf16.mxu0 0
      %680 = vmatmul.mubr.bf16.gmra.mxu0 %v483
      %v681 = vpop.f32.mrf.mxu0
      %v682 = vadd.f32 0.0, %v681
      %v683 = vpop.f32.mrf.mxu0
      %v684 = vpop.f32.mrf.mxu0
      %v685 = vadd.f32 0.0, %v684
      %v686 = vpop.f32.mrf.mxu0
      %687 = vmatprep.mubr.bf16.mxu0 0
      %688 = vmatmul.mubr.bf16.gmra.mxu0 %v484
      %v689 = vpop.f32.mrf.mxu0
      %v690 = vadd.f32 0.0, %v689
      %v691 = vpop.f32.mrf.mxu0
      %v692 = vpop.f32.mrf.mxu0
      %v693 = vadd.f32 0.0, %v692
      %v694 = vpop.f32.mrf.mxu0
      %695 = vmatprep.mubr.bf16.mxu0 0
      %696 = vmatmul.mubr.bf16.gmra.mxu0 %v485
      %v697 = vpop.f32.mrf.mxu0
      %v698 = vadd.f32 0.0, %v697
      %v699 = vpop.f32.mrf.mxu0
      %v700 = vpop.f32.mrf.mxu0
      %v701 = vadd.f32 0.0, %v700
      %v702 = vpop.f32.mrf.mxu0
      %703 = vmatprep.mubr.bf16.mxu0 0
      %704 = vmatmul.mubr.bf16.gmra.mxu0 %v486
      %v705 = vpop.f32.mrf.mxu0
      %v706 = vadd.f32 0.0, %v705
      %v707 = vpop.f32.mrf.mxu0
      %v708 = vpop.f32.mrf.mxu0
      %v709 = vadd.f32 0.0, %v708
      %v710 = vpop.f32.mrf.mxu0
      %711 = vdwg.mxu0
      %v712 = vadd.f32 %v327, %v586
      %v713 = vadd.f32 %v328, %v589
      %v714 = vadd.f32 %v329, %v594
      %v715 = vadd.f32 %v330, %v597
      %v716 = vadd.f32 %v331, %v602
      %v717 = vadd.f32 %v332, %v605
      %v718 = vadd.f32 %v333, %v610
      %v719 = vadd.f32 %v334, %v613
      %v720 = vadd.f32 %v335, %v618
      %v721 = vadd.f32 %v336, %v621
      %v722 = vadd.f32 %v337, %v626
      %v723 = vadd.f32 %v338, %v629
      %v724 = vadd.f32 %v339, %v634
      %v725 = vadd.f32 %v340, %v637
      %v726 = vadd.f32 %v341, %v642
      %v727 = vadd.f32 %v342, %v645
      %v728 = vadd.f32 %v343, %v650
      %v729 = vadd.f32 %v344, %v653
      %v730 = vadd.f32 %v345, %v658
      %v731 = vadd.f32 %v346, %v661
      %v732 = vadd.f32 %v347, %v666
      %v733 = vadd.f32 %v348, %v669
      %v734 = vadd.f32 %v349, %v674
      %v735 = vadd.f32 %v350, %v677
      %v736 = vadd.f32 %v351, %v682
      %v737 = vadd.f32 %v352, %v685
      %v738 = vadd.f32 %v353, %v690
      %v739 = vadd.f32 %v354, %v693
      %v740 = vadd.f32 %v355, %v698
      %v741 = vadd.f32 %v356, %v701
      %v742 = vadd.f32 %v357, %v706
      %v743 = vadd.f32 %v358, %v709
      %vm744 = vcmask 31744
      %745 = vst.msk [vmem:[#allocation2] sm:$0xff] %vm744, %v712
      %746 = vst.msk [vmem:[#allocation2 + $0x8] sm:$0xff] %vm744, %v713
      %747 = vst.msk [vmem:[#allocation2 + $0x10] sm:$0xff] %vm744, %v714
      %748 = vst.msk [vmem:[#allocation2 + $0x18] sm:$0xff] %vm744, %v715
      %749 = vst.msk [vmem:[#allocation2 + $0x20] sm:$0xff] %vm744, %v716
      %750 = vst.msk [vmem:[#allocation2 + $0x28] sm:$0xff] %vm744, %v717
      %751 = vst.msk [vmem:[#allocation2 + $0x30] sm:$0xff] %vm744, %v718
      %752 = vst.msk [vmem:[#allocation2 + $0x38] sm:$0xff] %vm744, %v719
      %753 = vst.msk [vmem:[#allocation2 + $0x40] sm:$0xff] %vm744, %v720
      %754 = vst.msk [vmem:[#allocation2 + $0x48] sm:$0xff] %vm744, %v721
      %755 = vst.msk [vmem:[#allocation2 + $0x50] sm:$0xff] %vm744, %v722
      %756 = vst.msk [vmem:[#allocation2 + $0x58] sm:$0xff] %vm744, %v723
      %757 = vst.msk [vmem:[#allocation2 + $0x60] sm:$0xff] %vm744, %v724
      %758 = vst.msk [vmem:[#allocation2 + $0x68] sm:$0xff] %vm744, %v725
      %759 = vst.msk [vmem:[#allocation2 + $0x70] sm:$0xff] %vm744, %v726
      %760 = vst.msk [vmem:[#allocation2 + $0x78] sm:$0xff] %vm744, %v727
      %761 = vst.msk [vmem:[#allocation2 + $0x80] sm:$0xff] %vm744, %v728
      %762 = vst.msk [vmem:[#allocation2 + $0x88] sm:$0xff] %vm744, %v729
      %763 = vst.msk [vmem:[#allocation2 + $0x90] sm:$0xff] %vm744, %v730
      %764 = vst.msk [vmem:[#allocation2 + $0x98] sm:$0xff] %vm744, %v731
      %765 = vst.msk [vmem:[#allocation2 + $0xa0] sm:$0xff] %vm744, %v732
      %766 = vst.msk [vmem:[#allocation2 + $0xa8] sm:$0xff] %vm744, %v733
      %767 = vst.msk [vmem:[#allocation2 + $0xb0] sm:$0xff] %vm744, %v734
      %768 = vst.msk [vmem:[#allocation2 + $0xb8] sm:$0xff] %vm744, %v735
      %769 = vst.msk [vmem:[#allocation2 + $0xc0] sm:$0xff] %vm744, %v736
      %770 = vst.msk [vmem:[#allocation2 + $0xc8] sm:$0xff] %vm744, %v737
      %771 = vst.msk [vmem:[#allocation2 + $0xd0] sm:$0xff] %vm744, %v738
      %772 = vst.msk [vmem:[#allocation2 + $0xd8] sm:$0xff] %vm744, %v739
      %773 = vst.msk [vmem:[#allocation2 + $0xe0] sm:$0xff] %vm744, %v740
      %774 = vst.msk [vmem:[#allocation2 + $0xe8] sm:$0xff] %vm744, %v741
      %775 = vst.msk [vmem:[#allocation2 + $0xf0] sm:$0xff] %vm744, %v742
      %776 = vst.msk [vmem:[#allocation2 + $0xf8] sm:$0xff] %vm744, %v743
      %p777 = scmp.eq.s32.totalorder %s22, 0
      %p778 = pnand %p290, %p777
      %p779 = pneg %p778
      // Predicated region
      $region33: #{move_analyser_forward.10} parent=27 // pred_check
        _
      $region34: #{move_analyser_forward.10} parent=27 // pred_check_branch
        %781 = sbr.rel (%p778) target = $region36
      $region35: #{move_analyser_forward.10} parent=27 // pred_region
        %vm782 = vcmask 24576
        %783 = vst.msk [vmem:[%s285] sm:$0x1] %vm782, 0.0
        %784 = vst.msk [vmem:[%s288] sm:$0x1] %vm782, 0.0
      $region36: #{move_analyser_forward.10} parent=27 // pred_fallthru
        _
      // Predicated region
      $region37: #{move_analyser_forward.10} parent=27 // pred_check
        %p785 = pneg %p290
      $region38: #{move_analyser_forward.10} parent=27 // pred_check_branch
        %787 = sbr.rel (%p785) target = $region40
      $region39: #{move_analyser_forward.10} parent=27 // pred_region
        %v788 = vld [vmem:[#allocation2] sm:$0xff]
        %v789 = vld [vmem:[#allocation2 + $0x8] sm:$0xff]
        %v790 = vld [vmem:[#allocation2 + $0x10] sm:$0xff]
        %v791 = vld [vmem:[#allocation2 + $0x18] sm:$0xff]
        %v792 = vld [vmem:[#allocation2 + $0x20] sm:$0xff]
        %v793 = vld [vmem:[#allocation2 + $0x28] sm:$0xff]
        %v794 = vld [vmem:[#allocation2 + $0x30] sm:$0xff]
        %v795 = vld [vmem:[#allocation2 + $0x38] sm:$0xff]
        %v796 = vld [vmem:[#allocation2 + $0x40] sm:$0xff]
        %v797 = vld [vmem:[#allocation2 + $0x48] sm:$0xff]
        %v798 = vld [vmem:[#allocation2 + $0x50] sm:$0xff]
        %v799 = vld [vmem:[#allocation2 + $0x58] sm:$0xff]
        %v800 = vld [vmem:[#allocation2 + $0x60] sm:$0xff]
        %v801 = vld [vmem:[#allocation2 + $0x68] sm:$0xff]
        %v802 = vld [vmem:[#allocation2 + $0x70] sm:$0xff]
        %v803 = vld [vmem:[#allocation2 + $0x78] sm:$0xff]
        %v804 = vld [vmem:[#allocation2 + $0x80] sm:$0xff]
        %v805 = vld [vmem:[#allocation2 + $0x88] sm:$0xff]
        %v806 = vld [vmem:[#allocation2 + $0x90] sm:$0xff]
        %v807 = vld [vmem:[#allocation2 + $0x98] sm:$0xff]
        %v808 = vld [vmem:[#allocation2 + $0xa0] sm:$0xff]
        %v809 = vld [vmem:[#allocation2 + $0xa8] sm:$0xff]
        %v810 = vld [vmem:[#allocation2 + $0xb0] sm:$0xff]
        %v811 = vld [vmem:[#allocation2 + $0xb8] sm:$0xff]
        %v812 = vld [vmem:[#allocation2 + $0xc0] sm:$0xff]
        %v813 = vld [vmem:[#allocation2 + $0xc8] sm:$0xff]
        %v814 = vld [vmem:[#allocation2 + $0xd0] sm:$0xff]
        %v815 = vld [vmem:[#allocation2 + $0xd8] sm:$0xff]
        %v816 = vld [vmem:[#allocation2 + $0xe0] sm:$0xff]
        %v817 = vld [vmem:[#allocation2 + $0xe8] sm:$0xff]
        %v818 = vld [vmem:[#allocation2 + $0xf0] sm:$0xff]
        %v819 = vld [vmem:[#allocation2 + $0xf8] sm:$0xff]
        %820 = vst.msk [vmem:[%s281] sm:$0xff] %vm744, %v788
        %821 = vst.msk [vmem:[%s281 + $0x8] sm:$0xff] %vm744, %v789
        %822 = vst.msk [vmem:[%s281 + $0x10] sm:$0xff] %vm744, %v790
        %823 = vst.msk [vmem:[%s281 + $0x18] sm:$0xff] %vm744, %v791
        %824 = vst.msk [vmem:[%s281 + $0x20] sm:$0xff] %vm744, %v792
        %825 = vst.msk [vmem:[%s281 + $0x28] sm:$0xff] %vm744, %v793
        %826 = vst.msk [vmem:[%s281 + $0x30] sm:$0xff] %vm744, %v794
        %827 = vst.msk [vmem:[%s281 + $0x38] sm:$0xff] %vm744, %v795
        %828 = vst.msk [vmem:[%s281 + $0x40] sm:$0xff] %vm744, %v796
        %829 = vst.msk [vmem:[%s281 + $0x48] sm:$0xff] %vm744, %v797
        %830 = vst.msk [vmem:[%s281 + $0x50] sm:$0xff] %vm744, %v798
        %831 = vst.msk [vmem:[%s281 + $0x58] sm:$0xff] %vm744, %v799
        %832 = vst.msk [vmem:[%s281 + $0x60] sm:$0xff] %vm744, %v800
        %833 = vst.msk [vmem:[%s281 + $0x68] sm:$0xff] %vm744, %v801
        %834 = vst.msk [vmem:[%s281 + $0x70] sm:$0xff] %vm744, %v802
        %835 = vst.msk [vmem:[%s281 + $0x78] sm:$0xff] %vm744, %v803
        %836 = vst.msk [vmem:[%s281 + $0x80] sm:$0xff] %vm744, %v804
        %837 = vst.msk [vmem:[%s281 + $0x88] sm:$0xff] %vm744, %v805
        %838 = vst.msk [vmem:[%s281 + $0x90] sm:$0xff] %vm744, %v806
        %839 = vst.msk [vmem:[%s281 + $0x98] sm:$0xff] %vm744, %v807
        %840 = vst.msk [vmem:[%s281 + $0xa0] sm:$0xff] %vm744, %v808
        %841 = vst.msk [vmem:[%s281 + $0xa8] sm:$0xff] %vm744, %v809
        %842 = vst.msk [vmem:[%s281 + $0xb0] sm:$0xff] %vm744, %v810
        %843 = vst.msk [vmem:[%s281 + $0xb8] sm:$0xff] %vm744, %v811
        %844 = vst.msk [vmem:[%s281 + $0xc0] sm:$0xff] %vm744, %v812
        %845 = vst.msk [vmem:[%s281 + $0xc8] sm:$0xff] %vm744, %v813
        %846 = vst.msk [vmem:[%s281 + $0xd0] sm:$0xff] %vm744, %v814
        %847 = vst.msk [vmem:[%s281 + $0xd8] sm:$0xff] %vm744, %v815
        %848 = vst.msk [vmem:[%s281 + $0xe0] sm:$0xff] %vm744, %v816
        %849 = vst.msk [vmem:[%s281 + $0xe8] sm:$0xff] %vm744, %v817
        %850 = vst.msk [vmem:[%s281 + $0xf0] sm:$0xff] %vm744, %v818
        %851 = vst.msk [vmem:[%s281 + $0xf8] sm:$0xff] %vm744, %v819
        %v852 = vld [vmem:[%s285] sm:$0x1]
        %v853 = vsel %vm744, %v788, 0.0
        %v854 = vsel %vm744, %v789, 0.0
        %v855 = vadd.f32 %v853, %v854
        %v856 = vsel %vm744, %v790, 0.0
        %v857 = vadd.f32 %v855, %v856
        %v858 = vsel %vm744, %v791, 0.0
        %v859 = vadd.f32 %v857, %v858
        %v860 = vsel %vm744, %v792, 0.0
        %v861 = vadd.f32 %v859, %v860
        %v862 = vsel %vm744, %v793, 0.0
        %v863 = vadd.f32 %v861, %v862
        %v864 = vsel %vm744, %v794, 0.0
        %v865 = vadd.f32 %v863, %v864
        %v866 = vsel %vm744, %v795, 0.0
        %v867 = vadd.f32 %v865, %v866
        %v868 = vsel %vm744, %v796, 0.0
        %v869 = vadd.f32 %v867, %v868
        %v870 = vsel %vm744, %v797, 0.0
        %v871 = vadd.f32 %v869, %v870
        %v872 = vsel %vm744, %v798, 0.0
        %v873 = vadd.f32 %v871, %v872
        %v874 = vsel %vm744, %v799, 0.0
        %v875 = vadd.f32 %v873, %v874
        %v876 = vsel %vm744, %v800, 0.0
        %v877 = vadd.f32 %v875, %v876
        %v878 = vsel %vm744, %v801, 0.0
        %v879 = vadd.f32 %v877, %v878
        %v880 = vsel %vm744, %v802, 0.0
        %v881 = vadd.f32 %v879, %v880
        %v882 = vsel %vm744, %v803, 0.0
        %v883 = vadd.f32 %v881, %v882
        %v884 = vsel %vm744, %v804, 0.0
        %v885 = vadd.f32 %v883, %v884
        %v886 = vsel %vm744, %v805, 0.0
        %v887 = vadd.f32 %v885, %v886
        %v888 = vsel %vm744, %v806, 0.0
        %v889 = vadd.f32 %v887, %v888
        %v890 = vsel %vm744, %v807, 0.0
        %v891 = vadd.f32 %v889, %v890
        %v892 = vsel %vm744, %v808, 0.0
        %v893 = vadd.f32 %v891, %v892
        %v894 = vsel %vm744, %v809, 0.0
        %v895 = vadd.f32 %v893, %v894
        %v896 = vsel %vm744, %v810, 0.0
        %v897 = vadd.f32 %v895, %v896
        %v898 = vsel %vm744, %v811, 0.0
        %v899 = vadd.f32 %v897, %v898
        %v900 = vsel %vm744, %v812, 0.0
        %v901 = vadd.f32 %v899, %v900
        %v902 = vsel %vm744, %v813, 0.0
        %v903 = vadd.f32 %v901, %v902
        %v904 = vsel %vm744, %v814, 0.0
        %v905 = vadd.f32 %v903, %v904
        %v906 = vsel %vm744, %v815, 0.0
        %v907 = vadd.f32 %v905, %v906
        %v908 = vsel %vm744, %v816, 0.0
        %v909 = vadd.f32 %v907, %v908
        %v910 = vsel %vm744, %v817, 0.0
        %v911 = vadd.f32 %v909, %v910
        %v912 = vsel %vm744, %v818, 0.0
        %v913 = vadd.f32 %v911, %v912
        %v914 = vsel %vm744, %v819, 0.0
        %v915 = vadd.f32 %v913, %v914
        %v916 = vrot.slane %v915, 4
        %v917 = vadd.f32 %v915, %v916
        %v918 = vrot.slane %v917, 2
        %v919 = vadd.f32 %v917, %v918
        %v920 = vrot.slane %v919, 1
        %v921 = vadd.f32 %v919, %v920
        %v922 = vadd.f32 %v852, %v921
        %vm923 = vcmask 24576
        %924 = vst.msk [vmem:[%s285] sm:$0x1] %vm923, %v922
        %v925 = vld [vmem:[%s288] sm:$0x1]
        %v926 = vmul.f32 %v788, %v788
        %v927 = vmul.f32 %v789, %v789
        %v928 = vmul.f32 %v790, %v790
        %v929 = vmul.f32 %v791, %v791
        %v930 = vmul.f32 %v792, %v792
        %v931 = vmul.f32 %v793, %v793
        %v932 = vmul.f32 %v794, %v794
        %v933 = vmul.f32 %v795, %v795
        %v934 = vmul.f32 %v796, %v796
        %v935 = vmul.f32 %v797, %v797
        %v936 = vmul.f32 %v798, %v798
        %v937 = vmul.f32 %v799, %v799
        %v938 = vmul.f32 %v800, %v800
        %v939 = vmul.f32 %v801, %v801
        %v940 = vmul.f32 %v802, %v802
        %v941 = vmul.f32 %v803, %v803
        %v942 = vmul.f32 %v804, %v804
        %v943 = vmul.f32 %v805, %v805
        %v944 = vmul.f32 %v806, %v806
        %v945 = vmul.f32 %v807, %v807
        %v946 = vmul.f32 %v808, %v808
        %v947 = vmul.f32 %v809, %v809
        %v948 = vmul.f32 %v810, %v810
        %v949 = vmul.f32 %v811, %v811
        %v950 = vmul.f32 %v812, %v812
        %v951 = vmul.f32 %v813, %v813
        %v952 = vmul.f32 %v814, %v814
        %v953 = vmul.f32 %v815, %v815
        %v954 = vmul.f32 %v816, %v816
        %v955 = vmul.f32 %v817, %v817
        %v956 = vmul.f32 %v818, %v818
        %v957 = vmul.f32 %v819, %v819
        %v958 = vsel %vm744, %v926, 0.0
        %v959 = vsel %vm744, %v927, 0.0
        %v960 = vadd.f32 %v958, %v959
        %v961 = vsel %vm744, %v928, 0.0
        %v962 = vadd.f32 %v960, %v961
        %v963 = vsel %vm744, %v929, 0.0
        %v964 = vadd.f32 %v962, %v963
        %v965 = vsel %vm744, %v930, 0.0
        %v966 = vadd.f32 %v964, %v965
        %v967 = vsel %vm744, %v931, 0.0
        %v968 = vadd.f32 %v966, %v967
        %v969 = vsel %vm744, %v932, 0.0
        %v970 = vadd.f32 %v968, %v969
        %v971 = vsel %vm744, %v933, 0.0
        %v972 = vadd.f32 %v970, %v971
        %v973 = vsel %vm744, %v934, 0.0
        %v974 = vadd.f32 %v972, %v973
        %v975 = vsel %vm744, %v935, 0.0
        %v976 = vadd.f32 %v974, %v975
        %v977 = vsel %vm744, %v936, 0.0
        %v978 = vadd.f32 %v976, %v977
        %v979 = vsel %vm744, %v937, 0.0
        %v980 = vadd.f32 %v978, %v979
        %v981 = vsel %vm744, %v938, 0.0
        %v982 = vadd.f32 %v980, %v981
        %v983 = vsel %vm744, %v939, 0.0
        %v984 = vadd.f32 %v982, %v983
        %v985 = vsel %vm744, %v940, 0.0
        %v986 = vadd.f32 %v984, %v985
        %v987 = vsel %vm744, %v941, 0.0
        %v988 = vadd.f32 %v986, %v987
        %v989 = vsel %vm744, %v942, 0.0
        %v990 = vadd.f32 %v988, %v989
        %v991 = vsel %vm744, %v943, 0.0
        %v992 = vadd.f32 %v990, %v991
        %v993 = vsel %vm744, %v944, 0.0
        %v994 = vadd.f32 %v992, %v993
        %v995 = vsel %vm744, %v945, 0.0
        %v996 = vadd.f32 %v994, %v995
        %v997 = vsel %vm744, %v946, 0.0
        %v998 = vadd.f32 %v996, %v997
        %v999 = vsel %vm744, %v947, 0.0
        %v1000 = vadd.f32 %v998, %v999
        %v1001 = vsel %vm744, %v948, 0.0
        %v1002 = vadd.f32 %v1000, %v1001
        %v1003 = vsel %vm744, %v949, 0.0
        %v1004 = vadd.f32 %v1002, %v1003
        %v1005 = vsel %vm744, %v950, 0.0
        %v1006 = vadd.f32 %v1004, %v1005
        %v1007 = vsel %vm744, %v951, 0.0
        %v1008 = vadd.f32 %v1006, %v1007
        %v1009 = vsel %vm744, %v952, 0.0
        %v1010 = vadd.f32 %v1008, %v1009
        %v1011 = vsel %vm744, %v953, 0.0
        %v1012 = vadd.f32 %v1010, %v1011
        %v1013 = vsel %vm744, %v954, 0.0
        %v1014 = vadd.f32 %v1012, %v1013
        %v1015 = vsel %vm744, %v955, 0.0
        %v1016 = vadd.f32 %v1014, %v1015
        %v1017 = vsel %vm744, %v956, 0.0
        %v1018 = vadd.f32 %v1016, %v1017
        %v1019 = vsel %vm744, %v957, 0.0
        %v1020 = vadd.f32 %v1018, %v1019
        %v1021 = vrot.slane %v1020, 4
        %v1022 = vadd.f32 %v1020, %v1021
        %v1023 = vrot.slane %v1022, 2
        %v1024 = vadd.f32 %v1022, %v1023
        %v1025 = vrot.slane %v1024, 1
        %v1026 = vadd.f32 %v1024, %v1025
        %v1027 = vadd.f32 %v925, %v1026
        %1028 = vst.msk [vmem:[%s288] sm:$0x1] %vm923, %v1027
      $region40: #{move_analyser_forward.10} parent=27 // pred_fallthru
        _
      %s1029 = smul.u32 32, %s22
      %p1030 = scmp.lt.s32.totalorder %s1029, 63
      %s1031 = scalar_select %p1030, %s1029, 63
      %p1032 = scmp.lt.s32.totalorder %s21, 0
      %s1033 = scalar_select %p1032, %s21, 0
      %s1034 = sadd.s32 %s1033, %s1031
      %s1035 = smul.addr %s1034, 8
      %s1036 = scalar_lea.vmem %s2, %s1035
      %p1037 = scmp.lt.s32.totalorder %s21, 0
      %s1038 = scalar_select %p1037, %s21, 0
      %s1039 = scalar_lea.vmem %s3, %s1038
      %p1040 = scmp.lt.s32.totalorder %s21, 0
      %s1041 = scalar_select %p1040, %s21, 0
      %s1042 = scalar_lea.vmem %s4, %s1041
      // Predicated region
      $region41: #{move_analyser_forward.10} parent=27 // pred_check
        %p1043 = pneg %p111
      $region42: #{move_analyser_forward.10} parent=27 // pred_check_branch
        %1045 = sbr.rel (%p1043) target = $region44
      $region43: #{move_analyser_forward.10} parent=27 // pred_region
        %s1046 = smul.u32 32, %s22
      $region44: #{move_analyser_forward.10} parent=27 // pred_fallthru
        _
      // Predicated region
      $region45: #{move_analyser_forward.10} parent=27 // pred_check
        %p1047 = pneg %p137
      $region46: #{move_analyser_forward.10} parent=27 // pred_check_branch
        %1049 = sbr.rel (%p1047) target = $region48
      $region47: #{move_analyser_forward.10} parent=27 // pred_region
        _
      $region48: #{move_analyser_forward.10} parent=27 // pred_fallthru
        _
      // Predicated region
      $region49: #{move_analyser_forward.10} parent=27 // pred_check
        %p1050 = pneg %p163
      $region50: #{move_analyser_forward.10} parent=27 // pred_check_branch
        %1052 = sbr.rel (%p1050) target = $region52
      $region51: #{move_analyser_forward.10} parent=27 // pred_region
        _
      $region52: #{move_analyser_forward.10} parent=27 // pred_fallthru
        _
      // Predicated region
      $region53: #{move_analyser_forward.10} parent=27 // pred_check
        %p1053 = pneg %p137
      $region54: #{move_analyser_forward.10} parent=27 // pred_check_branch
        %1055 = sbr.rel (%p1053) target = $region56
      $region55: #{move_analyser_forward.10} parent=27 // pred_region
        %p1056 = scmp.lt.s32.totalorder %s21, 0
        %s1057 = scalar_select %p1056, %s21, 0
        %s1058 = scalar_lea.vmem %s3, %s1057
      $region56: #{move_analyser_forward.10} parent=27 // pred_fallthru
        _
      // Predicated region
      $region57: #{move_analyser_forward.10} parent=27 // pred_check
        %p1059 = pneg %p163
      $region58: #{move_analyser_forward.10} parent=27 // pred_check_branch
        %1061 = sbr.rel (%p1059) target = $region60
      $region59: #{move_analyser_forward.10} parent=27 // pred_region
        %p1062 = scmp.lt.s32.totalorder %s21, 0
        %s1063 = scalar_select %p1062, %s21, 0
        %s1064 = scalar_lea.vmem %s4, %s1063
      $region60: #{move_analyser_forward.10} parent=27 // pred_fallthru
        _
    $region28: #{move_analyser_forward.10} parent=5 // pred_fallthru
      _
    %p1065 = scmp.le.s32.totalorder 2, %s11
    // Predicated region
    $region61: #{move_analyser_forward.10} parent=5 // pred_check
      %p1066 = pneg %p1065
    $region62: #{move_analyser_forward.10} parent=5 // pred_check_branch
      %1068 = sbr.rel (%p1066) target = $region64
    $region63: #{move_analyser_forward.10} parent=5 // pred_region
      %s1069 = ssub.s32 %s11, 2
      // Predicated region
      $region65: #{move_analyser_forward.10} parent=63 // pred_check
        %p1070 = pneg %p117
      $region66: #{move_analyser_forward.10} parent=63 // pred_check_branch
        %1072 = sbr.rel (%p1070) target = $region68
      $region67: #{move_analyser_forward.10} parent=63 // pred_region
        %s1073 = smul.u32 32, %s25
        %p1074 = scmp.lt.s32.totalorder %s1073, 63
        %s1075 = scalar_select %p1074, %s1073, 63
        %p1076 = scmp.lt.s32.totalorder %s24, 0
        %s1077 = scalar_select %p1076, %s24, 0
        %s1078 = sadd.s32 %s1077, %s1075
        %s1079 = smul.addr %s1078, 8
        %s1080 = scalar_lea.vmem %s2, %s1079
      $region68: #{move_analyser_forward.10} parent=63 // pred_fallthru
        _
    $region64: #{move_analyser_forward.10} parent=5 // pred_fallthru
      _
  $region6: #{move_analyser_forward.10} parent=0 // loop_footer
    %s15 = sadd.s32 1, %s11
  $region7: #{move_analyser_forward.10} parent=0 // loop_footer_branch
    %10 = sbr.rel target = $region3
  $region8: #{move_analyser_forward.10} parent=0 // loop_exit
    _

</llo_original>
